<compile_context>
chip_gen: v7x
topology: tpu7x:2x2x1
jax: 0.10.0
libtpu: 0.0.40
codegen_flags: <defaults>
</compile_context>

<pallas_src>
import functools

import jax
import jax.numpy as jnp
from jax.experimental import pallas as pl
from jax.experimental.pallas import tpu as pltpu


def _round_up(x, m):
    return ((x + m - 1) // m) * m


def _vmem_limit_bytes():
    # 3/4 of physical VMEM: ~96 MiB on v5e/v6e, 48 MiB on v7x (64 MiB per core).
    try:
        info = pltpu.get_tpu_info()
        cap = int(getattr(info, "vmem_capacity_bytes", 64 * 1024 * 1024))
    except Exception:  # pragma: no cover - conservative fallback
        cap = 64 * 1024 * 1024
    return int(min(cap * 3 // 4, 112 * 1024 * 1024))


# -----------------------------------------------------------------------------
# Kernel 1: (optional per-channel input affine) -> same-padded conv -> bias ->
#           ReLU, plus per-tile BatchNorm partial statistics (sum, sum of squares).
# One grid step == one batch item.
# -----------------------------------------------------------------------------
def conv_bias_relu_stats_kernel(x_ref, w_ref, b_ref, sc_ref, sh_ref,
                                y_ref, sum_ref, sq_ref,
                                xp_ref,
                                *, H, W, K, Cin, Cs, pad):
    # x_ref:   (1, H, W, Cx)   only the first Cin lanes are real channels
    # w_ref:   (K*K, Cin, Cp)  weights, output channels zero-padded to Cp (mult of 128)
    # b_ref:   (1, Cp)         bias (zero-padded)
    # sc_ref, sh_ref: (1, Cin) per-channel affine fused from the previous BatchNorm
    # y_ref:   (1, H*W, Cs)    conv+bias+ReLU output (pre-BN), Cs = stored channels
    # sum_ref, sq_ref: (1, 1, Cs) per-tile partial BN statistics
    # xp_ref:  VMEM (H+K-1, W+K-1, Cin) padded-input scratch
    Hp = H + K - 1
    Wp = W + K - 1

    x = x_ref[0][:, :, :Cin].astype(jnp.float32)          # (H, W, Cin)
    scale = sc_ref[...].reshape(1, 1, Cin)
    shift = sh_ref[...].reshape(1, 1, Cin)
    x = x * scale + shift                                  # fused previous-stage BN

    # 'same' zero padding: zero ONLY the border strips (interior fully overwritten).
    # Done every step so it remains correct with the batch axis sharded across cores.
    if pad > 0:
        xp_ref[0:pad, :, :] = jnp.zeros((pad, Wp, Cin), jnp.float32)
        xp_ref[pad + H:Hp, :, :] = jnp.zeros((Hp - H - pad, Wp, Cin), jnp.float32)
        xp_ref[pad:pad + H, 0:pad, :] = jnp.zeros((H, pad, Cin), jnp.float32)
        xp_ref[pad:pad + H, pad + W:Wp, :] = jnp.zeros((H, Wp - W - pad, Cin),
                                                       jnp.float32)
    xp_ref[pad:pad + H, pad:pad + W, :] = x

    # K*K tap matmuls, each (H*W, Cin) x (Cin, Cp), accumulated in vregs and written
    # once - no per-tap VMEM accumulator read-modify-write.
    # TODO(synk): replace with a single im2col matmul (H*W, K*K*Cin) x (K*K*Cin, Cp).
    acc = None
    for kh in range(K):
        for kw in range(K):
            tap = xp_ref[kh:kh + H, kw:kw + W, :]          # (H, W, Cin)
            d = jnp.dot(tap.reshape(H * W, Cin), w_ref[kh * K + kw],
                        preferred_element_type=jnp.float32)
            acc = d if acc is None else acc + d

    y = jnp.maximum(acc + b_ref[...], 0.0)                 # bias + ReLU, (H*W, Cp)
    ys = y[:, :Cs]                                         # drop zero-padded lanes

    # Partial BatchNorm statistics of the post-ReLU activation (cross-batch reduction
    # happens in the wrapper -> two-pass BN).
    sum_ref[0] = jnp.sum(ys, axis=0, keepdims=True)
    sq_ref[0] = jnp.sum(ys * ys, axis=0, keepdims=True)

    y_ref[0] = ys.astype(y_ref.dtype)


def _conv_bias_relu_stats(x, w, b, in_scale, in_shift):
    """x: (N, H, W, Cx) NHWC (only the first w.shape[2] lanes are real channels).
    w: (K, K, Cin, Cout) HWIO. Returns (y, sum, sumsq) with y: (N, H*W, Cs)."""
    N, H, W, Cx = x.shape
    K, _, Cin, Cout = w.shape
    assert Cx >= Cin
    # TODO(synk): PyTorch 'same' padding is asymmetric for even K; odd K assumed.
    pad = (K - 1) // 2
    Cp = _round_up(Cout, 128)          # lane-dense MXU output width
    Cs = Cout if Cout < 128 else Cp    # stored channels: avoid padded HBM handoff
    HW = H * W
    Hp, Wp = H + K - 1, W + K - 1

    w3 = jnp.pad(w.astype(jnp.float32).reshape(K * K, Cin, Cout),
                 ((0, 0), (0, 0), (0, Cp - Cout)))
    b2 = jnp.pad(b.astype(jnp.float32).reshape(1, Cout), ((0, 0), (0, Cp - Cout)))

    kern = functools.partial(conv_bias_relu_stats_kernel,
                             H=H, W=W, K=K, Cin=Cin, Cs=Cs, pad=pad)
    return pl.pallas_call(
        kern,
        grid=(N,),
        out_shape=(
            jax.ShapeDtypeStruct((N, HW, Cs), x.dtype),
            jax.ShapeDtypeStruct((N, 1, Cs), jnp.float32),
            jax.ShapeDtypeStruct((N, 1, Cs), jnp.float32),
        ),
        in_specs=[
            pl.BlockSpec((1, H, W, Cx), lambda n: (n, 0, 0, 0)),
            pl.BlockSpec((K * K, Cin, Cp), lambda n: (0, 0, 0)),
            pl.BlockSpec((1, Cp), lambda n: (0, 0)),
            pl.BlockSpec((1, Cin), lambda n: (0, 0)),
            pl.BlockSpec((1, Cin), lambda n: (0, 0)),
        ],
        out_specs=(
            pl.BlockSpec((1, HW, Cs), lambda n: (n, 0, 0)),
            pl.BlockSpec((1, 1, Cs), lambda n: (n, 0, 0)),
            pl.BlockSpec((1, 1, Cs), lambda n: (n, 0, 0)),
        ),
        scratch_shapes=[
            pltpu.VMEM((Hp, Wp, Cin), jnp.float32),   # padded-input scratch
        ],
        compiler_params=pltpu.CompilerParams(
            dimension_semantics=("parallel",),        # shard batch across TCs (v7x)
            vmem_limit_bytes=_vmem_limit_bytes(),
        ),
    )(x, w3, b2,
      in_scale.astype(jnp.float32).reshape(1, Cin),
      in_shift.astype(jnp.float32).reshape(1, Cin))


# -----------------------------------------------------------------------------
# Kernel 2: final BatchNorm affine + channel un-padding + NHWC -> NCHW transpose,
# fused into one pass (emits (N, Cout, H*W); trailing reshape to NCHW is free).
# -----------------------------------------------------------------------------
def bn_apply_nchw_kernel(y_ref, sc_ref, sh_ref, o_ref, *, Cout):
    y = y_ref[0].astype(jnp.float32)                  # (HW, Cs)
    y = y * sc_ref[0] + sh_ref[0]                     # per-channel affine
    o_ref[0] = jnp.transpose(y[:, :Cout]).astype(o_ref.dtype)   # (Cout, HW)


def _bn_apply_nchw(y, scale, shift, H, W):
    """y: (N, H*W, Cs); scale/shift: (Cout,) -> (N, Cout, H, W) (NCHW)."""
    N, HW, Cs = y.shape
    Cout = scale.shape[0]
    sc = jnp.pad(scale.astype(jnp.float32), (0, Cs - Cout)).reshape(1, 1, Cs)
    sh = jnp.pad(shift.astype(jnp.float32), (0, Cs - Cout)).reshape(1, 1, Cs)
    out = pl.pallas_call(
        functools.partial(bn_apply_nchw_kernel, Cout=Cout),
        grid=(N,),
        out_shape=jax.ShapeDtypeStruct((N, Cout, HW), y.dtype),
        in_specs=[
            pl.BlockSpec((1, HW, Cs), lambda n: (n, 0, 0)),
            pl.BlockSpec((1, 1, Cs), lambda n: (0, 0, 0)),
            pl.BlockSpec((1, 1, Cs), lambda n: (0, 0, 0)),
        ],
        out_specs=pl.BlockSpec((1, Cout, HW), lambda n: (n, 0, 0)),
        compiler_params=pltpu.CompilerParams(
            dimension_semantics=("parallel",),
            vmem_limit_bytes=_vmem_limit_bytes(),
        ),
    )(y, sc, sh)
    return out.reshape(N, Cout, H, W)                 # free contiguous reshape


def _bn_affine(part_sum, part_sq, gamma, beta, count, eps):
    """Reduce per-tile partial stats and fold BN into a per-channel affine."""
    Cout = gamma.shape[0]
    s = jnp.sum(part_sum, axis=(0, 1))[:Cout]
    q = jnp.sum(part_sq, axis=(0, 1))[:Cout]
    mean = s / count
    var = jnp.maximum(q / count - mean * mean, 0.0)   # biased variance (training BN)
    inv = jax.lax.rsqrt(var + eps)
    scale = gamma * inv
    shift = beta - mean * scale
    return scale, shift


# -----------------------------------------------------------------------------
# Full ConvBlock forward (PyTorch NCHW convention at the boundary).
# -----------------------------------------------------------------------------
def conv_block_forward(x_nchw, params, eps=1e-5):
    N, Cin, H, W = x_nchw.shape

    # TODO(synk): fold this NCHW->NHWC transpose into stage 1's kernel; the input is
    # the smallest tensor in the block so it is the cheapest remaining XLA pass.
    x = jnp.transpose(x_nchw, (0, 2, 3, 1))                      # NCHW -> NHWC

    # Stage 1: conv + bias + ReLU (+ partial BN stats). BN1 is deferred and fused
    # into stage 2's input load.
    one = jnp.ones((Cin,), jnp.float32)
    zero = jnp.zeros((Cin,), jnp.float32)
    y1, s1, q1 = _conv_bias_relu_stats(x, params["w1"], params["b1"], one, zero)
    scale1, shift1 = _bn_affine(s1, q1, params["g1"], params["be1"],
                                count=N * H * W, eps=eps)

    # Stage 2: fused BN1 affine on input, then conv + bias + ReLU (+ partial stats).
    x2 = y1.reshape(N, H, W, -1)                                 # free reshape
    y2, s2, q2 = _conv_bias_relu_stats(x2, params["w2"], params["b2"],
                                       scale1, shift1)
    scale2, shift2 = _bn_affine(s2, q2, params["g2"], params["be2"],
                                count=N * H * W, eps=eps)

    # BN2 + channel slice + NHWC->NCHW fused into one kernel.
    return _bn_apply_nchw(y2, scale2, shift2, H, W)              # (N, Cout, H, W)


# ---- pure-JAX reference (correctness check) ---------------------------------
def _ref_stage(x, w, b, gamma, beta, eps=1e-5):
    y = jax.lax.conv_general_dilated(x, w, (1, 1), "SAME",
                                     dimension_numbers=("NHWC", "HWIO", "NHWC"))
    y = jnp.maximum(y + b.reshape(1, 1, 1, -1), 0.0)
    mean = jnp.mean(y, axis=(0, 1, 2), keepdims=True)
    var = jnp.mean(jnp.square(y - mean), axis=(0, 1, 2), keepdims=True)
    y = (y - mean) * jax.lax.rsqrt(var + eps)
    return y * gamma.reshape(1, 1, 1, -1) + beta.reshape(1, 1, 1, -1)


def _ref_forward(x_nchw, p):
    x = jnp.transpose(x_nchw, (0, 2, 3, 1))
    x = _ref_stage(x, p["w1"], p["b1"], p["g1"], p["be1"])
    x = _ref_stage(x, p["w2"], p["b2"], p["g2"], p["be2"])
    return jnp.transpose(x, (0, 3, 1, 2))


if __name__ == "__main__":
    N, Cin, Cout, H, W, K = 2, 4, 8, 16, 16, 3

    key = jax.random.PRNGKey(0)
    ks = jax.random.split(key, 9)
    params = {
        "w1": 0.1 * jax.random.normal(ks[0], (K, K, Cin, Cout), jnp.float32),
        "b1": 0.1 * jax.random.normal(ks[1], (Cout,), jnp.float32),
        "g1": 1.0 + 0.1 * jax.random.normal(ks[2], (Cout,), jnp.float32),
        "be1": 0.1 * jax.random.normal(ks[3], (Cout,), jnp.float32),
        "w2": 0.1 * jax.random.normal(ks[4], (K, K, Cout, Cout), jnp.float32),
        "b2": 0.1 * jax.random.normal(ks[5], (Cout,), jnp.float32),
        "g2": 1.0 + 0.1 * jax.random.normal(ks[6], (Cout,), jnp.float32),
        "be2": 0.1 * jax.random.normal(ks[7], (Cout,), jnp.float32),
    }
    x = jax.random.normal(ks[8], (N, Cin, H, W), jnp.float32)    # PyTorch NCHW input

    out = jax.block_until_ready(jax.jit(conv_block_forward)(x, params))
    ref = jax.block_until_ready(_ref_forward(x, params))

    assert out.shape == (N, Cout, H, W)
    assert jnp.allclose(out, ref, atol=1e-4, rtol=1e-4), "mismatch vs JAX reference"
    print("KERNEL_OK")
</pallas_src>

<mosaic_0001>
module attributes {stable_mosaic.version = 11 : i64} {
  func.func @conv_bias_relu_stats_kernel(%arg0: i32, %arg1: memref<1x16x16x4xf32, #tpu.memory_space<vmem>>, %arg2: memref<9x4x128xf32, #tpu.memory_space<vmem>>, %arg3: memref<1x128xf32, #tpu.memory_space<vmem>>, %arg4: memref<1x4xf32, #tpu.memory_space<vmem>>, %arg5: memref<1x4xf32, #tpu.memory_space<vmem>>, %arg6: memref<1x256x8xf32, #tpu.memory_space<vmem>>, %arg7: memref<1x1x8xf32, #tpu.memory_space<vmem>>, %arg8: memref<1x1x8xf32, #tpu.memory_space<vmem>>, %arg9: memref<18x18x4xf32, #tpu.memory_space<vmem>>) attributes {dimension_semantics = [#tpu.dimension_semantics<parallel>], iteration_bounds = array<i64: 2>, scalar_prefetch = 0 : i64, scratch_operands = 1 : i64, tpu.core_type = #tpu.core_type<tc>, window_params = [{transform_indices = @transform_0, window_bounds = array<i64: 1, 16, 16, 4>}, {pipeline_mode = #tpu.pipeline_mode<synchronous>, transform_indices = @transform_1, window_bounds = array<i64: 9, 4, 128>}, {pipeline_mode = #tpu.pipeline_mode<synchronous>, transform_indices = @transform_2, window_bounds = array<i64: 1, 128>}, {pipeline_mode = #tpu.pipeline_mode<synchronous>, transform_indices = @transform_3, window_bounds = array<i64: 1, 4>}, {pipeline_mode = #tpu.pipeline_mode<synchronous>, transform_indices = @transform_4, window_bounds = array<i64: 1, 4>}, {transform_indices = @transform_5, window_bounds = array<i64: 1, 256, 8>}, {transform_indices = @transform_6, window_bounds = array<i64: 1, 1, 8>}, {transform_indices = @transform_7, window_bounds = array<i64: 1, 1, 8>}]} {
    %c0 = arith.constant 0 : index
    %c0_0 = arith.constant 0 : index
    %c0_1 = arith.constant 0 : index
    %c0_2 = arith.constant 0 : index
    %0 = vector.load %arg1[%c0, %c0_0, %c0_1, %c0_2] : memref<1x16x16x4xf32, #tpu.memory_space<vmem>>, vector<1x16x16x4xf32>
    %1 = vector.shape_cast %0 : vector<1x16x16x4xf32> to vector<16x16x4xf32>
    %c0_3 = arith.constant 0 : index
    %c0_4 = arith.constant 0 : index
    %2 = vector.load %arg4[%c0_3, %c0_4] : memref<1x4xf32, #tpu.memory_space<vmem>>, vector<1x4xf32>
    %3 = vector.shape_cast %2 : vector<1x4xf32> to vector<1x1x4xf32>
    %c0_5 = arith.constant 0 : index
    %c0_6 = arith.constant 0 : index
    %4 = vector.load %arg5[%c0_5, %c0_6] : memref<1x4xf32, #tpu.memory_space<vmem>>, vector<1x4xf32>
    %5 = vector.shape_cast %4 : vector<1x4xf32> to vector<1x1x4xf32>
    %6 = vector.broadcast %3 : vector<1x1x4xf32> to vector<16x16x4xf32>
    %7 = arith.mulf %1, %6 : vector<16x16x4xf32>
    %8 = vector.broadcast %5 : vector<1x1x4xf32> to vector<16x16x4xf32>
    %9 = arith.addf %7, %8 : vector<16x16x4xf32>
    %cst = arith.constant 0.000000e+00 : f32
    %10 = vector.broadcast %cst : f32 to vector<1x18x4xf32>
    %c0_7 = arith.constant 0 : index
    %c0_8 = arith.constant 0 : index
    %c0_9 = arith.constant 0 : index
    %11 = vector.load %arg9[%c0_7, %c0_8, %c0_9] : memref<18x18x4xf32, #tpu.memory_space<vmem>>, vector<1x18x4xf32>
    tpu.vector_store %arg9[%c0_7, %c0_8, %c0_9], %10 {strides = array<i32>} : memref<18x18x4xf32, #tpu.memory_space<vmem>>, vector<1x18x4xf32>,
    %cst_10 = arith.constant 0.000000e+00 : f32
    %12 = vector.broadcast %cst_10 : f32 to vector<1x18x4xf32>
    %c17 = arith.constant 17 : index
    %c0_11 = arith.constant 0 : index
    %c0_12 = arith.constant 0 : index
    %13 = vector.load %arg9[%c17, %c0_11, %c0_12] : memref<18x18x4xf32, #tpu.memory_space<vmem>>, vector<1x18x4xf32>
    tpu.vector_store %arg9[%c17, %c0_11, %c0_12], %12 {strides = array<i32>} : memref<18x18x4xf32, #tpu.memory_space<vmem>>, vector<1x18x4xf32>,
    %cst_13 = arith.constant 0.000000e+00 : f32
    %14 = vector.broadcast %cst_13 : f32 to vector<16x1x4xf32>
    %c1 = arith.constant 1 : index
    %c0_14 = arith.constant 0 : index
    %c0_15 = arith.constant 0 : index
    %15 = vector.load %arg9[%c1, %c0_14, %c0_15] : memref<18x18x4xf32, #tpu.memory_space<vmem>>, vector<16x1x4xf32>
    tpu.vector_store %arg9[%c1, %c0_14, %c0_15], %14 {strides = array<i32>} : memref<18x18x4xf32, #tpu.memory_space<vmem>>, vector<16x1x4xf32>,
    %cst_16 = arith.constant 0.000000e+00 : f32
    %16 = vector.broadcast %cst_16 : f32 to vector<16x1x4xf32>
    %c1_17 = arith.constant 1 : index
    %c17_18 = arith.constant 17 : index
    %c0_19 = arith.constant 0 : index
    %17 = vector.load %arg9[%c1_17, %c17_18, %c0_19] : memref<18x18x4xf32, #tpu.memory_space<vmem>>, vector<16x1x4xf32>
    tpu.vector_store %arg9[%c1_17, %c17_18, %c0_19], %16 {strides = array<i32>} : memref<18x18x4xf32, #tpu.memory_space<vmem>>, vector<16x1x4xf32>,
    %c1_20 = arith.constant 1 : index
    %c1_21 = arith.constant 1 : index
    %c0_22 = arith.constant 0 : index
    %18 = vector.load %arg9[%c1_20, %c1_21, %c0_22] : memref<18x18x4xf32, #tpu.memory_space<vmem>>, vector<16x16x4xf32>
    tpu.vector_store %arg9[%c1_20, %c1_21, %c0_22], %9 {strides = array<i32>} : memref<18x18x4xf32, #tpu.memory_space<vmem>>, vector<16x16x4xf32>,
    %c0_23 = arith.constant 0 : index
    %c0_24 = arith.constant 0 : index
    %c0_25 = arith.constant 0 : index
    %19 = vector.load %arg9[%c0_23, %c0_24, %c0_25] : memref<18x18x4xf32, #tpu.memory_space<vmem>>, vector<16x16x4xf32>
    %20 = vector.shape_cast %19 : vector<16x16x4xf32> to vector<256x4xf32>
    %c0_26 = arith.constant 0 : index
    %c0_27 = arith.constant 0 : index
    %c0_28 = arith.constant 0 : index
    %21 = vector.load %arg2[%c0_26, %c0_27, %c0_28] : memref<9x4x128xf32, #tpu.memory_space<vmem>>, vector<1x4x128xf32>
    %22 = vector.shape_cast %21 : vector<1x4x128xf32> to vector<4x128xf32>
    %cst_29 = arith.constant dense<0.000000e+00> : vector<256x128xf32>
    %23 = tpu.matmul %20, %22, %cst_29 {dimension_numbers = #tpu.dot_dimension_numbers<[1], [0], [0], [1], [0, 0, 1, 1], [], []>} : vector<256x4xf32>, vector<4x128xf32>, vector<256x128xf32> -> vector<256x128xf32>
    %c0_30 = arith.constant 0 : index
    %c1_31 = arith.constant 1 : index
    %c0_32 = arith.constant 0 : index
    %24 = vector.load %arg9[%c0_30, %c1_31, %c0_32] : memref<18x18x4xf32, #tpu.memory_space<vmem>>, vector<16x16x4xf32>
    %25 = vector.shape_cast %24 : vector<16x16x4xf32> to vector<256x4xf32>
    %c1_33 = arith.constant 1 : index
    %c0_34 = arith.constant 0 : index
    %c0_35 = arith.constant 0 : index
    %26 = vector.load %arg2[%c1_33, %c0_34, %c0_35] : memref<9x4x128xf32, #tpu.memory_space<vmem>>, vector<1x4x128xf32>
    %27 = vector.shape_cast %26 : vector<1x4x128xf32> to vector<4x128xf32>
    %cst_36 = arith.constant dense<0.000000e+00> : vector<256x128xf32>
    %28 = tpu.matmul %25, %27, %cst_36 {dimension_numbers = #tpu.dot_dimension_numbers<[1], [0], [0], [1], [0, 0, 1, 1], [], []>} : vector<256x4xf32>, vector<4x128xf32>, vector<256x128xf32> -> vector<256x128xf32>
    %29 = arith.addf %23, %28 : vector<256x128xf32>
    %c0_37 = arith.constant 0 : index
    %c2 = arith.constant 2 : index
    %c0_38 = arith.constant 0 : index
    %30 = vector.load %arg9[%c0_37, %c2, %c0_38] : memref<18x18x4xf32, #tpu.memory_space<vmem>>, vector<16x16x4xf32>
    %31 = vector.shape_cast %30 : vector<16x16x4xf32> to vector<256x4xf32>
    %c2_39 = arith.constant 2 : index
    %c0_40 = arith.constant 0 : index
    %c0_41 = arith.constant 0 : index
    %32 = vector.load %arg2[%c2_39, %c0_40, %c0_41] : memref<9x4x128xf32, #tpu.memory_space<vmem>>, vector<1x4x128xf32>
    %33 = vector.shape_cast %32 : vector<1x4x128xf32> to vector<4x128xf32>
    %cst_42 = arith.constant dense<0.000000e+00> : vector<256x128xf32>
    %34 = tpu.matmul %31, %33, %cst_42 {dimension_numbers = #tpu.dot_dimension_numbers<[1], [0], [0], [1], [0, 0, 1, 1], [], []>} : vector<256x4xf32>, vector<4x128xf32>, vector<256x128xf32> -> vector<256x128xf32>
    %35 = arith.addf %29, %34 : vector<256x128xf32>
    %c1_43 = arith.constant 1 : index
    %c0_44 = arith.constant 0 : index
    %c0_45 = arith.constant 0 : index
    %36 = vector.load %arg9[%c1_43, %c0_44, %c0_45] : memref<18x18x4xf32, #tpu.memory_space<vmem>>, vector<16x16x4xf32>
    %37 = vector.shape_cast %36 : vector<16x16x4xf32> to vector<256x4xf32>
    %c3 = arith.constant 3 : index
    %c0_46 = arith.constant 0 : index
    %c0_47 = arith.constant 0 : index
    %38 = vector.load %arg2[%c3, %c0_46, %c0_47] : memref<9x4x128xf32, #tpu.memory_space<vmem>>, vector<1x4x128xf32>
    %39 = vector.shape_cast %38 : vector<1x4x128xf32> to vector<4x128xf32>
    %cst_48 = arith.constant dense<0.000000e+00> : vector<256x128xf32>
    %40 = tpu.matmul %37, %39, %cst_48 {dimension_numbers = #tpu.dot_dimension_numbers<[1], [0], [0], [1], [0, 0, 1, 1], [], []>} : vector<256x4xf32>, vector<4x128xf32>, vector<256x128xf32> -> vector<256x128xf32>
    %41 = arith.addf %35, %40 : vector<256x128xf32>
    %c1_49 = arith.constant 1 : index
    %c1_50 = arith.constant 1 : index
    %c0_51 = arith.constant 0 : index
    %42 = vector.load %arg9[%c1_49, %c1_50, %c0_51] : memref<18x18x4xf32, #tpu.memory_space<vmem>>, vector<16x16x4xf32>
    %43 = vector.shape_cast %42 : vector<16x16x4xf32> to vector<256x4xf32>
    %c4 = arith.constant 4 : index
    %c0_52 = arith.constant 0 : index
    %c0_53 = arith.constant 0 : index
    %44 = vector.load %arg2[%c4, %c0_52, %c0_53] : memref<9x4x128xf32, #tpu.memory_space<vmem>>, vector<1x4x128xf32>
    %45 = vector.shape_cast %44 : vector<1x4x128xf32> to vector<4x128xf32>
    %cst_54 = arith.constant dense<0.000000e+00> : vector<256x128xf32>
    %46 = tpu.matmul %43, %45, %cst_54 {dimension_numbers = #tpu.dot_dimension_numbers<[1], [0], [0], [1], [0, 0, 1, 1], [], []>} : vector<256x4xf32>, vector<4x128xf32>, vector<256x128xf32> -> vector<256x128xf32>
    %47 = arith.addf %41, %46 : vector<256x128xf32>
    %c1_55 = arith.constant 1 : index
    %c2_56 = arith.constant 2 : index
    %c0_57 = arith.constant 0 : index
    %48 = vector.load %arg9[%c1_55, %c2_56, %c0_57] : memref<18x18x4xf32, #tpu.memory_space<vmem>>, vector<16x16x4xf32>
    %49 = vector.shape_cast %48 : vector<16x16x4xf32> to vector<256x4xf32>
    %c5 = arith.constant 5 : index
    %c0_58 = arith.constant 0 : index
    %c0_59 = arith.constant 0 : index
    %50 = vector.load %arg2[%c5, %c0_58, %c0_59] : memref<9x4x128xf32, #tpu.memory_space<vmem>>, vector<1x4x128xf32>
    %51 = vector.shape_cast %50 : vector<1x4x128xf32> to vector<4x128xf32>
    %cst_60 = arith.constant dense<0.000000e+00> : vector<256x128xf32>
    %52 = tpu.matmul %49, %51, %cst_60 {dimension_numbers = #tpu.dot_dimension_numbers<[1], [0], [0], [1], [0, 0, 1, 1], [], []>} : vector<256x4xf32>, vector<4x128xf32>, vector<256x128xf32> -> vector<256x128xf32>
    %53 = arith.addf %47, %52 : vector<256x128xf32>
    %c2_61 = arith.constant 2 : index
    %c0_62 = arith.constant 0 : index
    %c0_63 = arith.constant 0 : index
    %54 = vector.load %arg9[%c2_61, %c0_62, %c0_63] : memref<18x18x4xf32, #tpu.memory_space<vmem>>, vector<16x16x4xf32>
    %55 = vector.shape_cast %54 : vector<16x16x4xf32> to vector<256x4xf32>
    %c6 = arith.constant 6 : index
    %c0_64 = arith.constant 0 : index
    %c0_65 = arith.constant 0 : index
    %56 = vector.load %arg2[%c6, %c0_64, %c0_65] : memref<9x4x128xf32, #tpu.memory_space<vmem>>, vector<1x4x128xf32>
    %57 = vector.shape_cast %56 : vector<1x4x128xf32> to vector<4x128xf32>
    %cst_66 = arith.constant dense<0.000000e+00> : vector<256x128xf32>
    %58 = tpu.matmul %55, %57, %cst_66 {dimension_numbers = #tpu.dot_dimension_numbers<[1], [0], [0], [1], [0, 0, 1, 1], [], []>} : vector<256x4xf32>, vector<4x128xf32>, vector<256x128xf32> -> vector<256x128xf32>
    %59 = arith.addf %53, %58 : vector<256x128xf32>
    %c2_67 = arith.constant 2 : index
    %c1_68 = arith.constant 1 : index
    %c0_69 = arith.constant 0 : index
    %60 = vector.load %arg9[%c2_67, %c1_68, %c0_69] : memref<18x18x4xf32, #tpu.memory_space<vmem>>, vector<16x16x4xf32>
    %61 = vector.shape_cast %60 : vector<16x16x4xf32> to vector<256x4xf32>
    %c7 = arith.constant 7 : index
    %c0_70 = arith.constant 0 : index
    %c0_71 = arith.constant 0 : index
    %62 = vector.load %arg2[%c7, %c0_70, %c0_71] : memref<9x4x128xf32, #tpu.memory_space<vmem>>, vector<1x4x128xf32>
    %63 = vector.shape_cast %62 : vector<1x4x128xf32> to vector<4x128xf32>
    %cst_72 = arith.constant dense<0.000000e+00> : vector<256x128xf32>
    %64 = tpu.matmul %61, %63, %cst_72 {dimension_numbers = #tpu.dot_dimension_numbers<[1], [0], [0], [1], [0, 0, 1, 1], [], []>} : vector<256x4xf32>, vector<4x128xf32>, vector<256x128xf32> -> vector<256x128xf32>
    %65 = arith.addf %59, %64 : vector<256x128xf32>
    %c2_73 = arith.constant 2 : index
    %c2_74 = arith.constant 2 : index
    %c0_75 = arith.constant 0 : index
    %66 = vector.load %arg9[%c2_73, %c2_74, %c0_75] : memref<18x18x4xf32, #tpu.memory_space<vmem>>, vector<16x16x4xf32>
    %67 = vector.shape_cast %66 : vector<16x16x4xf32> to vector<256x4xf32>
    %c8 = arith.constant 8 : index
    %c0_76 = arith.constant 0 : index
    %c0_77 = arith.constant 0 : index
    %68 = vector.load %arg2[%c8, %c0_76, %c0_77] : memref<9x4x128xf32, #tpu.memory_space<vmem>>, vector<1x4x128xf32>
    %69 = vector.shape_cast %68 : vector<1x4x128xf32> to vector<4x128xf32>
    %cst_78 = arith.constant dense<0.000000e+00> : vector<256x128xf32>
    %70 = tpu.matmul %67, %69, %cst_78 {dimension_numbers = #tpu.dot_dimension_numbers<[1], [0], [0], [1], [0, 0, 1, 1], [], []>} : vector<256x4xf32>, vector<4x128xf32>, vector<256x128xf32> -> vector<256x128xf32>
    %71 = arith.addf %65, %70 : vector<256x128xf32>
    %c0_79 = arith.constant 0 : index
    %c0_80 = arith.constant 0 : index
    %72 = vector.load %arg3[%c0_79, %c0_80] : memref<1x128xf32, #tpu.memory_space<vmem>>, vector<1x128xf32>
    %73 = vector.broadcast %72 : vector<1x128xf32> to vector<256x128xf32>
    %74 = arith.addf %71, %73 : vector<256x128xf32>
    %cst_81 = arith.constant 0.000000e+00 : f32
    %75 = vector.broadcast %cst_81 : f32 to vector<256x128xf32>
    %76 = arith.maximumf %74, %75 : vector<256x128xf32>
    %77 = vector.extract_strided_slice %76 {offsets = [0, 0], sizes = [256, 8], strides = [1, 1]} : vector<256x128xf32> to vector<256x8xf32>
    %cst_82 = arith.constant dense<0.000000e+00> : vector<8xf32>
    %78 = vector.multi_reduction <add>, %77, %cst_82 [0] : vector<256x8xf32> to vector<8xf32>
    %79 = vector.shape_cast %78 : vector<8xf32> to vector<1x8xf32>
    %c0_83 = arith.constant 0 : index
    %c0_84 = arith.constant 0 : index
    %c0_85 = arith.constant 0 : index
    %80 = vector.load %arg7[%c0_83, %c0_84, %c0_85] : memref<1x1x8xf32, #tpu.memory_space<vmem>>, vector<1x1x8xf32>
    %81 = vector.shape_cast %80 : vector<1x1x8xf32> to vector<1x8xf32>
    %82 = vector.shape_cast %79 : vector<1x8xf32> to vector<1x1x8xf32>
    tpu.vector_store %arg7[%c0_83, %c0_84, %c0_85], %82 {strides = array<i32>} : memref<1x1x8xf32, #tpu.memory_space<vmem>>, vector<1x1x8xf32>,
    %83 = arith.mulf %77, %77 : vector<256x8xf32>
    %cst_86 = arith.constant dense<0.000000e+00> : vector<8xf32>
    %84 = vector.multi_reduction <add>, %83, %cst_86 [0] : vector<256x8xf32> to vector<8xf32>
    %85 = vector.shape_cast %84 : vector<8xf32> to vector<1x8xf32>
    %c0_87 = arith.constant 0 : index
    %c0_88 = arith.constant 0 : index
    %c0_89 = arith.constant 0 : index
    %86 = vector.load %arg8[%c0_87, %c0_88, %c0_89] : memref<1x1x8xf32, #tpu.memory_space<vmem>>, vector<1x1x8xf32>
    %87 = vector.shape_cast %86 : vector<1x1x8xf32> to vector<1x8xf32>
    %88 = vector.shape_cast %85 : vector<1x8xf32> to vector<1x1x8xf32>
    tpu.vector_store %arg8[%c0_87, %c0_88, %c0_89], %88 {strides = array<i32>} : memref<1x1x8xf32, #tpu.memory_space<vmem>>, vector<1x1x8xf32>,
    %c0_90 = arith.constant 0 : index
    %c0_91 = arith.constant 0 : index
    %c0_92 = arith.constant 0 : index
    %89 = vector.load %arg6[%c0_90, %c0_91, %c0_92] : memref<1x256x8xf32, #tpu.memory_space<vmem>>, vector<1x256x8xf32>
    %90 = vector.shape_cast %89 : vector<1x256x8xf32> to vector<256x8xf32>
    %91 = vector.shape_cast %77 : vector<256x8xf32> to vector<1x256x8xf32>
    tpu.vector_store %arg6[%c0_90, %c0_91, %c0_92], %91 {strides = array<i32>} : memref<1x256x8xf32, #tpu.memory_space<vmem>>, vector<1x256x8xf32>,
    return
  }
  func.func @transform_0(%arg0: i32) -> (i32, i32, i32, i32) {
    %c0_i32 = arith.constant 0 : i32
    %c0_i32_0 = arith.constant 0 : i32
    %c0_i32_1 = arith.constant 0 : i32
    %c0_i32_2 = arith.constant 0 : i32
    return %arg0, %c0_i32, %c0_i32_0, %c0_i32_1 : i32, i32, i32, i32
  }
  func.func @transform_1(%arg0: i32) -> (i32, i32, i32) {
    %c0_i32 = arith.constant 0 : i32
    %c0_i32_0 = arith.constant 0 : i32
    %c0_i32_1 = arith.constant 0 : i32
    %c0_i32_2 = arith.constant 0 : i32
    return %c0_i32, %c0_i32_0, %c0_i32_1 : i32, i32, i32
  }
  func.func @transform_2(%arg0: i32) -> (i32, i32) {
    %c0_i32 = arith.constant 0 : i32
    %c0_i32_0 = arith.constant 0 : i32
    %c0_i32_1 = arith.constant 0 : i32
    return %c0_i32, %c0_i32_0 : i32, i32
  }
  func.func @transform_3(%arg0: i32) -> (i32, i32) {
    %c0_i32 = arith.constant 0 : i32
    %c0_i32_0 = arith.constant 0 : i32
    %c0_i32_1 = arith.constant 0 : i32
    return %c0_i32, %c0_i32_0 : i32, i32
  }
  func.func @transform_4(%arg0: i32) -> (i32, i32) {
    %c0_i32 = arith.constant 0 : i32
    %c0_i32_0 = arith.constant 0 : i32
    %c0_i32_1 = arith.constant 0 : i32
    return %c0_i32, %c0_i32_0 : i32, i32
  }
  func.func @transform_5(%arg0: i32) -> (i32, i32, i32) {
    %c0_i32 = arith.constant 0 : i32
    %c0_i32_0 = arith.constant 0 : i32
    %c0_i32_1 = arith.constant 0 : i32
    return %arg0, %c0_i32, %c0_i32_0 : i32, i32, i32
  }
  func.func @transform_6(%arg0: i32) -> (i32, i32, i32) {
    %c0_i32 = arith.constant 0 : i32
    %c0_i32_0 = arith.constant 0 : i32
    %c0_i32_1 = arith.constant 0 : i32
    return %arg0, %c0_i32, %c0_i32_0 : i32, i32, i32
  }
  func.func @transform_7(%arg0: i32) -> (i32, i32, i32) {
    %c0_i32 = arith.constant 0 : i32
    %c0_i32_0 = arith.constant 0 : i32
    %c0_i32_1 = arith.constant 0 : i32
    return %arg0, %c0_i32, %c0_i32_0 : i32, i32, i32
  }
}

module attributes {stable_mosaic.version = 11 : i64} {
  func.func @conv_bias_relu_stats_kernel(%arg0: i32, %arg1: memref<1x16x16x8xf32, #tpu.memory_space<vmem>>, %arg2: memref<9x8x128xf32, #tpu.memory_space<vmem>>, %arg3: memref<1x128xf32, #tpu.memory_space<vmem>>, %arg4: memref<1x8xf32, #tpu.memory_space<vmem>>, %arg5: memref<1x8xf32, #tpu.memory_space<vmem>>, %arg6: memref<1x256x8xf32, #tpu.memory_space<vmem>>, %arg7: memref<1x1x8xf32, #tpu.memory_space<vmem>>, %arg8: memref<1x1x8xf32, #tpu.memory_space<vmem>>, %arg9: memref<18x18x8xf32, #tpu.memory_space<vmem>>) attributes {dimension_semantics = [#tpu.dimension_semantics<parallel>], iteration_bounds = array<i64: 2>, scalar_prefetch = 0 : i64, scratch_operands = 1 : i64, tpu.core_type = #tpu.core_type<tc>, window_params = [{transform_indices = @transform_0, window_bounds = array<i64: 1, 16, 16, 8>}, {pipeline_mode = #tpu.pipeline_mode<synchronous>, transform_indices = @transform_1, window_bounds = array<i64: 9, 8, 128>}, {pipeline_mode = #tpu.pipeline_mode<synchronous>, transform_indices = @transform_2, window_bounds = array<i64: 1, 128>}, {pipeline_mode = #tpu.pipeline_mode<synchronous>, transform_indices = @transform_3, window_bounds = array<i64: 1, 8>}, {pipeline_mode = #tpu.pipeline_mode<synchronous>, transform_indices = @transform_4, window_bounds = array<i64: 1, 8>}, {transform_indices = @transform_5, window_bounds = array<i64: 1, 256, 8>}, {transform_indices = @transform_6, window_bounds = array<i64: 1, 1, 8>}, {transform_indices = @transform_7, window_bounds = array<i64: 1, 1, 8>}]} {
    %c0 = arith.constant 0 : index
    %c0_0 = arith.constant 0 : index
    %c0_1 = arith.constant 0 : index
    %c0_2 = arith.constant 0 : index
    %0 = vector.load %arg1[%c0, %c0_0, %c0_1, %c0_2] : memref<1x16x16x8xf32, #tpu.memory_space<vmem>>, vector<1x16x16x8xf32>
    %1 = vector.shape_cast %0 : vector<1x16x16x8xf32> to vector<16x16x8xf32>
    %c0_3 = arith.constant 0 : index
    %c0_4 = arith.constant 0 : index
    %2 = vector.load %arg4[%c0_3, %c0_4] : memref<1x8xf32, #tpu.memory_space<vmem>>, vector<1x8xf32>
    %3 = vector.shape_cast %2 : vector<1x8xf32> to vector<1x1x8xf32>
    %c0_5 = arith.constant 0 : index
    %c0_6 = arith.constant 0 : index
    %4 = vector.load %arg5[%c0_5, %c0_6] : memref<1x8xf32, #tpu.memory_space<vmem>>, vector<1x8xf32>
    %5 = vector.shape_cast %4 : vector<1x8xf32> to vector<1x1x8xf32>
    %6 = vector.broadcast %3 : vector<1x1x8xf32> to vector<16x16x8xf32>
    %7 = arith.mulf %1, %6 : vector<16x16x8xf32>
    %8 = vector.broadcast %5 : vector<1x1x8xf32> to vector<16x16x8xf32>
    %9 = arith.addf %7, %8 : vector<16x16x8xf32>
    %cst = arith.constant 0.000000e+00 : f32
    %10 = vector.broadcast %cst : f32 to vector<1x18x8xf32>
    %c0_7 = arith.constant 0 : index
    %c0_8 = arith.constant 0 : index
    %c0_9 = arith.constant 0 : index
    %11 = vector.load %arg9[%c0_7, %c0_8, %c0_9] : memref<18x18x8xf32, #tpu.memory_space<vmem>>, vector<1x18x8xf32>
    tpu.vector_store %arg9[%c0_7, %c0_8, %c0_9], %10 {strides = array<i32>} : memref<18x18x8xf32, #tpu.memory_space<vmem>>, vector<1x18x8xf32>,
    %cst_10 = arith.constant 0.000000e+00 : f32
    %12 = vector.broadcast %cst_10 : f32 to vector<1x18x8xf32>
    %c17 = arith.constant 17 : index
    %c0_11 = arith.constant 0 : index
    %c0_12 = arith.constant 0 : index
    %13 = vector.load %arg9[%c17, %c0_11, %c0_12] : memref<18x18x8xf32, #tpu.memory_space<vmem>>, vector<1x18x8xf32>
    tpu.vector_store %arg9[%c17, %c0_11, %c0_12], %12 {strides = array<i32>} : memref<18x18x8xf32, #tpu.memory_space<vmem>>, vector<1x18x8xf32>,
    %cst_13 = arith.constant 0.000000e+00 : f32
    %14 = vector.broadcast %cst_13 : f32 to vector<16x1x8xf32>
    %c1 = arith.constant 1 : index
    %c0_14 = arith.constant 0 : index
    %c0_15 = arith.constant 0 : index
    %15 = vector.load %arg9[%c1, %c0_14, %c0_15] : memref<18x18x8xf32, #tpu.memory_space<vmem>>, vector<16x1x8xf32>
    tpu.vector_store %arg9[%c1, %c0_14, %c0_15], %14 {strides = array<i32>} : memref<18x18x8xf32, #tpu.memory_space<vmem>>, vector<16x1x8xf32>,
    %cst_16 = arith.constant 0.000000e+00 : f32
    %16 = vector.broadcast %cst_16 : f32 to vector<16x1x8xf32>
    %c1_17 = arith.constant 1 : index
    %c17_18 = arith.constant 17 : index
    %c0_19 = arith.constant 0 : index
    %17 = vector.load %arg9[%c1_17, %c17_18, %c0_19] : memref<18x18x8xf32, #tpu.memory_space<vmem>>, vector<16x1x8xf32>
    tpu.vector_store %arg9[%c1_17, %c17_18, %c0_19], %16 {strides = array<i32>} : memref<18x18x8xf32, #tpu.memory_space<vmem>>, vector<16x1x8xf32>,
    %c1_20 = arith.constant 1 : index
    %c1_21 = arith.constant 1 : index
    %c0_22 = arith.constant 0 : index
    %18 = vector.load %arg9[%c1_20, %c1_21, %c0_22] : memref<18x18x8xf32, #tpu.memory_space<vmem>>, vector<16x16x8xf32>
    tpu.vector_store %arg9[%c1_20, %c1_21, %c0_22], %9 {strides = array<i32>} : memref<18x18x8xf32, #tpu.memory_space<vmem>>, vector<16x16x8xf32>,
    %c0_23 = arith.constant 0 : index
    %c0_24 = arith.constant 0 : index
    %c0_25 = arith.constant 0 : index
    %19 = vector.load %arg9[%c0_23, %c0_24, %c0_25] : memref<18x18x8xf32, #tpu.memory_space<vmem>>, vector<16x16x8xf32>
    %20 = vector.shape_cast %19 : vector<16x16x8xf32> to vector<256x8xf32>
    %c0_26 = arith.constant 0 : index
    %c0_27 = arith.constant 0 : index
    %c0_28 = arith.constant 0 : index
    %21 = vector.load %arg2[%c0_26, %c0_27, %c0_28] : memref<9x8x128xf32, #tpu.memory_space<vmem>>, vector<1x8x128xf32>
    %22 = vector.shape_cast %21 : vector<1x8x128xf32> to vector<8x128xf32>
    %cst_29 = arith.constant dense<0.000000e+00> : vector<256x128xf32>
    %23 = tpu.matmul %20, %22, %cst_29 {dimension_numbers = #tpu.dot_dimension_numbers<[1], [0], [0], [1], [0, 0, 1, 1], [], []>} : vector<256x8xf32>, vector<8x128xf32>, vector<256x128xf32> -> vector<256x128xf32>
    %c0_30 = arith.constant 0 : index
    %c1_31 = arith.constant 1 : index
    %c0_32 = arith.constant 0 : index
    %24 = vector.load %arg9[%c0_30, %c1_31, %c0_32] : memref<18x18x8xf32, #tpu.memory_space<vmem>>, vector<16x16x8xf32>
    %25 = vector.shape_cast %24 : vector<16x16x8xf32> to vector<256x8xf32>
    %c1_33 = arith.constant 1 : index
    %c0_34 = arith.constant 0 : index
    %c0_35 = arith.constant 0 : index
    %26 = vector.load %arg2[%c1_33, %c0_34, %c0_35] : memref<9x8x128xf32, #tpu.memory_space<vmem>>, vector<1x8x128xf32>
    %27 = vector.shape_cast %26 : vector<1x8x128xf32> to vector<8x128xf32>
    %cst_36 = arith.constant dense<0.000000e+00> : vector<256x128xf32>
    %28 = tpu.matmul %25, %27, %cst_36 {dimension_numbers = #tpu.dot_dimension_numbers<[1], [0], [0], [1], [0, 0, 1, 1], [], []>} : vector<256x8xf32>, vector<8x128xf32>, vector<256x128xf32> -> vector<256x128xf32>
    %29 = arith.addf %23, %28 : vector<256x128xf32>
    %c0_37 = arith.constant 0 : index
    %c2 = arith.constant 2 : index
    %c0_38 = arith.constant 0 : index
    %30 = vector.load %arg9[%c0_37, %c2, %c0_38] : memref<18x18x8xf32, #tpu.memory_space<vmem>>, vector<16x16x8xf32>
    %31 = vector.shape_cast %30 : vector<16x16x8xf32> to vector<256x8xf32>
    %c2_39 = arith.constant 2 : index
    %c0_40 = arith.constant 0 : index
    %c0_41 = arith.constant 0 : index
    %32 = vector.load %arg2[%c2_39, %c0_40, %c0_41] : memref<9x8x128xf32, #tpu.memory_space<vmem>>, vector<1x8x128xf32>
    %33 = vector.shape_cast %32 : vector<1x8x128xf32> to vector<8x128xf32>
    %cst_42 = arith.constant dense<0.000000e+00> : vector<256x128xf32>
    %34 = tpu.matmul %31, %33, %cst_42 {dimension_numbers = #tpu.dot_dimension_numbers<[1], [0], [0], [1], [0, 0, 1, 1], [], []>} : vector<256x8xf32>, vector<8x128xf32>, vector<256x128xf32> -> vector<256x128xf32>
    %35 = arith.addf %29, %34 : vector<256x128xf32>
    %c1_43 = arith.constant 1 : index
    %c0_44 = arith.constant 0 : index
    %c0_45 = arith.constant 0 : index
    %36 = vector.load %arg9[%c1_43, %c0_44, %c0_45] : memref<18x18x8xf32, #tpu.memory_space<vmem>>, vector<16x16x8xf32>
    %37 = vector.shape_cast %36 : vector<16x16x8xf32> to vector<256x8xf32>
    %c3 = arith.constant 3 : index
    %c0_46 = arith.constant 0 : index
    %c0_47 = arith.constant 0 : index
    %38 = vector.load %arg2[%c3, %c0_46, %c0_47] : memref<9x8x128xf32, #tpu.memory_space<vmem>>, vector<1x8x128xf32>
    %39 = vector.shape_cast %38 : vector<1x8x128xf32> to vector<8x128xf32>
    %cst_48 = arith.constant dense<0.000000e+00> : vector<256x128xf32>
    %40 = tpu.matmul %37, %39, %cst_48 {dimension_numbers = #tpu.dot_dimension_numbers<[1], [0], [0], [1], [0, 0, 1, 1], [], []>} : vector<256x8xf32>, vector<8x128xf32>, vector<256x128xf32> -> vector<256x128xf32>
    %41 = arith.addf %35, %40 : vector<256x128xf32>
    %c1_49 = arith.constant 1 : index
    %c1_50 = arith.constant 1 : index
    %c0_51 = arith.constant 0 : index
    %42 = vector.load %arg9[%c1_49, %c1_50, %c0_51] : memref<18x18x8xf32, #tpu.memory_space<vmem>>, vector<16x16x8xf32>
    %43 = vector.shape_cast %42 : vector<16x16x8xf32> to vector<256x8xf32>
    %c4 = arith.constant 4 : index
    %c0_52 = arith.constant 0 : index
    %c0_53 = arith.constant 0 : index
    %44 = vector.load %arg2[%c4, %c0_52, %c0_53] : memref<9x8x128xf32, #tpu.memory_space<vmem>>, vector<1x8x128xf32>
    %45 = vector.shape_cast %44 : vector<1x8x128xf32> to vector<8x128xf32>
    %cst_54 = arith.constant dense<0.000000e+00> : vector<256x128xf32>
    %46 = tpu.matmul %43, %45, %cst_54 {dimension_numbers = #tpu.dot_dimension_numbers<[1], [0], [0], [1], [0, 0, 1, 1], [], []>} : vector<256x8xf32>, vector<8x128xf32>, vector<256x128xf32> -> vector<256x128xf32>
    %47 = arith.addf %41, %46 : vector<256x128xf32>
    %c1_55 = arith.constant 1 : index
    %c2_56 = arith.constant 2 : index
    %c0_57 = arith.constant 0 : index
    %48 = vector.load %arg9[%c1_55, %c2_56, %c0_57] : memref<18x18x8xf32, #tpu.memory_space<vmem>>, vector<16x16x8xf32>
    %49 = vector.shape_cast %48 : vector<16x16x8xf32> to vector<256x8xf32>
    %c5 = arith.constant 5 : index
    %c0_58 = arith.constant 0 : index
    %c0_59 = arith.constant 0 : index
    %50 = vector.load %arg2[%c5, %c0_58, %c0_59] : memref<9x8x128xf32, #tpu.memory_space<vmem>>, vector<1x8x128xf32>
    %51 = vector.shape_cast %50 : vector<1x8x128xf32> to vector<8x128xf32>
    %cst_60 = arith.constant dense<0.000000e+00> : vector<256x128xf32>
    %52 = tpu.matmul %49, %51, %cst_60 {dimension_numbers = #tpu.dot_dimension_numbers<[1], [0], [0], [1], [0, 0, 1, 1], [], []>} : vector<256x8xf32>, vector<8x128xf32>, vector<256x128xf32> -> vector<256x128xf32>
    %53 = arith.addf %47, %52 : vector<256x128xf32>
    %c2_61 = arith.constant 2 : index
    %c0_62 = arith.constant 0 : index
    %c0_63 = arith.constant 0 : index
    %54 = vector.load %arg9[%c2_61, %c0_62, %c0_63] : memref<18x18x8xf32, #tpu.memory_space<vmem>>, vector<16x16x8xf32>
    %55 = vector.shape_cast %54 : vector<16x16x8xf32> to vector<256x8xf32>
    %c6 = arith.constant 6 : index
    %c0_64 = arith.constant 0 : index
    %c0_65 = arith.constant 0 : index
    %56 = vector.load %arg2[%c6, %c0_64, %c0_65] : memref<9x8x128xf32, #tpu.memory_space<vmem>>, vector<1x8x128xf32>
    %57 = vector.shape_cast %56 : vector<1x8x128xf32> to vector<8x128xf32>
    %cst_66 = arith.constant dense<0.000000e+00> : vector<256x128xf32>
    %58 = tpu.matmul %55, %57, %cst_66 {dimension_numbers = #tpu.dot_dimension_numbers<[1], [0], [0], [1], [0, 0, 1, 1], [], []>} : vector<256x8xf32>, vector<8x128xf32>, vector<256x128xf32> -> vector<256x128xf32>
    %59 = arith.addf %53, %58 : vector<256x128xf32>
    %c2_67 = arith.constant 2 : index
    %c1_68 = arith.constant 1 : index
    %c0_69 = arith.constant 0 : index
    %60 = vector.load %arg9[%c2_67, %c1_68, %c0_69] : memref<18x18x8xf32, #tpu.memory_space<vmem>>, vector<16x16x8xf32>
    %61 = vector.shape_cast %60 : vector<16x16x8xf32> to vector<256x8xf32>
    %c7 = arith.constant 7 : index
    %c0_70 = arith.constant 0 : index
    %c0_71 = arith.constant 0 : index
    %62 = vector.load %arg2[%c7, %c0_70, %c0_71] : memref<9x8x128xf32, #tpu.memory_space<vmem>>, vector<1x8x128xf32>
    %63 = vector.shape_cast %62 : vector<1x8x128xf32> to vector<8x128xf32>
    %cst_72 = arith.constant dense<0.000000e+00> : vector<256x128xf32>
    %64 = tpu.matmul %61, %63, %cst_72 {dimension_numbers = #tpu.dot_dimension_numbers<[1], [0], [0], [1], [0, 0, 1, 1], [], []>} : vector<256x8xf32>, vector<8x128xf32>, vector<256x128xf32> -> vector<256x128xf32>
    %65 = arith.addf %59, %64 : vector<256x128xf32>
    %c2_73 = arith.constant 2 : index
    %c2_74 = arith.constant 2 : index
    %c0_75 = arith.constant 0 : index
    %66 = vector.load %arg9[%c2_73, %c2_74, %c0_75] : memref<18x18x8xf32, #tpu.memory_space<vmem>>, vector<16x16x8xf32>
    %67 = vector.shape_cast %66 : vector<16x16x8xf32> to vector<256x8xf32>
    %c8 = arith.constant 8 : index
    %c0_76 = arith.constant 0 : index
    %c0_77 = arith.constant 0 : index
    %68 = vector.load %arg2[%c8, %c0_76, %c0_77] : memref<9x8x128xf32, #tpu.memory_space<vmem>>, vector<1x8x128xf32>
    %69 = vector.shape_cast %68 : vector<1x8x128xf32> to vector<8x128xf32>
    %cst_78 = arith.constant dense<0.000000e+00> : vector<256x128xf32>
    %70 = tpu.matmul %67, %69, %cst_78 {dimension_numbers = #tpu.dot_dimension_numbers<[1], [0], [0], [1], [0, 0, 1, 1], [], []>} : vector<256x8xf32>, vector<8x128xf32>, vector<256x128xf32> -> vector<256x128xf32>
    %71 = arith.addf %65, %70 : vector<256x128xf32>
    %c0_79 = arith.constant 0 : index
    %c0_80 = arith.constant 0 : index
    %72 = vector.load %arg3[%c0_79, %c0_80] : memref<1x128xf32, #tpu.memory_space<vmem>>, vector<1x128xf32>
    %73 = vector.broadcast %72 : vector<1x128xf32> to vector<256x128xf32>
    %74 = arith.addf %71, %73 : vector<256x128xf32>
    %cst_81 = arith.constant 0.000000e+00 : f32
    %75 = vector.broadcast %cst_81 : f32 to vector<256x128xf32>
    %76 = arith.maximumf %74, %75 : vector<256x128xf32>
    %77 = vector.extract_strided_slice %76 {offsets = [0, 0], sizes = [256, 8], strides = [1, 1]} : vector<256x128xf32> to vector<256x8xf32>
    %cst_82 = arith.constant dense<0.000000e+00> : vector<8xf32>
    %78 = vector.multi_reduction <add>, %77, %cst_82 [0] : vector<256x8xf32> to vector<8xf32>
    %79 = vector.shape_cast %78 : vector<8xf32> to vector<1x8xf32>
    %c0_83 = arith.constant 0 : index
    %c0_84 = arith.constant 0 : index
    %c0_85 = arith.constant 0 : index
    %80 = vector.load %arg7[%c0_83, %c0_84, %c0_85] : memref<1x1x8xf32, #tpu.memory_space<vmem>>, vector<1x1x8xf32>
    %81 = vector.shape_cast %80 : vector<1x1x8xf32> to vector<1x8xf32>
    %82 = vector.shape_cast %79 : vector<1x8xf32> to vector<1x1x8xf32>
    tpu.vector_store %arg7[%c0_83, %c0_84, %c0_85], %82 {strides = array<i32>} : memref<1x1x8xf32, #tpu.memory_space<vmem>>, vector<1x1x8xf32>,
    %83 = arith.mulf %77, %77 : vector<256x8xf32>
    %cst_86 = arith.constant dense<0.000000e+00> : vector<8xf32>
    %84 = vector.multi_reduction <add>, %83, %cst_86 [0] : vector<256x8xf32> to vector<8xf32>
    %85 = vector.shape_cast %84 : vector<8xf32> to vector<1x8xf32>
    %c0_87 = arith.constant 0 : index
    %c0_88 = arith.constant 0 : index
    %c0_89 = arith.constant 0 : index
    %86 = vector.load %arg8[%c0_87, %c0_88, %c0_89] : memref<1x1x8xf32, #tpu.memory_space<vmem>>, vector<1x1x8xf32>
    %87 = vector.shape_cast %86 : vector<1x1x8xf32> to vector<1x8xf32>
    %88 = vector.shape_cast %85 : vector<1x8xf32> to vector<1x1x8xf32>
    tpu.vector_store %arg8[%c0_87, %c0_88, %c0_89], %88 {strides = array<i32>} : memref<1x1x8xf32, #tpu.memory_space<vmem>>, vector<1x1x8xf32>,
    %c0_90 = arith.constant 0 : index
    %c0_91 = arith.constant 0 : index
    %c0_92 = arith.constant 0 : index
    %89 = vector.load %arg6[%c0_90, %c0_91, %c0_92] : memref<1x256x8xf32, #tpu.memory_space<vmem>>, vector<1x256x8xf32>
    %90 = vector.shape_cast %89 : vector<1x256x8xf32> to vector<256x8xf32>
    %91 = vector.shape_cast %77 : vector<256x8xf32> to vector<1x256x8xf32>
    tpu.vector_store %arg6[%c0_90, %c0_91, %c0_92], %91 {strides = array<i32>} : memref<1x256x8xf32, #tpu.memory_space<vmem>>, vector<1x256x8xf32>,
    return
  }
  func.func @transform_0(%arg0: i32) -> (i32, i32, i32, i32) {
    %c0_i32 = arith.constant 0 : i32
    %c0_i32_0 = arith.constant 0 : i32
    %c0_i32_1 = arith.constant 0 : i32
    %c0_i32_2 = arith.constant 0 : i32
    return %arg0, %c0_i32, %c0_i32_0, %c0_i32_1 : i32, i32, i32, i32
  }
  func.func @transform_1(%arg0: i32) -> (i32, i32, i32) {
    %c0_i32 = arith.constant 0 : i32
    %c0_i32_0 = arith.constant 0 : i32
    %c0_i32_1 = arith.constant 0 : i32
    %c0_i32_2 = arith.constant 0 : i32
    return %c0_i32, %c0_i32_0, %c0_i32_1 : i32, i32, i32
  }
  func.func @transform_2(%arg0: i32) -> (i32, i32) {
    %c0_i32 = arith.constant 0 : i32
    %c0_i32_0 = arith.constant 0 : i32
    %c0_i32_1 = arith.constant 0 : i32
    return %c0_i32, %c0_i32_0 : i32, i32
  }
  func.func @transform_3(%arg0: i32) -> (i32, i32) {
    %c0_i32 = arith.constant 0 : i32
    %c0_i32_0 = arith.constant 0 : i32
    %c0_i32_1 = arith.constant 0 : i32
    return %c0_i32, %c0_i32_0 : i32, i32
  }
  func.func @transform_4(%arg0: i32) -> (i32, i32) {
    %c0_i32 = arith.constant 0 : i32
    %c0_i32_0 = arith.constant 0 : i32
    %c0_i32_1 = arith.constant 0 : i32
    return %c0_i32, %c0_i32_0 : i32, i32
  }
  func.func @transform_5(%arg0: i32) -> (i32, i32, i32) {
    %c0_i32 = arith.constant 0 : i32
    %c0_i32_0 = arith.constant 0 : i32
    %c0_i32_1 = arith.constant 0 : i32
    return %arg0, %c0_i32, %c0_i32_0 : i32, i32, i32
  }
  func.func @transform_6(%arg0: i32) -> (i32, i32, i32) {
    %c0_i32 = arith.constant 0 : i32
    %c0_i32_0 = arith.constant 0 : i32
    %c0_i32_1 = arith.constant 0 : i32
    return %arg0, %c0_i32, %c0_i32_0 : i32, i32, i32
  }
  func.func @transform_7(%arg0: i32) -> (i32, i32, i32) {
    %c0_i32 = arith.constant 0 : i32
    %c0_i32_0 = arith.constant 0 : i32
    %c0_i32_1 = arith.constant 0 : i32
    return %arg0, %c0_i32, %c0_i32_0 : i32, i32, i32
  }
}

module attributes {stable_mosaic.version = 11 : i64} {
  func.func @bn_apply_nchw_kernel(%arg0: i32, %arg1: memref<1x256x8xf32, #tpu.memory_space<vmem>>, %arg2: memref<1x1x8xf32, #tpu.memory_space<vmem>>, %arg3: memref<1x1x8xf32, #tpu.memory_space<vmem>>, %arg4: memref<1x8x256xf32, #tpu.memory_space<vmem>>) attributes {dimension_semantics = [#tpu.dimension_semantics<parallel>], iteration_bounds = array<i64: 2>, scalar_prefetch = 0 : i64, scratch_operands = 0 : i64, tpu.core_type = #tpu.core_type<tc>, window_params = [{transform_indices = @transform_0, window_bounds = array<i64: 1, 256, 8>}, {pipeline_mode = #tpu.pipeline_mode<synchronous>, transform_indices = @transform_1, window_bounds = array<i64: 1, 1, 8>}, {pipeline_mode = #tpu.pipeline_mode<synchronous>, transform_indices = @transform_2, window_bounds = array<i64: 1, 1, 8>}, {transform_indices = @transform_3, window_bounds = array<i64: 1, 8, 256>}]} {
    %c0 = arith.constant 0 : index
    %c0_0 = arith.constant 0 : index
    %c0_1 = arith.constant 0 : index
    %0 = vector.load %arg1[%c0, %c0_0, %c0_1] : memref<1x256x8xf32, #tpu.memory_space<vmem>>, vector<1x256x8xf32>
    %1 = vector.shape_cast %0 : vector<1x256x8xf32> to vector<256x8xf32>
    %c0_2 = arith.constant 0 : index
    %c0_3 = arith.constant 0 : index
    %c0_4 = arith.constant 0 : index
    %2 = vector.load %arg2[%c0_2, %c0_3, %c0_4] : memref<1x1x8xf32, #tpu.memory_space<vmem>>, vector<1x1x8xf32>
    %3 = vector.shape_cast %2 : vector<1x1x8xf32> to vector<1x8xf32>
    %4 = vector.broadcast %3 : vector<1x8xf32> to vector<256x8xf32>
    %5 = arith.mulf %1, %4 : vector<256x8xf32>
    %c0_5 = arith.constant 0 : index
    %c0_6 = arith.constant 0 : index
    %c0_7 = arith.constant 0 : index
    %6 = vector.load %arg3[%c0_5, %c0_6, %c0_7] : memref<1x1x8xf32, #tpu.memory_space<vmem>>, vector<1x1x8xf32>
    %7 = vector.shape_cast %6 : vector<1x1x8xf32> to vector<1x8xf32>
    %8 = vector.broadcast %7 : vector<1x8xf32> to vector<256x8xf32>
    %9 = arith.addf %5, %8 : vector<256x8xf32>
    %10 = tpu.transpose %9, [1, 0] : vector<256x8xf32> -> vector<8x256xf32>
    %c0_8 = arith.constant 0 : index
    %c0_9 = arith.constant 0 : index
    %c0_10 = arith.constant 0 : index
    %11 = vector.load %arg4[%c0_8, %c0_9, %c0_10] : memref<1x8x256xf32, #tpu.memory_space<vmem>>, vector<1x8x256xf32>
    %12 = vector.shape_cast %11 : vector<1x8x256xf32> to vector<8x256xf32>
    %13 = vector.shape_cast %10 : vector<8x256xf32> to vector<1x8x256xf32>
    tpu.vector_store %arg4[%c0_8, %c0_9, %c0_10], %13 {strides = array<i32>} : memref<1x8x256xf32, #tpu.memory_space<vmem>>, vector<1x8x256xf32>,
    return
  }
  func.func @transform_0(%arg0: i32) -> (i32, i32, i32) {
    %c0_i32 = arith.constant 0 : i32
    %c0_i32_0 = arith.constant 0 : i32
    %c0_i32_1 = arith.constant 0 : i32
    return %arg0, %c0_i32, %c0_i32_0 : i32, i32, i32
  }
  func.func @transform_1(%arg0: i32) -> (i32, i32, i32) {
    %c0_i32 = arith.constant 0 : i32
    %c0_i32_0 = arith.constant 0 : i32
    %c0_i32_1 = arith.constant 0 : i32
    %c0_i32_2 = arith.constant 0 : i32
    return %c0_i32, %c0_i32_0, %c0_i32_1 : i32, i32, i32
  }
  func.func @transform_2(%arg0: i32) -> (i32, i32, i32) {
    %c0_i32 = arith.constant 0 : i32
    %c0_i32_0 = arith.constant 0 : i32
    %c0_i32_1 = arith.constant 0 : i32
    %c0_i32_2 = arith.constant 0 : i32
    return %c0_i32, %c0_i32_0, %c0_i32_1 : i32, i32, i32
  }
  func.func @transform_3(%arg0: i32) -> (i32, i32, i32) {
    %c0_i32 = arith.constant 0 : i32
    %c0_i32_0 = arith.constant 0 : i32
    %c0_i32_1 = arith.constant 0 : i32
    return %arg0, %c0_i32, %c0_i32_0 : i32, i32, i32
  }
}

</mosaic_0001>

<llo_original>
// kernel: conv_block_forward.5
$region0: #{conv_block_forward.5}
  #allocation0 [shape = 'u32[]', space=smem, size = 0x4, offset = 0x4, fixed_abs, tag = 'smem constant byte address 0x4 - core index']
  #allocation1 [shape = 'u32[144,128]{1,0:T(1,128)}', space=vmem, size = 0x12000, scoped, tag = 'internal scratch']
  %s0 = inlined_call_operand.vmem [shape: f32[2,256,8], index: 0, kind: input, shape index: {}]
  %s1 = inlined_call_operand.vmem [shape: f32[1,1,8], index: 1, kind: input, shape index: {}]
  %s2 = inlined_call_operand.vmem [shape: f32[1,1,8], index: 2, kind: input, shape index: {}]
  %s3 = inlined_call_operand.vmem [shape: f32[2,8,256], index: 3, kind: output, shape index: {}]
  %s4 = sld [smem:[#allocation0]]
  $region45: #{conv_block_forward.5} parent=0
    _
  %s6 = ssub.s32 1, %s4
  %s7 = scalar_select 0, %s6, %s4
  loop: start=0, step=1, limit=4
  $region2: #{conv_block_forward.5} parent=0 // loop_pre_header
    _
  $region3: #{conv_block_forward.5} parent=0 // loop_header
    %s9 = sphi 0, %s13
    %p10 = scmp.ge.s32.totalorder %s9, 4
    %s19 = sphi 0, %s21
    %s22 = sphi 0, %s19
    %s23 = sphi 0, %s22
    %s39 = sphi 0, %s23
    %s43 = sphi 0, %s43
    %s45 = sphi 0, %s43
    %s46 = sphi 0, %s45
    %s60 = sphi 0, %s46
    %s64 = sphi 0, %s64
    %s66 = sphi 0, %s64
    %s67 = sphi 0, %s66
    %s81 = sphi 0, %s67
    %s87 = sphi 0, %s89
    %s90 = sphi 0, %s87
    %s91 = sphi 0, %s90
    %s107 = sphi 0, %s91
  $region4: #{conv_block_forward.5} parent=0 // loop_header_branch
    %12 = sbr.rel (%p10) target = $region8
  $region5: #{conv_block_forward.5} parent=0 // loop_body
    %s14 = ssub.s32 %s9, 1
    %s15 = ssub.s32 %s9, 2
    %s16 = sadd.s32 %s9, 1
    %s17 = ssub.s32 %s9, %s16
    %p18 = scmp.eq.s32.totalorder %s17, 0
    %s20 = sadd.s32 %s19, 1
    %s21 = scalar_select %p18, %s19, %s20
    %p24 = pneg %p18
    %p25 = scmp.eq.s32.totalorder %s9, 1
    %p26 = por %p24, %p25
    %p27 = scmp.ne.s32.totalorder %s19, %s22
    %p28 = scmp.eq.s32.totalorder %s9, 0
    %p29 = por %p27, %p28
    %p30 = scmp.ne.s32.totalorder %s19, %s22
    %p31 = scmp.eq.s32.totalorder %s14, 1
    %p32 = por %p30, %p31
    %p33 = scmp.ne.s32.totalorder %s22, %s23
    %p34 = scmp.eq.s32.totalorder %s14, 0
    %p35 = por %p33, %p34
    %p36 = scmp.ne.s32.totalorder %s22, %s23
    %p37 = scmp.eq.s32.totalorder %s15, 1
    %p38 = por %p36, %p37
    %p40 = scmp.ne.s32.totalorder %s23, %s39
    %p41 = scmp.eq.s32.totalorder %s15, 0
    %p42 = por %p40, %p41
    %s44 = sadd.s32 %s43, 1
    %p47 = scmp.eq.s32.totalorder %s9, 1
    %p48 = scmp.ne.s32.totalorder %s43, %s45
    %p49 = scmp.eq.s32.totalorder %s9, 0
    %p50 = por %p48, %p49
    %p51 = scmp.ne.s32.totalorder %s43, %s45
    %p52 = scmp.eq.s32.totalorder %s14, 1
    %p53 = por %p51, %p52
    %p54 = scmp.ne.s32.totalorder %s45, %s46
    %p55 = scmp.eq.s32.totalorder %s14, 0
    %p56 = por %p54, %p55
    %p57 = scmp.ne.s32.totalorder %s45, %s46
    %p58 = scmp.eq.s32.totalorder %s15, 1
    %p59 = por %p57, %p58
    %p61 = scmp.ne.s32.totalorder %s46, %s60
    %p62 = scmp.eq.s32.totalorder %s15, 0
    %p63 = por %p61, %p62
    %s65 = sadd.s32 %s64, 1
    %p68 = scmp.eq.s32.totalorder %s9, 1
    %p69 = scmp.ne.s32.totalorder %s64, %s66
    %p70 = scmp.eq.s32.totalorder %s9, 0
    %p71 = por %p69, %p70
    %p72 = scmp.ne.s32.totalorder %s64, %s66
    %p73 = scmp.eq.s32.totalorder %s14, 1
    %p74 = por %p72, %p73
    %p75 = scmp.ne.s32.totalorder %s66, %s67
    %p76 = scmp.eq.s32.totalorder %s14, 0
    %p77 = por %p75, %p76
    %p78 = scmp.ne.s32.totalorder %s66, %s67
    %p79 = scmp.eq.s32.totalorder %s15, 1
    %p80 = por %p78, %p79
    %p82 = scmp.ne.s32.totalorder %s67, %s81
    %p83 = scmp.eq.s32.totalorder %s15, 0
    %p84 = por %p82, %p83
    %s85 = ssub.s32 %s9, %s16
    %p86 = scmp.eq.s32.totalorder %s85, 0
    %s88 = sadd.s32 %s87, 1
    %s89 = scalar_select %p86, %s87, %s88
    %p92 = pneg %p86
    %p93 = scmp.eq.s32.totalorder %s9, 1
    %p94 = por %p92, %p93
    %p95 = scmp.ne.s32.totalorder %s87, %s90
    %p96 = scmp.eq.s32.totalorder %s9, 0
    %p97 = por %p95, %p96
    %p98 = scmp.ne.s32.totalorder %s87, %s90
    %p99 = scmp.eq.s32.totalorder %s14, 1
    %p100 = por %p98, %p99
    %p101 = scmp.ne.s32.totalorder %s90, %s91
    %p102 = scmp.eq.s32.totalorder %s14, 0
    %p103 = por %p101, %p102
    %p104 = scmp.ne.s32.totalorder %s90, %s91
    %p105 = scmp.eq.s32.totalorder %s15, 1
    %p106 = por %p104, %p105
    %p108 = scmp.ne.s32.totalorder %s91, %s107
    %p109 = scmp.eq.s32.totalorder %s15, 0
    %p110 = por %p108, %p109
    %p111 = scmp.le.s32.totalorder 1, %s9
    %p112 = scmp.lt.s32.totalorder %s9, 3
    %p113 = pnand %p111, %p112
    %p114 = pneg %p113
    // Predicated region
    $region9: #{conv_block_forward.5} parent=5 // pred_check
      _
    $region10: #{conv_block_forward.5} parent=5 // pred_check_branch
      %116 = sbr.rel (%p113) target = $region12
    $region11: #{conv_block_forward.5} parent=5 // pred_region
      %s117 = ssub.s32 %s9, 1
      // Predicated region
      $region13: #{conv_block_forward.5} parent=11 // pred_check
        %p118 = pneg %p56
      $region14: #{conv_block_forward.5} parent=11 // pred_check_branch
        %120 = sbr.rel (%p118) target = $region16
      $region15: #{conv_block_forward.5} parent=11 // pred_region
        _
      $region16: #{conv_block_forward.5} parent=11 // pred_fallthru
        _
      // Predicated region
      $region17: #{conv_block_forward.5} parent=11 // pred_check
        %p121 = pneg %p77
      $region18: #{conv_block_forward.5} parent=11 // pred_check_branch
        %123 = sbr.rel (%p121) target = $region20
      $region19: #{conv_block_forward.5} parent=11 // pred_region
        _
      $region20: #{conv_block_forward.5} parent=11 // pred_fallthru
        _
    $region12: #{conv_block_forward.5} parent=5 // pred_fallthru
      _
    %p124 = scmp.lt.s32.totalorder %s9, 2
    // Predicated region
    $region21: #{conv_block_forward.5} parent=5 // pred_check
      %p125 = pneg %p124
    $region22: #{conv_block_forward.5} parent=5 // pred_check_branch
      %127 = sbr.rel (%p125) target = $region24
    $region23: #{conv_block_forward.5} parent=5 // pred_region
      // Predicated region
      $region25: #{conv_block_forward.5} parent=23 // pred_check
        %p128 = pneg %p29
      $region26: #{conv_block_forward.5} parent=23 // pred_check_branch
        %130 = sbr.rel (%p128) target = $region28
      $region27: #{conv_block_forward.5} parent=23 // pred_region
        %p131 = scmp.lt.s32.totalorder %s9, 1
        %s132 = scalar_select %p131, %s9, 1
        %s133 = smul.addr %s132, 32
        %s134 = smul.addr %s133, 8
        %s135 = scalar_lea.vmem %s0, %s134
      $region28: #{conv_block_forward.5} parent=23 // pred_fallthru
        _
    $region24: #{conv_block_forward.5} parent=5 // pred_fallthru
      _
    %p136 = scmp.le.s32.totalorder 1, %s9
    %p137 = scmp.lt.s32.totalorder %s9, 3
    %p138 = pnand %p136, %p137
    %p139 = pneg %p138
    // Predicated region
    $region29: #{conv_block_forward.5} parent=5 // pred_check
      _
    $region30: #{conv_block_forward.5} parent=5 // pred_check_branch
      %141 = sbr.rel (%p138) target = $region32
    $region31: #{conv_block_forward.5} parent=5 // pred_region
      %s142 = ssub.s32 %s9, 1
      %p143 = scmp.lt.s32.totalorder %s14, 1
      %s144 = scalar_select %p143, %s14, 1
      %s145 = smul.addr %s144, 32
      %s146 = smul.addr %s145, 8
      %s147 = scalar_lea.vmem %s0, %s146
      %p148 = pneg %p35
      %p149 = pneg %p32
      %p150 = pneg %p56
      %p151 = pneg %p53
      %p152 = pneg %p77
      %p153 = pneg %p74
      %p154 = pneg %p103
      %p155 = pneg %p100
      %p156 = scmp.lt.s32.totalorder %s14, 1
      %s157 = scalar_select %p156, %s14, 1
      %s158 = smul.addr %s157, 2
      %s159 = smul.addr %s158, 8
      %s160 = scalar_lea.vmem %s3, %s159
      %p161 = scmp.lt.s32.totalorder %s14, 1
      %s162 = scalar_select %p161, %s14, 1
      %s163 = smul.addr %s162, 32
      %s164 = smul.addr %s163, 8
      %s165 = scalar_lea.vmem %s0, %s164
      %p166 = scmp.lt.s32.totalorder %s14, 1
      %s167 = scalar_select %p166, %s14, 1
      %s168 = smul.addr %s167, 2
      %s169 = smul.addr %s168, 8
      %s170 = scalar_lea.vmem %s3, %s169
      %v171 = vld [vmem:[%s165] sm:$0xff]
      %v172 = vld [vmem:[%s165 + $0x8] sm:$0xff]
      %v173 = vld [vmem:[%s165 + $0x10] sm:$0xff]
      %v174 = vld [vmem:[%s165 + $0x18] sm:$0xff]
      %v175 = vld [vmem:[%s165 + $0x20] sm:$0xff]
      %v176 = vld [vmem:[%s165 + $0x28] sm:$0xff]
      %v177 = vld [vmem:[%s165 + $0x30] sm:$0xff]
      %v178 = vld [vmem:[%s165 + $0x38] sm:$0xff]
      %v179 = vld [vmem:[%s165 + $0x40] sm:$0xff]
      %v180 = vld [vmem:[%s165 + $0x48] sm:$0xff]
      %v181 = vld [vmem:[%s165 + $0x50] sm:$0xff]
      %v182 = vld [vmem:[%s165 + $0x58] sm:$0xff]
      %v183 = vld [vmem:[%s165 + $0x60] sm:$0xff]
      %v184 = vld [vmem:[%s165 + $0x68] sm:$0xff]
      %v185 = vld [vmem:[%s165 + $0x70] sm:$0xff]
      %v186 = vld [vmem:[%s165 + $0x78] sm:$0xff]
      %v187 = vld [vmem:[%s165 + $0x80] sm:$0xff]
      %v188 = vld [vmem:[%s165 + $0x88] sm:$0xff]
      %v189 = vld [vmem:[%s165 + $0x90] sm:$0xff]
      %v190 = vld [vmem:[%s165 + $0x98] sm:$0xff]
      %v191 = vld [vmem:[%s165 + $0xa0] sm:$0xff]
      %v192 = vld [vmem:[%s165 + $0xa8] sm:$0xff]
      %v193 = vld [vmem:[%s165 + $0xb0] sm:$0xff]
      %v194 = vld [vmem:[%s165 + $0xb8] sm:$0xff]
      %v195 = vld [vmem:[%s165 + $0xc0] sm:$0xff]
      %v196 = vld [vmem:[%s165 + $0xc8] sm:$0xff]
      %v197 = vld [vmem:[%s165 + $0xd0] sm:$0xff]
      %v198 = vld [vmem:[%s165 + $0xd8] sm:$0xff]
      %v199 = vld [vmem:[%s165 + $0xe0] sm:$0xff]
      %v200 = vld [vmem:[%s165 + $0xe8] sm:$0xff]
      %v201 = vld [vmem:[%s165 + $0xf0] sm:$0xff]
      %v202 = vld [vmem:[%s165 + $0xf8] sm:$0xff]
      %v203 = vld [vmem:[%s1] sm:$0x1]
      %v205 = vlaneseq
      %v206 = vshrl.u32 %v205, 7
      %v207 = vsub.s32 0, %v206
      %v208 = vrot.slane %v203, %v207
      %v210 = vmul.f32 %v171, %v208
      %v211 = vmul.f32 %v172, %v208
      %v212 = vmul.f32 %v173, %v208
      %v213 = vmul.f32 %v174, %v208
      %v214 = vmul.f32 %v175, %v208
      %v215 = vmul.f32 %v176, %v208
      %v216 = vmul.f32 %v177, %v208
      %v217 = vmul.f32 %v178, %v208
      %v218 = vmul.f32 %v179, %v208
      %v219 = vmul.f32 %v180, %v208
      %v220 = vmul.f32 %v181, %v208
      %v221 = vmul.f32 %v182, %v208
      %v222 = vmul.f32 %v183, %v208
      %v223 = vmul.f32 %v184, %v208
      %v224 = vmul.f32 %v185, %v208
      %v225 = vmul.f32 %v186, %v208
      %v226 = vmul.f32 %v187, %v208
      %v227 = vmul.f32 %v188, %v208
      %v228 = vmul.f32 %v189, %v208
      %v229 = vmul.f32 %v190, %v208
      %v230 = vmul.f32 %v191, %v208
      %v231 = vmul.f32 %v192, %v208
      %v232 = vmul.f32 %v193, %v208
      %v233 = vmul.f32 %v194, %v208
      %v234 = vmul.f32 %v195, %v208
      %v235 = vmul.f32 %v196, %v208
      %v236 = vmul.f32 %v197, %v208
      %v237 = vmul.f32 %v198, %v208
      %v238 = vmul.f32 %v199, %v208
      %v239 = vmul.f32 %v200, %v208
      %v240 = vmul.f32 %v201, %v208
      %v241 = vmul.f32 %v202, %v208
      %v242 = vld [vmem:[%s2] sm:$0x1]
      %v244 = vlaneseq
      %v245 = vshrl.u32 %v244, 7
      %v246 = vsub.s32 0, %v245
      %v247 = vrot.slane %v242, %v246
      %v249 = vadd.f32 %v210, %v247
      %v250 = vadd.f32 %v211, %v247
      %v251 = vadd.f32 %v212, %v247
      %v252 = vadd.f32 %v213, %v247
      %v253 = vadd.f32 %v214, %v247
      %v254 = vadd.f32 %v215, %v247
      %v255 = vadd.f32 %v216, %v247
      %v256 = vadd.f32 %v217, %v247
      %v257 = vadd.f32 %v218, %v247
      %v258 = vadd.f32 %v219, %v247
      %v259 = vadd.f32 %v220, %v247
      %v260 = vadd.f32 %v221, %v247
      %v261 = vadd.f32 %v222, %v247
      %v262 = vadd.f32 %v223, %v247
      %v263 = vadd.f32 %v224, %v247
      %v264 = vadd.f32 %v225, %v247
      %v265 = vadd.f32 %v226, %v247
      %v266 = vadd.f32 %v227, %v247
      %v267 = vadd.f32 %v228, %v247
      %v268 = vadd.f32 %v229, %v247
      %v269 = vadd.f32 %v230, %v247
      %v270 = vadd.f32 %v231, %v247
      %v271 = vadd.f32 %v232, %v247
      %v272 = vadd.f32 %v233, %v247
      %v273 = vadd.f32 %v234, %v247
      %v274 = vadd.f32 %v235, %v247
      %v275 = vadd.f32 %v236, %v247
      %v276 = vadd.f32 %v237, %v247
      %v277 = vadd.f32 %v238, %v247
      %v278 = vadd.f32 %v239, %v247
      %v279 = vadd.f32 %v240, %v247
      %v280 = vadd.f32 %v241, %v247
      %281 = vxpose.xlu0.b32.start [1/16] %v249, 128
      %282 = vxpose.xlu0.b32.cont [2/16] %v250, 128
      %283 = vxpose.xlu0.b32.cont [3/16] %v251, 128
      %284 = vxpose.xlu0.b32.cont [4/16] %v252, 128
      %285 = vxpose.xlu0.b32.cont [5/16] %v253, 128
      %286 = vxpose.xlu0.b32.cont [6/16] %v254, 128
      %287 = vxpose.xlu0.b32.cont [7/16] %v255, 128
      %288 = vxpose.xlu0.b32.cont [8/16] %v256, 128
      %289 = vxpose.xlu0.b32.cont [9/16] %v257, 128
      %290 = vxpose.xlu0.b32.cont [10/16] %v258, 128
      %291 = vxpose.xlu0.b32.cont [11/16] %v259, 128
      %292 = vxpose.xlu0.b32.cont [12/16] %v260, 128
      %293 = vxpose.xlu0.b32.cont [13/16] %v261, 128
      %294 = vxpose.xlu0.b32.cont [14/16] %v262, 128
      %295 = vxpose.xlu0.b32.cont [15/16] %v263, 128
      %296 = vxpose.xlu0.b32.end [16/16] %v264, 128
      %v297 = vpop.trf.xlu0
      %v298 = vpop.trf.xlu0
      %v299 = vpop.trf.xlu0
      %v300 = vpop.trf.xlu0
      %v301 = vpop.trf.xlu0
      %v302 = vpop.trf.xlu0
      %v303 = vpop.trf.xlu0
      %v304 = vpop.trf.xlu0
      %v305 = vpop.trf.xlu0
      %v306 = vpop.trf.xlu0
      %v307 = vpop.trf.xlu0
      %v308 = vpop.trf.xlu0
      %v309 = vpop.trf.xlu0
      %v310 = vpop.trf.xlu0
      %v311 = vpop.trf.xlu0
      %v312 = vpop.trf.xlu0
      %313 = vxpose.xlu0.b32.start [1/16] %v265, 128
      %314 = vxpose.xlu0.b32.cont [2/16] %v266, 128
      %315 = vxpose.xlu0.b32.cont [3/16] %v267, 128
      %316 = vxpose.xlu0.b32.cont [4/16] %v268, 128
      %317 = vxpose.xlu0.b32.cont [5/16] %v269, 128
      %318 = vxpose.xlu0.b32.cont [6/16] %v270, 128
      %319 = vxpose.xlu0.b32.cont [7/16] %v271, 128
      %320 = vxpose.xlu0.b32.cont [8/16] %v272, 128
      %321 = vxpose.xlu0.b32.cont [9/16] %v273, 128
      %322 = vxpose.xlu0.b32.cont [10/16] %v274, 128
      %323 = vxpose.xlu0.b32.cont [11/16] %v275, 128
      %324 = vxpose.xlu0.b32.cont [12/16] %v276, 128
      %325 = vxpose.xlu0.b32.cont [13/16] %v277, 128
      %326 = vxpose.xlu0.b32.cont [14/16] %v278, 128
      %327 = vxpose.xlu0.b32.cont [15/16] %v279, 128
      %328 = vxpose.xlu0.b32.end [16/16] %v280, 128
      %v329 = vpop.trf.xlu0
      %v330 = vpop.trf.xlu0
      %v331 = vpop.trf.xlu0
      %v332 = vpop.trf.xlu0
      %v333 = vpop.trf.xlu0
      %v334 = vpop.trf.xlu0
      %v335 = vpop.trf.xlu0
      %v336 = vpop.trf.xlu0
      %v337 = vpop.trf.xlu0
      %v338 = vpop.trf.xlu0
      %v339 = vpop.trf.xlu0
      %v340 = vpop.trf.xlu0
      %v341 = vpop.trf.xlu0
      %v342 = vpop.trf.xlu0
      %v343 = vpop.trf.xlu0
      %v344 = vpop.trf.xlu0
      %345 = vst [vmem:[%s170] sm:$0xff] %v297
      %346 = vst [vmem:[%s170 + $0x8] sm:$0xff] %v329
      %p347 = scmp.lt.s32.totalorder %s14, 1
      %s348 = scalar_select %p347, %s14, 1
      %s349 = smul.addr %s348, 2
      %s350 = smul.addr %s349, 8
      %s351 = scalar_lea.vmem %s3, %s350
      // Predicated region
      $region33: #{conv_block_forward.5} parent=31 // pred_check
        %p352 = pneg %p100
      $region34: #{conv_block_forward.5} parent=31 // pred_check_branch
        %354 = sbr.rel (%p352) target = $region36
      $region35: #{conv_block_forward.5} parent=31 // pred_region
        _
      $region36: #{conv_block_forward.5} parent=31 // pred_fallthru
        _
    $region32: #{conv_block_forward.5} parent=5 // pred_fallthru
      _
    %p355 = scmp.le.s32.totalorder 2, %s9
    // Predicated region
    $region37: #{conv_block_forward.5} parent=5 // pred_check
      %p356 = pneg %p355
    $region38: #{conv_block_forward.5} parent=5 // pred_check_branch
      %358 = sbr.rel (%p356) target = $region40
    $region39: #{conv_block_forward.5} parent=5 // pred_region
      %s359 = ssub.s32 %s9, 2
      // Predicated region
      $region41: #{conv_block_forward.5} parent=39 // pred_check
        %p360 = pneg %p106
      $region42: #{conv_block_forward.5} parent=39 // pred_check_branch
        %362 = sbr.rel (%p360) target = $region44
      $region43: #{conv_block_forward.5} parent=39 // pred_region
        %p363 = scmp.lt.s32.totalorder %s15, 1
        %s364 = scalar_select %p363, %s15, 1
        %s365 = smul.addr %s364, 2
        %s366 = smul.addr %s365, 8
        %s367 = scalar_lea.vmem %s3, %s366
      $region44: #{conv_block_forward.5} parent=39 // pred_fallthru
        _
    $region40: #{conv_block_forward.5} parent=5 // pred_fallthru
      _
  $region6: #{conv_block_forward.5} parent=0 // loop_footer
    %s13 = sadd.s32 1, %s9
  $region7: #{conv_block_forward.5} parent=0 // loop_footer_branch
    %8 = sbr.rel target = $region3
  $region8: #{conv_block_forward.5} parent=0 // loop_exit
    _

// kernel: conv_block_forward.4
$region0: #{conv_block_forward.4}
  #allocation0 [shape = 'u32[]', space=smem, size = 0x4, offset = 0x4, fixed_abs, tag = 'smem constant byte address 0x4 - core index']
  #allocation1 [shape = 'u32[144,128]{1,0:T(1,128)}', space=vmem, size = 0x12000, scoped, tag = 'internal scratch']
  #allocation2 [shape = 'f32[18,18,8]{2,1,0:T(8,128)}', space=vmem, size = 0x36000, scoped, tag = 'scratch operand']
  %s0 = inlined_call_operand.vmem [shape: f32[2,16,16,8], index: 0, kind: input, shape index: {}]
  %s1 = inlined_call_operand.vmem [shape: f32[9,8,128], index: 1, kind: input, shape index: {}]
  %s2 = inlined_call_operand.vmem [shape: f32[1,128], index: 2, kind: input, shape index: {}]
  %s3 = inlined_call_operand.vmem [shape: f32[1,8], index: 3, kind: input, shape index: {}]
  %s4 = inlined_call_operand.vmem [shape: f32[1,8], index: 4, kind: input, shape index: {}]
  %s5 = inlined_call_operand.vmem [shape: f32[2,256,8], index: 5, kind: output, shape index: {0}]
  %s6 = inlined_call_operand.vmem [shape: f32[2,1,8], index: 6, kind: output, shape index: {1}]
  %s7 = inlined_call_operand.vmem [shape: f32[2,1,8], index: 7, kind: output, shape index: {2}]
  %8 = xla_tuple %s5, %s6, %s7
  %s9 = sld [smem:[#allocation0]]
  $region69: #{conv_block_forward.4} parent=0
    _
  %s11 = ssub.s32 1, %s9
  %s12 = scalar_select 0, %s11, %s9
  loop: start=0, step=1, limit=4
  $region2: #{conv_block_forward.4} parent=0 // loop_pre_header
    _
  $region3: #{conv_block_forward.4} parent=0 // loop_header
    %s14 = sphi 0, %s18
    %p15 = scmp.ge.s32.totalorder %s14, 4
    %s24 = sphi 0, %s26
    %s27 = sphi 0, %s24
    %s28 = sphi 0, %s27
    %s44 = sphi 0, %s28
    %s48 = sphi 0, %s48
    %s50 = sphi 0, %s48
    %s51 = sphi 0, %s50
    %s65 = sphi 0, %s51
    %s69 = sphi 0, %s69
    %s71 = sphi 0, %s69
    %s72 = sphi 0, %s71
    %s86 = sphi 0, %s72
    %s90 = sphi 0, %s90
    %s92 = sphi 0, %s90
    %s93 = sphi 0, %s92
    %s107 = sphi 0, %s93
    %s111 = sphi 0, %s111
    %s113 = sphi 0, %s111
    %s114 = sphi 0, %s113
    %s128 = sphi 0, %s114
    %s134 = sphi 0, %s136
    %s137 = sphi 0, %s134
    %s138 = sphi 0, %s137
    %s154 = sphi 0, %s138
    %s160 = sphi 0, %s162
    %s163 = sphi 0, %s160
    %s164 = sphi 0, %s163
    %s180 = sphi 0, %s164
    %s186 = sphi 0, %s188
    %s189 = sphi 0, %s186
    %s190 = sphi 0, %s189
    %s206 = sphi 0, %s190
  $region4: #{conv_block_forward.4} parent=0 // loop_header_branch
    %17 = sbr.rel (%p15) target = $region8
  $region5: #{conv_block_forward.4} parent=0 // loop_body
    %s19 = ssub.s32 %s14, 1
    %s20 = ssub.s32 %s14, 2
    %s21 = sadd.s32 %s14, 1
    %s22 = ssub.s32 %s14, %s21
    %p23 = scmp.eq.s32.totalorder %s22, 0
    %s25 = sadd.s32 %s24, 1
    %s26 = scalar_select %p23, %s24, %s25
    %p29 = pneg %p23
    %p30 = scmp.eq.s32.totalorder %s14, 1
    %p31 = por %p29, %p30
    %p32 = scmp.ne.s32.totalorder %s24, %s27
    %p33 = scmp.eq.s32.totalorder %s14, 0
    %p34 = por %p32, %p33
    %p35 = scmp.ne.s32.totalorder %s24, %s27
    %p36 = scmp.eq.s32.totalorder %s19, 1
    %p37 = por %p35, %p36
    %p38 = scmp.ne.s32.totalorder %s27, %s28
    %p39 = scmp.eq.s32.totalorder %s19, 0
    %p40 = por %p38, %p39
    %p41 = scmp.ne.s32.totalorder %s27, %s28
    %p42 = scmp.eq.s32.totalorder %s20, 1
    %p43 = por %p41, %p42
    %p45 = scmp.ne.s32.totalorder %s28, %s44
    %p46 = scmp.eq.s32.totalorder %s20, 0
    %p47 = por %p45, %p46
    %s49 = sadd.s32 %s48, 1
    %p52 = scmp.eq.s32.totalorder %s14, 1
    %p53 = scmp.ne.s32.totalorder %s48, %s50
    %p54 = scmp.eq.s32.totalorder %s14, 0
    %p55 = por %p53, %p54
    %p56 = scmp.ne.s32.totalorder %s48, %s50
    %p57 = scmp.eq.s32.totalorder %s19, 1
    %p58 = por %p56, %p57
    %p59 = scmp.ne.s32.totalorder %s50, %s51
    %p60 = scmp.eq.s32.totalorder %s19, 0
    %p61 = por %p59, %p60
    %p62 = scmp.ne.s32.totalorder %s50, %s51
    %p63 = scmp.eq.s32.totalorder %s20, 1
    %p64 = por %p62, %p63
    %p66 = scmp.ne.s32.totalorder %s51, %s65
    %p67 = scmp.eq.s32.totalorder %s20, 0
    %p68 = por %p66, %p67
    %s70 = sadd.s32 %s69, 1
    %p73 = scmp.eq.s32.totalorder %s14, 1
    %p74 = scmp.ne.s32.totalorder %s69, %s71
    %p75 = scmp.eq.s32.totalorder %s14, 0
    %p76 = por %p74, %p75
    %p77 = scmp.ne.s32.totalorder %s69, %s71
    %p78 = scmp.eq.s32.totalorder %s19, 1
    %p79 = por %p77, %p78
    %p80 = scmp.ne.s32.totalorder %s71, %s72
    %p81 = scmp.eq.s32.totalorder %s19, 0
    %p82 = por %p80, %p81
    %p83 = scmp.ne.s32.totalorder %s71, %s72
    %p84 = scmp.eq.s32.totalorder %s20, 1
    %p85 = por %p83, %p84
    %p87 = scmp.ne.s32.totalorder %s72, %s86
    %p88 = scmp.eq.s32.totalorder %s20, 0
    %p89 = por %p87, %p88
    %s91 = sadd.s32 %s90, 1
    %p94 = scmp.eq.s32.totalorder %s14, 1
    %p95 = scmp.ne.s32.totalorder %s90, %s92
    %p96 = scmp.eq.s32.totalorder %s14, 0
    %p97 = por %p95, %p96
    %p98 = scmp.ne.s32.totalorder %s90, %s92
    %p99 = scmp.eq.s32.totalorder %s19, 1
    %p100 = por %p98, %p99
    %p101 = scmp.ne.s32.totalorder %s92, %s93
    %p102 = scmp.eq.s32.totalorder %s19, 0
    %p103 = por %p101, %p102
    %p104 = scmp.ne.s32.totalorder %s92, %s93
    %p105 = scmp.eq.s32.totalorder %s20, 1
    %p106 = por %p104, %p105
    %p108 = scmp.ne.s32.totalorder %s93, %s107
    %p109 = scmp.eq.s32.totalorder %s20, 0
    %p110 = por %p108, %p109
    %s112 = sadd.s32 %s111, 1
    %p115 = scmp.eq.s32.totalorder %s14, 1
    %p116 = scmp.ne.s32.totalorder %s111, %s113
    %p117 = scmp.eq.s32.totalorder %s14, 0
    %p118 = por %p116, %p117
    %p119 = scmp.ne.s32.totalorder %s111, %s113
    %p120 = scmp.eq.s32.totalorder %s19, 1
    %p121 = por %p119, %p120
    %p122 = scmp.ne.s32.totalorder %s113, %s114
    %p123 = scmp.eq.s32.totalorder %s19, 0
    %p124 = por %p122, %p123
    %p125 = scmp.ne.s32.totalorder %s113, %s114
    %p126 = scmp.eq.s32.totalorder %s20, 1
    %p127 = por %p125, %p126
    %p129 = scmp.ne.s32.totalorder %s114, %s128
    %p130 = scmp.eq.s32.totalorder %s20, 0
    %p131 = por %p129, %p130
    %s132 = ssub.s32 %s14, %s21
    %p133 = scmp.eq.s32.totalorder %s132, 0
    %s135 = sadd.s32 %s134, 1
    %s136 = scalar_select %p133, %s134, %s135
    %p139 = pneg %p133
    %p140 = scmp.eq.s32.totalorder %s14, 1
    %p141 = por %p139, %p140
    %p142 = scmp.ne.s32.totalorder %s134, %s137
    %p143 = scmp.eq.s32.totalorder %s14, 0
    %p144 = por %p142, %p143
    %p145 = scmp.ne.s32.totalorder %s134, %s137
    %p146 = scmp.eq.s32.totalorder %s19, 1
    %p147 = por %p145, %p146
    %p148 = scmp.ne.s32.totalorder %s137, %s138
    %p149 = scmp.eq.s32.totalorder %s19, 0
    %p150 = por %p148, %p149
    %p151 = scmp.ne.s32.totalorder %s137, %s138
    %p152 = scmp.eq.s32.totalorder %s20, 1
    %p153 = por %p151, %p152
    %p155 = scmp.ne.s32.totalorder %s138, %s154
    %p156 = scmp.eq.s32.totalorder %s20, 0
    %p157 = por %p155, %p156
    %s158 = ssub.s32 %s14, %s21
    %p159 = scmp.eq.s32.totalorder %s158, 0
    %s161 = sadd.s32 %s160, 1
    %s162 = scalar_select %p159, %s160, %s161
    %p165 = pneg %p159
    %p166 = scmp.eq.s32.totalorder %s14, 1
    %p167 = por %p165, %p166
    %p168 = scmp.ne.s32.totalorder %s160, %s163
    %p169 = scmp.eq.s32.totalorder %s14, 0
    %p170 = por %p168, %p169
    %p171 = scmp.ne.s32.totalorder %s160, %s163
    %p172 = scmp.eq.s32.totalorder %s19, 1
    %p173 = por %p171, %p172
    %p174 = scmp.ne.s32.totalorder %s163, %s164
    %p175 = scmp.eq.s32.totalorder %s19, 0
    %p176 = por %p174, %p175
    %p177 = scmp.ne.s32.totalorder %s163, %s164
    %p178 = scmp.eq.s32.totalorder %s20, 1
    %p179 = por %p177, %p178
    %p181 = scmp.ne.s32.totalorder %s164, %s180
    %p182 = scmp.eq.s32.totalorder %s20, 0
    %p183 = por %p181, %p182
    %s184 = ssub.s32 %s14, %s21
    %p185 = scmp.eq.s32.totalorder %s184, 0
    %s187 = sadd.s32 %s186, 1
    %s188 = scalar_select %p185, %s186, %s187
    %p191 = pneg %p185
    %p192 = scmp.eq.s32.totalorder %s14, 1
    %p193 = por %p191, %p192
    %p194 = scmp.ne.s32.totalorder %s186, %s189
    %p195 = scmp.eq.s32.totalorder %s14, 0
    %p196 = por %p194, %p195
    %p197 = scmp.ne.s32.totalorder %s186, %s189
    %p198 = scmp.eq.s32.totalorder %s19, 1
    %p199 = por %p197, %p198
    %p200 = scmp.ne.s32.totalorder %s189, %s190
    %p201 = scmp.eq.s32.totalorder %s19, 0
    %p202 = por %p200, %p201
    %p203 = scmp.ne.s32.totalorder %s189, %s190
    %p204 = scmp.eq.s32.totalorder %s20, 1
    %p205 = por %p203, %p204
    %p207 = scmp.ne.s32.totalorder %s190, %s206
    %p208 = scmp.eq.s32.totalorder %s20, 0
    %p209 = por %p207, %p208
    %p210 = scmp.le.s32.totalorder 1, %s14
    %p211 = scmp.lt.s32.totalorder %s14, 3
    %p212 = pnand %p210, %p211
    %p213 = pneg %p212
    // Predicated region
    $region9: #{conv_block_forward.4} parent=5 // pred_check
      _
    $region10: #{conv_block_forward.4} parent=5 // pred_check_branch
      %215 = sbr.rel (%p212) target = $region12
    $region11: #{conv_block_forward.4} parent=5 // pred_region
      %s216 = ssub.s32 %s14, 1
      // Predicated region
      $region13: #{conv_block_forward.4} parent=11 // pred_check
        %p217 = pneg %p61
      $region14: #{conv_block_forward.4} parent=11 // pred_check_branch
        %219 = sbr.rel (%p217) target = $region16
      $region15: #{conv_block_forward.4} parent=11 // pred_region
        _
      $region16: #{conv_block_forward.4} parent=11 // pred_fallthru
        _
      // Predicated region
      $region17: #{conv_block_forward.4} parent=11 // pred_check
        %p220 = pneg %p82
      $region18: #{conv_block_forward.4} parent=11 // pred_check_branch
        %222 = sbr.rel (%p220) target = $region20
      $region19: #{conv_block_forward.4} parent=11 // pred_region
        _
      $region20: #{conv_block_forward.4} parent=11 // pred_fallthru
        _
      // Predicated region
      $region21: #{conv_block_forward.4} parent=11 // pred_check
        %p223 = pneg %p103
      $region22: #{conv_block_forward.4} parent=11 // pred_check_branch
        %225 = sbr.rel (%p223) target = $region24
      $region23: #{conv_block_forward.4} parent=11 // pred_region
        _
      $region24: #{conv_block_forward.4} parent=11 // pred_fallthru
        _
      // Predicated region
      $region25: #{conv_block_forward.4} parent=11 // pred_check
        %p226 = pneg %p124
      $region26: #{conv_block_forward.4} parent=11 // pred_check_branch
        %228 = sbr.rel (%p226) target = $region28
      $region27: #{conv_block_forward.4} parent=11 // pred_region
        _
      $region28: #{conv_block_forward.4} parent=11 // pred_fallthru
        _
    $region12: #{conv_block_forward.4} parent=5 // pred_fallthru
      _
    %p229 = scmp.lt.s32.totalorder %s14, 2
    // Predicated region
    $region29: #{conv_block_forward.4} parent=5 // pred_check
      %p230 = pneg %p229
    $region30: #{conv_block_forward.4} parent=5 // pred_check_branch
      %232 = sbr.rel (%p230) target = $region32
    $region31: #{conv_block_forward.4} parent=5 // pred_region
      // Predicated region
      $region33: #{conv_block_forward.4} parent=31 // pred_check
        %p233 = pneg %p34
      $region34: #{conv_block_forward.4} parent=31 // pred_check_branch
        %235 = sbr.rel (%p233) target = $region36
      $region35: #{conv_block_forward.4} parent=31 // pred_region
        %p236 = scmp.lt.s32.totalorder %s14, 1
        %s237 = scalar_select %p236, %s14, 1
        %s238 = smul.addr %s237, 32
        %s239 = smul.addr %s238, 8
        %s240 = scalar_lea.vmem %s0, %s239
      $region36: #{conv_block_forward.4} parent=31 // pred_fallthru
        _
    $region32: #{conv_block_forward.4} parent=5 // pred_fallthru
      _
    %p241 = scmp.le.s32.totalorder 1, %s14
    %p242 = scmp.lt.s32.totalorder %s14, 3
    %p243 = pnand %p241, %p242
    %p244 = pneg %p243
    // Predicated region
    $region37: #{conv_block_forward.4} parent=5 // pred_check
      _
    $region38: #{conv_block_forward.4} parent=5 // pred_check_branch
      %246 = sbr.rel (%p243) target = $region40
    $region39: #{conv_block_forward.4} parent=5 // pred_region
      %s247 = ssub.s32 %s14, 1
      %p248 = scmp.lt.s32.totalorder %s19, 1
      %s249 = scalar_select %p248, %s19, 1
      %s250 = smul.addr %s249, 32
      %s251 = smul.addr %s250, 8
      %s252 = scalar_lea.vmem %s0, %s251
      %p253 = pneg %p40
      %p254 = pneg %p37
      %p255 = pneg %p61
      %p256 = pneg %p58
      %p257 = pneg %p82
      %p258 = pneg %p79
      %p259 = pneg %p103
      %p260 = pneg %p100
      %p261 = pneg %p124
      %p262 = pneg %p121
      %p263 = pneg %p150
      %p264 = pneg %p147
      %p265 = scmp.lt.s32.totalorder %s19, 1
      %s266 = scalar_select %p265, %s19, 1
      %s267 = smul.addr %s266, 32
      %s268 = smul.addr %s267, 8
      %s269 = scalar_lea.vmem %s5, %s268
      %p270 = pneg %p176
      %p271 = pneg %p173
      %p272 = scmp.lt.s32.totalorder %s19, 1
      %s273 = scalar_select %p272, %s19, 1
      %s274 = scalar_lea.vmem %s6, %s273
      %p275 = pneg %p202
      %p276 = pneg %p199
      %p277 = scmp.lt.s32.totalorder %s19, 1
      %s278 = scalar_select %p277, %s19, 1
      %s279 = scalar_lea.vmem %s7, %s278
      %p280 = scmp.lt.s32.totalorder %s19, 1
      %s281 = scalar_select %p280, %s19, 1
      %s282 = smul.addr %s281, 32
      %s283 = smul.addr %s282, 8
      %s284 = scalar_lea.vmem %s0, %s283
      %p285 = scmp.lt.s32.totalorder %s19, 1
      %s286 = scalar_select %p285, %s19, 1
      %s287 = smul.addr %s286, 32
      %s288 = smul.addr %s287, 8
      %s289 = scalar_lea.vmem %s5, %s288
      %p290 = scmp.lt.s32.totalorder %s19, 1
      %s291 = scalar_select %p290, %s19, 1
      %s292 = scalar_lea.vmem %s6, %s291
      %p293 = scmp.lt.s32.totalorder %s19, 1
      %s294 = scalar_select %p293, %s19, 1
      %s295 = scalar_lea.vmem %s7, %s294
      %v296 = vld [vmem:[%s284] sm:$0xff]
      %v297 = vld [vmem:[%s284 + $0x8] sm:$0xff]
      %v298 = vld [vmem:[%s284 + $0x10] sm:$0xff]
      %v299 = vld [vmem:[%s284 + $0x18] sm:$0xff]
      %v300 = vld [vmem:[%s284 + $0x20] sm:$0xff]
      %v301 = vld [vmem:[%s284 + $0x28] sm:$0xff]
      %v302 = vld [vmem:[%s284 + $0x30] sm:$0xff]
      %v303 = vld [vmem:[%s284 + $0x38] sm:$0xff]
      %v304 = vld [vmem:[%s284 + $0x40] sm:$0xff]
      %v305 = vld [vmem:[%s284 + $0x48] sm:$0xff]
      %v306 = vld [vmem:[%s284 + $0x50] sm:$0xff]
      %v307 = vld [vmem:[%s284 + $0x58] sm:$0xff]
      %v308 = vld [vmem:[%s284 + $0x60] sm:$0xff]
      %v309 = vld [vmem:[%s284 + $0x68] sm:$0xff]
      %v310 = vld [vmem:[%s284 + $0x70] sm:$0xff]
      %v311 = vld [vmem:[%s284 + $0x78] sm:$0xff]
      %v312 = vld [vmem:[%s284 + $0x80] sm:$0xff]
      %v313 = vld [vmem:[%s284 + $0x88] sm:$0xff]
      %v314 = vld [vmem:[%s284 + $0x90] sm:$0xff]
      %v315 = vld [vmem:[%s284 + $0x98] sm:$0xff]
      %v316 = vld [vmem:[%s284 + $0xa0] sm:$0xff]
      %v317 = vld [vmem:[%s284 + $0xa8] sm:$0xff]
      %v318 = vld [vmem:[%s284 + $0xb0] sm:$0xff]
      %v319 = vld [vmem:[%s284 + $0xb8] sm:$0xff]
      %v320 = vld [vmem:[%s284 + $0xc0] sm:$0xff]
      %v321 = vld [vmem:[%s284 + $0xc8] sm:$0xff]
      %v322 = vld [vmem:[%s284 + $0xd0] sm:$0xff]
      %v323 = vld [vmem:[%s284 + $0xd8] sm:$0xff]
      %v324 = vld [vmem:[%s284 + $0xe0] sm:$0xff]
      %v325 = vld [vmem:[%s284 + $0xe8] sm:$0xff]
      %v326 = vld [vmem:[%s284 + $0xf0] sm:$0xff]
      %v327 = vld [vmem:[%s284 + $0xf8] sm:$0xff]
      %v328 = vld [vmem:[%s3] sm:$0x1]
      %v329 = vld [vmem:[%s4] sm:$0x1]
      %v331 = vlaneseq
      %v332 = vshrl.u32 %v331, 7
      %v333 = vsub.s32 0, %v332
      %v334 = vrot.slane %v328, %v333
      %v336 = vmul.f32 %v296, %v334
      %v337 = vmul.f32 %v297, %v334
      %v338 = vmul.f32 %v298, %v334
      %v339 = vmul.f32 %v299, %v334
      %v340 = vmul.f32 %v300, %v334
      %v341 = vmul.f32 %v301, %v334
      %v342 = vmul.f32 %v302, %v334
      %v343 = vmul.f32 %v303, %v334
      %v344 = vmul.f32 %v304, %v334
      %v345 = vmul.f32 %v305, %v334
      %v346 = vmul.f32 %v306, %v334
      %v347 = vmul.f32 %v307, %v334
      %v348 = vmul.f32 %v308, %v334
      %v349 = vmul.f32 %v309, %v334
      %v350 = vmul.f32 %v310, %v334
      %v351 = vmul.f32 %v311, %v334
      %v352 = vmul.f32 %v312, %v334
      %v353 = vmul.f32 %v313, %v334
      %v354 = vmul.f32 %v314, %v334
      %v355 = vmul.f32 %v315, %v334
      %v356 = vmul.f32 %v316, %v334
      %v357 = vmul.f32 %v317, %v334
      %v358 = vmul.f32 %v318, %v334
      %v359 = vmul.f32 %v319, %v334
      %v360 = vmul.f32 %v320, %v334
      %v361 = vmul.f32 %v321, %v334
      %v362 = vmul.f32 %v322, %v334
      %v363 = vmul.f32 %v323, %v334
      %v364 = vmul.f32 %v324, %v334
      %v365 = vmul.f32 %v325, %v334
      %v366 = vmul.f32 %v326, %v334
      %v367 = vmul.f32 %v327, %v334
      %v369 = vlaneseq
      %v370 = vshrl.u32 %v369, 7
      %v371 = vsub.s32 0, %v370
      %v372 = vrot.slane %v329, %v371
      %v374 = vadd.f32 %v336, %v372
      %v375 = vadd.f32 %v337, %v372
      %v376 = vadd.f32 %v338, %v372
      %v377 = vadd.f32 %v339, %v372
      %v378 = vadd.f32 %v340, %v372
      %v379 = vadd.f32 %v341, %v372
      %v380 = vadd.f32 %v342, %v372
      %v381 = vadd.f32 %v343, %v372
      %v382 = vadd.f32 %v344, %v372
      %v383 = vadd.f32 %v345, %v372
      %v384 = vadd.f32 %v346, %v372
      %v385 = vadd.f32 %v347, %v372
      %v386 = vadd.f32 %v348, %v372
      %v387 = vadd.f32 %v349, %v372
      %v388 = vadd.f32 %v350, %v372
      %v389 = vadd.f32 %v351, %v372
      %v390 = vadd.f32 %v352, %v372
      %v391 = vadd.f32 %v353, %v372
      %v392 = vadd.f32 %v354, %v372
      %v393 = vadd.f32 %v355, %v372
      %v394 = vadd.f32 %v356, %v372
      %v395 = vadd.f32 %v357, %v372
      %v396 = vadd.f32 %v358, %v372
      %v397 = vadd.f32 %v359, %v372
      %v398 = vadd.f32 %v360, %v372
      %v399 = vadd.f32 %v361, %v372
      %v400 = vadd.f32 %v362, %v372
      %v401 = vadd.f32 %v363, %v372
      %v402 = vadd.f32 %v364, %v372
      %v403 = vadd.f32 %v365, %v372
      %v404 = vadd.f32 %v366, %v372
      %v405 = vadd.f32 %v367, %v372
      %vm406 = vcmask 64512
      %407 = vst.msk [vmem:[#allocation2] sm:$0xff] %vm406, 0.0
      %408 = vst.msk [vmem:[#allocation2 + $0x8] sm:$0xff] %vm406, 0.0
      %vm409 = vcmask 58368
      %410 = vst.msk [vmem:[#allocation2 + $0x10] sm:$0x3] %vm409, 0.0
      %s411 = scalar_lea.vmem [#allocation2], 408
      %412 = vst.msk [vmem:[%s411] sm:$0xff] %vm406, 0.0
      %413 = vst.msk [vmem:[%s411 + $0x8] sm:$0xff] %vm406, 0.0
      %414 = vst.msk [vmem:[%s411 + $0x10] sm:$0x3] %vm409, 0.0
      %s415 = scalar_lea.vmem [#allocation2], 24
      %vm416 = vcmask 57344
      %417 = vst.msk [vmem:[%s415] sm:$0x1] %vm416, 0.0
      %418 = vst.msk [vmem:[%s415 + $0x18] sm:$0x1] %vm416, 0.0
      %419 = vst.msk [vmem:[%s415 + $0x30] sm:$0x1] %vm416, 0.0
      %420 = vst.msk [vmem:[%s415 + $0x48] sm:$0x1] %vm416, 0.0
      %421 = vst.msk [vmem:[%s415 + $0x60] sm:$0x1] %vm416, 0.0
      %422 = vst.msk [vmem:[%s415 + $0x78] sm:$0x1] %vm416, 0.0
      %423 = vst.msk [vmem:[%s415 + $0x90] sm:$0x1] %vm416, 0.0
      %424 = vst.msk [vmem:[%s415 + $0xa8] sm:$0x1] %vm416, 0.0
      %425 = vst.msk [vmem:[%s415 + $0xc0] sm:$0x1] %vm416, 0.0
      %426 = vst.msk [vmem:[%s415 + $0xd8] sm:$0x1] %vm416, 0.0
      %427 = vst.msk [vmem:[%s415 + $0xf0] sm:$0x1] %vm416, 0.0
      %428 = vst.msk [vmem:[%s415 + $0x108] sm:$0x1] %vm416, 0.0
      %429 = vst.msk [vmem:[%s415 + $0x120] sm:$0x1] %vm416, 0.0
      %430 = vst.msk [vmem:[%s415 + $0x138] sm:$0x1] %vm416, 0.0
      %431 = vst.msk [vmem:[%s415 + $0x150] sm:$0x1] %vm416, 0.0
      %432 = vst.msk [vmem:[%s415 + $0x168] sm:$0x1] %vm416, 0.0
      %433 = vst.msk [vmem:[%s415 + $0x11] sm:$0x1] %vm416, 0.0
      %434 = vst.msk [vmem:[%s415 + $0x29] sm:$0x1] %vm416, 0.0
      %435 = vst.msk [vmem:[%s415 + $0x41] sm:$0x1] %vm416, 0.0
      %436 = vst.msk [vmem:[%s415 + $0x59] sm:$0x1] %vm416, 0.0
      %437 = vst.msk [vmem:[%s415 + $0x71] sm:$0x1] %vm416, 0.0
      %438 = vst.msk [vmem:[%s415 + $0x89] sm:$0x1] %vm416, 0.0
      %439 = vst.msk [vmem:[%s415 + $0xa1] sm:$0x1] %vm416, 0.0
      %440 = vst.msk [vmem:[%s415 + $0xb9] sm:$0x1] %vm416, 0.0
      %441 = vst.msk [vmem:[%s415 + $0xd1] sm:$0x1] %vm416, 0.0
      %442 = vst.msk [vmem:[%s415 + $0xe9] sm:$0x1] %vm416, 0.0
      %443 = vst.msk [vmem:[%s415 + $0x101] sm:$0x1] %vm416, 0.0
      %444 = vst.msk [vmem:[%s415 + $0x119] sm:$0x1] %vm416, 0.0
      %445 = vst.msk [vmem:[%s415 + $0x131] sm:$0x1] %vm416, 0.0
      %446 = vst.msk [vmem:[%s415 + $0x149] sm:$0x1] %vm416, 0.0
      %447 = vst.msk [vmem:[%s415 + $0x161] sm:$0x1] %vm416, 0.0
      %448 = vst.msk [vmem:[%s415 + $0x179] sm:$0x1] %vm416, 0.0
      %449 = vst.msk [vmem:[%s415 + $0x1] sm:$0xff] %vm406, %v374
      %450 = vst.msk [vmem:[%s415 + $0x9] sm:$0xff] %vm406, %v375
      %451 = vst.msk [vmem:[%s415 + $0x19] sm:$0xff] %vm406, %v376
      %452 = vst.msk [vmem:[%s415 + $0x21] sm:$0xff] %vm406, %v377
      %453 = vst.msk [vmem:[%s415 + $0x31] sm:$0xff] %vm406, %v378
      %454 = vst.msk [vmem:[%s415 + $0x39] sm:$0xff] %vm406, %v379
      %455 = vst.msk [vmem:[%s415 + $0x49] sm:$0xff] %vm406, %v380
      %456 = vst.msk [vmem:[%s415 + $0x51] sm:$0xff] %vm406, %v381
      %457 = vst.msk [vmem:[%s415 + $0x61] sm:$0xff] %vm406, %v382
      %458 = vst.msk [vmem:[%s415 + $0x69] sm:$0xff] %vm406, %v383
      %459 = vst.msk [vmem:[%s415 + $0x79] sm:$0xff] %vm406, %v384
      %460 = vst.msk [vmem:[%s415 + $0x81] sm:$0xff] %vm406, %v385
      %461 = vst.msk [vmem:[%s415 + $0x91] sm:$0xff] %vm406, %v386
      %462 = vst.msk [vmem:[%s415 + $0x99] sm:$0xff] %vm406, %v387
      %463 = vst.msk [vmem:[%s415 + $0xa9] sm:$0xff] %vm406, %v388
      %464 = vst.msk [vmem:[%s415 + $0xb1] sm:$0xff] %vm406, %v389
      %465 = vst.msk [vmem:[%s415 + $0xc1] sm:$0xff] %vm406, %v390
      %466 = vst.msk [vmem:[%s415 + $0xc9] sm:$0xff] %vm406, %v391
      %467 = vst.msk [vmem:[%s415 + $0xd9] sm:$0xff] %vm406, %v392
      %468 = vst.msk [vmem:[%s415 + $0xe1] sm:$0xff] %vm406, %v393
      %469 = vst.msk [vmem:[%s415 + $0xf1] sm:$0xff] %vm406, %v394
      %470 = vst.msk [vmem:[%s415 + $0xf9] sm:$0xff] %vm406, %v395
      %471 = vst.msk [vmem:[%s415 + $0x109] sm:$0xff] %vm406, %v396
      %472 = vst.msk [vmem:[%s415 + $0x111] sm:$0xff] %vm406, %v397
      %473 = vst.msk [vmem:[%s415 + $0x121] sm:$0xff] %vm406, %v398
      %474 = vst.msk [vmem:[%s415 + $0x129] sm:$0xff] %vm406, %v399
      %475 = vst.msk [vmem:[%s415 + $0x139] sm:$0xff] %vm406, %v400
      %476 = vst.msk [vmem:[%s415 + $0x141] sm:$0xff] %vm406, %v401
      %477 = vst.msk [vmem:[%s415 + $0x151] sm:$0xff] %vm406, %v402
      %478 = vst.msk [vmem:[%s415 + $0x159] sm:$0xff] %vm406, %v403
      %479 = vst.msk [vmem:[%s415 + $0x169] sm:$0xff] %vm406, %v404
      %480 = vst.msk [vmem:[%s415 + $0x171] sm:$0xff] %vm406, %v405
      %v481 = vld [vmem:[#allocation2] sm:$0xff]
      %v482 = vld [vmem:[#allocation2 + $0x8] sm:$0xff]
      %v483 = vld [vmem:[#allocation2 + $0x18] sm:$0xff]
      %v484 = vld [vmem:[#allocation2 + $0x20] sm:$0xff]
      %v485 = vld [vmem:[#allocation2 + $0x30] sm:$0xff]
      %v486 = vld [vmem:[#allocation2 + $0x38] sm:$0xff]
      %v487 = vld [vmem:[#allocation2 + $0x48] sm:$0xff]
      %v488 = vld [vmem:[#allocation2 + $0x50] sm:$0xff]
      %v489 = vld [vmem:[#allocation2 + $0x60] sm:$0xff]
      %v490 = vld [vmem:[#allocation2 + $0x68] sm:$0xff]
      %v491 = vld [vmem:[#allocation2 + $0x78] sm:$0xff]
      %v492 = vld [vmem:[#allocation2 + $0x80] sm:$0xff]
      %v493 = vld [vmem:[#allocation2 + $0x90] sm:$0xff]
      %v494 = vld [vmem:[#allocation2 + $0x98] sm:$0xff]
      %v495 = vld [vmem:[#allocation2 + $0xa8] sm:$0xff]
      %v496 = vld [vmem:[#allocation2 + $0xb0] sm:$0xff]
      %v497 = vld [vmem:[#allocation2 + $0xc0] sm:$0xff]
      %v498 = vld [vmem:[#allocation2 + $0xc8] sm:$0xff]
      %v499 = vld [vmem:[#allocation2 + $0xd8] sm:$0xff]
      %v500 = vld [vmem:[#allocation2 + $0xe0] sm:$0xff]
      %v501 = vld [vmem:[#allocation2 + $0xf0] sm:$0xff]
      %v502 = vld [vmem:[#allocation2 + $0xf8] sm:$0xff]
      %v503 = vld [vmem:[#allocation2 + $0x108] sm:$0xff]
      %v504 = vld [vmem:[#allocation2 + $0x110] sm:$0xff]
      %v505 = vld [vmem:[#allocation2 + $0x120] sm:$0xff]
      %v506 = vld [vmem:[#allocation2 + $0x128] sm:$0xff]
      %v507 = vld [vmem:[#allocation2 + $0x138] sm:$0xff]
      %v508 = vld [vmem:[#allocation2 + $0x140] sm:$0xff]
      %v509 = vld [vmem:[#allocation2 + $0x150] sm:$0xff]
      %v510 = vld [vmem:[#allocation2 + $0x158] sm:$0xff]
      %v511 = vld [vmem:[#allocation2 + $0x168] sm:$0xff]
      %v512 = vld [vmem:[#allocation2 + $0x170] sm:$0xff]
      %v513 = vld [vmem:[%s1] sm:$0xff]
      %v514 = vld [vmem:[#allocation2 + $0x1] sm:$0xff]
      %v515 = vld [vmem:[#allocation2 + $0x9] sm:$0xff]
      %v516 = vld [vmem:[#allocation2 + $0x19] sm:$0xff]
      %v517 = vld [vmem:[#allocation2 + $0x21] sm:$0xff]
      %v518 = vld [vmem:[#allocation2 + $0x31] sm:$0xff]
      %v519 = vld [vmem:[#allocation2 + $0x39] sm:$0xff]
      %v520 = vld [vmem:[#allocation2 + $0x49] sm:$0xff]
      %v521 = vld [vmem:[#allocation2 + $0x51] sm:$0xff]
      %v522 = vld [vmem:[#allocation2 + $0x61] sm:$0xff]
      %v523 = vld [vmem:[#allocation2 + $0x69] sm:$0xff]
      %v524 = vld [vmem:[#allocation2 + $0x79] sm:$0xff]
      %v525 = vld [vmem:[#allocation2 + $0x81] sm:$0xff]
      %v526 = vld [vmem:[#allocation2 + $0x91] sm:$0xff]
      %v527 = vld [vmem:[#allocation2 + $0x99] sm:$0xff]
      %v528 = vld [vmem:[#allocation2 + $0xa9] sm:$0xff]
      %v529 = vld [vmem:[#allocation2 + $0xb1] sm:$0xff]
      %v530 = vld [vmem:[#allocation2 + $0xc1] sm:$0xff]
      %v531 = vld [vmem:[#allocation2 + $0xc9] sm:$0xff]
      %v532 = vld [vmem:[#allocation2 + $0xd9] sm:$0xff]
      %v533 = vld [vmem:[#allocation2 + $0xe1] sm:$0xff]
      %v534 = vld [vmem:[#allocation2 + $0xf1] sm:$0xff]
      %v535 = vld [vmem:[#allocation2 + $0xf9] sm:$0xff]
      %v536 = vld [vmem:[#allocation2 + $0x109] sm:$0xff]
      %v537 = vld [vmem:[#allocation2 + $0x111] sm:$0xff]
      %v538 = vld [vmem:[#allocation2 + $0x121] sm:$0xff]
      %v539 = vld [vmem:[#allocation2 + $0x129] sm:$0xff]
      %v540 = vld [vmem:[#allocation2 + $0x139] sm:$0xff]
      %v541 = vld [vmem:[#allocation2 + $0x141] sm:$0xff]
      %v542 = vld [vmem:[#allocation2 + $0x151] sm:$0xff]
      %v543 = vld [vmem:[#allocation2 + $0x159] sm:$0xff]
      %v544 = vld [vmem:[#allocation2 + $0x169] sm:$0xff]
      %v545 = vld [vmem:[#allocation2 + $0x171] sm:$0xff]
      %s546 = scalar_lea.vmem %s1, 8
      %v547 = vld [vmem:[%s546] sm:$0xff]
      %v549 = vsel %vm406, %v514, 0
      %v552 = vsel %vm406, %v515, 0
      %v555 = vsel %vm406, %v516, 0
      %v558 = vsel %vm406, %v517, 0
      %v561 = vsel %vm406, %v518, 0
      %v564 = vsel %vm406, %v519, 0
      %v567 = vsel %vm406, %v520, 0
      %v570 = vsel %vm406, %v521, 0
      %v573 = vsel %vm406, %v522, 0
      %v576 = vsel %vm406, %v523, 0
      %v579 = vsel %vm406, %v524, 0
      %v582 = vsel %vm406, %v525, 0
      %v585 = vsel %vm406, %v526, 0
      %v588 = vsel %vm406, %v527, 0
      %v591 = vsel %vm406, %v528, 0
      %v594 = vsel %vm406, %v529, 0
      %v597 = vsel %vm406, %v530, 0
      %v600 = vsel %vm406, %v531, 0
      %v603 = vsel %vm406, %v532, 0
      %v606 = vsel %vm406, %v533, 0
      %v609 = vsel %vm406, %v534, 0
      %v612 = vsel %vm406, %v535, 0
      %v615 = vsel %vm406, %v536, 0
      %v618 = vsel %vm406, %v537, 0
      %v621 = vsel %vm406, %v538, 0
      %v624 = vsel %vm406, %v539, 0
      %v627 = vsel %vm406, %v540, 0
      %v630 = vsel %vm406, %v541, 0
      %v633 = vsel %vm406, %v542, 0
      %v636 = vsel %vm406, %v543, 0
      %v639 = vsel %vm406, %v544, 0
      %v642 = vsel %vm406, %v545, 0
      %644 = vmatprep.subr.mxu0 0.0
      %645 = vmatpush1.msra.mxu0 %v547
      %646 = vmatprep.subr.mxu0 0.0
      %647 = vmatpush1.msra.mxu0 0.0
      %648 = vmatprep.subr.mxu0 0.0
      %649 = vmatpush1.msra.mxu0 0.0
      %650 = vmatprep.subr.mxu0 0.0
      %651 = vmatpush1.msra.mxu0 0.0
      %652 = vmatprep.subr.mxu0 0.0
      %653 = vmatpush1.msra.mxu0 0.0
      %654 = vmatprep.subr.mxu0 0.0
      %655 = vmatpush1.msra.mxu0 0.0
      %656 = vmatprep.subr.mxu0 0.0
      %657 = vmatpush1.msra.mxu0 0.0
      %658 = vmatprep.subr.mxu0 0.0
      %659 = vmatpush1.msra.mxu0 0.0
      %660 = vmatprep.subr.mxu0 0.0
      %661 = vmatpush1.msra.mxu0 0.0
      %662 = vmatprep.subr.mxu0 0.0
      %663 = vmatpush1.msra.mxu0 0.0
      %664 = vmatprep.subr.mxu0 0.0
      %665 = vmatpush1.msra.mxu0 0.0
      %666 = vmatprep.subr.mxu0 0.0
      %667 = vmatpush1.msra.mxu0 0.0
      %668 = vmatprep.subr.mxu0 0.0
      %669 = vmatpush1.msra.mxu0 0.0
      %670 = vmatprep.subr.mxu0 0.0
      %671 = vmatpush1.msra.mxu0 0.0
      %672 = vmatprep.subr.mxu0 0.0
      %673 = vmatpush1.msra.mxu0 0.0
      %674 = vmatprep.subr.mxu0 0.0
      %675 = vmatpush1.msra.mxu0 0.0
      %676 = vmatprep.subr.mxu0 0.0
      %677 = vmatpush1.msra.mxu0 0.0
      %678 = vmatprep.subr.mxu0 0.0
      %679 = vmatpush1.msra.mxu0 0.0
      %680 = vmatprep.subr.mxu0 0.0
      %681 = vmatpush1.msra.mxu0 0.0
      %682 = vmatprep.subr.mxu0 0.0
      %683 = vmatpush1.msra.mxu0 0.0
      %684 = vmatprep.subr.mxu0 0.0
      %685 = vmatpush1.msra.mxu0 0.0
      %686 = vmatprep.subr.mxu0 0.0
      %687 = vmatpush1.msra.mxu0 0.0
      %688 = vmatprep.subr.mxu0 0.0
      %689 = vmatpush1.msra.mxu0 0.0
      %690 = vmatprep.subr.mxu0 0.0
      %691 = vmatpush1.msra.mxu0 0.0
      %692 = vmatprep.subr.mxu0 0.0
      %693 = vmatpush1.msra.mxu0 0.0
      %694 = vmatprep.subr.mxu0 0.0
      %695 = vmatpush1.msra.mxu0 0.0
      %696 = vmatprep.subr.mxu0 0.0
      %697 = vmatpush1.msra.mxu0 0.0
      %698 = vmatprep.subr.mxu0 0.0
      %699 = vmatpush1.msra.mxu0 0.0
      %700 = vmatprep.subr.mxu0 0.0
      %701 = vmatpush1.msra.mxu0 0.0
      %702 = vmatprep.subr.mxu0 0.0
      %703 = vmatpush1.msra.mxu0 0.0
      %704 = vmatprep.subr.mxu0 0.0
      %705 = vmatpush1.msra.mxu0 0.0
      %706 = vmatprep.subr.mxu0 0.0
      %707 = vmatpush1.msra.mxu0 0.0
      %708 = vmatprep.mubr.f32.mxu0 0.0
      %709 = vmatmul.mubr.f32.gmra.mrb[0].mxu0 %v549
      %v710 = vpop.f32.mrb[0].mxu0
      %v711 = vadd.f32 0.0, %v710
      %v712 = vpop.f32.mrb[0].mxu0
      %713 = vmatprep.mubr.f32.mxu0 0.0
      %714 = vmatmul.mubr.f32.gmra.mrb[0].mxu0 %v552
      %v715 = vpop.f32.mrb[0].mxu0
      %v716 = vadd.f32 0.0, %v715
      %v717 = vpop.f32.mrb[0].mxu0
      %718 = vmatprep.mubr.f32.mxu0 0.0
      %719 = vmatmul.mubr.f32.gmra.mrb[0].mxu0 %v555
      %v720 = vpop.f32.mrb[0].mxu0
      %v721 = vadd.f32 0.0, %v720
      %v722 = vpop.f32.mrb[0].mxu0
      %723 = vmatprep.mubr.f32.mxu0 0.0
      %724 = vmatmul.mubr.f32.gmra.mrb[0].mxu0 %v558
      %v725 = vpop.f32.mrb[0].mxu0
      %v726 = vadd.f32 0.0, %v725
      %v727 = vpop.f32.mrb[0].mxu0
      %728 = vmatprep.mubr.f32.mxu0 0.0
      %729 = vmatmul.mubr.f32.gmra.mrb[0].mxu0 %v561
      %v730 = vpop.f32.mrb[0].mxu0
      %v731 = vadd.f32 0.0, %v730
      %v732 = vpop.f32.mrb[0].mxu0
      %733 = vmatprep.mubr.f32.mxu0 0.0
      %734 = vmatmul.mubr.f32.gmra.mrb[0].mxu0 %v564
      %v735 = vpop.f32.mrb[0].mxu0
      %v736 = vadd.f32 0.0, %v735
      %v737 = vpop.f32.mrb[0].mxu0
      %738 = vmatprep.mubr.f32.mxu0 0.0
      %739 = vmatmul.mubr.f32.gmra.mrb[0].mxu0 %v567
      %v740 = vpop.f32.mrb[0].mxu0
      %v741 = vadd.f32 0.0, %v740
      %v742 = vpop.f32.mrb[0].mxu0
      %743 = vmatprep.mubr.f32.mxu0 0.0
      %744 = vmatmul.mubr.f32.gmra.mrb[0].mxu0 %v570
      %v745 = vpop.f32.mrb[0].mxu0
      %v746 = vadd.f32 0.0, %v745
      %v747 = vpop.f32.mrb[0].mxu0
      %748 = vmatprep.mubr.f32.mxu0 0.0
      %749 = vmatmul.mubr.f32.gmra.mrb[0].mxu0 %v573
      %v750 = vpop.f32.mrb[0].mxu0
      %v751 = vadd.f32 0.0, %v750
      %v752 = vpop.f32.mrb[0].mxu0
      %753 = vmatprep.mubr.f32.mxu0 0.0
      %754 = vmatmul.mubr.f32.gmra.mrb[0].mxu0 %v576
      %v755 = vpop.f32.mrb[0].mxu0
      %v756 = vadd.f32 0.0, %v755
      %v757 = vpop.f32.mrb[0].mxu0
      %758 = vmatprep.mubr.f32.mxu0 0.0
      %759 = vmatmul.mubr.f32.gmra.mrb[0].mxu0 %v579
      %v760 = vpop.f32.mrb[0].mxu0
      %v761 = vadd.f32 0.0, %v760
      %v762 = vpop.f32.mrb[0].mxu0
      %763 = vmatprep.mubr.f32.mxu0 0.0
      %764 = vmatmul.mubr.f32.gmra.mrb[0].mxu0 %v582
      %v765 = vpop.f32.mrb[0].mxu0
      %v766 = vadd.f32 0.0, %v765
      %v767 = vpop.f32.mrb[0].mxu0
      %768 = vmatprep.mubr.f32.mxu0 0.0
      %769 = vmatmul.mubr.f32.gmra.mrb[0].mxu0 %v585
      %v770 = vpop.f32.mrb[0].mxu0
      %v771 = vadd.f32 0.0, %v770
      %v772 = vpop.f32.mrb[0].mxu0
      %773 = vmatprep.mubr.f32.mxu0 0.0
      %774 = vmatmul.mubr.f32.gmra.mrb[0].mxu0 %v588
      %v775 = vpop.f32.mrb[0].mxu0
      %v776 = vadd.f32 0.0, %v775
      %v777 = vpop.f32.mrb[0].mxu0
      %778 = vmatprep.mubr.f32.mxu0 0.0
      %779 = vmatmul.mubr.f32.gmra.mrb[0].mxu0 %v591
      %v780 = vpop.f32.mrb[0].mxu0
      %v781 = vadd.f32 0.0, %v780
      %v782 = vpop.f32.mrb[0].mxu0
      %783 = vmatprep.mubr.f32.mxu0 0.0
      %784 = vmatmul.mubr.f32.gmra.mrb[0].mxu0 %v594
      %v785 = vpop.f32.mrb[0].mxu0
      %v786 = vadd.f32 0.0, %v785
      %v787 = vpop.f32.mrb[0].mxu0
      %788 = vmatprep.mubr.f32.mxu0 0.0
      %789 = vmatmul.mubr.f32.gmra.mrb[0].mxu0 %v597
      %v790 = vpop.f32.mrb[0].mxu0
      %v791 = vadd.f32 0.0, %v790
      %v792 = vpop.f32.mrb[0].mxu0
      %793 = vmatprep.mubr.f32.mxu0 0.0
      %794 = vmatmul.mubr.f32.gmra.mrb[0].mxu0 %v600
      %v795 = vpop.f32.mrb[0].mxu0
      %v796 = vadd.f32 0.0, %v795
      %v797 = vpop.f32.mrb[0].mxu0
      %798 = vmatprep.mubr.f32.mxu0 0.0
      %799 = vmatmul.mubr.f32.gmra.mrb[0].mxu0 %v603
      %v800 = vpop.f32.mrb[0].mxu0
      %v801 = vadd.f32 0.0, %v800
      %v802 = vpop.f32.mrb[0].mxu0
      %803 = vmatprep.mubr.f32.mxu0 0.0
      %804 = vmatmul.mubr.f32.gmra.mrb[0].mxu0 %v606
      %v805 = vpop.f32.mrb[0].mxu0
      %v806 = vadd.f32 0.0, %v805
      %v807 = vpop.f32.mrb[0].mxu0
      %808 = vmatprep.mubr.f32.mxu0 0.0
      %809 = vmatmul.mubr.f32.gmra.mrb[0].mxu0 %v609
      %v810 = vpop.f32.mrb[0].mxu0
      %v811 = vadd.f32 0.0, %v810
      %v812 = vpop.f32.mrb[0].mxu0
      %813 = vmatprep.mubr.f32.mxu0 0.0
      %814 = vmatmul.mubr.f32.gmra.mrb[0].mxu0 %v612
      %v815 = vpop.f32.mrb[0].mxu0
      %v816 = vadd.f32 0.0, %v815
      %v817 = vpop.f32.mrb[0].mxu0
      %818 = vmatprep.mubr.f32.mxu0 0.0
      %819 = vmatmul.mubr.f32.gmra.mrb[0].mxu0 %v615
      %v820 = vpop.f32.mrb[0].mxu0
      %v821 = vadd.f32 0.0, %v820
      %v822 = vpop.f32.mrb[0].mxu0
      %823 = vmatprep.mubr.f32.mxu0 0.0
      %824 = vmatmul.mubr.f32.gmra.mrb[0].mxu0 %v618
      %v825 = vpop.f32.mrb[0].mxu0
      %v826 = vadd.f32 0.0, %v825
      %v827 = vpop.f32.mrb[0].mxu0
      %828 = vmatprep.mubr.f32.mxu0 0.0
      %829 = vmatmul.mubr.f32.gmra.mrb[0].mxu0 %v621
      %v830 = vpop.f32.mrb[0].mxu0
      %v831 = vadd.f32 0.0, %v830
      %v832 = vpop.f32.mrb[0].mxu0
      %833 = vmatprep.mubr.f32.mxu0 0.0
      %834 = vmatmul.mubr.f32.gmra.mrb[0].mxu0 %v624
      %v835 = vpop.f32.mrb[0].mxu0
      %v836 = vadd.f32 0.0, %v835
      %v837 = vpop.f32.mrb[0].mxu0
      %838 = vmatprep.mubr.f32.mxu0 0.0
      %839 = vmatmul.mubr.f32.gmra.mrb[0].mxu0 %v627
      %v840 = vpop.f32.mrb[0].mxu0
      %v841 = vadd.f32 0.0, %v840
      %v842 = vpop.f32.mrb[0].mxu0
      %843 = vmatprep.mubr.f32.mxu0 0.0
      %844 = vmatmul.mubr.f32.gmra.mrb[0].mxu0 %v630
      %v845 = vpop.f32.mrb[0].mxu0
      %v846 = vadd.f32 0.0, %v845
      %v847 = vpop.f32.mrb[0].mxu0
      %848 = vmatprep.mubr.f32.mxu0 0.0
      %849 = vmatmul.mubr.f32.gmra.mrb[0].mxu0 %v633
      %v850 = vpop.f32.mrb[0].mxu0
      %v851 = vadd.f32 0.0, %v850
      %v852 = vpop.f32.mrb[0].mxu0
      %853 = vmatprep.mubr.f32.mxu0 0.0
      %854 = vmatmul.mubr.f32.gmra.mrb[0].mxu0 %v636
      %v855 = vpop.f32.mrb[0].mxu0
      %v856 = vadd.f32 0.0, %v855
      %v857 = vpop.f32.mrb[0].mxu0
      %858 = vmatprep.mubr.f32.mxu0 0.0
      %859 = vmatmul.mubr.f32.gmra.mrb[0].mxu0 %v639
      %v860 = vpop.f32.mrb[0].mxu0
      %v861 = vadd.f32 0.0, %v860
      %v862 = vpop.f32.mrb[0].mxu0
      %863 = vmatprep.mubr.f32.mxu0 0.0
      %864 = vmatmul.mubr.f32.gmra.mrb[0].mxu0 %v642
      %v865 = vpop.f32.mrb[0].mxu0
      %v866 = vadd.f32 0.0, %v865
      %v867 = vpop.f32.mrb[0].mxu0
      %868 = vdwg.mxu0
      %v870 = vsel %vm406, %v481, 0
      %v873 = vsel %vm406, %v482, 0
      %v876 = vsel %vm406, %v483, 0
      %v879 = vsel %vm406, %v484, 0
      %v882 = vsel %vm406, %v485, 0
      %v885 = vsel %vm406, %v486, 0
      %v888 = vsel %vm406, %v487, 0
      %v891 = vsel %vm406, %v488, 0
      %v894 = vsel %vm406, %v489, 0
      %v897 = vsel %vm406, %v490, 0
      %v900 = vsel %vm406, %v491, 0
      %v903 = vsel %vm406, %v492, 0
      %v906 = vsel %vm406, %v493, 0
      %v909 = vsel %vm406, %v494, 0
      %v912 = vsel %vm406, %v495, 0
      %v915 = vsel %vm406, %v496, 0
      %v918 = vsel %vm406, %v497, 0
      %v921 = vsel %vm406, %v498, 0
      %v924 = vsel %vm406, %v499, 0
      %v927 = vsel %vm406, %v500, 0
      %v930 = vsel %vm406, %v501, 0
      %v933 = vsel %vm406, %v502, 0
      %v936 = vsel %vm406, %v503, 0
      %v939 = vsel %vm406, %v504, 0
      %v942 = vsel %vm406, %v505, 0
      %v945 = vsel %vm406, %v506, 0
      %v948 = vsel %vm406, %v507, 0
      %v951 = vsel %vm406, %v508, 0
      %v954 = vsel %vm406, %v509, 0
      %v957 = vsel %vm406, %v510, 0
      %v960 = vsel %vm406, %v511, 0
      %v963 = vsel %vm406, %v512, 0
      %965 = vmatprep.subr.mxu0 0.0
      %966 = vmatpush1.msra.mxu0 %v513
      %967 = vmatprep.subr.mxu0 0.0
      %968 = vmatpush1.msra.mxu0 0.0
      %969 = vmatprep.subr.mxu0 0.0
      %970 = vmatpush1.msra.mxu0 0.0
      %971 = vmatprep.subr.mxu0 0.0
      %972 = vmatpush1.msra.mxu0 0.0
      %973 = vmatprep.subr.mxu0 0.0
      %974 = vmatpush1.msra.mxu0 0.0
      %975 = vmatprep.subr.mxu0 0.0
      %976 = vmatpush1.msra.mxu0 0.0
      %977 = vmatprep.subr.mxu0 0.0
      %978 = vmatpush1.msra.mxu0 0.0
      %979 = vmatprep.subr.mxu0 0.0
      %980 = vmatpush1.msra.mxu0 0.0
      %981 = vmatprep.subr.mxu0 0.0
      %982 = vmatpush1.msra.mxu0 0.0
      %983 = vmatprep.subr.mxu0 0.0
      %984 = vmatpush1.msra.mxu0 0.0
      %985 = vmatprep.subr.mxu0 0.0
      %986 = vmatpush1.msra.mxu0 0.0
      %987 = vmatprep.subr.mxu0 0.0
      %988 = vmatpush1.msra.mxu0 0.0
      %989 = vmatprep.subr.mxu0 0.0
      %990 = vmatpush1.msra.mxu0 0.0
      %991 = vmatprep.subr.mxu0 0.0
      %992 = vmatpush1.msra.mxu0 0.0
      %993 = vmatprep.subr.mxu0 0.0
      %994 = vmatpush1.msra.mxu0 0.0
      %995 = vmatprep.subr.mxu0 0.0
      %996 = vmatpush1.msra.mxu0 0.0
      %997 = vmatprep.subr.mxu0 0.0
      %998 = vmatpush1.msra.mxu0 0.0
      %999 = vmatprep.subr.mxu0 0.0
      %1000 = vmatpush1.msra.mxu0 0.0
      %1001 = vmatprep.subr.mxu0 0.0
      %1002 = vmatpush1.msra.mxu0 0.0
      %1003 = vmatprep.subr.mxu0 0.0
      %1004 = vmatpush1.msra.mxu0 0.0
      %1005 = vmatprep.subr.mxu0 0.0
      %1006 = vmatpush1.msra.mxu0 0.0
      %1007 = vmatprep.subr.mxu0 0.0
      %1008 = vmatpush1.msra.mxu0 0.0
      %1009 = vmatprep.subr.mxu0 0.0
      %1010 = vmatpush1.msra.mxu0 0.0
      %1011 = vmatprep.subr.mxu0 0.0
      %1012 = vmatpush1.msra.mxu0 0.0
      %1013 = vmatprep.subr.mxu0 0.0
      %1014 = vmatpush1.msra.mxu0 0.0
      %1015 = vmatprep.subr.mxu0 0.0
      %1016 = vmatpush1.msra.mxu0 0.0
      %1017 = vmatprep.subr.mxu0 0.0
      %1018 = vmatpush1.msra.mxu0 0.0
      %1019 = vmatprep.subr.mxu0 0.0
      %1020 = vmatpush1.msra.mxu0 0.0
      %1021 = vmatprep.subr.mxu0 0.0
      %1022 = vmatpush1.msra.mxu0 0.0
      %1023 = vmatprep.subr.mxu0 0.0
      %1024 = vmatpush1.msra.mxu0 0.0
      %1025 = vmatprep.subr.mxu0 0.0
      %1026 = vmatpush1.msra.mxu0 0.0
      %1027 = vmatprep.subr.mxu0 0.0
      %1028 = vmatpush1.msra.mxu0 0.0
      %1029 = vmatprep.mubr.f32.mxu0 0.0
      %1030 = vmatmul.mubr.f32.gmra.mrb[0].mxu0 %v870
      %v1031 = vpop.f32.mrb[0].mxu0
      %v1032 = vadd.f32 %v711, %v1031
      %v1033 = vpop.f32.mrb[0].mxu0
      %1034 = vmatprep.mubr.f32.mxu0 0.0
      %1035 = vmatmul.mubr.f32.gmra.mrb[0].mxu0 %v873
      %v1036 = vpop.f32.mrb[0].mxu0
      %v1037 = vadd.f32 %v716, %v1036
      %v1038 = vpop.f32.mrb[0].mxu0
      %1039 = vmatprep.mubr.f32.mxu0 0.0
      %1040 = vmatmul.mubr.f32.gmra.mrb[0].mxu0 %v876
      %v1041 = vpop.f32.mrb[0].mxu0
      %v1042 = vadd.f32 %v721, %v1041
      %v1043 = vpop.f32.mrb[0].mxu0
      %1044 = vmatprep.mubr.f32.mxu0 0.0
      %1045 = vmatmul.mubr.f32.gmra.mrb[0].mxu0 %v879
      %v1046 = vpop.f32.mrb[0].mxu0
      %v1047 = vadd.f32 %v726, %v1046
      %v1048 = vpop.f32.mrb[0].mxu0
      %1049 = vmatprep.mubr.f32.mxu0 0.0
      %1050 = vmatmul.mubr.f32.gmra.mrb[0].mxu0 %v882
      %v1051 = vpop.f32.mrb[0].mxu0
      %v1052 = vadd.f32 %v731, %v1051
      %v1053 = vpop.f32.mrb[0].mxu0
      %1054 = vmatprep.mubr.f32.mxu0 0.0
      %1055 = vmatmul.mubr.f32.gmra.mrb[0].mxu0 %v885
      %v1056 = vpop.f32.mrb[0].mxu0
      %v1057 = vadd.f32 %v736, %v1056
      %v1058 = vpop.f32.mrb[0].mxu0
      %1059 = vmatprep.mubr.f32.mxu0 0.0
      %1060 = vmatmul.mubr.f32.gmra.mrb[0].mxu0 %v888
      %v1061 = vpop.f32.mrb[0].mxu0
      %v1062 = vadd.f32 %v741, %v1061
      %v1063 = vpop.f32.mrb[0].mxu0
      %1064 = vmatprep.mubr.f32.mxu0 0.0
      %1065 = vmatmul.mubr.f32.gmra.mrb[0].mxu0 %v891
      %v1066 = vpop.f32.mrb[0].mxu0
      %v1067 = vadd.f32 %v746, %v1066
      %v1068 = vpop.f32.mrb[0].mxu0
      %1069 = vmatprep.mubr.f32.mxu0 0.0
      %1070 = vmatmul.mubr.f32.gmra.mrb[0].mxu0 %v894
      %v1071 = vpop.f32.mrb[0].mxu0
      %v1072 = vadd.f32 %v751, %v1071
      %v1073 = vpop.f32.mrb[0].mxu0
      %1074 = vmatprep.mubr.f32.mxu0 0.0
      %1075 = vmatmul.mubr.f32.gmra.mrb[0].mxu0 %v897
      %v1076 = vpop.f32.mrb[0].mxu0
      %v1077 = vadd.f32 %v756, %v1076
      %v1078 = vpop.f32.mrb[0].mxu0
      %1079 = vmatprep.mubr.f32.mxu0 0.0
      %1080 = vmatmul.mubr.f32.gmra.mrb[0].mxu0 %v900
      %v1081 = vpop.f32.mrb[0].mxu0
      %v1082 = vadd.f32 %v761, %v1081
      %v1083 = vpop.f32.mrb[0].mxu0
      %1084 = vmatprep.mubr.f32.mxu0 0.0
      %1085 = vmatmul.mubr.f32.gmra.mrb[0].mxu0 %v903
      %v1086 = vpop.f32.mrb[0].mxu0
      %v1087 = vadd.f32 %v766, %v1086
      %v1088 = vpop.f32.mrb[0].mxu0
      %1089 = vmatprep.mubr.f32.mxu0 0.0
      %1090 = vmatmul.mubr.f32.gmra.mrb[0].mxu0 %v906
      %v1091 = vpop.f32.mrb[0].mxu0
      %v1092 = vadd.f32 %v771, %v1091
      %v1093 = vpop.f32.mrb[0].mxu0
      %1094 = vmatprep.mubr.f32.mxu0 0.0
      %1095 = vmatmul.mubr.f32.gmra.mrb[0].mxu0 %v909
      %v1096 = vpop.f32.mrb[0].mxu0
      %v1097 = vadd.f32 %v776, %v1096
      %v1098 = vpop.f32.mrb[0].mxu0
      %1099 = vmatprep.mubr.f32.mxu0 0.0
      %1100 = vmatmul.mubr.f32.gmra.mrb[0].mxu0 %v912
      %v1101 = vpop.f32.mrb[0].mxu0
      %v1102 = vadd.f32 %v781, %v1101
      %v1103 = vpop.f32.mrb[0].mxu0
      %1104 = vmatprep.mubr.f32.mxu0 0.0
      %1105 = vmatmul.mubr.f32.gmra.mrb[0].mxu0 %v915
      %v1106 = vpop.f32.mrb[0].mxu0
      %v1107 = vadd.f32 %v786, %v1106
      %v1108 = vpop.f32.mrb[0].mxu0
      %1109 = vmatprep.mubr.f32.mxu0 0.0
      %1110 = vmatmul.mubr.f32.gmra.mrb[0].mxu0 %v918
      %v1111 = vpop.f32.mrb[0].mxu0
      %v1112 = vadd.f32 %v791, %v1111
      %v1113 = vpop.f32.mrb[0].mxu0
      %1114 = vmatprep.mubr.f32.mxu0 0.0
      %1115 = vmatmul.mubr.f32.gmra.mrb[0].mxu0 %v921
      %v1116 = vpop.f32.mrb[0].mxu0
      %v1117 = vadd.f32 %v796, %v1116
      %v1118 = vpop.f32.mrb[0].mxu0
      %1119 = vmatprep.mubr.f32.mxu0 0.0
      %1120 = vmatmul.mubr.f32.gmra.mrb[0].mxu0 %v924
      %v1121 = vpop.f32.mrb[0].mxu0
      %v1122 = vadd.f32 %v801, %v1121
      %v1123 = vpop.f32.mrb[0].mxu0
      %1124 = vmatprep.mubr.f32.mxu0 0.0
      %1125 = vmatmul.mubr.f32.gmra.mrb[0].mxu0 %v927
      %v1126 = vpop.f32.mrb[0].mxu0
      %v1127 = vadd.f32 %v806, %v1126
      %v1128 = vpop.f32.mrb[0].mxu0
      %1129 = vmatprep.mubr.f32.mxu0 0.0
      %1130 = vmatmul.mubr.f32.gmra.mrb[0].mxu0 %v930
      %v1131 = vpop.f32.mrb[0].mxu0
      %v1132 = vadd.f32 %v811, %v1131
      %v1133 = vpop.f32.mrb[0].mxu0
      %1134 = vmatprep.mubr.f32.mxu0 0.0
      %1135 = vmatmul.mubr.f32.gmra.mrb[0].mxu0 %v933
      %v1136 = vpop.f32.mrb[0].mxu0
      %v1137 = vadd.f32 %v816, %v1136
      %v1138 = vpop.f32.mrb[0].mxu0
      %1139 = vmatprep.mubr.f32.mxu0 0.0
      %1140 = vmatmul.mubr.f32.gmra.mrb[0].mxu0 %v936
      %v1141 = vpop.f32.mrb[0].mxu0
      %v1142 = vadd.f32 %v821, %v1141
      %v1143 = vpop.f32.mrb[0].mxu0
      %1144 = vmatprep.mubr.f32.mxu0 0.0
      %1145 = vmatmul.mubr.f32.gmra.mrb[0].mxu0 %v939
      %v1146 = vpop.f32.mrb[0].mxu0
      %v1147 = vadd.f32 %v826, %v1146
      %v1148 = vpop.f32.mrb[0].mxu0
      %1149 = vmatprep.mubr.f32.mxu0 0.0
      %1150 = vmatmul.mubr.f32.gmra.mrb[0].mxu0 %v942
      %v1151 = vpop.f32.mrb[0].mxu0
      %v1152 = vadd.f32 %v831, %v1151
      %v1153 = vpop.f32.mrb[0].mxu0
      %1154 = vmatprep.mubr.f32.mxu0 0.0
      %1155 = vmatmul.mubr.f32.gmra.mrb[0].mxu0 %v945
      %v1156 = vpop.f32.mrb[0].mxu0
      %v1157 = vadd.f32 %v836, %v1156
      %v1158 = vpop.f32.mrb[0].mxu0
      %1159 = vmatprep.mubr.f32.mxu0 0.0
      %1160 = vmatmul.mubr.f32.gmra.mrb[0].mxu0 %v948
      %v1161 = vpop.f32.mrb[0].mxu0
      %v1162 = vadd.f32 %v841, %v1161
      %v1163 = vpop.f32.mrb[0].mxu0
      %1164 = vmatprep.mubr.f32.mxu0 0.0
      %1165 = vmatmul.mubr.f32.gmra.mrb[0].mxu0 %v951
      %v1166 = vpop.f32.mrb[0].mxu0
      %v1167 = vadd.f32 %v846, %v1166
      %v1168 = vpop.f32.mrb[0].mxu0
      %1169 = vmatprep.mubr.f32.mxu0 0.0
      %1170 = vmatmul.mubr.f32.gmra.mrb[0].mxu0 %v954
      %v1171 = vpop.f32.mrb[0].mxu0
      %v1172 = vadd.f32 %v851, %v1171
      %v1173 = vpop.f32.mrb[0].mxu0
      %1174 = vmatprep.mubr.f32.mxu0 0.0
      %1175 = vmatmul.mubr.f32.gmra.mrb[0].mxu0 %v957
      %v1176 = vpop.f32.mrb[0].mxu0
      %v1177 = vadd.f32 %v856, %v1176
      %v1178 = vpop.f32.mrb[0].mxu0
      %1179 = vmatprep.mubr.f32.mxu0 0.0
      %1180 = vmatmul.mubr.f32.gmra.mrb[0].mxu0 %v960
      %v1181 = vpop.f32.mrb[0].mxu0
      %v1182 = vadd.f32 %v861, %v1181
      %v1183 = vpop.f32.mrb[0].mxu0
      %1184 = vmatprep.mubr.f32.mxu0 0.0
      %1185 = vmatmul.mubr.f32.gmra.mrb[0].mxu0 %v963
      %v1186 = vpop.f32.mrb[0].mxu0
      %v1187 = vadd.f32 %v866, %v1186
      %v1188 = vpop.f32.mrb[0].mxu0
      %1189 = vdwg.mxu0
      %v1190 = vld [vmem:[#allocation2 + $0x2] sm:$0xff]
      %v1191 = vld [vmem:[#allocation2 + $0xa] sm:$0xff]
      %v1192 = vld [vmem:[#allocation2 + $0x1a] sm:$0xff]
      %v1193 = vld [vmem:[#allocation2 + $0x22] sm:$0xff]
      %v1194 = vld [vmem:[#allocation2 + $0x32] sm:$0xff]
      %v1195 = vld [vmem:[#allocation2 + $0x3a] sm:$0xff]
      %v1196 = vld [vmem:[#allocation2 + $0x4a] sm:$0xff]
      %v1197 = vld [vmem:[#allocation2 + $0x52] sm:$0xff]
      %v1198 = vld [vmem:[#allocation2 + $0x62] sm:$0xff]
      %v1199 = vld [vmem:[#allocation2 + $0x6a] sm:$0xff]
      %v1200 = vld [vmem:[#allocation2 + $0x7a] sm:$0xff]
      %v1201 = vld [vmem:[#allocation2 + $0x82] sm:$0xff]
      %v1202 = vld [vmem:[#allocation2 + $0x92] sm:$0xff]
      %v1203 = vld [vmem:[#allocation2 + $0x9a] sm:$0xff]
      %v1204 = vld [vmem:[#allocation2 + $0xaa] sm:$0xff]
      %v1205 = vld [vmem:[#allocation2 + $0xb2] sm:$0xff]
      %v1206 = vld [vmem:[#allocation2 + $0xc2] sm:$0xff]
      %v1207 = vld [vmem:[#allocation2 + $0xca] sm:$0xff]
      %v1208 = vld [vmem:[#allocation2 + $0xda] sm:$0xff]
      %v1209 = vld [vmem:[#allocation2 + $0xe2] sm:$0xff]
      %v1210 = vld [vmem:[#allocation2 + $0xf2] sm:$0xff]
      %v1211 = vld [vmem:[#allocation2 + $0xfa] sm:$0xff]
      %v1212 = vld [vmem:[#allocation2 + $0x10a] sm:$0xff]
      %v1213 = vld [vmem:[#allocation2 + $0x112] sm:$0xff]
      %v1214 = vld [vmem:[#allocation2 + $0x122] sm:$0xff]
      %v1215 = vld [vmem:[#allocation2 + $0x12a] sm:$0xff]
      %v1216 = vld [vmem:[#allocation2 + $0x13a] sm:$0xff]
      %v1217 = vld [vmem:[#allocation2 + $0x142] sm:$0xff]
      %v1218 = vld [vmem:[#allocation2 + $0x152] sm:$0xff]
      %v1219 = vld [vmem:[#allocation2 + $0x15a] sm:$0xff]
      %v1220 = vld [vmem:[#allocation2 + $0x16a] sm:$0xff]
      %v1221 = vld [vmem:[#allocation2 + $0x172] sm:$0xff]
      %s1222 = scalar_lea.vmem %s1, 16
      %v1223 = vld [vmem:[%s1222] sm:$0xff]
      %v1225 = vsel %vm406, %v1190, 0
      %v1228 = vsel %vm406, %v1191, 0
      %v1231 = vsel %vm406, %v1192, 0
      %v1234 = vsel %vm406, %v1193, 0
      %v1237 = vsel %vm406, %v1194, 0
      %v1240 = vsel %vm406, %v1195, 0
      %v1243 = vsel %vm406, %v1196, 0
      %v1246 = vsel %vm406, %v1197, 0
      %v1249 = vsel %vm406, %v1198, 0
      %v1252 = vsel %vm406, %v1199, 0
      %v1255 = vsel %vm406, %v1200, 0
      %v1258 = vsel %vm406, %v1201, 0
      %v1261 = vsel %vm406, %v1202, 0
      %v1264 = vsel %vm406, %v1203, 0
      %v1267 = vsel %vm406, %v1204, 0
      %v1270 = vsel %vm406, %v1205, 0
      %v1273 = vsel %vm406, %v1206, 0
      %v1276 = vsel %vm406, %v1207, 0
      %v1279 = vsel %vm406, %v1208, 0
      %v1282 = vsel %vm406, %v1209, 0
      %v1285 = vsel %vm406, %v1210, 0
      %v1288 = vsel %vm406, %v1211, 0
      %v1291 = vsel %vm406, %v1212, 0
      %v1294 = vsel %vm406, %v1213, 0
      %v1297 = vsel %vm406, %v1214, 0
      %v1300 = vsel %vm406, %v1215, 0
      %v1303 = vsel %vm406, %v1216, 0
      %v1306 = vsel %vm406, %v1217, 0
      %v1309 = vsel %vm406, %v1218, 0
      %v1312 = vsel %vm406, %v1219, 0
      %v1315 = vsel %vm406, %v1220, 0
      %v1318 = vsel %vm406, %v1221, 0
      %1320 = vmatprep.subr.mxu0 0.0
      %1321 = vmatpush1.msra.mxu0 %v1223
      %1322 = vmatprep.subr.mxu0 0.0
      %1323 = vmatpush1.msra.mxu0 0.0
      %1324 = vmatprep.subr.mxu0 0.0
      %1325 = vmatpush1.msra.mxu0 0.0
      %1326 = vmatprep.subr.mxu0 0.0
      %1327 = vmatpush1.msra.mxu0 0.0
      %1328 = vmatprep.subr.mxu0 0.0
      %1329 = vmatpush1.msra.mxu0 0.0
      %1330 = vmatprep.subr.mxu0 0.0
      %1331 = vmatpush1.msra.mxu0 0.0
      %1332 = vmatprep.subr.mxu0 0.0
      %1333 = vmatpush1.msra.mxu0 0.0
      %1334 = vmatprep.subr.mxu0 0.0
      %1335 = vmatpush1.msra.mxu0 0.0
      %1336 = vmatprep.subr.mxu0 0.0
      %1337 = vmatpush1.msra.mxu0 0.0
      %1338 = vmatprep.subr.mxu0 0.0
      %1339 = vmatpush1.msra.mxu0 0.0
      %1340 = vmatprep.subr.mxu0 0.0
      %1341 = vmatpush1.msra.mxu0 0.0
      %1342 = vmatprep.subr.mxu0 0.0
      %1343 = vmatpush1.msra.mxu0 0.0
      %1344 = vmatprep.subr.mxu0 0.0
      %1345 = vmatpush1.msra.mxu0 0.0
      %1346 = vmatprep.subr.mxu0 0.0
      %1347 = vmatpush1.msra.mxu0 0.0
      %1348 = vmatprep.subr.mxu0 0.0
      %1349 = vmatpush1.msra.mxu0 0.0
      %1350 = vmatprep.subr.mxu0 0.0
      %1351 = vmatpush1.msra.mxu0 0.0
      %1352 = vmatprep.subr.mxu0 0.0
      %1353 = vmatpush1.msra.mxu0 0.0
      %1354 = vmatprep.subr.mxu0 0.0
      %1355 = vmatpush1.msra.mxu0 0.0
      %1356 = vmatprep.subr.mxu0 0.0
      %1357 = vmatpush1.msra.mxu0 0.0
      %1358 = vmatprep.subr.mxu0 0.0
      %1359 = vmatpush1.msra.mxu0 0.0
      %1360 = vmatprep.subr.mxu0 0.0
      %1361 = vmatpush1.msra.mxu0 0.0
      %1362 = vmatprep.subr.mxu0 0.0
      %1363 = vmatpush1.msra.mxu0 0.0
      %1364 = vmatprep.subr.mxu0 0.0
      %1365 = vmatpush1.msra.mxu0 0.0
      %1366 = vmatprep.subr.mxu0 0.0
      %1367 = vmatpush1.msra.mxu0 0.0
      %1368 = vmatprep.subr.mxu0 0.0
      %1369 = vmatpush1.msra.mxu0 0.0
      %1370 = vmatprep.subr.mxu0 0.0
      %1371 = vmatpush1.msra.mxu0 0.0
      %1372 = vmatprep.subr.mxu0 0.0
      %1373 = vmatpush1.msra.mxu0 0.0
      %1374 = vmatprep.subr.mxu0 0.0
      %1375 = vmatpush1.msra.mxu0 0.0
      %1376 = vmatprep.subr.mxu0 0.0
      %1377 = vmatpush1.msra.mxu0 0.0
      %1378 = vmatprep.subr.mxu0 0.0
      %1379 = vmatpush1.msra.mxu0 0.0
      %1380 = vmatprep.subr.mxu0 0.0
      %1381 = vmatpush1.msra.mxu0 0.0
      %1382 = vmatprep.subr.mxu0 0.0
      %1383 = vmatpush1.msra.mxu0 0.0
      %1384 = vmatprep.mubr.f32.mxu0 0.0
      %1385 = vmatmul.mubr.f32.gmra.mrb[0].mxu0 %v1225
      %v1386 = vpop.f32.mrb[0].mxu0
      %v1387 = vadd.f32 0.0, %v1386
      %v1388 = vpop.f32.mrb[0].mxu0
      %1389 = vmatprep.mubr.f32.mxu0 0.0
      %1390 = vmatmul.mubr.f32.gmra.mrb[0].mxu0 %v1228
      %v1391 = vpop.f32.mrb[0].mxu0
      %v1392 = vadd.f32 0.0, %v1391
      %v1393 = vpop.f32.mrb[0].mxu0
      %1394 = vmatprep.mubr.f32.mxu0 0.0
      %1395 = vmatmul.mubr.f32.gmra.mrb[0].mxu0 %v1231
      %v1396 = vpop.f32.mrb[0].mxu0
      %v1397 = vadd.f32 0.0, %v1396
      %v1398 = vpop.f32.mrb[0].mxu0
      %1399 = vmatprep.mubr.f32.mxu0 0.0
      %1400 = vmatmul.mubr.f32.gmra.mrb[0].mxu0 %v1234
      %v1401 = vpop.f32.mrb[0].mxu0
      %v1402 = vadd.f32 0.0, %v1401
      %v1403 = vpop.f32.mrb[0].mxu0
      %1404 = vmatprep.mubr.f32.mxu0 0.0
      %1405 = vmatmul.mubr.f32.gmra.mrb[0].mxu0 %v1237
      %v1406 = vpop.f32.mrb[0].mxu0
      %v1407 = vadd.f32 0.0, %v1406
      %v1408 = vpop.f32.mrb[0].mxu0
      %1409 = vmatprep.mubr.f32.mxu0 0.0
      %1410 = vmatmul.mubr.f32.gmra.mrb[0].mxu0 %v1240
      %v1411 = vpop.f32.mrb[0].mxu0
      %v1412 = vadd.f32 0.0, %v1411
      %v1413 = vpop.f32.mrb[0].mxu0
      %1414 = vmatprep.mubr.f32.mxu0 0.0
      %1415 = vmatmul.mubr.f32.gmra.mrb[0].mxu0 %v1243
      %v1416 = vpop.f32.mrb[0].mxu0
      %v1417 = vadd.f32 0.0, %v1416
      %v1418 = vpop.f32.mrb[0].mxu0
      %1419 = vmatprep.mubr.f32.mxu0 0.0
      %1420 = vmatmul.mubr.f32.gmra.mrb[0].mxu0 %v1246
      %v1421 = vpop.f32.mrb[0].mxu0
      %v1422 = vadd.f32 0.0, %v1421
      %v1423 = vpop.f32.mrb[0].mxu0
      %1424 = vmatprep.mubr.f32.mxu0 0.0
      %1425 = vmatmul.mubr.f32.gmra.mrb[0].mxu0 %v1249
      %v1426 = vpop.f32.mrb[0].mxu0
      %v1427 = vadd.f32 0.0, %v1426
      %v1428 = vpop.f32.mrb[0].mxu0
      %1429 = vmatprep.mubr.f32.mxu0 0.0
      %1430 = vmatmul.mubr.f32.gmra.mrb[0].mxu0 %v1252
      %v1431 = vpop.f32.mrb[0].mxu0
      %v1432 = vadd.f32 0.0, %v1431
      %v1433 = vpop.f32.mrb[0].mxu0
      %1434 = vmatprep.mubr.f32.mxu0 0.0
      %1435 = vmatmul.mubr.f32.gmra.mrb[0].mxu0 %v1255
      %v1436 = vpop.f32.mrb[0].mxu0
      %v1437 = vadd.f32 0.0, %v1436
      %v1438 = vpop.f32.mrb[0].mxu0
      %1439 = vmatprep.mubr.f32.mxu0 0.0
      %1440 = vmatmul.mubr.f32.gmra.mrb[0].mxu0 %v1258
      %v1441 = vpop.f32.mrb[0].mxu0
      %v1442 = vadd.f32 0.0, %v1441
      %v1443 = vpop.f32.mrb[0].mxu0
      %1444 = vmatprep.mubr.f32.mxu0 0.0
      %1445 = vmatmul.mubr.f32.gmra.mrb[0].mxu0 %v1261
      %v1446 = vpop.f32.mrb[0].mxu0
      %v1447 = vadd.f32 0.0, %v1446
      %v1448 = vpop.f32.mrb[0].mxu0
      %1449 = vmatprep.mubr.f32.mxu0 0.0
      %1450 = vmatmul.mubr.f32.gmra.mrb[0].mxu0 %v1264
      %v1451 = vpop.f32.mrb[0].mxu0
      %v1452 = vadd.f32 0.0, %v1451
      %v1453 = vpop.f32.mrb[0].mxu0
      %1454 = vmatprep.mubr.f32.mxu0 0.0
      %1455 = vmatmul.mubr.f32.gmra.mrb[0].mxu0 %v1267
      %v1456 = vpop.f32.mrb[0].mxu0
      %v1457 = vadd.f32 0.0, %v1456
      %v1458 = vpop.f32.mrb[0].mxu0
      %1459 = vmatprep.mubr.f32.mxu0 0.0
      %1460 = vmatmul.mubr.f32.gmra.mrb[0].mxu0 %v1270
      %v1461 = vpop.f32.mrb[0].mxu0
      %v1462 = vadd.f32 0.0, %v1461
      %v1463 = vpop.f32.mrb[0].mxu0
      %1464 = vmatprep.mubr.f32.mxu0 0.0
      %1465 = vmatmul.mubr.f32.gmra.mrb[0].mxu0 %v1273
      %v1466 = vpop.f32.mrb[0].mxu0
      %v1467 = vadd.f32 0.0, %v1466
      %v1468 = vpop.f32.mrb[0].mxu0
      %1469 = vmatprep.mubr.f32.mxu0 0.0
      %1470 = vmatmul.mubr.f32.gmra.mrb[0].mxu0 %v1276
      %v1471 = vpop.f32.mrb[0].mxu0
      %v1472 = vadd.f32 0.0, %v1471
      %v1473 = vpop.f32.mrb[0].mxu0
      %1474 = vmatprep.mubr.f32.mxu0 0.0
      %1475 = vmatmul.mubr.f32.gmra.mrb[0].mxu0 %v1279
      %v1476 = vpop.f32.mrb[0].mxu0
      %v1477 = vadd.f32 0.0, %v1476
      %v1478 = vpop.f32.mrb[0].mxu0
      %1479 = vmatprep.mubr.f32.mxu0 0.0
      %1480 = vmatmul.mubr.f32.gmra.mrb[0].mxu0 %v1282
      %v1481 = vpop.f32.mrb[0].mxu0
      %v1482 = vadd.f32 0.0, %v1481
      %v1483 = vpop.f32.mrb[0].mxu0
      %1484 = vmatprep.mubr.f32.mxu0 0.0
      %1485 = vmatmul.mubr.f32.gmra.mrb[0].mxu0 %v1285
      %v1486 = vpop.f32.mrb[0].mxu0
      %v1487 = vadd.f32 0.0, %v1486
      %v1488 = vpop.f32.mrb[0].mxu0
      %1489 = vmatprep.mubr.f32.mxu0 0.0
      %1490 = vmatmul.mubr.f32.gmra.mrb[0].mxu0 %v1288
      %v1491 = vpop.f32.mrb[0].mxu0
      %v1492 = vadd.f32 0.0, %v1491
      %v1493 = vpop.f32.mrb[0].mxu0
      %1494 = vmatprep.mubr.f32.mxu0 0.0
      %1495 = vmatmul.mubr.f32.gmra.mrb[0].mxu0 %v1291
      %v1496 = vpop.f32.mrb[0].mxu0
      %v1497 = vadd.f32 0.0, %v1496
      %v1498 = vpop.f32.mrb[0].mxu0
      %1499 = vmatprep.mubr.f32.mxu0 0.0
      %1500 = vmatmul.mubr.f32.gmra.mrb[0].mxu0 %v1294
      %v1501 = vpop.f32.mrb[0].mxu0
      %v1502 = vadd.f32 0.0, %v1501
      %v1503 = vpop.f32.mrb[0].mxu0
      %1504 = vmatprep.mubr.f32.mxu0 0.0
      %1505 = vmatmul.mubr.f32.gmra.mrb[0].mxu0 %v1297
      %v1506 = vpop.f32.mrb[0].mxu0
      %v1507 = vadd.f32 0.0, %v1506
      %v1508 = vpop.f32.mrb[0].mxu0
      %1509 = vmatprep.mubr.f32.mxu0 0.0
      %1510 = vmatmul.mubr.f32.gmra.mrb[0].mxu0 %v1300
      %v1511 = vpop.f32.mrb[0].mxu0
      %v1512 = vadd.f32 0.0, %v1511
      %v1513 = vpop.f32.mrb[0].mxu0
      %1514 = vmatprep.mubr.f32.mxu0 0.0
      %1515 = vmatmul.mubr.f32.gmra.mrb[0].mxu0 %v1303
      %v1516 = vpop.f32.mrb[0].mxu0
      %v1517 = vadd.f32 0.0, %v1516
      %v1518 = vpop.f32.mrb[0].mxu0
      %1519 = vmatprep.mubr.f32.mxu0 0.0
      %1520 = vmatmul.mubr.f32.gmra.mrb[0].mxu0 %v1306
      %v1521 = vpop.f32.mrb[0].mxu0
      %v1522 = vadd.f32 0.0, %v1521
      %v1523 = vpop.f32.mrb[0].mxu0
      %1524 = vmatprep.mubr.f32.mxu0 0.0
      %1525 = vmatmul.mubr.f32.gmra.mrb[0].mxu0 %v1309
      %v1526 = vpop.f32.mrb[0].mxu0
      %v1527 = vadd.f32 0.0, %v1526
      %v1528 = vpop.f32.mrb[0].mxu0
      %1529 = vmatprep.mubr.f32.mxu0 0.0
      %1530 = vmatmul.mubr.f32.gmra.mrb[0].mxu0 %v1312
      %v1531 = vpop.f32.mrb[0].mxu0
      %v1532 = vadd.f32 0.0, %v1531
      %v1533 = vpop.f32.mrb[0].mxu0
      %1534 = vmatprep.mubr.f32.mxu0 0.0
      %1535 = vmatmul.mubr.f32.gmra.mrb[0].mxu0 %v1315
      %v1536 = vpop.f32.mrb[0].mxu0
      %v1537 = vadd.f32 0.0, %v1536
      %v1538 = vpop.f32.mrb[0].mxu0
      %1539 = vmatprep.mubr.f32.mxu0 0.0
      %1540 = vmatmul.mubr.f32.gmra.mrb[0].mxu0 %v1318
      %v1541 = vpop.f32.mrb[0].mxu0
      %v1542 = vadd.f32 0.0, %v1541
      %v1543 = vpop.f32.mrb[0].mxu0
      %1544 = vdwg.mxu0
      %v1545 = vadd.f32 %v1032, %v1387
      %v1546 = vadd.f32 %v1037, %v1392
      %v1547 = vadd.f32 %v1042, %v1397
      %v1548 = vadd.f32 %v1047, %v1402
      %v1549 = vadd.f32 %v1052, %v1407
      %v1550 = vadd.f32 %v1057, %v1412
      %v1551 = vadd.f32 %v1062, %v1417
      %v1552 = vadd.f32 %v1067, %v1422
      %v1553 = vadd.f32 %v1072, %v1427
      %v1554 = vadd.f32 %v1077, %v1432
      %v1555 = vadd.f32 %v1082, %v1437
      %v1556 = vadd.f32 %v1087, %v1442
      %v1557 = vadd.f32 %v1092, %v1447
      %v1558 = vadd.f32 %v1097, %v1452
      %v1559 = vadd.f32 %v1102, %v1457
      %v1560 = vadd.f32 %v1107, %v1462
      %v1561 = vadd.f32 %v1112, %v1467
      %v1562 = vadd.f32 %v1117, %v1472
      %v1563 = vadd.f32 %v1122, %v1477
      %v1564 = vadd.f32 %v1127, %v1482
      %v1565 = vadd.f32 %v1132, %v1487
      %v1566 = vadd.f32 %v1137, %v1492
      %v1567 = vadd.f32 %v1142, %v1497
      %v1568 = vadd.f32 %v1147, %v1502
      %v1569 = vadd.f32 %v1152, %v1507
      %v1570 = vadd.f32 %v1157, %v1512
      %v1571 = vadd.f32 %v1162, %v1517
      %v1572 = vadd.f32 %v1167, %v1522
      %v1573 = vadd.f32 %v1172, %v1527
      %v1574 = vadd.f32 %v1177, %v1532
      %v1575 = vadd.f32 %v1182, %v1537
      %v1576 = vadd.f32 %v1187, %v1542
      %v1577 = vld [vmem:[%s415] sm:$0xff]
      %v1578 = vld [vmem:[%s415 + $0x8] sm:$0xff]
      %v1579 = vld [vmem:[%s415 + $0x18] sm:$0xff]
      %v1580 = vld [vmem:[%s415 + $0x20] sm:$0xff]
      %v1581 = vld [vmem:[%s415 + $0x30] sm:$0xff]
      %v1582 = vld [vmem:[%s415 + $0x38] sm:$0xff]
      %v1583 = vld [vmem:[%s415 + $0x48] sm:$0xff]
      %v1584 = vld [vmem:[%s415 + $0x50] sm:$0xff]
      %v1585 = vld [vmem:[%s415 + $0x60] sm:$0xff]
      %v1586 = vld [vmem:[%s415 + $0x68] sm:$0xff]
      %v1587 = vld [vmem:[%s415 + $0x78] sm:$0xff]
      %v1588 = vld [vmem:[%s415 + $0x80] sm:$0xff]
      %v1589 = vld [vmem:[%s415 + $0x90] sm:$0xff]
      %v1590 = vld [vmem:[%s415 + $0x98] sm:$0xff]
      %v1591 = vld [vmem:[%s415 + $0xa8] sm:$0xff]
      %v1592 = vld [vmem:[%s415 + $0xb0] sm:$0xff]
      %v1593 = vld [vmem:[%s415 + $0xc0] sm:$0xff]
      %v1594 = vld [vmem:[%s415 + $0xc8] sm:$0xff]
      %v1595 = vld [vmem:[%s415 + $0xd8] sm:$0xff]
      %v1596 = vld [vmem:[%s415 + $0xe0] sm:$0xff]
      %v1597 = vld [vmem:[%s415 + $0xf0] sm:$0xff]
      %v1598 = vld [vmem:[%s415 + $0xf8] sm:$0xff]
      %v1599 = vld [vmem:[%s415 + $0x108] sm:$0xff]
      %v1600 = vld [vmem:[%s415 + $0x110] sm:$0xff]
      %v1601 = vld [vmem:[%s415 + $0x120] sm:$0xff]
      %v1602 = vld [vmem:[%s415 + $0x128] sm:$0xff]
      %v1603 = vld [vmem:[%s415 + $0x138] sm:$0xff]
      %v1604 = vld [vmem:[%s415 + $0x140] sm:$0xff]
      %v1605 = vld [vmem:[%s415 + $0x150] sm:$0xff]
      %v1606 = vld [vmem:[%s415 + $0x158] sm:$0xff]
      %v1607 = vld [vmem:[%s415 + $0x168] sm:$0xff]
      %v1608 = vld [vmem:[%s415 + $0x170] sm:$0xff]
      %s1609 = scalar_lea.vmem %s1, 24
      %v1610 = vld [vmem:[%s1609] sm:$0xff]
      %v1612 = vsel %vm406, %v1577, 0
      %v1615 = vsel %vm406, %v1578, 0
      %v1618 = vsel %vm406, %v1579, 0
      %v1621 = vsel %vm406, %v1580, 0
      %v1624 = vsel %vm406, %v1581, 0
      %v1627 = vsel %vm406, %v1582, 0
      %v1630 = vsel %vm406, %v1583, 0
      %v1633 = vsel %vm406, %v1584, 0
      %v1636 = vsel %vm406, %v1585, 0
      %v1639 = vsel %vm406, %v1586, 0
      %v1642 = vsel %vm406, %v1587, 0
      %v1645 = vsel %vm406, %v1588, 0
      %v1648 = vsel %vm406, %v1589, 0
      %v1651 = vsel %vm406, %v1590, 0
      %v1654 = vsel %vm406, %v1591, 0
      %v1657 = vsel %vm406, %v1592, 0
      %v1660 = vsel %vm406, %v1593, 0
      %v1663 = vsel %vm406, %v1594, 0
      %v1666 = vsel %vm406, %v1595, 0
      %v1669 = vsel %vm406, %v1596, 0
      %v1672 = vsel %vm406, %v1597, 0
      %v1675 = vsel %vm406, %v1598, 0
      %v1678 = vsel %vm406, %v1599, 0
      %v1681 = vsel %vm406, %v1600, 0
      %v1684 = vsel %vm406, %v1601, 0
      %v1687 = vsel %vm406, %v1602, 0
      %v1690 = vsel %vm406, %v1603, 0
      %v1693 = vsel %vm406, %v1604, 0
      %v1696 = vsel %vm406, %v1605, 0
      %v1699 = vsel %vm406, %v1606, 0
      %v1702 = vsel %vm406, %v1607, 0
      %v1705 = vsel %vm406, %v1608, 0
      %1707 = vmatprep.subr.mxu0 0.0
      %1708 = vmatpush1.msra.mxu0 %v1610
      %1709 = vmatprep.subr.mxu0 0.0
      %1710 = vmatpush1.msra.mxu0 0.0
      %1711 = vmatprep.subr.mxu0 0.0
      %1712 = vmatpush1.msra.mxu0 0.0
      %1713 = vmatprep.subr.mxu0 0.0
      %1714 = vmatpush1.msra.mxu0 0.0
      %1715 = vmatprep.subr.mxu0 0.0
      %1716 = vmatpush1.msra.mxu0 0.0
      %1717 = vmatprep.subr.mxu0 0.0
      %1718 = vmatpush1.msra.mxu0 0.0
      %1719 = vmatprep.subr.mxu0 0.0
      %1720 = vmatpush1.msra.mxu0 0.0
      %1721 = vmatprep.subr.mxu0 0.0
      %1722 = vmatpush1.msra.mxu0 0.0
      %1723 = vmatprep.subr.mxu0 0.0
      %1724 = vmatpush1.msra.mxu0 0.0
      %1725 = vmatprep.subr.mxu0 0.0
      %1726 = vmatpush1.msra.mxu0 0.0
      %1727 = vmatprep.subr.mxu0 0.0
      %1728 = vmatpush1.msra.mxu0 0.0
      %1729 = vmatprep.subr.mxu0 0.0
      %1730 = vmatpush1.msra.mxu0 0.0
      %1731 = vmatprep.subr.mxu0 0.0
      %1732 = vmatpush1.msra.mxu0 0.0
      %1733 = vmatprep.subr.mxu0 0.0
      %1734 = vmatpush1.msra.mxu0 0.0
      %1735 = vmatprep.subr.mxu0 0.0
      %1736 = vmatpush1.msra.mxu0 0.0
      %1737 = vmatprep.subr.mxu0 0.0
      %1738 = vmatpush1.msra.mxu0 0.0
      %1739 = vmatprep.subr.mxu0 0.0
      %1740 = vmatpush1.msra.mxu0 0.0
      %1741 = vmatprep.subr.mxu0 0.0
      %1742 = vmatpush1.msra.mxu0 0.0
      %1743 = vmatprep.subr.mxu0 0.0
      %1744 = vmatpush1.msra.mxu0 0.0
      %1745 = vmatprep.subr.mxu0 0.0
      %1746 = vmatpush1.msra.mxu0 0.0
      %1747 = vmatprep.subr.mxu0 0.0
      %1748 = vmatpush1.msra.mxu0 0.0
      %1749 = vmatprep.subr.mxu0 0.0
      %1750 = vmatpush1.msra.mxu0 0.0
      %1751 = vmatprep.subr.mxu0 0.0
      %1752 = vmatpush1.msra.mxu0 0.0
      %1753 = vmatprep.subr.mxu0 0.0
      %1754 = vmatpush1.msra.mxu0 0.0
      %1755 = vmatprep.subr.mxu0 0.0
      %1756 = vmatpush1.msra.mxu0 0.0
      %1757 = vmatprep.subr.mxu0 0.0
      %1758 = vmatpush1.msra.mxu0 0.0
      %1759 = vmatprep.subr.mxu0 0.0
      %1760 = vmatpush1.msra.mxu0 0.0
      %1761 = vmatprep.subr.mxu0 0.0
      %1762 = vmatpush1.msra.mxu0 0.0
      %1763 = vmatprep.subr.mxu0 0.0
      %1764 = vmatpush1.msra.mxu0 0.0
      %1765 = vmatprep.subr.mxu0 0.0
      %1766 = vmatpush1.msra.mxu0 0.0
      %1767 = vmatprep.subr.mxu0 0.0
      %1768 = vmatpush1.msra.mxu0 0.0
      %1769 = vmatprep.subr.mxu0 0.0
      %1770 = vmatpush1.msra.mxu0 0.0
      %1771 = vmatprep.mubr.f32.mxu0 0.0
      %1772 = vmatmul.mubr.f32.gmra.mrb[0].mxu0 %v1612
      %v1773 = vpop.f32.mrb[0].mxu0
      %v1774 = vadd.f32 0.0, %v1773
      %v1775 = vpop.f32.mrb[0].mxu0
      %1776 = vmatprep.mubr.f32.mxu0 0.0
      %1777 = vmatmul.mubr.f32.gmra.mrb[0].mxu0 %v1615
      %v1778 = vpop.f32.mrb[0].mxu0
      %v1779 = vadd.f32 0.0, %v1778
      %v1780 = vpop.f32.mrb[0].mxu0
      %1781 = vmatprep.mubr.f32.mxu0 0.0
      %1782 = vmatmul.mubr.f32.gmra.mrb[0].mxu0 %v1618
      %v1783 = vpop.f32.mrb[0].mxu0
      %v1784 = vadd.f32 0.0, %v1783
      %v1785 = vpop.f32.mrb[0].mxu0
      %1786 = vmatprep.mubr.f32.mxu0 0.0
      %1787 = vmatmul.mubr.f32.gmra.mrb[0].mxu0 %v1621
      %v1788 = vpop.f32.mrb[0].mxu0
      %v1789 = vadd.f32 0.0, %v1788
      %v1790 = vpop.f32.mrb[0].mxu0
      %1791 = vmatprep.mubr.f32.mxu0 0.0
      %1792 = vmatmul.mubr.f32.gmra.mrb[0].mxu0 %v1624
      %v1793 = vpop.f32.mrb[0].mxu0
      %v1794 = vadd.f32 0.0, %v1793
      %v1795 = vpop.f32.mrb[0].mxu0
      %1796 = vmatprep.mubr.f32.mxu0 0.0
      %1797 = vmatmul.mubr.f32.gmra.mrb[0].mxu0 %v1627
      %v1798 = vpop.f32.mrb[0].mxu0
      %v1799 = vadd.f32 0.0, %v1798
      %v1800 = vpop.f32.mrb[0].mxu0
      %1801 = vmatprep.mubr.f32.mxu0 0.0
      %1802 = vmatmul.mubr.f32.gmra.mrb[0].mxu0 %v1630
      %v1803 = vpop.f32.mrb[0].mxu0
      %v1804 = vadd.f32 0.0, %v1803
      %v1805 = vpop.f32.mrb[0].mxu0
      %1806 = vmatprep.mubr.f32.mxu0 0.0
      %1807 = vmatmul.mubr.f32.gmra.mrb[0].mxu0 %v1633
      %v1808 = vpop.f32.mrb[0].mxu0
      %v1809 = vadd.f32 0.0, %v1808
      %v1810 = vpop.f32.mrb[0].mxu0
      %1811 = vmatprep.mubr.f32.mxu0 0.0
      %1812 = vmatmul.mubr.f32.gmra.mrb[0].mxu0 %v1636
      %v1813 = vpop.f32.mrb[0].mxu0
      %v1814 = vadd.f32 0.0, %v1813
      %v1815 = vpop.f32.mrb[0].mxu0
      %1816 = vmatprep.mubr.f32.mxu0 0.0
      %1817 = vmatmul.mubr.f32.gmra.mrb[0].mxu0 %v1639
      %v1818 = vpop.f32.mrb[0].mxu0
      %v1819 = vadd.f32 0.0, %v1818
      %v1820 = vpop.f32.mrb[0].mxu0
      %1821 = vmatprep.mubr.f32.mxu0 0.0
      %1822 = vmatmul.mubr.f32.gmra.mrb[0].mxu0 %v1642
      %v1823 = vpop.f32.mrb[0].mxu0
      %v1824 = vadd.f32 0.0, %v1823
      %v1825 = vpop.f32.mrb[0].mxu0
      %1826 = vmatprep.mubr.f32.mxu0 0.0
      %1827 = vmatmul.mubr.f32.gmra.mrb[0].mxu0 %v1645
      %v1828 = vpop.f32.mrb[0].mxu0
      %v1829 = vadd.f32 0.0, %v1828
      %v1830 = vpop.f32.mrb[0].mxu0
      %1831 = vmatprep.mubr.f32.mxu0 0.0
      %1832 = vmatmul.mubr.f32.gmra.mrb[0].mxu0 %v1648
      %v1833 = vpop.f32.mrb[0].mxu0
      %v1834 = vadd.f32 0.0, %v1833
      %v1835 = vpop.f32.mrb[0].mxu0
      %1836 = vmatprep.mubr.f32.mxu0 0.0
      %1837 = vmatmul.mubr.f32.gmra.mrb[0].mxu0 %v1651
      %v1838 = vpop.f32.mrb[0].mxu0
      %v1839 = vadd.f32 0.0, %v1838
      %v1840 = vpop.f32.mrb[0].mxu0
      %1841 = vmatprep.mubr.f32.mxu0 0.0
      %1842 = vmatmul.mubr.f32.gmra.mrb[0].mxu0 %v1654
      %v1843 = vpop.f32.mrb[0].mxu0
      %v1844 = vadd.f32 0.0, %v1843
      %v1845 = vpop.f32.mrb[0].mxu0
      %1846 = vmatprep.mubr.f32.mxu0 0.0
      %1847 = vmatmul.mubr.f32.gmra.mrb[0].mxu0 %v1657
      %v1848 = vpop.f32.mrb[0].mxu0
      %v1849 = vadd.f32 0.0, %v1848
      %v1850 = vpop.f32.mrb[0].mxu0
      %1851 = vmatprep.mubr.f32.mxu0 0.0
      %1852 = vmatmul.mubr.f32.gmra.mrb[0].mxu0 %v1660
      %v1853 = vpop.f32.mrb[0].mxu0
      %v1854 = vadd.f32 0.0, %v1853
      %v1855 = vpop.f32.mrb[0].mxu0
      %1856 = vmatprep.mubr.f32.mxu0 0.0
      %1857 = vmatmul.mubr.f32.gmra.mrb[0].mxu0 %v1663
      %v1858 = vpop.f32.mrb[0].mxu0
      %v1859 = vadd.f32 0.0, %v1858
      %v1860 = vpop.f32.mrb[0].mxu0
      %1861 = vmatprep.mubr.f32.mxu0 0.0
      %1862 = vmatmul.mubr.f32.gmra.mrb[0].mxu0 %v1666
      %v1863 = vpop.f32.mrb[0].mxu0
      %v1864 = vadd.f32 0.0, %v1863
      %v1865 = vpop.f32.mrb[0].mxu0
      %1866 = vmatprep.mubr.f32.mxu0 0.0
      %1867 = vmatmul.mubr.f32.gmra.mrb[0].mxu0 %v1669
      %v1868 = vpop.f32.mrb[0].mxu0
      %v1869 = vadd.f32 0.0, %v1868
      %v1870 = vpop.f32.mrb[0].mxu0
      %1871 = vmatprep.mubr.f32.mxu0 0.0
      %1872 = vmatmul.mubr.f32.gmra.mrb[0].mxu0 %v1672
      %v1873 = vpop.f32.mrb[0].mxu0
      %v1874 = vadd.f32 0.0, %v1873
      %v1875 = vpop.f32.mrb[0].mxu0
      %1876 = vmatprep.mubr.f32.mxu0 0.0
      %1877 = vmatmul.mubr.f32.gmra.mrb[0].mxu0 %v1675
      %v1878 = vpop.f32.mrb[0].mxu0
      %v1879 = vadd.f32 0.0, %v1878
      %v1880 = vpop.f32.mrb[0].mxu0
      %1881 = vmatprep.mubr.f32.mxu0 0.0
      %1882 = vmatmul.mubr.f32.gmra.mrb[0].mxu0 %v1678
      %v1883 = vpop.f32.mrb[0].mxu0
      %v1884 = vadd.f32 0.0, %v1883
      %v1885 = vpop.f32.mrb[0].mxu0
      %1886 = vmatprep.mubr.f32.mxu0 0.0
      %1887 = vmatmul.mubr.f32.gmra.mrb[0].mxu0 %v1681
      %v1888 = vpop.f32.mrb[0].mxu0
      %v1889 = vadd.f32 0.0, %v1888
      %v1890 = vpop.f32.mrb[0].mxu0
      %1891 = vmatprep.mubr.f32.mxu0 0.0
      %1892 = vmatmul.mubr.f32.gmra.mrb[0].mxu0 %v1684
      %v1893 = vpop.f32.mrb[0].mxu0
      %v1894 = vadd.f32 0.0, %v1893
      %v1895 = vpop.f32.mrb[0].mxu0
      %1896 = vmatprep.mubr.f32.mxu0 0.0
      %1897 = vmatmul.mubr.f32.gmra.mrb[0].mxu0 %v1687
      %v1898 = vpop.f32.mrb[0].mxu0
      %v1899 = vadd.f32 0.0, %v1898
      %v1900 = vpop.f32.mrb[0].mxu0
      %1901 = vmatprep.mubr.f32.mxu0 0.0
      %1902 = vmatmul.mubr.f32.gmra.mrb[0].mxu0 %v1690
      %v1903 = vpop.f32.mrb[0].mxu0
      %v1904 = vadd.f32 0.0, %v1903
      %v1905 = vpop.f32.mrb[0].mxu0
      %1906 = vmatprep.mubr.f32.mxu0 0.0
      %1907 = vmatmul.mubr.f32.gmra.mrb[0].mxu0 %v1693
      %v1908 = vpop.f32.mrb[0].mxu0
      %v1909 = vadd.f32 0.0, %v1908
      %v1910 = vpop.f32.mrb[0].mxu0
      %1911 = vmatprep.mubr.f32.mxu0 0.0
      %1912 = vmatmul.mubr.f32.gmra.mrb[0].mxu0 %v1696
      %v1913 = vpop.f32.mrb[0].mxu0
      %v1914 = vadd.f32 0.0, %v1913
      %v1915 = vpop.f32.mrb[0].mxu0
      %1916 = vmatprep.mubr.f32.mxu0 0.0
      %1917 = vmatmul.mubr.f32.gmra.mrb[0].mxu0 %v1699
      %v1918 = vpop.f32.mrb[0].mxu0
      %v1919 = vadd.f32 0.0, %v1918
      %v1920 = vpop.f32.mrb[0].mxu0
      %1921 = vmatprep.mubr.f32.mxu0 0.0
      %1922 = vmatmul.mubr.f32.gmra.mrb[0].mxu0 %v1702
      %v1923 = vpop.f32.mrb[0].mxu0
      %v1924 = vadd.f32 0.0, %v1923
      %v1925 = vpop.f32.mrb[0].mxu0
      %1926 = vmatprep.mubr.f32.mxu0 0.0
      %1927 = vmatmul.mubr.f32.gmra.mrb[0].mxu0 %v1705
      %v1928 = vpop.f32.mrb[0].mxu0
      %v1929 = vadd.f32 0.0, %v1928
      %v1930 = vpop.f32.mrb[0].mxu0
      %1931 = vdwg.mxu0
      %v1932 = vadd.f32 %v1545, %v1774
      %v1933 = vadd.f32 %v1546, %v1779
      %v1934 = vadd.f32 %v1547, %v1784
      %v1935 = vadd.f32 %v1548, %v1789
      %v1936 = vadd.f32 %v1549, %v1794
      %v1937 = vadd.f32 %v1550, %v1799
      %v1938 = vadd.f32 %v1551, %v1804
      %v1939 = vadd.f32 %v1552, %v1809
      %v1940 = vadd.f32 %v1553, %v1814
      %v1941 = vadd.f32 %v1554, %v1819
      %v1942 = vadd.f32 %v1555, %v1824
      %v1943 = vadd.f32 %v1556, %v1829
      %v1944 = vadd.f32 %v1557, %v1834
      %v1945 = vadd.f32 %v1558, %v1839
      %v1946 = vadd.f32 %v1559, %v1844
      %v1947 = vadd.f32 %v1560, %v1849
      %v1948 = vadd.f32 %v1561, %v1854
      %v1949 = vadd.f32 %v1562, %v1859
      %v1950 = vadd.f32 %v1563, %v1864
      %v1951 = vadd.f32 %v1564, %v1869
      %v1952 = vadd.f32 %v1565, %v1874
      %v1953 = vadd.f32 %v1566, %v1879
      %v1954 = vadd.f32 %v1567, %v1884
      %v1955 = vadd.f32 %v1568, %v1889
      %v1956 = vadd.f32 %v1569, %v1894
      %v1957 = vadd.f32 %v1570, %v1899
      %v1958 = vadd.f32 %v1571, %v1904
      %v1959 = vadd.f32 %v1572, %v1909
      %v1960 = vadd.f32 %v1573, %v1914
      %v1961 = vadd.f32 %v1574, %v1919
      %v1962 = vadd.f32 %v1575, %v1924
      %v1963 = vadd.f32 %v1576, %v1929
      %v1964 = vld [vmem:[%s415 + $0x1] sm:$0xff]
      %v1965 = vld [vmem:[%s415 + $0x9] sm:$0xff]
      %v1966 = vld [vmem:[%s415 + $0x19] sm:$0xff]
      %v1967 = vld [vmem:[%s415 + $0x21] sm:$0xff]
      %v1968 = vld [vmem:[%s415 + $0x31] sm:$0xff]
      %v1969 = vld [vmem:[%s415 + $0x39] sm:$0xff]
      %v1970 = vld [vmem:[%s415 + $0x49] sm:$0xff]
      %v1971 = vld [vmem:[%s415 + $0x51] sm:$0xff]
      %v1972 = vld [vmem:[%s415 + $0x61] sm:$0xff]
      %v1973 = vld [vmem:[%s415 + $0x69] sm:$0xff]
      %v1974 = vld [vmem:[%s415 + $0x79] sm:$0xff]
      %v1975 = vld [vmem:[%s415 + $0x81] sm:$0xff]
      %v1976 = vld [vmem:[%s415 + $0x91] sm:$0xff]
      %v1977 = vld [vmem:[%s415 + $0x99] sm:$0xff]
      %v1978 = vld [vmem:[%s415 + $0xa9] sm:$0xff]
      %v1979 = vld [vmem:[%s415 + $0xb1] sm:$0xff]
      %v1980 = vld [vmem:[%s415 + $0xc1] sm:$0xff]
      %v1981 = vld [vmem:[%s415 + $0xc9] sm:$0xff]
      %v1982 = vld [vmem:[%s415 + $0xd9] sm:$0xff]
      %v1983 = vld [vmem:[%s415 + $0xe1] sm:$0xff]
      %v1984 = vld [vmem:[%s415 + $0xf1] sm:$0xff]
      %v1985 = vld [vmem:[%s415 + $0xf9] sm:$0xff]
      %v1986 = vld [vmem:[%s415 + $0x109] sm:$0xff]
      %v1987 = vld [vmem:[%s415 + $0x111] sm:$0xff]
      %v1988 = vld [vmem:[%s415 + $0x121] sm:$0xff]
      %v1989 = vld [vmem:[%s415 + $0x129] sm:$0xff]
      %v1990 = vld [vmem:[%s415 + $0x139] sm:$0xff]
      %v1991 = vld [vmem:[%s415 + $0x141] sm:$0xff]
      %v1992 = vld [vmem:[%s415 + $0x151] sm:$0xff]
      %v1993 = vld [vmem:[%s415 + $0x159] sm:$0xff]
      %v1994 = vld [vmem:[%s415 + $0x169] sm:$0xff]
      %v1995 = vld [vmem:[%s415 + $0x171] sm:$0xff]
      %s1996 = scalar_lea.vmem %s1, 32
      %v1997 = vld [vmem:[%s1996] sm:$0xff]
      %v1999 = vsel %vm406, %v1964, 0
      %v2002 = vsel %vm406, %v1965, 0
      %v2005 = vsel %vm406, %v1966, 0
      %v2008 = vsel %vm406, %v1967, 0
      %v2011 = vsel %vm406, %v1968, 0
      %v2014 = vsel %vm406, %v1969, 0
      %v2017 = vsel %vm406, %v1970, 0
      %v2020 = vsel %vm406, %v1971, 0
      %v2023 = vsel %vm406, %v1972, 0
      %v2026 = vsel %vm406, %v1973, 0
      %v2029 = vsel %vm406, %v1974, 0
      %v2032 = vsel %vm406, %v1975, 0
      %v2035 = vsel %vm406, %v1976, 0
      %v2038 = vsel %vm406, %v1977, 0
      %v2041 = vsel %vm406, %v1978, 0
      %v2044 = vsel %vm406, %v1979, 0
      %v2047 = vsel %vm406, %v1980, 0
      %v2050 = vsel %vm406, %v1981, 0
      %v2053 = vsel %vm406, %v1982, 0
      %v2056 = vsel %vm406, %v1983, 0
      %v2059 = vsel %vm406, %v1984, 0
      %v2062 = vsel %vm406, %v1985, 0
      %v2065 = vsel %vm406, %v1986, 0
      %v2068 = vsel %vm406, %v1987, 0
      %v2071 = vsel %vm406, %v1988, 0
      %v2074 = vsel %vm406, %v1989, 0
      %v2077 = vsel %vm406, %v1990, 0
      %v2080 = vsel %vm406, %v1991, 0
      %v2083 = vsel %vm406, %v1992, 0
      %v2086 = vsel %vm406, %v1993, 0
      %v2089 = vsel %vm406, %v1994, 0
      %v2092 = vsel %vm406, %v1995, 0
      %2094 = vmatprep.subr.mxu0 0.0
      %2095 = vmatpush1.msra.mxu0 %v1997
      %2096 = vmatprep.subr.mxu0 0.0
      %2097 = vmatpush1.msra.mxu0 0.0
      %2098 = vmatprep.subr.mxu0 0.0
      %2099 = vmatpush1.msra.mxu0 0.0
      %2100 = vmatprep.subr.mxu0 0.0
      %2101 = vmatpush1.msra.mxu0 0.0
      %2102 = vmatprep.subr.mxu0 0.0
      %2103 = vmatpush1.msra.mxu0 0.0
      %2104 = vmatprep.subr.mxu0 0.0
      %2105 = vmatpush1.msra.mxu0 0.0
      %2106 = vmatprep.subr.mxu0 0.0
      %2107 = vmatpush1.msra.mxu0 0.0
      %2108 = vmatprep.subr.mxu0 0.0
      %2109 = vmatpush1.msra.mxu0 0.0
      %2110 = vmatprep.subr.mxu0 0.0
      %2111 = vmatpush1.msra.mxu0 0.0
      %2112 = vmatprep.subr.mxu0 0.0
      %2113 = vmatpush1.msra.mxu0 0.0
      %2114 = vmatprep.subr.mxu0 0.0
      %2115 = vmatpush1.msra.mxu0 0.0
      %2116 = vmatprep.subr.mxu0 0.0
      %2117 = vmatpush1.msra.mxu0 0.0
      %2118 = vmatprep.subr.mxu0 0.0
      %2119 = vmatpush1.msra.mxu0 0.0
      %2120 = vmatprep.subr.mxu0 0.0
      %2121 = vmatpush1.msra.mxu0 0.0
      %2122 = vmatprep.subr.mxu0 0.0
      %2123 = vmatpush1.msra.mxu0 0.0
      %2124 = vmatprep.subr.mxu0 0.0
      %2125 = vmatpush1.msra.mxu0 0.0
      %2126 = vmatprep.subr.mxu0 0.0
      %2127 = vmatpush1.msra.mxu0 0.0
      %2128 = vmatprep.subr.mxu0 0.0
      %2129 = vmatpush1.msra.mxu0 0.0
      %2130 = vmatprep.subr.mxu0 0.0
      %2131 = vmatpush1.msra.mxu0 0.0
      %2132 = vmatprep.subr.mxu0 0.0
      %2133 = vmatpush1.msra.mxu0 0.0
      %2134 = vmatprep.subr.mxu0 0.0
      %2135 = vmatpush1.msra.mxu0 0.0
      %2136 = vmatprep.subr.mxu0 0.0
      %2137 = vmatpush1.msra.mxu0 0.0
      %2138 = vmatprep.subr.mxu0 0.0
      %2139 = vmatpush1.msra.mxu0 0.0
      %2140 = vmatprep.subr.mxu0 0.0
      %2141 = vmatpush1.msra.mxu0 0.0
      %2142 = vmatprep.subr.mxu0 0.0
      %2143 = vmatpush1.msra.mxu0 0.0
      %2144 = vmatprep.subr.mxu0 0.0
      %2145 = vmatpush1.msra.mxu0 0.0
      %2146 = vmatprep.subr.mxu0 0.0
      %2147 = vmatpush1.msra.mxu0 0.0
      %2148 = vmatprep.subr.mxu0 0.0
      %2149 = vmatpush1.msra.mxu0 0.0
      %2150 = vmatprep.subr.mxu0 0.0
      %2151 = vmatpush1.msra.mxu0 0.0
      %2152 = vmatprep.subr.mxu0 0.0
      %2153 = vmatpush1.msra.mxu0 0.0
      %2154 = vmatprep.subr.mxu0 0.0
      %2155 = vmatpush1.msra.mxu0 0.0
      %2156 = vmatprep.subr.mxu0 0.0
      %2157 = vmatpush1.msra.mxu0 0.0
      %2158 = vmatprep.mubr.f32.mxu0 0.0
      %2159 = vmatmul.mubr.f32.gmra.mrb[0].mxu0 %v1999
      %v2160 = vpop.f32.mrb[0].mxu0
      %v2161 = vadd.f32 0.0, %v2160
      %v2162 = vpop.f32.mrb[0].mxu0
      %2163 = vmatprep.mubr.f32.mxu0 0.0
      %2164 = vmatmul.mubr.f32.gmra.mrb[0].mxu0 %v2002
      %v2165 = vpop.f32.mrb[0].mxu0
      %v2166 = vadd.f32 0.0, %v2165
      %v2167 = vpop.f32.mrb[0].mxu0
      %2168 = vmatprep.mubr.f32.mxu0 0.0
      %2169 = vmatmul.mubr.f32.gmra.mrb[0].mxu0 %v2005
      %v2170 = vpop.f32.mrb[0].mxu0
      %v2171 = vadd.f32 0.0, %v2170
      %v2172 = vpop.f32.mrb[0].mxu0
      %2173 = vmatprep.mubr.f32.mxu0 0.0
      %2174 = vmatmul.mubr.f32.gmra.mrb[0].mxu0 %v2008
      %v2175 = vpop.f32.mrb[0].mxu0
      %v2176 = vadd.f32 0.0, %v2175
      %v2177 = vpop.f32.mrb[0].mxu0
      %2178 = vmatprep.mubr.f32.mxu0 0.0
      %2179 = vmatmul.mubr.f32.gmra.mrb[0].mxu0 %v2011
      %v2180 = vpop.f32.mrb[0].mxu0
      %v2181 = vadd.f32 0.0, %v2180
      %v2182 = vpop.f32.mrb[0].mxu0
      %2183 = vmatprep.mubr.f32.mxu0 0.0
      %2184 = vmatmul.mubr.f32.gmra.mrb[0].mxu0 %v2014
      %v2185 = vpop.f32.mrb[0].mxu0
      %v2186 = vadd.f32 0.0, %v2185
      %v2187 = vpop.f32.mrb[0].mxu0
      %2188 = vmatprep.mubr.f32.mxu0 0.0
      %2189 = vmatmul.mubr.f32.gmra.mrb[0].mxu0 %v2017
      %v2190 = vpop.f32.mrb[0].mxu0
      %v2191 = vadd.f32 0.0, %v2190
      %v2192 = vpop.f32.mrb[0].mxu0
      %2193 = vmatprep.mubr.f32.mxu0 0.0
      %2194 = vmatmul.mubr.f32.gmra.mrb[0].mxu0 %v2020
      %v2195 = vpop.f32.mrb[0].mxu0
      %v2196 = vadd.f32 0.0, %v2195
      %v2197 = vpop.f32.mrb[0].mxu0
      %2198 = vmatprep.mubr.f32.mxu0 0.0
      %2199 = vmatmul.mubr.f32.gmra.mrb[0].mxu0 %v2023
      %v2200 = vpop.f32.mrb[0].mxu0
      %v2201 = vadd.f32 0.0, %v2200
      %v2202 = vpop.f32.mrb[0].mxu0
      %2203 = vmatprep.mubr.f32.mxu0 0.0
      %2204 = vmatmul.mubr.f32.gmra.mrb[0].mxu0 %v2026
      %v2205 = vpop.f32.mrb[0].mxu0
      %v2206 = vadd.f32 0.0, %v2205
      %v2207 = vpop.f32.mrb[0].mxu0
      %2208 = vmatprep.mubr.f32.mxu0 0.0
      %2209 = vmatmul.mubr.f32.gmra.mrb[0].mxu0 %v2029
      %v2210 = vpop.f32.mrb[0].mxu0
      %v2211 = vadd.f32 0.0, %v2210
      %v2212 = vpop.f32.mrb[0].mxu0
      %2213 = vmatprep.mubr.f32.mxu0 0.0
      %2214 = vmatmul.mubr.f32.gmra.mrb[0].mxu0 %v2032
      %v2215 = vpop.f32.mrb[0].mxu0
      %v2216 = vadd.f32 0.0, %v2215
      %v2217 = vpop.f32.mrb[0].mxu0
      %2218 = vmatprep.mubr.f32.mxu0 0.0
      %2219 = vmatmul.mubr.f32.gmra.mrb[0].mxu0 %v2035
      %v2220 = vpop.f32.mrb[0].mxu0
      %v2221 = vadd.f32 0.0, %v2220
      %v2222 = vpop.f32.mrb[0].mxu0
      %2223 = vmatprep.mubr.f32.mxu0 0.0
      %2224 = vmatmul.mubr.f32.gmra.mrb[0].mxu0 %v2038
      %v2225 = vpop.f32.mrb[0].mxu0
      %v2226 = vadd.f32 0.0, %v2225
      %v2227 = vpop.f32.mrb[0].mxu0
      %2228 = vmatprep.mubr.f32.mxu0 0.0
      %2229 = vmatmul.mubr.f32.gmra.mrb[0].mxu0 %v2041
      %v2230 = vpop.f32.mrb[0].mxu0
      %v2231 = vadd.f32 0.0, %v2230
      %v2232 = vpop.f32.mrb[0].mxu0
      %2233 = vmatprep.mubr.f32.mxu0 0.0
      %2234 = vmatmul.mubr.f32.gmra.mrb[0].mxu0 %v2044
      %v2235 = vpop.f32.mrb[0].mxu0
      %v2236 = vadd.f32 0.0, %v2235
      %v2237 = vpop.f32.mrb[0].mxu0
      %2238 = vmatprep.mubr.f32.mxu0 0.0
      %2239 = vmatmul.mubr.f32.gmra.mrb[0].mxu0 %v2047
      %v2240 = vpop.f32.mrb[0].mxu0
      %v2241 = vadd.f32 0.0, %v2240
      %v2242 = vpop.f32.mrb[0].mxu0
      %2243 = vmatprep.mubr.f32.mxu0 0.0
      %2244 = vmatmul.mubr.f32.gmra.mrb[0].mxu0 %v2050
      %v2245 = vpop.f32.mrb[0].mxu0
      %v2246 = vadd.f32 0.0, %v2245
      %v2247 = vpop.f32.mrb[0].mxu0
      %2248 = vmatprep.mubr.f32.mxu0 0.0
      %2249 = vmatmul.mubr.f32.gmra.mrb[0].mxu0 %v2053
      %v2250 = vpop.f32.mrb[0].mxu0
      %v2251 = vadd.f32 0.0, %v2250
      %v2252 = vpop.f32.mrb[0].mxu0
      %2253 = vmatprep.mubr.f32.mxu0 0.0
      %2254 = vmatmul.mubr.f32.gmra.mrb[0].mxu0 %v2056
      %v2255 = vpop.f32.mrb[0].mxu0
      %v2256 = vadd.f32 0.0, %v2255
      %v2257 = vpop.f32.mrb[0].mxu0
      %2258 = vmatprep.mubr.f32.mxu0 0.0
      %2259 = vmatmul.mubr.f32.gmra.mrb[0].mxu0 %v2059
      %v2260 = vpop.f32.mrb[0].mxu0
      %v2261 = vadd.f32 0.0, %v2260
      %v2262 = vpop.f32.mrb[0].mxu0
      %2263 = vmatprep.mubr.f32.mxu0 0.0
      %2264 = vmatmul.mubr.f32.gmra.mrb[0].mxu0 %v2062
      %v2265 = vpop.f32.mrb[0].mxu0
      %v2266 = vadd.f32 0.0, %v2265
      %v2267 = vpop.f32.mrb[0].mxu0
      %2268 = vmatprep.mubr.f32.mxu0 0.0
      %2269 = vmatmul.mubr.f32.gmra.mrb[0].mxu0 %v2065
      %v2270 = vpop.f32.mrb[0].mxu0
      %v2271 = vadd.f32 0.0, %v2270
      %v2272 = vpop.f32.mrb[0].mxu0
      %2273 = vmatprep.mubr.f32.mxu0 0.0
      %2274 = vmatmul.mubr.f32.gmra.mrb[0].mxu0 %v2068
      %v2275 = vpop.f32.mrb[0].mxu0
      %v2276 = vadd.f32 0.0, %v2275
      %v2277 = vpop.f32.mrb[0].mxu0
      %2278 = vmatprep.mubr.f32.mxu0 0.0
      %2279 = vmatmul.mubr.f32.gmra.mrb[0].mxu0 %v2071
      %v2280 = vpop.f32.mrb[0].mxu0
      %v2281 = vadd.f32 0.0, %v2280
      %v2282 = vpop.f32.mrb[0].mxu0
      %2283 = vmatprep.mubr.f32.mxu0 0.0
      %2284 = vmatmul.mubr.f32.gmra.mrb[0].mxu0 %v2074
      %v2285 = vpop.f32.mrb[0].mxu0
      %v2286 = vadd.f32 0.0, %v2285
      %v2287 = vpop.f32.mrb[0].mxu0
      %2288 = vmatprep.mubr.f32.mxu0 0.0
      %2289 = vmatmul.mubr.f32.gmra.mrb[0].mxu0 %v2077
      %v2290 = vpop.f32.mrb[0].mxu0
      %v2291 = vadd.f32 0.0, %v2290
      %v2292 = vpop.f32.mrb[0].mxu0
      %2293 = vmatprep.mubr.f32.mxu0 0.0
      %2294 = vmatmul.mubr.f32.gmra.mrb[0].mxu0 %v2080
      %v2295 = vpop.f32.mrb[0].mxu0
      %v2296 = vadd.f32 0.0, %v2295
      %v2297 = vpop.f32.mrb[0].mxu0
      %2298 = vmatprep.mubr.f32.mxu0 0.0
      %2299 = vmatmul.mubr.f32.gmra.mrb[0].mxu0 %v2083
      %v2300 = vpop.f32.mrb[0].mxu0
      %v2301 = vadd.f32 0.0, %v2300
      %v2302 = vpop.f32.mrb[0].mxu0
      %2303 = vmatprep.mubr.f32.mxu0 0.0
      %2304 = vmatmul.mubr.f32.gmra.mrb[0].mxu0 %v2086
      %v2305 = vpop.f32.mrb[0].mxu0
      %v2306 = vadd.f32 0.0, %v2305
      %v2307 = vpop.f32.mrb[0].mxu0
      %2308 = vmatprep.mubr.f32.mxu0 0.0
      %2309 = vmatmul.mubr.f32.gmra.mrb[0].mxu0 %v2089
      %v2310 = vpop.f32.mrb[0].mxu0
      %v2311 = vadd.f32 0.0, %v2310
      %v2312 = vpop.f32.mrb[0].mxu0
      %2313 = vmatprep.mubr.f32.mxu0 0.0
      %2314 = vmatmul.mubr.f32.gmra.mrb[0].mxu0 %v2092
      %v2315 = vpop.f32.mrb[0].mxu0
      %v2316 = vadd.f32 0.0, %v2315
      %v2317 = vpop.f32.mrb[0].mxu0
      %2318 = vdwg.mxu0
      %v2319 = vadd.f32 %v1932, %v2161
      %v2320 = vadd.f32 %v1933, %v2166
      %v2321 = vadd.f32 %v1934, %v2171
      %v2322 = vadd.f32 %v1935, %v2176
      %v2323 = vadd.f32 %v1936, %v2181
      %v2324 = vadd.f32 %v1937, %v2186
      %v2325 = vadd.f32 %v1938, %v2191
      %v2326 = vadd.f32 %v1939, %v2196
      %v2327 = vadd.f32 %v1940, %v2201
      %v2328 = vadd.f32 %v1941, %v2206
      %v2329 = vadd.f32 %v1942, %v2211
      %v2330 = vadd.f32 %v1943, %v2216
      %v2331 = vadd.f32 %v1944, %v2221
      %v2332 = vadd.f32 %v1945, %v2226
      %v2333 = vadd.f32 %v1946, %v2231
      %v2334 = vadd.f32 %v1947, %v2236
      %v2335 = vadd.f32 %v1948, %v2241
      %v2336 = vadd.f32 %v1949, %v2246
      %v2337 = vadd.f32 %v1950, %v2251
      %v2338 = vadd.f32 %v1951, %v2256
      %v2339 = vadd.f32 %v1952, %v2261
      %v2340 = vadd.f32 %v1953, %v2266
      %v2341 = vadd.f32 %v1954, %v2271
      %v2342 = vadd.f32 %v1955, %v2276
      %v2343 = vadd.f32 %v1956, %v2281
      %v2344 = vadd.f32 %v1957, %v2286
      %v2345 = vadd.f32 %v1958, %v2291
      %v2346 = vadd.f32 %v1959, %v2296
      %v2347 = vadd.f32 %v1960, %v2301
      %v2348 = vadd.f32 %v1961, %v2306
      %v2349 = vadd.f32 %v1962, %v2311
      %v2350 = vadd.f32 %v1963, %v2316
      %v2351 = vld [vmem:[%s415 + $0x2] sm:$0xff]
      %v2352 = vld [vmem:[%s415 + $0xa] sm:$0xff]
      %v2353 = vld [vmem:[%s415 + $0x1a] sm:$0xff]
      %v2354 = vld [vmem:[%s415 + $0x22] sm:$0xff]
      %v2355 = vld [vmem:[%s415 + $0x32] sm:$0xff]
      %v2356 = vld [vmem:[%s415 + $0x3a] sm:$0xff]
      %v2357 = vld [vmem:[%s415 + $0x4a] sm:$0xff]
      %v2358 = vld [vmem:[%s415 + $0x52] sm:$0xff]
      %v2359 = vld [vmem:[%s415 + $0x62] sm:$0xff]
      %v2360 = vld [vmem:[%s415 + $0x6a] sm:$0xff]
      %v2361 = vld [vmem:[%s415 + $0x7a] sm:$0xff]
      %v2362 = vld [vmem:[%s415 + $0x82] sm:$0xff]
      %v2363 = vld [vmem:[%s415 + $0x92] sm:$0xff]
      %v2364 = vld [vmem:[%s415 + $0x9a] sm:$0xff]
      %v2365 = vld [vmem:[%s415 + $0xaa] sm:$0xff]
      %v2366 = vld [vmem:[%s415 + $0xb2] sm:$0xff]
      %v2367 = vld [vmem:[%s415 + $0xc2] sm:$0xff]
      %v2368 = vld [vmem:[%s415 + $0xca] sm:$0xff]
      %v2369 = vld [vmem:[%s415 + $0xda] sm:$0xff]
      %v2370 = vld [vmem:[%s415 + $0xe2] sm:$0xff]
      %v2371 = vld [vmem:[%s415 + $0xf2] sm:$0xff]
      %v2372 = vld [vmem:[%s415 + $0xfa] sm:$0xff]
      %v2373 = vld [vmem:[%s415 + $0x10a] sm:$0xff]
      %v2374 = vld [vmem:[%s415 + $0x112] sm:$0xff]
      %v2375 = vld [vmem:[%s415 + $0x122] sm:$0xff]
      %v2376 = vld [vmem:[%s415 + $0x12a] sm:$0xff]
      %v2377 = vld [vmem:[%s415 + $0x13a] sm:$0xff]
      %v2378 = vld [vmem:[%s415 + $0x142] sm:$0xff]
      %v2379 = vld [vmem:[%s415 + $0x152] sm:$0xff]
      %v2380 = vld [vmem:[%s415 + $0x15a] sm:$0xff]
      %v2381 = vld [vmem:[%s415 + $0x16a] sm:$0xff]
      %v2382 = vld [vmem:[%s415 + $0x172] sm:$0xff]
      %s2383 = scalar_lea.vmem %s1, 40
      %v2384 = vld [vmem:[%s2383] sm:$0xff]
      %v2386 = vsel %vm406, %v2351, 0
      %v2389 = vsel %vm406, %v2352, 0
      %v2392 = vsel %vm406, %v2353, 0
      %v2395 = vsel %vm406, %v2354, 0
      %v2398 = vsel %vm406, %v2355, 0
      %v2401 = vsel %vm406, %v2356, 0
      %v2404 = vsel %vm406, %v2357, 0
      %v2407 = vsel %vm406, %v2358, 0
      %v2410 = vsel %vm406, %v2359, 0
      %v2413 = vsel %vm406, %v2360, 0
      %v2416 = vsel %vm406, %v2361, 0
      %v2419 = vsel %vm406, %v2362, 0
      %v2422 = vsel %vm406, %v2363, 0
      %v2425 = vsel %vm406, %v2364, 0
      %v2428 = vsel %vm406, %v2365, 0
      %v2431 = vsel %vm406, %v2366, 0
      %v2434 = vsel %vm406, %v2367, 0
      %v2437 = vsel %vm406, %v2368, 0
      %v2440 = vsel %vm406, %v2369, 0
      %v2443 = vsel %vm406, %v2370, 0
      %v2446 = vsel %vm406, %v2371, 0
      %v2449 = vsel %vm406, %v2372, 0
      %v2452 = vsel %vm406, %v2373, 0
      %v2455 = vsel %vm406, %v2374, 0
      %v2458 = vsel %vm406, %v2375, 0
      %v2461 = vsel %vm406, %v2376, 0
      %v2464 = vsel %vm406, %v2377, 0
      %v2467 = vsel %vm406, %v2378, 0
      %v2470 = vsel %vm406, %v2379, 0
      %v2473 = vsel %vm406, %v2380, 0
      %v2476 = vsel %vm406, %v2381, 0
      %v2479 = vsel %vm406, %v2382, 0
      %2481 = vmatprep.subr.mxu0 0.0
      %2482 = vmatpush1.msra.mxu0 %v2384
      %2483 = vmatprep.subr.mxu0 0.0
      %2484 = vmatpush1.msra.mxu0 0.0
      %2485 = vmatprep.subr.mxu0 0.0
      %2486 = vmatpush1.msra.mxu0 0.0
      %2487 = vmatprep.subr.mxu0 0.0
      %2488 = vmatpush1.msra.mxu0 0.0
      %2489 = vmatprep.subr.mxu0 0.0
      %2490 = vmatpush1.msra.mxu0 0.0
      %2491 = vmatprep.subr.mxu0 0.0
      %2492 = vmatpush1.msra.mxu0 0.0
      %2493 = vmatprep.subr.mxu0 0.0
      %2494 = vmatpush1.msra.mxu0 0.0
      %2495 = vmatprep.subr.mxu0 0.0
      %2496 = vmatpush1.msra.mxu0 0.0
      %2497 = vmatprep.subr.mxu0 0.0
      %2498 = vmatpush1.msra.mxu0 0.0
      %2499 = vmatprep.subr.mxu0 0.0
      %2500 = vmatpush1.msra.mxu0 0.0
      %2501 = vmatprep.subr.mxu0 0.0
      %2502 = vmatpush1.msra.mxu0 0.0
      %2503 = vmatprep.subr.mxu0 0.0
      %2504 = vmatpush1.msra.mxu0 0.0
      %2505 = vmatprep.subr.mxu0 0.0
      %2506 = vmatpush1.msra.mxu0 0.0
      %2507 = vmatprep.subr.mxu0 0.0
      %2508 = vmatpush1.msra.mxu0 0.0
      %2509 = vmatprep.subr.mxu0 0.0
      %2510 = vmatpush1.msra.mxu0 0.0
      %2511 = vmatprep.subr.mxu0 0.0
      %2512 = vmatpush1.msra.mxu0 0.0
      %2513 = vmatprep.subr.mxu0 0.0
      %2514 = vmatpush1.msra.mxu0 0.0
      %2515 = vmatprep.subr.mxu0 0.0
      %2516 = vmatpush1.msra.mxu0 0.0
      %2517 = vmatprep.subr.mxu0 0.0
      %2518 = vmatpush1.msra.mxu0 0.0
      %2519 = vmatprep.subr.mxu0 0.0
      %2520 = vmatpush1.msra.mxu0 0.0
      %2521 = vmatprep.subr.mxu0 0.0
      %2522 = vmatpush1.msra.mxu0 0.0
      %2523 = vmatprep.subr.mxu0 0.0
      %2524 = vmatpush1.msra.mxu0 0.0
      %2525 = vmatprep.subr.mxu0 0.0
      %2526 = vmatpush1.msra.mxu0 0.0
      %2527 = vmatprep.subr.mxu0 0.0
      %2528 = vmatpush1.msra.mxu0 0.0
      %2529 = vmatprep.subr.mxu0 0.0
      %2530 = vmatpush1.msra.mxu0 0.0
      %2531 = vmatprep.subr.mxu0 0.0
      %2532 = vmatpush1.msra.mxu0 0.0
      %2533 = vmatprep.subr.mxu0 0.0
      %2534 = vmatpush1.msra.mxu0 0.0
      %2535 = vmatprep.subr.mxu0 0.0
      %2536 = vmatpush1.msra.mxu0 0.0
      %2537 = vmatprep.subr.mxu0 0.0
      %2538 = vmatpush1.msra.mxu0 0.0
      %2539 = vmatprep.subr.mxu0 0.0
      %2540 = vmatpush1.msra.mxu0 0.0
      %2541 = vmatprep.subr.mxu0 0.0
      %2542 = vmatpush1.msra.mxu0 0.0
      %2543 = vmatprep.subr.mxu0 0.0
      %2544 = vmatpush1.msra.mxu0 0.0
      %2545 = vmatprep.mubr.f32.mxu0 0.0
      %2546 = vmatmul.mubr.f32.gmra.mrb[0].mxu0 %v2386
      %v2547 = vpop.f32.mrb[0].mxu0
      %v2548 = vadd.f32 0.0, %v2547
      %v2549 = vpop.f32.mrb[0].mxu0
      %2550 = vmatprep.mubr.f32.mxu0 0.0
      %2551 = vmatmul.mubr.f32.gmra.mrb[0].mxu0 %v2389
      %v2552 = vpop.f32.mrb[0].mxu0
      %v2553 = vadd.f32 0.0, %v2552
      %v2554 = vpop.f32.mrb[0].mxu0
      %2555 = vmatprep.mubr.f32.mxu0 0.0
      %2556 = vmatmul.mubr.f32.gmra.mrb[0].mxu0 %v2392
      %v2557 = vpop.f32.mrb[0].mxu0
      %v2558 = vadd.f32 0.0, %v2557
      %v2559 = vpop.f32.mrb[0].mxu0
      %2560 = vmatprep.mubr.f32.mxu0 0.0
      %2561 = vmatmul.mubr.f32.gmra.mrb[0].mxu0 %v2395
      %v2562 = vpop.f32.mrb[0].mxu0
      %v2563 = vadd.f32 0.0, %v2562
      %v2564 = vpop.f32.mrb[0].mxu0
      %2565 = vmatprep.mubr.f32.mxu0 0.0
      %2566 = vmatmul.mubr.f32.gmra.mrb[0].mxu0 %v2398
      %v2567 = vpop.f32.mrb[0].mxu0
      %v2568 = vadd.f32 0.0, %v2567
      %v2569 = vpop.f32.mrb[0].mxu0
      %2570 = vmatprep.mubr.f32.mxu0 0.0
      %2571 = vmatmul.mubr.f32.gmra.mrb[0].mxu0 %v2401
      %v2572 = vpop.f32.mrb[0].mxu0
      %v2573 = vadd.f32 0.0, %v2572
      %v2574 = vpop.f32.mrb[0].mxu0
      %2575 = vmatprep.mubr.f32.mxu0 0.0
      %2576 = vmatmul.mubr.f32.gmra.mrb[0].mxu0 %v2404
      %v2577 = vpop.f32.mrb[0].mxu0
      %v2578 = vadd.f32 0.0, %v2577
      %v2579 = vpop.f32.mrb[0].mxu0
      %2580 = vmatprep.mubr.f32.mxu0 0.0
      %2581 = vmatmul.mubr.f32.gmra.mrb[0].mxu0 %v2407
      %v2582 = vpop.f32.mrb[0].mxu0
      %v2583 = vadd.f32 0.0, %v2582
      %v2584 = vpop.f32.mrb[0].mxu0
      %2585 = vmatprep.mubr.f32.mxu0 0.0
      %2586 = vmatmul.mubr.f32.gmra.mrb[0].mxu0 %v2410
      %v2587 = vpop.f32.mrb[0].mxu0
      %v2588 = vadd.f32 0.0, %v2587
      %v2589 = vpop.f32.mrb[0].mxu0
      %2590 = vmatprep.mubr.f32.mxu0 0.0
      %2591 = vmatmul.mubr.f32.gmra.mrb[0].mxu0 %v2413
      %v2592 = vpop.f32.mrb[0].mxu0
      %v2593 = vadd.f32 0.0, %v2592
      %v2594 = vpop.f32.mrb[0].mxu0
      %2595 = vmatprep.mubr.f32.mxu0 0.0
      %2596 = vmatmul.mubr.f32.gmra.mrb[0].mxu0 %v2416
      %v2597 = vpop.f32.mrb[0].mxu0
      %v2598 = vadd.f32 0.0, %v2597
      %v2599 = vpop.f32.mrb[0].mxu0
      %2600 = vmatprep.mubr.f32.mxu0 0.0
      %2601 = vmatmul.mubr.f32.gmra.mrb[0].mxu0 %v2419
      %v2602 = vpop.f32.mrb[0].mxu0
      %v2603 = vadd.f32 0.0, %v2602
      %v2604 = vpop.f32.mrb[0].mxu0
      %2605 = vmatprep.mubr.f32.mxu0 0.0
      %2606 = vmatmul.mubr.f32.gmra.mrb[0].mxu0 %v2422
      %v2607 = vpop.f32.mrb[0].mxu0
      %v2608 = vadd.f32 0.0, %v2607
      %v2609 = vpop.f32.mrb[0].mxu0
      %2610 = vmatprep.mubr.f32.mxu0 0.0
      %2611 = vmatmul.mubr.f32.gmra.mrb[0].mxu0 %v2425
      %v2612 = vpop.f32.mrb[0].mxu0
      %v2613 = vadd.f32 0.0, %v2612
      %v2614 = vpop.f32.mrb[0].mxu0
      %2615 = vmatprep.mubr.f32.mxu0 0.0
      %2616 = vmatmul.mubr.f32.gmra.mrb[0].mxu0 %v2428
      %v2617 = vpop.f32.mrb[0].mxu0
      %v2618 = vadd.f32 0.0, %v2617
      %v2619 = vpop.f32.mrb[0].mxu0
      %2620 = vmatprep.mubr.f32.mxu0 0.0
      %2621 = vmatmul.mubr.f32.gmra.mrb[0].mxu0 %v2431
      %v2622 = vpop.f32.mrb[0].mxu0
      %v2623 = vadd.f32 0.0, %v2622
      %v2624 = vpop.f32.mrb[0].mxu0
      %2625 = vmatprep.mubr.f32.mxu0 0.0
      %2626 = vmatmul.mubr.f32.gmra.mrb[0].mxu0 %v2434
      %v2627 = vpop.f32.mrb[0].mxu0
      %v2628 = vadd.f32 0.0, %v2627
      %v2629 = vpop.f32.mrb[0].mxu0
      %2630 = vmatprep.mubr.f32.mxu0 0.0
      %2631 = vmatmul.mubr.f32.gmra.mrb[0].mxu0 %v2437
      %v2632 = vpop.f32.mrb[0].mxu0
      %v2633 = vadd.f32 0.0, %v2632
      %v2634 = vpop.f32.mrb[0].mxu0
      %2635 = vmatprep.mubr.f32.mxu0 0.0
      %2636 = vmatmul.mubr.f32.gmra.mrb[0].mxu0 %v2440
      %v2637 = vpop.f32.mrb[0].mxu0
      %v2638 = vadd.f32 0.0, %v2637
      %v2639 = vpop.f32.mrb[0].mxu0
      %2640 = vmatprep.mubr.f32.mxu0 0.0
      %2641 = vmatmul.mubr.f32.gmra.mrb[0].mxu0 %v2443
      %v2642 = vpop.f32.mrb[0].mxu0
      %v2643 = vadd.f32 0.0, %v2642
      %v2644 = vpop.f32.mrb[0].mxu0
      %2645 = vmatprep.mubr.f32.mxu0 0.0
      %2646 = vmatmul.mubr.f32.gmra.mrb[0].mxu0 %v2446
      %v2647 = vpop.f32.mrb[0].mxu0
      %v2648 = vadd.f32 0.0, %v2647
      %v2649 = vpop.f32.mrb[0].mxu0
      %2650 = vmatprep.mubr.f32.mxu0 0.0
      %2651 = vmatmul.mubr.f32.gmra.mrb[0].mxu0 %v2449
      %v2652 = vpop.f32.mrb[0].mxu0
      %v2653 = vadd.f32 0.0, %v2652
      %v2654 = vpop.f32.mrb[0].mxu0
      %2655 = vmatprep.mubr.f32.mxu0 0.0
      %2656 = vmatmul.mubr.f32.gmra.mrb[0].mxu0 %v2452
      %v2657 = vpop.f32.mrb[0].mxu0
      %v2658 = vadd.f32 0.0, %v2657
      %v2659 = vpop.f32.mrb[0].mxu0
      %2660 = vmatprep.mubr.f32.mxu0 0.0
      %2661 = vmatmul.mubr.f32.gmra.mrb[0].mxu0 %v2455
      %v2662 = vpop.f32.mrb[0].mxu0
      %v2663 = vadd.f32 0.0, %v2662
      %v2664 = vpop.f32.mrb[0].mxu0
      %2665 = vmatprep.mubr.f32.mxu0 0.0
      %2666 = vmatmul.mubr.f32.gmra.mrb[0].mxu0 %v2458
      %v2667 = vpop.f32.mrb[0].mxu0
      %v2668 = vadd.f32 0.0, %v2667
      %v2669 = vpop.f32.mrb[0].mxu0
      %2670 = vmatprep.mubr.f32.mxu0 0.0
      %2671 = vmatmul.mubr.f32.gmra.mrb[0].mxu0 %v2461
      %v2672 = vpop.f32.mrb[0].mxu0
      %v2673 = vadd.f32 0.0, %v2672
      %v2674 = vpop.f32.mrb[0].mxu0
      %2675 = vmatprep.mubr.f32.mxu0 0.0
      %2676 = vmatmul.mubr.f32.gmra.mrb[0].mxu0 %v2464
      %v2677 = vpop.f32.mrb[0].mxu0
      %v2678 = vadd.f32 0.0, %v2677
      %v2679 = vpop.f32.mrb[0].mxu0
      %2680 = vmatprep.mubr.f32.mxu0 0.0
      %2681 = vmatmul.mubr.f32.gmra.mrb[0].mxu0 %v2467
      %v2682 = vpop.f32.mrb[0].mxu0
      %v2683 = vadd.f32 0.0, %v2682
      %v2684 = vpop.f32.mrb[0].mxu0
      %2685 = vmatprep.mubr.f32.mxu0 0.0
      %2686 = vmatmul.mubr.f32.gmra.mrb[0].mxu0 %v2470
      %v2687 = vpop.f32.mrb[0].mxu0
      %v2688 = vadd.f32 0.0, %v2687
      %v2689 = vpop.f32.mrb[0].mxu0
      %2690 = vmatprep.mubr.f32.mxu0 0.0
      %2691 = vmatmul.mubr.f32.gmra.mrb[0].mxu0 %v2473
      %v2692 = vpop.f32.mrb[0].mxu0
      %v2693 = vadd.f32 0.0, %v2692
      %v2694 = vpop.f32.mrb[0].mxu0
      %2695 = vmatprep.mubr.f32.mxu0 0.0
      %2696 = vmatmul.mubr.f32.gmra.mrb[0].mxu0 %v2476
      %v2697 = vpop.f32.mrb[0].mxu0
      %v2698 = vadd.f32 0.0, %v2697
      %v2699 = vpop.f32.mrb[0].mxu0
      %2700 = vmatprep.mubr.f32.mxu0 0.0
      %2701 = vmatmul.mubr.f32.gmra.mrb[0].mxu0 %v2479
      %v2702 = vpop.f32.mrb[0].mxu0
      %v2703 = vadd.f32 0.0, %v2702
      %v2704 = vpop.f32.mrb[0].mxu0
      %2705 = vdwg.mxu0
      %v2706 = vadd.f32 %v2319, %v2548
      %v2707 = vadd.f32 %v2320, %v2553
      %v2708 = vadd.f32 %v2321, %v2558
      %v2709 = vadd.f32 %v2322, %v2563
      %v2710 = vadd.f32 %v2323, %v2568
      %v2711 = vadd.f32 %v2324, %v2573
      %v2712 = vadd.f32 %v2325, %v2578
      %v2713 = vadd.f32 %v2326, %v2583
      %v2714 = vadd.f32 %v2327, %v2588
      %v2715 = vadd.f32 %v2328, %v2593
      %v2716 = vadd.f32 %v2329, %v2598
      %v2717 = vadd.f32 %v2330, %v2603
      %v2718 = vadd.f32 %v2331, %v2608
      %v2719 = vadd.f32 %v2332, %v2613
      %v2720 = vadd.f32 %v2333, %v2618
      %v2721 = vadd.f32 %v2334, %v2623
      %v2722 = vadd.f32 %v2335, %v2628
      %v2723 = vadd.f32 %v2336, %v2633
      %v2724 = vadd.f32 %v2337, %v2638
      %v2725 = vadd.f32 %v2338, %v2643
      %v2726 = vadd.f32 %v2339, %v2648
      %v2727 = vadd.f32 %v2340, %v2653
      %v2728 = vadd.f32 %v2341, %v2658
      %v2729 = vadd.f32 %v2342, %v2663
      %v2730 = vadd.f32 %v2343, %v2668
      %v2731 = vadd.f32 %v2344, %v2673
      %v2732 = vadd.f32 %v2345, %v2678
      %v2733 = vadd.f32 %v2346, %v2683
      %v2734 = vadd.f32 %v2347, %v2688
      %v2735 = vadd.f32 %v2348, %v2693
      %v2736 = vadd.f32 %v2349, %v2698
      %v2737 = vadd.f32 %v2350, %v2703
      %s2738 = scalar_lea.vmem [#allocation2], 48
      %v2739 = vld [vmem:[%s2738] sm:$0xff]
      %v2740 = vld [vmem:[%s2738 + $0x8] sm:$0xff]
      %v2741 = vld [vmem:[%s2738 + $0x18] sm:$0xff]
      %v2742 = vld [vmem:[%s2738 + $0x20] sm:$0xff]
      %v2743 = vld [vmem:[%s2738 + $0x30] sm:$0xff]
      %v2744 = vld [vmem:[%s2738 + $0x38] sm:$0xff]
      %v2745 = vld [vmem:[%s2738 + $0x48] sm:$0xff]
      %v2746 = vld [vmem:[%s2738 + $0x50] sm:$0xff]
      %v2747 = vld [vmem:[%s2738 + $0x60] sm:$0xff]
      %v2748 = vld [vmem:[%s2738 + $0x68] sm:$0xff]
      %v2749 = vld [vmem:[%s2738 + $0x78] sm:$0xff]
      %v2750 = vld [vmem:[%s2738 + $0x80] sm:$0xff]
      %v2751 = vld [vmem:[%s2738 + $0x90] sm:$0xff]
      %v2752 = vld [vmem:[%s2738 + $0x98] sm:$0xff]
      %v2753 = vld [vmem:[%s2738 + $0xa8] sm:$0xff]
      %v2754 = vld [vmem:[%s2738 + $0xb0] sm:$0xff]
      %v2755 = vld [vmem:[%s2738 + $0xc0] sm:$0xff]
      %v2756 = vld [vmem:[%s2738 + $0xc8] sm:$0xff]
      %v2757 = vld [vmem:[%s2738 + $0xd8] sm:$0xff]
      %v2758 = vld [vmem:[%s2738 + $0xe0] sm:$0xff]
      %v2759 = vld [vmem:[%s2738 + $0xf0] sm:$0xff]
      %v2760 = vld [vmem:[%s2738 + $0xf8] sm:$0xff]
      %v2761 = vld [vmem:[%s2738 + $0x108] sm:$0xff]
      %v2762 = vld [vmem:[%s2738 + $0x110] sm:$0xff]
      %v2763 = vld [vmem:[%s2738 + $0x120] sm:$0xff]
      %v2764 = vld [vmem:[%s2738 + $0x128] sm:$0xff]
      %v2765 = vld [vmem:[%s2738 + $0x138] sm:$0xff]
      %v2766 = vld [vmem:[%s2738 + $0x140] sm:$0xff]
      %v2767 = vld [vmem:[%s2738 + $0x150] sm:$0xff]
      %v2768 = vld [vmem:[%s2738 + $0x158] sm:$0xff]
      %v2769 = vld [vmem:[%s2738 + $0x168] sm:$0xff]
      %v2770 = vld [vmem:[%s2738 + $0x170] sm:$0xff]
      %s2771 = scalar_lea.vmem %s1, 48
      %v2772 = vld [vmem:[%s2771] sm:$0xff]
      %v2774 = vsel %vm406, %v2739, 0
      %v2777 = vsel %vm406, %v2740, 0
      %v2780 = vsel %vm406, %v2741, 0
      %v2783 = vsel %vm406, %v2742, 0
      %v2786 = vsel %vm406, %v2743, 0
      %v2789 = vsel %vm406, %v2744, 0
      %v2792 = vsel %vm406, %v2745, 0
      %v2795 = vsel %vm406, %v2746, 0
      %v2798 = vsel %vm406, %v2747, 0
      %v2801 = vsel %vm406, %v2748, 0
      %v2804 = vsel %vm406, %v2749, 0
      %v2807 = vsel %vm406, %v2750, 0
      %v2810 = vsel %vm406, %v2751, 0
      %v2813 = vsel %vm406, %v2752, 0
      %v2816 = vsel %vm406, %v2753, 0
      %v2819 = vsel %vm406, %v2754, 0
      %v2822 = vsel %vm406, %v2755, 0
      %v2825 = vsel %vm406, %v2756, 0
      %v2828 = vsel %vm406, %v2757, 0
      %v2831 = vsel %vm406, %v2758, 0
      %v2834 = vsel %vm406, %v2759, 0
      %v2837 = vsel %vm406, %v2760, 0
      %v2840 = vsel %vm406, %v2761, 0
      %v2843 = vsel %vm406, %v2762, 0
      %v2846 = vsel %vm406, %v2763, 0
      %v2849 = vsel %vm406, %v2764, 0
      %v2852 = vsel %vm406, %v2765, 0
      %v2855 = vsel %vm406, %v2766, 0
      %v2858 = vsel %vm406, %v2767, 0
      %v2861 = vsel %vm406, %v2768, 0
      %v2864 = vsel %vm406, %v2769, 0
      %v2867 = vsel %vm406, %v2770, 0
      %2869 = vmatprep.subr.mxu0 0.0
      %2870 = vmatpush1.msra.mxu0 %v2772
      %2871 = vmatprep.subr.mxu0 0.0
      %2872 = vmatpush1.msra.mxu0 0.0
      %2873 = vmatprep.subr.mxu0 0.0
      %2874 = vmatpush1.msra.mxu0 0.0
      %2875 = vmatprep.subr.mxu0 0.0
      %2876 = vmatpush1.msra.mxu0 0.0
      %2877 = vmatprep.subr.mxu0 0.0
      %2878 = vmatpush1.msra.mxu0 0.0
      %2879 = vmatprep.subr.mxu0 0.0
      %2880 = vmatpush1.msra.mxu0 0.0
      %2881 = vmatprep.subr.mxu0 0.0
      %2882 = vmatpush1.msra.mxu0 0.0
      %2883 = vmatprep.subr.mxu0 0.0
      %2884 = vmatpush1.msra.mxu0 0.0
      %2885 = vmatprep.subr.mxu0 0.0
      %2886 = vmatpush1.msra.mxu0 0.0
      %2887 = vmatprep.subr.mxu0 0.0
      %2888 = vmatpush1.msra.mxu0 0.0
      %2889 = vmatprep.subr.mxu0 0.0
      %2890 = vmatpush1.msra.mxu0 0.0
      %2891 = vmatprep.subr.mxu0 0.0
      %2892 = vmatpush1.msra.mxu0 0.0
      %2893 = vmatprep.subr.mxu0 0.0
      %2894 = vmatpush1.msra.mxu0 0.0
      %2895 = vmatprep.subr.mxu0 0.0
      %2896 = vmatpush1.msra.mxu0 0.0
      %2897 = vmatprep.subr.mxu0 0.0
      %2898 = vmatpush1.msra.mxu0 0.0
      %2899 = vmatprep.subr.mxu0 0.0
      %2900 = vmatpush1.msra.mxu0 0.0
      %2901 = vmatprep.subr.mxu0 0.0
      %2902 = vmatpush1.msra.mxu0 0.0
      %2903 = vmatprep.subr.mxu0 0.0
      %2904 = vmatpush1.msra.mxu0 0.0
      %2905 = vmatprep.subr.mxu0 0.0
      %2906 = vmatpush1.msra.mxu0 0.0
      %2907 = vmatprep.subr.mxu0 0.0
      %2908 = vmatpush1.msra.mxu0 0.0
      %2909 = vmatprep.subr.mxu0 0.0
      %2910 = vmatpush1.msra.mxu0 0.0
      %2911 = vmatprep.subr.mxu0 0.0
      %2912 = vmatpush1.msra.mxu0 0.0
      %2913 = vmatprep.subr.mxu0 0.0
      %2914 = vmatpush1.msra.mxu0 0.0
      %2915 = vmatprep.subr.mxu0 0.0
      %2916 = vmatpush1.msra.mxu0 0.0
      %2917 = vmatprep.subr.mxu0 0.0
      %2918 = vmatpush1.msra.mxu0 0.0
      %2919 = vmatprep.subr.mxu0 0.0
      %2920 = vmatpush1.msra.mxu0 0.0
      %2921 = vmatprep.subr.mxu0 0.0
      %2922 = vmatpush1.msra.mxu0 0.0
      %2923 = vmatprep.subr.mxu0 0.0
      %2924 = vmatpush1.msra.mxu0 0.0
      %2925 = vmatprep.subr.mxu0 0.0
      %2926 = vmatpush1.msra.mxu0 0.0
      %2927 = vmatprep.subr.mxu0 0.0
      %2928 = vmatpush1.msra.mxu0 0.0
      %2929 = vmatprep.subr.mxu0 0.0
      %2930 = vmatpush1.msra.mxu0 0.0
      %2931 = vmatprep.subr.mxu0 0.0
      %2932 = vmatpush1.msra.mxu0 0.0
      %2933 = vmatprep.mubr.f32.mxu0 0.0
      %2934 = vmatmul.mubr.f32.gmra.mrb[0].mxu0 %v2774
      %v2935 = vpop.f32.mrb[0].mxu0
      %v2936 = vadd.f32 0.0, %v2935
      %v2937 = vpop.f32.mrb[0].mxu0
      %2938 = vmatprep.mubr.f32.mxu0 0.0
      %2939 = vmatmul.mubr.f32.gmra.mrb[0].mxu0 %v2777
      %v2940 = vpop.f32.mrb[0].mxu0
      %v2941 = vadd.f32 0.0, %v2940
      %v2942 = vpop.f32.mrb[0].mxu0
      %2943 = vmatprep.mubr.f32.mxu0 0.0
      %2944 = vmatmul.mubr.f32.gmra.mrb[0].mxu0 %v2780
      %v2945 = vpop.f32.mrb[0].mxu0
      %v2946 = vadd.f32 0.0, %v2945
      %v2947 = vpop.f32.mrb[0].mxu0
      %2948 = vmatprep.mubr.f32.mxu0 0.0
      %2949 = vmatmul.mubr.f32.gmra.mrb[0].mxu0 %v2783
      %v2950 = vpop.f32.mrb[0].mxu0
      %v2951 = vadd.f32 0.0, %v2950
      %v2952 = vpop.f32.mrb[0].mxu0
      %2953 = vmatprep.mubr.f32.mxu0 0.0
      %2954 = vmatmul.mubr.f32.gmra.mrb[0].mxu0 %v2786
      %v2955 = vpop.f32.mrb[0].mxu0
      %v2956 = vadd.f32 0.0, %v2955
      %v2957 = vpop.f32.mrb[0].mxu0
      %2958 = vmatprep.mubr.f32.mxu0 0.0
      %2959 = vmatmul.mubr.f32.gmra.mrb[0].mxu0 %v2789
      %v2960 = vpop.f32.mrb[0].mxu0
      %v2961 = vadd.f32 0.0, %v2960
      %v2962 = vpop.f32.mrb[0].mxu0
      %2963 = vmatprep.mubr.f32.mxu0 0.0
      %2964 = vmatmul.mubr.f32.gmra.mrb[0].mxu0 %v2792
      %v2965 = vpop.f32.mrb[0].mxu0
      %v2966 = vadd.f32 0.0, %v2965
      %v2967 = vpop.f32.mrb[0].mxu0
      %2968 = vmatprep.mubr.f32.mxu0 0.0
      %2969 = vmatmul.mubr.f32.gmra.mrb[0].mxu0 %v2795
      %v2970 = vpop.f32.mrb[0].mxu0
      %v2971 = vadd.f32 0.0, %v2970
      %v2972 = vpop.f32.mrb[0].mxu0
      %2973 = vmatprep.mubr.f32.mxu0 0.0
      %2974 = vmatmul.mubr.f32.gmra.mrb[0].mxu0 %v2798
      %v2975 = vpop.f32.mrb[0].mxu0
      %v2976 = vadd.f32 0.0, %v2975
      %v2977 = vpop.f32.mrb[0].mxu0
      %2978 = vmatprep.mubr.f32.mxu0 0.0
      %2979 = vmatmul.mubr.f32.gmra.mrb[0].mxu0 %v2801
      %v2980 = vpop.f32.mrb[0].mxu0
      %v2981 = vadd.f32 0.0, %v2980
      %v2982 = vpop.f32.mrb[0].mxu0
      %2983 = vmatprep.mubr.f32.mxu0 0.0
      %2984 = vmatmul.mubr.f32.gmra.mrb[0].mxu0 %v2804
      %v2985 = vpop.f32.mrb[0].mxu0
      %v2986 = vadd.f32 0.0, %v2985
      %v2987 = vpop.f32.mrb[0].mxu0
      %2988 = vmatprep.mubr.f32.mxu0 0.0
      %2989 = vmatmul.mubr.f32.gmra.mrb[0].mxu0 %v2807
      %v2990 = vpop.f32.mrb[0].mxu0
      %v2991 = vadd.f32 0.0, %v2990
      %v2992 = vpop.f32.mrb[0].mxu0
      %2993 = vmatprep.mubr.f32.mxu0 0.0
      %2994 = vmatmul.mubr.f32.gmra.mrb[0].mxu0 %v2810
      %v2995 = vpop.f32.mrb[0].mxu0
      %v2996 = vadd.f32 0.0, %v2995
      %v2997 = vpop.f32.mrb[0].mxu0
      %2998 = vmatprep.mubr.f32.mxu0 0.0
      %2999 = vmatmul.mubr.f32.gmra.mrb[0].mxu0 %v2813
      %v3000 = vpop.f32.mrb[0].mxu0
      %v3001 = vadd.f32 0.0, %v3000
      %v3002 = vpop.f32.mrb[0].mxu0
      %3003 = vmatprep.mubr.f32.mxu0 0.0
      %3004 = vmatmul.mubr.f32.gmra.mrb[0].mxu0 %v2816
      %v3005 = vpop.f32.mrb[0].mxu0
      %v3006 = vadd.f32 0.0, %v3005
      %v3007 = vpop.f32.mrb[0].mxu0
      %3008 = vmatprep.mubr.f32.mxu0 0.0
      %3009 = vmatmul.mubr.f32.gmra.mrb[0].mxu0 %v2819
      %v3010 = vpop.f32.mrb[0].mxu0
      %v3011 = vadd.f32 0.0, %v3010
      %v3012 = vpop.f32.mrb[0].mxu0
      %3013 = vmatprep.mubr.f32.mxu0 0.0
      %3014 = vmatmul.mubr.f32.gmra.mrb[0].mxu0 %v2822
      %v3015 = vpop.f32.mrb[0].mxu0
      %v3016 = vadd.f32 0.0, %v3015
      %v3017 = vpop.f32.mrb[0].mxu0
      %3018 = vmatprep.mubr.f32.mxu0 0.0
      %3019 = vmatmul.mubr.f32.gmra.mrb[0].mxu0 %v2825
      %v3020 = vpop.f32.mrb[0].mxu0
      %v3021 = vadd.f32 0.0, %v3020
      %v3022 = vpop.f32.mrb[0].mxu0
      %3023 = vmatprep.mubr.f32.mxu0 0.0
      %3024 = vmatmul.mubr.f32.gmra.mrb[0].mxu0 %v2828
      %v3025 = vpop.f32.mrb[0].mxu0
      %v3026 = vadd.f32 0.0, %v3025
      %v3027 = vpop.f32.mrb[0].mxu0
      %3028 = vmatprep.mubr.f32.mxu0 0.0
      %3029 = vmatmul.mubr.f32.gmra.mrb[0].mxu0 %v2831
      %v3030 = vpop.f32.mrb[0].mxu0
      %v3031 = vadd.f32 0.0, %v3030
      %v3032 = vpop.f32.mrb[0].mxu0
      %3033 = vmatprep.mubr.f32.mxu0 0.0
      %3034 = vmatmul.mubr.f32.gmra.mrb[0].mxu0 %v2834
      %v3035 = vpop.f32.mrb[0].mxu0
      %v3036 = vadd.f32 0.0, %v3035
      %v3037 = vpop.f32.mrb[0].mxu0
      %3038 = vmatprep.mubr.f32.mxu0 0.0
      %3039 = vmatmul.mubr.f32.gmra.mrb[0].mxu0 %v2837
      %v3040 = vpop.f32.mrb[0].mxu0
      %v3041 = vadd.f32 0.0, %v3040
      %v3042 = vpop.f32.mrb[0].mxu0
      %3043 = vmatprep.mubr.f32.mxu0 0.0
      %3044 = vmatmul.mubr.f32.gmra.mrb[0].mxu0 %v2840
      %v3045 = vpop.f32.mrb[0].mxu0
      %v3046 = vadd.f32 0.0, %v3045
      %v3047 = vpop.f32.mrb[0].mxu0
      %3048 = vmatprep.mubr.f32.mxu0 0.0
      %3049 = vmatmul.mubr.f32.gmra.mrb[0].mxu0 %v2843
      %v3050 = vpop.f32.mrb[0].mxu0
      %v3051 = vadd.f32 0.0, %v3050
      %v3052 = vpop.f32.mrb[0].mxu0
      %3053 = vmatprep.mubr.f32.mxu0 0.0
      %3054 = vmatmul.mubr.f32.gmra.mrb[0].mxu0 %v2846
      %v3055 = vpop.f32.mrb[0].mxu0
      %v3056 = vadd.f32 0.0, %v3055
      %v3057 = vpop.f32.mrb[0].mxu0
      %3058 = vmatprep.mubr.f32.mxu0 0.0
      %3059 = vmatmul.mubr.f32.gmra.mrb[0].mxu0 %v2849
      %v3060 = vpop.f32.mrb[0].mxu0
      %v3061 = vadd.f32 0.0, %v3060
      %v3062 = vpop.f32.mrb[0].mxu0
      %3063 = vmatprep.mubr.f32.mxu0 0.0
      %3064 = vmatmul.mubr.f32.gmra.mrb[0].mxu0 %v2852
      %v3065 = vpop.f32.mrb[0].mxu0
      %v3066 = vadd.f32 0.0, %v3065
      %v3067 = vpop.f32.mrb[0].mxu0
      %3068 = vmatprep.mubr.f32.mxu0 0.0
      %3069 = vmatmul.mubr.f32.gmra.mrb[0].mxu0 %v2855
      %v3070 = vpop.f32.mrb[0].mxu0
      %v3071 = vadd.f32 0.0, %v3070
      %v3072 = vpop.f32.mrb[0].mxu0
      %3073 = vmatprep.mubr.f32.mxu0 0.0
      %3074 = vmatmul.mubr.f32.gmra.mrb[0].mxu0 %v2858
      %v3075 = vpop.f32.mrb[0].mxu0
      %v3076 = vadd.f32 0.0, %v3075
      %v3077 = vpop.f32.mrb[0].mxu0
      %3078 = vmatprep.mubr.f32.mxu0 0.0
      %3079 = vmatmul.mubr.f32.gmra.mrb[0].mxu0 %v2861
      %v3080 = vpop.f32.mrb[0].mxu0
      %v3081 = vadd.f32 0.0, %v3080
      %v3082 = vpop.f32.mrb[0].mxu0
      %3083 = vmatprep.mubr.f32.mxu0 0.0
      %3084 = vmatmul.mubr.f32.gmra.mrb[0].mxu0 %v2864
      %v3085 = vpop.f32.mrb[0].mxu0
      %v3086 = vadd.f32 0.0, %v3085
      %v3087 = vpop.f32.mrb[0].mxu0
      %3088 = vmatprep.mubr.f32.mxu0 0.0
      %3089 = vmatmul.mubr.f32.gmra.mrb[0].mxu0 %v2867
      %v3090 = vpop.f32.mrb[0].mxu0
      %v3091 = vadd.f32 0.0, %v3090
      %v3092 = vpop.f32.mrb[0].mxu0
      %3093 = vdwg.mxu0
      %v3094 = vadd.f32 %v2706, %v2936
      %v3095 = vadd.f32 %v2707, %v2941
      %v3096 = vadd.f32 %v2708, %v2946
      %v3097 = vadd.f32 %v2709, %v2951
      %v3098 = vadd.f32 %v2710, %v2956
      %v3099 = vadd.f32 %v2711, %v2961
      %v3100 = vadd.f32 %v2712, %v2966
      %v3101 = vadd.f32 %v2713, %v2971
      %v3102 = vadd.f32 %v2714, %v2976
      %v3103 = vadd.f32 %v2715, %v2981
      %v3104 = vadd.f32 %v2716, %v2986
      %v3105 = vadd.f32 %v2717, %v2991
      %v3106 = vadd.f32 %v2718, %v2996
      %v3107 = vadd.f32 %v2719, %v3001
      %v3108 = vadd.f32 %v2720, %v3006
      %v3109 = vadd.f32 %v2721, %v3011
      %v3110 = vadd.f32 %v2722, %v3016
      %v3111 = vadd.f32 %v2723, %v3021
      %v3112 = vadd.f32 %v2724, %v3026
      %v3113 = vadd.f32 %v2725, %v3031
      %v3114 = vadd.f32 %v2726, %v3036
      %v3115 = vadd.f32 %v2727, %v3041
      %v3116 = vadd.f32 %v2728, %v3046
      %v3117 = vadd.f32 %v2729, %v3051
      %v3118 = vadd.f32 %v2730, %v3056
      %v3119 = vadd.f32 %v2731, %v3061
      %v3120 = vadd.f32 %v2732, %v3066
      %v3121 = vadd.f32 %v2733, %v3071
      %v3122 = vadd.f32 %v2734, %v3076
      %v3123 = vadd.f32 %v2735, %v3081
      %v3124 = vadd.f32 %v2736, %v3086
      %v3125 = vadd.f32 %v2737, %v3091
      %v3126 = vld [vmem:[%s2738 + $0x1] sm:$0xff]
      %v3127 = vld [vmem:[%s2738 + $0x9] sm:$0xff]
      %v3128 = vld [vmem:[%s2738 + $0x19] sm:$0xff]
      %v3129 = vld [vmem:[%s2738 + $0x21] sm:$0xff]
      %v3130 = vld [vmem:[%s2738 + $0x31] sm:$0xff]
      %v3131 = vld [vmem:[%s2738 + $0x39] sm:$0xff]
      %v3132 = vld [vmem:[%s2738 + $0x49] sm:$0xff]
      %v3133 = vld [vmem:[%s2738 + $0x51] sm:$0xff]
      %v3134 = vld [vmem:[%s2738 + $0x61] sm:$0xff]
      %v3135 = vld [vmem:[%s2738 + $0x69] sm:$0xff]
      %v3136 = vld [vmem:[%s2738 + $0x79] sm:$0xff]
      %v3137 = vld [vmem:[%s2738 + $0x81] sm:$0xff]
      %v3138 = vld [vmem:[%s2738 + $0x91] sm:$0xff]
      %v3139 = vld [vmem:[%s2738 + $0x99] sm:$0xff]
      %v3140 = vld [vmem:[%s2738 + $0xa9] sm:$0xff]
      %v3141 = vld [vmem:[%s2738 + $0xb1] sm:$0xff]
      %v3142 = vld [vmem:[%s2738 + $0xc1] sm:$0xff]
      %v3143 = vld [vmem:[%s2738 + $0xc9] sm:$0xff]
      %v3144 = vld [vmem:[%s2738 + $0xd9] sm:$0xff]
      %v3145 = vld [vmem:[%s2738 + $0xe1] sm:$0xff]
      %v3146 = vld [vmem:[%s2738 + $0xf1] sm:$0xff]
      %v3147 = vld [vmem:[%s2738 + $0xf9] sm:$0xff]
      %v3148 = vld [vmem:[%s2738 + $0x109] sm:$0xff]
      %v3149 = vld [vmem:[%s2738 + $0x111] sm:$0xff]
      %v3150 = vld [vmem:[%s2738 + $0x121] sm:$0xff]
      %v3151 = vld [vmem:[%s2738 + $0x129] sm:$0xff]
      %v3152 = vld [vmem:[%s2738 + $0x139] sm:$0xff]
      %v3153 = vld [vmem:[%s2738 + $0x141] sm:$0xff]
      %v3154 = vld [vmem:[%s2738 + $0x151] sm:$0xff]
      %v3155 = vld [vmem:[%s2738 + $0x159] sm:$0xff]
      %v3156 = vld [vmem:[%s2738 + $0x169] sm:$0xff]
      %v3157 = vld [vmem:[%s2738 + $0x171] sm:$0xff]
      %s3158 = scalar_lea.vmem %s1, 56
      %v3159 = vld [vmem:[%s3158] sm:$0xff]
      %v3161 = vsel %vm406, %v3126, 0
      %v3164 = vsel %vm406, %v3127, 0
      %v3167 = vsel %vm406, %v3128, 0
      %v3170 = vsel %vm406, %v3129, 0
      %v3173 = vsel %vm406, %v3130, 0
      %v3176 = vsel %vm406, %v3131, 0
      %v3179 = vsel %vm406, %v3132, 0
      %v3182 = vsel %vm406, %v3133, 0
      %v3185 = vsel %vm406, %v3134, 0
      %v3188 = vsel %vm406, %v3135, 0
      %v3191 = vsel %vm406, %v3136, 0
      %v3194 = vsel %vm406, %v3137, 0
      %v3197 = vsel %vm406, %v3138, 0
      %v3200 = vsel %vm406, %v3139, 0
      %v3203 = vsel %vm406, %v3140, 0
      %v3206 = vsel %vm406, %v3141, 0
      %v3209 = vsel %vm406, %v3142, 0
      %v3212 = vsel %vm406, %v3143, 0
      %v3215 = vsel %vm406, %v3144, 0
      %v3218 = vsel %vm406, %v3145, 0
      %v3221 = vsel %vm406, %v3146, 0
      %v3224 = vsel %vm406, %v3147, 0
      %v3227 = vsel %vm406, %v3148, 0
      %v3230 = vsel %vm406, %v3149, 0
      %v3233 = vsel %vm406, %v3150, 0
      %v3236 = vsel %vm406, %v3151, 0
      %v3239 = vsel %vm406, %v3152, 0
      %v3242 = vsel %vm406, %v3153, 0
      %v3245 = vsel %vm406, %v3154, 0
      %v3248 = vsel %vm406, %v3155, 0
      %v3251 = vsel %vm406, %v3156, 0
      %v3254 = vsel %vm406, %v3157, 0
      %3256 = vmatprep.subr.mxu0 0.0
      %3257 = vmatpush1.msra.mxu0 %v3159
      %3258 = vmatprep.subr.mxu0 0.0
      %3259 = vmatpush1.msra.mxu0 0.0
      %3260 = vmatprep.subr.mxu0 0.0
      %3261 = vmatpush1.msra.mxu0 0.0
      %3262 = vmatprep.subr.mxu0 0.0
      %3263 = vmatpush1.msra.mxu0 0.0
      %3264 = vmatprep.subr.mxu0 0.0
      %3265 = vmatpush1.msra.mxu0 0.0
      %3266 = vmatprep.subr.mxu0 0.0
      %3267 = vmatpush1.msra.mxu0 0.0
      %3268 = vmatprep.subr.mxu0 0.0
      %3269 = vmatpush1.msra.mxu0 0.0
      %3270 = vmatprep.subr.mxu0 0.0
      %3271 = vmatpush1.msra.mxu0 0.0
      %3272 = vmatprep.subr.mxu0 0.0
      %3273 = vmatpush1.msra.mxu0 0.0
      %3274 = vmatprep.subr.mxu0 0.0
      %3275 = vmatpush1.msra.mxu0 0.0
      %3276 = vmatprep.subr.mxu0 0.0
      %3277 = vmatpush1.msra.mxu0 0.0
      %3278 = vmatprep.subr.mxu0 0.0
      %3279 = vmatpush1.msra.mxu0 0.0
      %3280 = vmatprep.subr.mxu0 0.0
      %3281 = vmatpush1.msra.mxu0 0.0
      %3282 = vmatprep.subr.mxu0 0.0
      %3283 = vmatpush1.msra.mxu0 0.0
      %3284 = vmatprep.subr.mxu0 0.0
      %3285 = vmatpush1.msra.mxu0 0.0
      %3286 = vmatprep.subr.mxu0 0.0
      %3287 = vmatpush1.msra.mxu0 0.0
      %3288 = vmatprep.subr.mxu0 0.0
      %3289 = vmatpush1.msra.mxu0 0.0
      %3290 = vmatprep.subr.mxu0 0.0
      %3291 = vmatpush1.msra.mxu0 0.0
      %3292 = vmatprep.subr.mxu0 0.0
      %3293 = vmatpush1.msra.mxu0 0.0
      %3294 = vmatprep.subr.mxu0 0.0
      %3295 = vmatpush1.msra.mxu0 0.0
      %3296 = vmatprep.subr.mxu0 0.0
      %3297 = vmatpush1.msra.mxu0 0.0
      %3298 = vmatprep.subr.mxu0 0.0
      %3299 = vmatpush1.msra.mxu0 0.0
      %3300 = vmatprep.subr.mxu0 0.0
      %3301 = vmatpush1.msra.mxu0 0.0
      %3302 = vmatprep.subr.mxu0 0.0
      %3303 = vmatpush1.msra.mxu0 0.0
      %3304 = vmatprep.subr.mxu0 0.0
      %3305 = vmatpush1.msra.mxu0 0.0
      %3306 = vmatprep.subr.mxu0 0.0
      %3307 = vmatpush1.msra.mxu0 0.0
      %3308 = vmatprep.subr.mxu0 0.0
      %3309 = vmatpush1.msra.mxu0 0.0
      %3310 = vmatprep.subr.mxu0 0.0
      %3311 = vmatpush1.msra.mxu0 0.0
      %3312 = vmatprep.subr.mxu0 0.0
      %3313 = vmatpush1.msra.mxu0 0.0
      %3314 = vmatprep.subr.mxu0 0.0
      %3315 = vmatpush1.msra.mxu0 0.0
      %3316 = vmatprep.subr.mxu0 0.0
      %3317 = vmatpush1.msra.mxu0 0.0
      %3318 = vmatprep.subr.mxu0 0.0
      %3319 = vmatpush1.msra.mxu0 0.0
      %3320 = vmatprep.mubr.f32.mxu0 0.0
      %3321 = vmatmul.mubr.f32.gmra.mrb[0].mxu0 %v3161
      %v3322 = vpop.f32.mrb[0].mxu0
      %v3323 = vadd.f32 0.0, %v3322
      %v3324 = vpop.f32.mrb[0].mxu0
      %3325 = vmatprep.mubr.f32.mxu0 0.0
      %3326 = vmatmul.mubr.f32.gmra.mrb[0].mxu0 %v3164
      %v3327 = vpop.f32.mrb[0].mxu0
      %v3328 = vadd.f32 0.0, %v3327
      %v3329 = vpop.f32.mrb[0].mxu0
      %3330 = vmatprep.mubr.f32.mxu0 0.0
      %3331 = vmatmul.mubr.f32.gmra.mrb[0].mxu0 %v3167
      %v3332 = vpop.f32.mrb[0].mxu0
      %v3333 = vadd.f32 0.0, %v3332
      %v3334 = vpop.f32.mrb[0].mxu0
      %3335 = vmatprep.mubr.f32.mxu0 0.0
      %3336 = vmatmul.mubr.f32.gmra.mrb[0].mxu0 %v3170
      %v3337 = vpop.f32.mrb[0].mxu0
      %v3338 = vadd.f32 0.0, %v3337
      %v3339 = vpop.f32.mrb[0].mxu0
      %3340 = vmatprep.mubr.f32.mxu0 0.0
      %3341 = vmatmul.mubr.f32.gmra.mrb[0].mxu0 %v3173
      %v3342 = vpop.f32.mrb[0].mxu0
      %v3343 = vadd.f32 0.0, %v3342
      %v3344 = vpop.f32.mrb[0].mxu0
      %3345 = vmatprep.mubr.f32.mxu0 0.0
      %3346 = vmatmul.mubr.f32.gmra.mrb[0].mxu0 %v3176
      %v3347 = vpop.f32.mrb[0].mxu0
      %v3348 = vadd.f32 0.0, %v3347
      %v3349 = vpop.f32.mrb[0].mxu0
      %3350 = vmatprep.mubr.f32.mxu0 0.0
      %3351 = vmatmul.mubr.f32.gmra.mrb[0].mxu0 %v3179
      %v3352 = vpop.f32.mrb[0].mxu0
      %v3353 = vadd.f32 0.0, %v3352
      %v3354 = vpop.f32.mrb[0].mxu0
      %3355 = vmatprep.mubr.f32.mxu0 0.0
      %3356 = vmatmul.mubr.f32.gmra.mrb[0].mxu0 %v3182
      %v3357 = vpop.f32.mrb[0].mxu0
      %v3358 = vadd.f32 0.0, %v3357
      %v3359 = vpop.f32.mrb[0].mxu0
      %3360 = vmatprep.mubr.f32.mxu0 0.0
      %3361 = vmatmul.mubr.f32.gmra.mrb[0].mxu0 %v3185
      %v3362 = vpop.f32.mrb[0].mxu0
      %v3363 = vadd.f32 0.0, %v3362
      %v3364 = vpop.f32.mrb[0].mxu0
      %3365 = vmatprep.mubr.f32.mxu0 0.0
      %3366 = vmatmul.mubr.f32.gmra.mrb[0].mxu0 %v3188
      %v3367 = vpop.f32.mrb[0].mxu0
      %v3368 = vadd.f32 0.0, %v3367
      %v3369 = vpop.f32.mrb[0].mxu0
      %3370 = vmatprep.mubr.f32.mxu0 0.0
      %3371 = vmatmul.mubr.f32.gmra.mrb[0].mxu0 %v3191
      %v3372 = vpop.f32.mrb[0].mxu0
      %v3373 = vadd.f32 0.0, %v3372
      %v3374 = vpop.f32.mrb[0].mxu0
      %3375 = vmatprep.mubr.f32.mxu0 0.0
      %3376 = vmatmul.mubr.f32.gmra.mrb[0].mxu0 %v3194
      %v3377 = vpop.f32.mrb[0].mxu0
      %v3378 = vadd.f32 0.0, %v3377
      %v3379 = vpop.f32.mrb[0].mxu0
      %3380 = vmatprep.mubr.f32.mxu0 0.0
      %3381 = vmatmul.mubr.f32.gmra.mrb[0].mxu0 %v3197
      %v3382 = vpop.f32.mrb[0].mxu0
      %v3383 = vadd.f32 0.0, %v3382
      %v3384 = vpop.f32.mrb[0].mxu0
      %3385 = vmatprep.mubr.f32.mxu0 0.0
      %3386 = vmatmul.mubr.f32.gmra.mrb[0].mxu0 %v3200
      %v3387 = vpop.f32.mrb[0].mxu0
      %v3388 = vadd.f32 0.0, %v3387
      %v3389 = vpop.f32.mrb[0].mxu0
      %3390 = vmatprep.mubr.f32.mxu0 0.0
      %3391 = vmatmul.mubr.f32.gmra.mrb[0].mxu0 %v3203
      %v3392 = vpop.f32.mrb[0].mxu0
      %v3393 = vadd.f32 0.0, %v3392
      %v3394 = vpop.f32.mrb[0].mxu0
      %3395 = vmatprep.mubr.f32.mxu0 0.0
      %3396 = vmatmul.mubr.f32.gmra.mrb[0].mxu0 %v3206
      %v3397 = vpop.f32.mrb[0].mxu0
      %v3398 = vadd.f32 0.0, %v3397
      %v3399 = vpop.f32.mrb[0].mxu0
      %3400 = vmatprep.mubr.f32.mxu0 0.0
      %3401 = vmatmul.mubr.f32.gmra.mrb[0].mxu0 %v3209
      %v3402 = vpop.f32.mrb[0].mxu0
      %v3403 = vadd.f32 0.0, %v3402
      %v3404 = vpop.f32.mrb[0].mxu0
      %3405 = vmatprep.mubr.f32.mxu0 0.0
      %3406 = vmatmul.mubr.f32.gmra.mrb[0].mxu0 %v3212
      %v3407 = vpop.f32.mrb[0].mxu0
      %v3408 = vadd.f32 0.0, %v3407
      %v3409 = vpop.f32.mrb[0].mxu0
      %3410 = vmatprep.mubr.f32.mxu0 0.0
      %3411 = vmatmul.mubr.f32.gmra.mrb[0].mxu0 %v3215
      %v3412 = vpop.f32.mrb[0].mxu0
      %v3413 = vadd.f32 0.0, %v3412
      %v3414 = vpop.f32.mrb[0].mxu0
      %3415 = vmatprep.mubr.f32.mxu0 0.0
      %3416 = vmatmul.mubr.f32.gmra.mrb[0].mxu0 %v3218
      %v3417 = vpop.f32.mrb[0].mxu0
      %v3418 = vadd.f32 0.0, %v3417
      %v3419 = vpop.f32.mrb[0].mxu0
      %3420 = vmatprep.mubr.f32.mxu0 0.0
      %3421 = vmatmul.mubr.f32.gmra.mrb[0].mxu0 %v3221
      %v3422 = vpop.f32.mrb[0].mxu0
      %v3423 = vadd.f32 0.0, %v3422
      %v3424 = vpop.f32.mrb[0].mxu0
      %3425 = vmatprep.mubr.f32.mxu0 0.0
      %3426 = vmatmul.mubr.f32.gmra.mrb[0].mxu0 %v3224
      %v3427 = vpop.f32.mrb[0].mxu0
      %v3428 = vadd.f32 0.0, %v3427
      %v3429 = vpop.f32.mrb[0].mxu0
      %3430 = vmatprep.mubr.f32.mxu0 0.0
      %3431 = vmatmul.mubr.f32.gmra.mrb[0].mxu0 %v3227
      %v3432 = vpop.f32.mrb[0].mxu0
      %v3433 = vadd.f32 0.0, %v3432
      %v3434 = vpop.f32.mrb[0].mxu0
      %3435 = vmatprep.mubr.f32.mxu0 0.0
      %3436 = vmatmul.mubr.f32.gmra.mrb[0].mxu0 %v3230
      %v3437 = vpop.f32.mrb[0].mxu0
      %v3438 = vadd.f32 0.0, %v3437
      %v3439 = vpop.f32.mrb[0].mxu0
      %3440 = vmatprep.mubr.f32.mxu0 0.0
      %3441 = vmatmul.mubr.f32.gmra.mrb[0].mxu0 %v3233
      %v3442 = vpop.f32.mrb[0].mxu0
      %v3443 = vadd.f32 0.0, %v3442
      %v3444 = vpop.f32.mrb[0].mxu0
      %3445 = vmatprep.mubr.f32.mxu0 0.0
      %3446 = vmatmul.mubr.f32.gmra.mrb[0].mxu0 %v3236
      %v3447 = vpop.f32.mrb[0].mxu0
      %v3448 = vadd.f32 0.0, %v3447
      %v3449 = vpop.f32.mrb[0].mxu0
      %3450 = vmatprep.mubr.f32.mxu0 0.0
      %3451 = vmatmul.mubr.f32.gmra.mrb[0].mxu0 %v3239
      %v3452 = vpop.f32.mrb[0].mxu0
      %v3453 = vadd.f32 0.0, %v3452
      %v3454 = vpop.f32.mrb[0].mxu0
      %3455 = vmatprep.mubr.f32.mxu0 0.0
      %3456 = vmatmul.mubr.f32.gmra.mrb[0].mxu0 %v3242
      %v3457 = vpop.f32.mrb[0].mxu0
      %v3458 = vadd.f32 0.0, %v3457
      %v3459 = vpop.f32.mrb[0].mxu0
      %3460 = vmatprep.mubr.f32.mxu0 0.0
      %3461 = vmatmul.mubr.f32.gmra.mrb[0].mxu0 %v3245
      %v3462 = vpop.f32.mrb[0].mxu0
      %v3463 = vadd.f32 0.0, %v3462
      %v3464 = vpop.f32.mrb[0].mxu0
      %3465 = vmatprep.mubr.f32.mxu0 0.0
      %3466 = vmatmul.mubr.f32.gmra.mrb[0].mxu0 %v3248
      %v3467 = vpop.f32.mrb[0].mxu0
      %v3468 = vadd.f32 0.0, %v3467
      %v3469 = vpop.f32.mrb[0].mxu0
      %3470 = vmatprep.mubr.f32.mxu0 0.0
      %3471 = vmatmul.mubr.f32.gmra.mrb[0].mxu0 %v3251
      %v3472 = vpop.f32.mrb[0].mxu0
      %v3473 = vadd.f32 0.0, %v3472
      %v3474 = vpop.f32.mrb[0].mxu0
      %3475 = vmatprep.mubr.f32.mxu0 0.0
      %3476 = vmatmul.mubr.f32.gmra.mrb[0].mxu0 %v3254
      %v3477 = vpop.f32.mrb[0].mxu0
      %v3478 = vadd.f32 0.0, %v3477
      %v3479 = vpop.f32.mrb[0].mxu0
      %3480 = vdwg.mxu0
      %v3481 = vadd.f32 %v3094, %v3323
      %v3482 = vadd.f32 %v3095, %v3328
      %v3483 = vadd.f32 %v3096, %v3333
      %v3484 = vadd.f32 %v3097, %v3338
      %v3485 = vadd.f32 %v3098, %v3343
      %v3486 = vadd.f32 %v3099, %v3348
      %v3487 = vadd.f32 %v3100, %v3353
      %v3488 = vadd.f32 %v3101, %v3358
      %v3489 = vadd.f32 %v3102, %v3363
      %v3490 = vadd.f32 %v3103, %v3368
      %v3491 = vadd.f32 %v3104, %v3373
      %v3492 = vadd.f32 %v3105, %v3378
      %v3493 = vadd.f32 %v3106, %v3383
      %v3494 = vadd.f32 %v3107, %v3388
      %v3495 = vadd.f32 %v3108, %v3393
      %v3496 = vadd.f32 %v3109, %v3398
      %v3497 = vadd.f32 %v3110, %v3403
      %v3498 = vadd.f32 %v3111, %v3408
      %v3499 = vadd.f32 %v3112, %v3413
      %v3500 = vadd.f32 %v3113, %v3418
      %v3501 = vadd.f32 %v3114, %v3423
      %v3502 = vadd.f32 %v3115, %v3428
      %v3503 = vadd.f32 %v3116, %v3433
      %v3504 = vadd.f32 %v3117, %v3438
      %v3505 = vadd.f32 %v3118, %v3443
      %v3506 = vadd.f32 %v3119, %v3448
      %v3507 = vadd.f32 %v3120, %v3453
      %v3508 = vadd.f32 %v3121, %v3458
      %v3509 = vadd.f32 %v3122, %v3463
      %v3510 = vadd.f32 %v3123, %v3468
      %v3511 = vadd.f32 %v3124, %v3473
      %v3512 = vadd.f32 %v3125, %v3478
      %v3513 = vld [vmem:[%s2738 + $0x2] sm:$0xff]
      %v3514 = vld [vmem:[%s2738 + $0xa] sm:$0xff]
      %v3515 = vld [vmem:[%s2738 + $0x1a] sm:$0xff]
      %v3516 = vld [vmem:[%s2738 + $0x22] sm:$0xff]
      %v3517 = vld [vmem:[%s2738 + $0x32] sm:$0xff]
      %v3518 = vld [vmem:[%s2738 + $0x3a] sm:$0xff]
      %v3519 = vld [vmem:[%s2738 + $0x4a] sm:$0xff]
      %v3520 = vld [vmem:[%s2738 + $0x52] sm:$0xff]
      %v3521 = vld [vmem:[%s2738 + $0x62] sm:$0xff]
      %v3522 = vld [vmem:[%s2738 + $0x6a] sm:$0xff]
      %v3523 = vld [vmem:[%s2738 + $0x7a] sm:$0xff]
      %v3524 = vld [vmem:[%s2738 + $0x82] sm:$0xff]
      %v3525 = vld [vmem:[%s2738 + $0x92] sm:$0xff]
      %v3526 = vld [vmem:[%s2738 + $0x9a] sm:$0xff]
      %v3527 = vld [vmem:[%s2738 + $0xaa] sm:$0xff]
      %v3528 = vld [vmem:[%s2738 + $0xb2] sm:$0xff]
      %v3529 = vld [vmem:[%s2738 + $0xc2] sm:$0xff]
      %v3530 = vld [vmem:[%s2738 + $0xca] sm:$0xff]
      %v3531 = vld [vmem:[%s2738 + $0xda] sm:$0xff]
      %v3532 = vld [vmem:[%s2738 + $0xe2] sm:$0xff]
      %v3533 = vld [vmem:[%s2738 + $0xf2] sm:$0xff]
      %v3534 = vld [vmem:[%s2738 + $0xfa] sm:$0xff]
      %v3535 = vld [vmem:[%s2738 + $0x10a] sm:$0xff]
      %v3536 = vld [vmem:[%s2738 + $0x112] sm:$0xff]
      %v3537 = vld [vmem:[%s2738 + $0x122] sm:$0xff]
      %v3538 = vld [vmem:[%s2738 + $0x12a] sm:$0xff]
      %v3539 = vld [vmem:[%s2738 + $0x13a] sm:$0xff]
      %v3540 = vld [vmem:[%s2738 + $0x142] sm:$0xff]
      %v3541 = vld [vmem:[%s2738 + $0x152] sm:$0xff]
      %v3542 = vld [vmem:[%s2738 + $0x15a] sm:$0xff]
      %v3543 = vld [vmem:[%s2738 + $0x16a] sm:$0xff]
      %v3544 = vld [vmem:[%s2738 + $0x172] sm:$0xff]
      %s3545 = scalar_lea.vmem %s1, 64
      %v3546 = vld [vmem:[%s3545] sm:$0xff]
      %v3548 = vsel %vm406, %v3513, 0
      %v3551 = vsel %vm406, %v3514, 0
      %v3554 = vsel %vm406, %v3515, 0
      %v3557 = vsel %vm406, %v3516, 0
      %v3560 = vsel %vm406, %v3517, 0
      %v3563 = vsel %vm406, %v3518, 0
      %v3566 = vsel %vm406, %v3519, 0
      %v3569 = vsel %vm406, %v3520, 0
      %v3572 = vsel %vm406, %v3521, 0
      %v3575 = vsel %vm406, %v3522, 0
      %v3578 = vsel %vm406, %v3523, 0
      %v3581 = vsel %vm406, %v3524, 0
      %v3584 = vsel %vm406, %v3525, 0
      %v3587 = vsel %vm406, %v3526, 0
      %v3590 = vsel %vm406, %v3527, 0
      %v3593 = vsel %vm406, %v3528, 0
      %v3596 = vsel %vm406, %v3529, 0
      %v3599 = vsel %vm406, %v3530, 0
      %v3602 = vsel %vm406, %v3531, 0
      %v3605 = vsel %vm406, %v3532, 0
      %v3608 = vsel %vm406, %v3533, 0
      %v3611 = vsel %vm406, %v3534, 0
      %v3614 = vsel %vm406, %v3535, 0
      %v3617 = vsel %vm406, %v3536, 0
      %v3620 = vsel %vm406, %v3537, 0
      %v3623 = vsel %vm406, %v3538, 0
      %v3626 = vsel %vm406, %v3539, 0
      %v3629 = vsel %vm406, %v3540, 0
      %v3632 = vsel %vm406, %v3541, 0
      %v3635 = vsel %vm406, %v3542, 0
      %v3638 = vsel %vm406, %v3543, 0
      %v3641 = vsel %vm406, %v3544, 0
      %3643 = vmatprep.subr.mxu0 0.0
      %3644 = vmatpush1.msra.mxu0 %v3546
      %3645 = vmatprep.subr.mxu0 0.0
      %3646 = vmatpush1.msra.mxu0 0.0
      %3647 = vmatprep.subr.mxu0 0.0
      %3648 = vmatpush1.msra.mxu0 0.0
      %3649 = vmatprep.subr.mxu0 0.0
      %3650 = vmatpush1.msra.mxu0 0.0
      %3651 = vmatprep.subr.mxu0 0.0
      %3652 = vmatpush1.msra.mxu0 0.0
      %3653 = vmatprep.subr.mxu0 0.0
      %3654 = vmatpush1.msra.mxu0 0.0
      %3655 = vmatprep.subr.mxu0 0.0
      %3656 = vmatpush1.msra.mxu0 0.0
      %3657 = vmatprep.subr.mxu0 0.0
      %3658 = vmatpush1.msra.mxu0 0.0
      %3659 = vmatprep.subr.mxu0 0.0
      %3660 = vmatpush1.msra.mxu0 0.0
      %3661 = vmatprep.subr.mxu0 0.0
      %3662 = vmatpush1.msra.mxu0 0.0
      %3663 = vmatprep.subr.mxu0 0.0
      %3664 = vmatpush1.msra.mxu0 0.0
      %3665 = vmatprep.subr.mxu0 0.0
      %3666 = vmatpush1.msra.mxu0 0.0
      %3667 = vmatprep.subr.mxu0 0.0
      %3668 = vmatpush1.msra.mxu0 0.0
      %3669 = vmatprep.subr.mxu0 0.0
      %3670 = vmatpush1.msra.mxu0 0.0
      %3671 = vmatprep.subr.mxu0 0.0
      %3672 = vmatpush1.msra.mxu0 0.0
      %3673 = vmatprep.subr.mxu0 0.0
      %3674 = vmatpush1.msra.mxu0 0.0
      %3675 = vmatprep.subr.mxu0 0.0
      %3676 = vmatpush1.msra.mxu0 0.0
      %3677 = vmatprep.subr.mxu0 0.0
      %3678 = vmatpush1.msra.mxu0 0.0
      %3679 = vmatprep.subr.mxu0 0.0
      %3680 = vmatpush1.msra.mxu0 0.0
      %3681 = vmatprep.subr.mxu0 0.0
      %3682 = vmatpush1.msra.mxu0 0.0
      %3683 = vmatprep.subr.mxu0 0.0
      %3684 = vmatpush1.msra.mxu0 0.0
      %3685 = vmatprep.subr.mxu0 0.0
      %3686 = vmatpush1.msra.mxu0 0.0
      %3687 = vmatprep.subr.mxu0 0.0
      %3688 = vmatpush1.msra.mxu0 0.0
      %3689 = vmatprep.subr.mxu0 0.0
      %3690 = vmatpush1.msra.mxu0 0.0
      %3691 = vmatprep.subr.mxu0 0.0
      %3692 = vmatpush1.msra.mxu0 0.0
      %3693 = vmatprep.subr.mxu0 0.0
      %3694 = vmatpush1.msra.mxu0 0.0
      %3695 = vmatprep.subr.mxu0 0.0
      %3696 = vmatpush1.msra.mxu0 0.0
      %3697 = vmatprep.subr.mxu0 0.0
      %3698 = vmatpush1.msra.mxu0 0.0
      %3699 = vmatprep.subr.mxu0 0.0
      %3700 = vmatpush1.msra.mxu0 0.0
      %3701 = vmatprep.subr.mxu0 0.0
      %3702 = vmatpush1.msra.mxu0 0.0
      %3703 = vmatprep.subr.mxu0 0.0
      %3704 = vmatpush1.msra.mxu0 0.0
      %3705 = vmatprep.subr.mxu0 0.0
      %3706 = vmatpush1.msra.mxu0 0.0
      %3707 = vmatprep.mubr.f32.mxu0 0.0
      %3708 = vmatmul.mubr.f32.gmra.mrb[0].mxu0 %v3548
      %v3709 = vpop.f32.mrb[0].mxu0
      %v3710 = vadd.f32 0.0, %v3709
      %v3711 = vpop.f32.mrb[0].mxu0
      %3712 = vmatprep.mubr.f32.mxu0 0.0
      %3713 = vmatmul.mubr.f32.gmra.mrb[0].mxu0 %v3551
      %v3714 = vpop.f32.mrb[0].mxu0
      %v3715 = vadd.f32 0.0, %v3714
      %v3716 = vpop.f32.mrb[0].mxu0
      %3717 = vmatprep.mubr.f32.mxu0 0.0
      %3718 = vmatmul.mubr.f32.gmra.mrb[0].mxu0 %v3554
      %v3719 = vpop.f32.mrb[0].mxu0
      %v3720 = vadd.f32 0.0, %v3719
      %v3721 = vpop.f32.mrb[0].mxu0
      %3722 = vmatprep.mubr.f32.mxu0 0.0
      %3723 = vmatmul.mubr.f32.gmra.mrb[0].mxu0 %v3557
      %v3724 = vpop.f32.mrb[0].mxu0
      %v3725 = vadd.f32 0.0, %v3724
      %v3726 = vpop.f32.mrb[0].mxu0
      %3727 = vmatprep.mubr.f32.mxu0 0.0
      %3728 = vmatmul.mubr.f32.gmra.mrb[0].mxu0 %v3560
      %v3729 = vpop.f32.mrb[0].mxu0
      %v3730 = vadd.f32 0.0, %v3729
      %v3731 = vpop.f32.mrb[0].mxu0
      %3732 = vmatprep.mubr.f32.mxu0 0.0
      %3733 = vmatmul.mubr.f32.gmra.mrb[0].mxu0 %v3563
      %v3734 = vpop.f32.mrb[0].mxu0
      %v3735 = vadd.f32 0.0, %v3734
      %v3736 = vpop.f32.mrb[0].mxu0
      %3737 = vmatprep.mubr.f32.mxu0 0.0
      %3738 = vmatmul.mubr.f32.gmra.mrb[0].mxu0 %v3566
      %v3739 = vpop.f32.mrb[0].mxu0
      %v3740 = vadd.f32 0.0, %v3739
      %v3741 = vpop.f32.mrb[0].mxu0
      %3742 = vmatprep.mubr.f32.mxu0 0.0
      %3743 = vmatmul.mubr.f32.gmra.mrb[0].mxu0 %v3569
      %v3744 = vpop.f32.mrb[0].mxu0
      %v3745 = vadd.f32 0.0, %v3744
      %v3746 = vpop.f32.mrb[0].mxu0
      %3747 = vmatprep.mubr.f32.mxu0 0.0
      %3748 = vmatmul.mubr.f32.gmra.mrb[0].mxu0 %v3572
      %v3749 = vpop.f32.mrb[0].mxu0
      %v3750 = vadd.f32 0.0, %v3749
      %v3751 = vpop.f32.mrb[0].mxu0
      %3752 = vmatprep.mubr.f32.mxu0 0.0
      %3753 = vmatmul.mubr.f32.gmra.mrb[0].mxu0 %v3575
      %v3754 = vpop.f32.mrb[0].mxu0
      %v3755 = vadd.f32 0.0, %v3754
      %v3756 = vpop.f32.mrb[0].mxu0
      %3757 = vmatprep.mubr.f32.mxu0 0.0
      %3758 = vmatmul.mubr.f32.gmra.mrb[0].mxu0 %v3578
      %v3759 = vpop.f32.mrb[0].mxu0
      %v3760 = vadd.f32 0.0, %v3759
      %v3761 = vpop.f32.mrb[0].mxu0
      %3762 = vmatprep.mubr.f32.mxu0 0.0
      %3763 = vmatmul.mubr.f32.gmra.mrb[0].mxu0 %v3581
      %v3764 = vpop.f32.mrb[0].mxu0
      %v3765 = vadd.f32 0.0, %v3764
      %v3766 = vpop.f32.mrb[0].mxu0
      %3767 = vmatprep.mubr.f32.mxu0 0.0
      %3768 = vmatmul.mubr.f32.gmra.mrb[0].mxu0 %v3584
      %v3769 = vpop.f32.mrb[0].mxu0
      %v3770 = vadd.f32 0.0, %v3769
      %v3771 = vpop.f32.mrb[0].mxu0
      %3772 = vmatprep.mubr.f32.mxu0 0.0
      %3773 = vmatmul.mubr.f32.gmra.mrb[0].mxu0 %v3587
      %v3774 = vpop.f32.mrb[0].mxu0
      %v3775 = vadd.f32 0.0, %v3774
      %v3776 = vpop.f32.mrb[0].mxu0
      %3777 = vmatprep.mubr.f32.mxu0 0.0
      %3778 = vmatmul.mubr.f32.gmra.mrb[0].mxu0 %v3590
      %v3779 = vpop.f32.mrb[0].mxu0
      %v3780 = vadd.f32 0.0, %v3779
      %v3781 = vpop.f32.mrb[0].mxu0
      %3782 = vmatprep.mubr.f32.mxu0 0.0
      %3783 = vmatmul.mubr.f32.gmra.mrb[0].mxu0 %v3593
      %v3784 = vpop.f32.mrb[0].mxu0
      %v3785 = vadd.f32 0.0, %v3784
      %v3786 = vpop.f32.mrb[0].mxu0
      %3787 = vmatprep.mubr.f32.mxu0 0.0
      %3788 = vmatmul.mubr.f32.gmra.mrb[0].mxu0 %v3596
      %v3789 = vpop.f32.mrb[0].mxu0
      %v3790 = vadd.f32 0.0, %v3789
      %v3791 = vpop.f32.mrb[0].mxu0
      %3792 = vmatprep.mubr.f32.mxu0 0.0
      %3793 = vmatmul.mubr.f32.gmra.mrb[0].mxu0 %v3599
      %v3794 = vpop.f32.mrb[0].mxu0
      %v3795 = vadd.f32 0.0, %v3794
      %v3796 = vpop.f32.mrb[0].mxu0
      %3797 = vmatprep.mubr.f32.mxu0 0.0
      %3798 = vmatmul.mubr.f32.gmra.mrb[0].mxu0 %v3602
      %v3799 = vpop.f32.mrb[0].mxu0
      %v3800 = vadd.f32 0.0, %v3799
      %v3801 = vpop.f32.mrb[0].mxu0
      %3802 = vmatprep.mubr.f32.mxu0 0.0
      %3803 = vmatmul.mubr.f32.gmra.mrb[0].mxu0 %v3605
      %v3804 = vpop.f32.mrb[0].mxu0
      %v3805 = vadd.f32 0.0, %v3804
      %v3806 = vpop.f32.mrb[0].mxu0
      %3807 = vmatprep.mubr.f32.mxu0 0.0
      %3808 = vmatmul.mubr.f32.gmra.mrb[0].mxu0 %v3608
      %v3809 = vpop.f32.mrb[0].mxu0
      %v3810 = vadd.f32 0.0, %v3809
      %v3811 = vpop.f32.mrb[0].mxu0
      %3812 = vmatprep.mubr.f32.mxu0 0.0
      %3813 = vmatmul.mubr.f32.gmra.mrb[0].mxu0 %v3611
      %v3814 = vpop.f32.mrb[0].mxu0
      %v3815 = vadd.f32 0.0, %v3814
      %v3816 = vpop.f32.mrb[0].mxu0
      %3817 = vmatprep.mubr.f32.mxu0 0.0
      %3818 = vmatmul.mubr.f32.gmra.mrb[0].mxu0 %v3614
      %v3819 = vpop.f32.mrb[0].mxu0
      %v3820 = vadd.f32 0.0, %v3819
      %v3821 = vpop.f32.mrb[0].mxu0
      %3822 = vmatprep.mubr.f32.mxu0 0.0
      %3823 = vmatmul.mubr.f32.gmra.mrb[0].mxu0 %v3617
      %v3824 = vpop.f32.mrb[0].mxu0
      %v3825 = vadd.f32 0.0, %v3824
      %v3826 = vpop.f32.mrb[0].mxu0
      %3827 = vmatprep.mubr.f32.mxu0 0.0
      %3828 = vmatmul.mubr.f32.gmra.mrb[0].mxu0 %v3620
      %v3829 = vpop.f32.mrb[0].mxu0
      %v3830 = vadd.f32 0.0, %v3829
      %v3831 = vpop.f32.mrb[0].mxu0
      %3832 = vmatprep.mubr.f32.mxu0 0.0
      %3833 = vmatmul.mubr.f32.gmra.mrb[0].mxu0 %v3623
      %v3834 = vpop.f32.mrb[0].mxu0
      %v3835 = vadd.f32 0.0, %v3834
      %v3836 = vpop.f32.mrb[0].mxu0
      %3837 = vmatprep.mubr.f32.mxu0 0.0
      %3838 = vmatmul.mubr.f32.gmra.mrb[0].mxu0 %v3626
      %v3839 = vpop.f32.mrb[0].mxu0
      %v3840 = vadd.f32 0.0, %v3839
      %v3841 = vpop.f32.mrb[0].mxu0
      %3842 = vmatprep.mubr.f32.mxu0 0.0
      %3843 = vmatmul.mubr.f32.gmra.mrb[0].mxu0 %v3629
      %v3844 = vpop.f32.mrb[0].mxu0
      %v3845 = vadd.f32 0.0, %v3844
      %v3846 = vpop.f32.mrb[0].mxu0
      %3847 = vmatprep.mubr.f32.mxu0 0.0
      %3848 = vmatmul.mubr.f32.gmra.mrb[0].mxu0 %v3632
      %v3849 = vpop.f32.mrb[0].mxu0
      %v3850 = vadd.f32 0.0, %v3849
      %v3851 = vpop.f32.mrb[0].mxu0
      %3852 = vmatprep.mubr.f32.mxu0 0.0
      %3853 = vmatmul.mubr.f32.gmra.mrb[0].mxu0 %v3635
      %v3854 = vpop.f32.mrb[0].mxu0
      %v3855 = vadd.f32 0.0, %v3854
      %v3856 = vpop.f32.mrb[0].mxu0
      %3857 = vmatprep.mubr.f32.mxu0 0.0
      %3858 = vmatmul.mubr.f32.gmra.mrb[0].mxu0 %v3638
      %v3859 = vpop.f32.mrb[0].mxu0
      %v3860 = vadd.f32 0.0, %v3859
      %v3861 = vpop.f32.mrb[0].mxu0
      %3862 = vmatprep.mubr.f32.mxu0 0.0
      %3863 = vmatmul.mubr.f32.gmra.mrb[0].mxu0 %v3641
      %v3864 = vpop.f32.mrb[0].mxu0
      %v3865 = vadd.f32 0.0, %v3864
      %v3866 = vpop.f32.mrb[0].mxu0
      %3867 = vdwg.mxu0
      %v3868 = vadd.f32 %v3481, %v3710
      %v3869 = vadd.f32 %v3482, %v3715
      %v3870 = vadd.f32 %v3483, %v3720
      %v3871 = vadd.f32 %v3484, %v3725
      %v3872 = vadd.f32 %v3485, %v3730
      %v3873 = vadd.f32 %v3486, %v3735
      %v3874 = vadd.f32 %v3487, %v3740
      %v3875 = vadd.f32 %v3488, %v3745
      %v3876 = vadd.f32 %v3489, %v3750
      %v3877 = vadd.f32 %v3490, %v3755
      %v3878 = vadd.f32 %v3491, %v3760
      %v3879 = vadd.f32 %v3492, %v3765
      %v3880 = vadd.f32 %v3493, %v3770
      %v3881 = vadd.f32 %v3494, %v3775
      %v3882 = vadd.f32 %v3495, %v3780
      %v3883 = vadd.f32 %v3496, %v3785
      %v3884 = vadd.f32 %v3497, %v3790
      %v3885 = vadd.f32 %v3498, %v3795
      %v3886 = vadd.f32 %v3499, %v3800
      %v3887 = vadd.f32 %v3500, %v3805
      %v3888 = vadd.f32 %v3501, %v3810
      %v3889 = vadd.f32 %v3502, %v3815
      %v3890 = vadd.f32 %v3503, %v3820
      %v3891 = vadd.f32 %v3504, %v3825
      %v3892 = vadd.f32 %v3505, %v3830
      %v3893 = vadd.f32 %v3506, %v3835
      %v3894 = vadd.f32 %v3507, %v3840
      %v3895 = vadd.f32 %v3508, %v3845
      %v3896 = vadd.f32 %v3509, %v3850
      %v3897 = vadd.f32 %v3510, %v3855
      %v3898 = vadd.f32 %v3511, %v3860
      %v3899 = vadd.f32 %v3512, %v3865
      %v3900 = vld [vmem:[%s2] sm:$0x1]
      %v3902 = vlaneseq
      %v3903 = vshrl.u32 %v3902, 7
      %v3904 = vsub.s32 0, %v3903
      %v3905 = vrot.slane %v3900, %v3904
      %v3907 = vadd.f32 %v3868, %v3905
      %v3908 = vadd.f32 %v3869, %v3905
      %v3909 = vadd.f32 %v3870, %v3905
      %v3910 = vadd.f32 %v3871, %v3905
      %v3911 = vadd.f32 %v3872, %v3905
      %v3912 = vadd.f32 %v3873, %v3905
      %v3913 = vadd.f32 %v3874, %v3905
      %v3914 = vadd.f32 %v3875, %v3905
      %v3915 = vadd.f32 %v3876, %v3905
      %v3916 = vadd.f32 %v3877, %v3905
      %v3917 = vadd.f32 %v3878, %v3905
      %v3918 = vadd.f32 %v3879, %v3905
      %v3919 = vadd.f32 %v3880, %v3905
      %v3920 = vadd.f32 %v3881, %v3905
      %v3921 = vadd.f32 %v3882, %v3905
      %v3922 = vadd.f32 %v3883, %v3905
      %v3923 = vadd.f32 %v3884, %v3905
      %v3924 = vadd.f32 %v3885, %v3905
      %v3925 = vadd.f32 %v3886, %v3905
      %v3926 = vadd.f32 %v3887, %v3905
      %v3927 = vadd.f32 %v3888, %v3905
      %v3928 = vadd.f32 %v3889, %v3905
      %v3929 = vadd.f32 %v3890, %v3905
      %v3930 = vadd.f32 %v3891, %v3905
      %v3931 = vadd.f32 %v3892, %v3905
      %v3932 = vadd.f32 %v3893, %v3905
      %v3933 = vadd.f32 %v3894, %v3905
      %v3934 = vadd.f32 %v3895, %v3905
      %v3935 = vadd.f32 %v3896, %v3905
      %v3936 = vadd.f32 %v3897, %v3905
      %v3937 = vadd.f32 %v3898, %v3905
      %v3938 = vadd.f32 %v3899, %v3905
      %v3939 = vmax.f32 %v3907, 0.0
      %v3940 = vmax.f32 %v3908, 0.0
      %v3941 = vmax.f32 %v3909, 0.0
      %v3942 = vmax.f32 %v3910, 0.0
      %v3943 = vmax.f32 %v3911, 0.0
      %v3944 = vmax.f32 %v3912, 0.0
      %v3945 = vmax.f32 %v3913, 0.0
      %v3946 = vmax.f32 %v3914, 0.0
      %v3947 = vmax.f32 %v3915, 0.0
      %v3948 = vmax.f32 %v3916, 0.0
      %v3949 = vmax.f32 %v3917, 0.0
      %v3950 = vmax.f32 %v3918, 0.0
      %v3951 = vmax.f32 %v3919, 0.0
      %v3952 = vmax.f32 %v3920, 0.0
      %v3953 = vmax.f32 %v3921, 0.0
      %v3954 = vmax.f32 %v3922, 0.0
      %v3955 = vmax.f32 %v3923, 0.0
      %v3956 = vmax.f32 %v3924, 0.0
      %v3957 = vmax.f32 %v3925, 0.0
      %v3958 = vmax.f32 %v3926, 0.0
      %v3959 = vmax.f32 %v3927, 0.0
      %v3960 = vmax.f32 %v3928, 0.0
      %v3961 = vmax.f32 %v3929, 0.0
      %v3962 = vmax.f32 %v3930, 0.0
      %v3963 = vmax.f32 %v3931, 0.0
      %v3964 = vmax.f32 %v3932, 0.0
      %v3965 = vmax.f32 %v3933, 0.0
      %v3966 = vmax.f32 %v3934, 0.0
      %v3967 = vmax.f32 %v3935, 0.0
      %v3968 = vmax.f32 %v3936, 0.0
      %v3969 = vmax.f32 %v3937, 0.0
      %v3970 = vmax.f32 %v3938, 0.0
      %v3971 = vsel %vm406, %v3939, 0.0
      %v3972 = vsel %vm406, %v3940, 0.0
      %v3973 = vadd.f32 %v3971, %v3972
      %v3974 = vsel %vm406, %v3941, 0.0
      %v3975 = vadd.f32 %v3973, %v3974
      %v3976 = vsel %vm406, %v3942, 0.0
      %v3977 = vadd.f32 %v3975, %v3976
      %v3978 = vsel %vm406, %v3943, 0.0
      %v3979 = vadd.f32 %v3977, %v3978
      %v3980 = vsel %vm406, %v3944, 0.0
      %v3981 = vadd.f32 %v3979, %v3980
      %v3982 = vsel %vm406, %v3945, 0.0
      %v3983 = vadd.f32 %v3981, %v3982
      %v3984 = vsel %vm406, %v3946, 0.0
      %v3985 = vadd.f32 %v3983, %v3984
      %v3986 = vsel %vm406, %v3947, 0.0
      %v3987 = vadd.f32 %v3985, %v3986
      %v3988 = vsel %vm406, %v3948, 0.0
      %v3989 = vadd.f32 %v3987, %v3988
      %v3990 = vsel %vm406, %v3949, 0.0
      %v3991 = vadd.f32 %v3989, %v3990
      %v3992 = vsel %vm406, %v3950, 0.0
      %v3993 = vadd.f32 %v3991, %v3992
      %v3994 = vsel %vm406, %v3951, 0.0
      %v3995 = vadd.f32 %v3993, %v3994
      %v3996 = vsel %vm406, %v3952, 0.0
      %v3997 = vadd.f32 %v3995, %v3996
      %v3998 = vsel %vm406, %v3953, 0.0
      %v3999 = vadd.f32 %v3997, %v3998
      %v4000 = vsel %vm406, %v3954, 0.0
      %v4001 = vadd.f32 %v3999, %v4000
      %v4002 = vsel %vm406, %v3955, 0.0
      %v4003 = vadd.f32 %v4001, %v4002
      %v4004 = vsel %vm406, %v3956, 0.0
      %v4005 = vadd.f32 %v4003, %v4004
      %v4006 = vsel %vm406, %v3957, 0.0
      %v4007 = vadd.f32 %v4005, %v4006
      %v4008 = vsel %vm406, %v3958, 0.0
      %v4009 = vadd.f32 %v4007, %v4008
      %v4010 = vsel %vm406, %v3959, 0.0
      %v4011 = vadd.f32 %v4009, %v4010
      %v4012 = vsel %vm406, %v3960, 0.0
      %v4013 = vadd.f32 %v4011, %v4012
      %v4014 = vsel %vm406, %v3961, 0.0
      %v4015 = vadd.f32 %v4013, %v4014
      %v4016 = vsel %vm406, %v3962, 0.0
      %v4017 = vadd.f32 %v4015, %v4016
      %v4018 = vsel %vm406, %v3963, 0.0
      %v4019 = vadd.f32 %v4017, %v4018
      %v4020 = vsel %vm406, %v3964, 0.0
      %v4021 = vadd.f32 %v4019, %v4020
      %v4022 = vsel %vm406, %v3965, 0.0
      %v4023 = vadd.f32 %v4021, %v4022
      %v4024 = vsel %vm406, %v3966, 0.0
      %v4025 = vadd.f32 %v4023, %v4024
      %v4026 = vsel %vm406, %v3967, 0.0
      %v4027 = vadd.f32 %v4025, %v4026
      %v4028 = vsel %vm406, %v3968, 0.0
      %v4029 = vadd.f32 %v4027, %v4028
      %v4030 = vsel %vm406, %v3969, 0.0
      %v4031 = vadd.f32 %v4029, %v4030
      %v4032 = vsel %vm406, %v3970, 0.0
      %v4033 = vadd.f32 %v4031, %v4032
      %v4034 = vrot.slane %v4033, 4
      %v4035 = vadd.f32 %v4033, %v4034
      %v4036 = vrot.slane %v4035, 2
      %v4037 = vadd.f32 %v4035, %v4036
      %v4038 = vrot.slane %v4037, 1
      %v4039 = vadd.f32 %v4037, %v4038
      %4040 = vst.msk [vmem:[%s292] sm:$0x1] %vm416, %v4039
      %v4041 = vmul.f32 %v3939, %v3939
      %v4042 = vmul.f32 %v3940, %v3940
      %v4043 = vmul.f32 %v3941, %v3941
      %v4044 = vmul.f32 %v3942, %v3942
      %v4045 = vmul.f32 %v3943, %v3943
      %v4046 = vmul.f32 %v3944, %v3944
      %v4047 = vmul.f32 %v3945, %v3945
      %v4048 = vmul.f32 %v3946, %v3946
      %v4049 = vmul.f32 %v3947, %v3947
      %v4050 = vmul.f32 %v3948, %v3948
      %v4051 = vmul.f32 %v3949, %v3949
      %v4052 = vmul.f32 %v3950, %v3950
      %v4053 = vmul.f32 %v3951, %v3951
      %v4054 = vmul.f32 %v3952, %v3952
      %v4055 = vmul.f32 %v3953, %v3953
      %v4056 = vmul.f32 %v3954, %v3954
      %v4057 = vmul.f32 %v3955, %v3955
      %v4058 = vmul.f32 %v3956, %v3956
      %v4059 = vmul.f32 %v3957, %v3957
      %v4060 = vmul.f32 %v3958, %v3958
      %v4061 = vmul.f32 %v3959, %v3959
      %v4062 = vmul.f32 %v3960, %v3960
      %v4063 = vmul.f32 %v3961, %v3961
      %v4064 = vmul.f32 %v3962, %v3962
      %v4065 = vmul.f32 %v3963, %v3963
      %v4066 = vmul.f32 %v3964, %v3964
      %v4067 = vmul.f32 %v3965, %v3965
      %v4068 = vmul.f32 %v3966, %v3966
      %v4069 = vmul.f32 %v3967, %v3967
      %v4070 = vmul.f32 %v3968, %v3968
      %v4071 = vmul.f32 %v3969, %v3969
      %v4072 = vmul.f32 %v3970, %v3970
      %v4073 = vsel %vm406, %v4041, 0.0
      %v4074 = vsel %vm406, %v4042, 0.0
      %v4075 = vadd.f32 %v4073, %v4074
      %v4076 = vsel %vm406, %v4043, 0.0
      %v4077 = vadd.f32 %v4075, %v4076
      %v4078 = vsel %vm406, %v4044, 0.0
      %v4079 = vadd.f32 %v4077, %v4078
      %v4080 = vsel %vm406, %v4045, 0.0
      %v4081 = vadd.f32 %v4079, %v4080
      %v4082 = vsel %vm406, %v4046, 0.0
      %v4083 = vadd.f32 %v4081, %v4082
      %v4084 = vsel %vm406, %v4047, 0.0
      %v4085 = vadd.f32 %v4083, %v4084
      %v4086 = vsel %vm406, %v4048, 0.0
      %v4087 = vadd.f32 %v4085, %v4086
      %v4088 = vsel %vm406, %v4049, 0.0
      %v4089 = vadd.f32 %v4087, %v4088
      %v4090 = vsel %vm406, %v4050, 0.0
      %v4091 = vadd.f32 %v4089, %v4090
      %v4092 = vsel %vm406, %v4051, 0.0
      %v4093 = vadd.f32 %v4091, %v4092
      %v4094 = vsel %vm406, %v4052, 0.0
      %v4095 = vadd.f32 %v4093, %v4094
      %v4096 = vsel %vm406, %v4053, 0.0
      %v4097 = vadd.f32 %v4095, %v4096
      %v4098 = vsel %vm406, %v4054, 0.0
      %v4099 = vadd.f32 %v4097, %v4098
      %v4100 = vsel %vm406, %v4055, 0.0
      %v4101 = vadd.f32 %v4099, %v4100
      %v4102 = vsel %vm406, %v4056, 0.0
      %v4103 = vadd.f32 %v4101, %v4102
      %v4104 = vsel %vm406, %v4057, 0.0
      %v4105 = vadd.f32 %v4103, %v4104
      %v4106 = vsel %vm406, %v4058, 0.0
      %v4107 = vadd.f32 %v4105, %v4106
      %v4108 = vsel %vm406, %v4059, 0.0
      %v4109 = vadd.f32 %v4107, %v4108
      %v4110 = vsel %vm406, %v4060, 0.0
      %v4111 = vadd.f32 %v4109, %v4110
      %v4112 = vsel %vm406, %v4061, 0.0
      %v4113 = vadd.f32 %v4111, %v4112
      %v4114 = vsel %vm406, %v4062, 0.0
      %v4115 = vadd.f32 %v4113, %v4114
      %v4116 = vsel %vm406, %v4063, 0.0
      %v4117 = vadd.f32 %v4115, %v4116
      %v4118 = vsel %vm406, %v4064, 0.0
      %v4119 = vadd.f32 %v4117, %v4118
      %v4120 = vsel %vm406, %v4065, 0.0
      %v4121 = vadd.f32 %v4119, %v4120
      %v4122 = vsel %vm406, %v4066, 0.0
      %v4123 = vadd.f32 %v4121, %v4122
      %v4124 = vsel %vm406, %v4067, 0.0
      %v4125 = vadd.f32 %v4123, %v4124
      %v4126 = vsel %vm406, %v4068, 0.0
      %v4127 = vadd.f32 %v4125, %v4126
      %v4128 = vsel %vm406, %v4069, 0.0
      %v4129 = vadd.f32 %v4127, %v4128
      %v4130 = vsel %vm406, %v4070, 0.0
      %v4131 = vadd.f32 %v4129, %v4130
      %v4132 = vsel %vm406, %v4071, 0.0
      %v4133 = vadd.f32 %v4131, %v4132
      %v4134 = vsel %vm406, %v4072, 0.0
      %v4135 = vadd.f32 %v4133, %v4134
      %v4136 = vrot.slane %v4135, 4
      %v4137 = vadd.f32 %v4135, %v4136
      %v4138 = vrot.slane %v4137, 2
      %v4139 = vadd.f32 %v4137, %v4138
      %v4140 = vrot.slane %v4139, 1
      %v4141 = vadd.f32 %v4139, %v4140
      %4142 = vst.msk [vmem:[%s295] sm:$0x1] %vm416, %v4141
      %4143 = vst.msk [vmem:[%s289] sm:$0xff] %vm406, %v3939
      %4144 = vst.msk [vmem:[%s289 + $0x8] sm:$0xff] %vm406, %v3940
      %4145 = vst.msk [vmem:[%s289 + $0x10] sm:$0xff] %vm406, %v3941
      %4146 = vst.msk [vmem:[%s289 + $0x18] sm:$0xff] %vm406, %v3942
      %4147 = vst.msk [vmem:[%s289 + $0x20] sm:$0xff] %vm406, %v3943
      %4148 = vst.msk [vmem:[%s289 + $0x28] sm:$0xff] %vm406, %v3944
      %4149 = vst.msk [vmem:[%s289 + $0x30] sm:$0xff] %vm406, %v3945
      %4150 = vst.msk [vmem:[%s289 + $0x38] sm:$0xff] %vm406, %v3946
      %4151 = vst.msk [vmem:[%s289 + $0x40] sm:$0xff] %vm406, %v3947
      %4152 = vst.msk [vmem:[%s289 + $0x48] sm:$0xff] %vm406, %v3948
      %4153 = vst.msk [vmem:[%s289 + $0x50] sm:$0xff] %vm406, %v3949
      %4154 = vst.msk [vmem:[%s289 + $0x58] sm:$0xff] %vm406, %v3950
      %4155 = vst.msk [vmem:[%s289 + $0x60] sm:$0xff] %vm406, %v3951
      %4156 = vst.msk [vmem:[%s289 + $0x68] sm:$0xff] %vm406, %v3952
      %4157 = vst.msk [vmem:[%s289 + $0x70] sm:$0xff] %vm406, %v3953
      %4158 = vst.msk [vmem:[%s289 + $0x78] sm:$0xff] %vm406, %v3954
      %4159 = vst.msk [vmem:[%s289 + $0x80] sm:$0xff] %vm406, %v3955
      %4160 = vst.msk [vmem:[%s289 + $0x88] sm:$0xff] %vm406, %v3956
      %4161 = vst.msk [vmem:[%s289 + $0x90] sm:$0xff] %vm406, %v3957
      %4162 = vst.msk [vmem:[%s289 + $0x98] sm:$0xff] %vm406, %v3958
      %4163 = vst.msk [vmem:[%s289 + $0xa0] sm:$0xff] %vm406, %v3959
      %4164 = vst.msk [vmem:[%s289 + $0xa8] sm:$0xff] %vm406, %v3960
      %4165 = vst.msk [vmem:[%s289 + $0xb0] sm:$0xff] %vm406, %v3961
      %4166 = vst.msk [vmem:[%s289 + $0xb8] sm:$0xff] %vm406, %v3962
      %4167 = vst.msk [vmem:[%s289 + $0xc0] sm:$0xff] %vm406, %v3963
      %4168 = vst.msk [vmem:[%s289 + $0xc8] sm:$0xff] %vm406, %v3964
      %4169 = vst.msk [vmem:[%s289 + $0xd0] sm:$0xff] %vm406, %v3965
      %4170 = vst.msk [vmem:[%s289 + $0xd8] sm:$0xff] %vm406, %v3966
      %4171 = vst.msk [vmem:[%s289 + $0xe0] sm:$0xff] %vm406, %v3967
      %4172 = vst.msk [vmem:[%s289 + $0xe8] sm:$0xff] %vm406, %v3968
      %4173 = vst.msk [vmem:[%s289 + $0xf0] sm:$0xff] %vm406, %v3969
      %4174 = vst.msk [vmem:[%s289 + $0xf8] sm:$0xff] %vm406, %v3970
      %p4175 = scmp.lt.s32.totalorder %s19, 1
      %s4176 = scalar_select %p4175, %s19, 1
      %s4177 = smul.addr %s4176, 32
      %s4178 = smul.addr %s4177, 8
      %s4179 = scalar_lea.vmem %s5, %s4178
      %p4180 = scmp.lt.s32.totalorder %s19, 1
      %s4181 = scalar_select %p4180, %s19, 1
      %s4182 = scalar_lea.vmem %s6, %s4181
      %p4183 = scmp.lt.s32.totalorder %s19, 1
      %s4184 = scalar_select %p4183, %s19, 1
      %s4185 = scalar_lea.vmem %s7, %s4184
      // Predicated region
      $region41: #{conv_block_forward.4} parent=39 // pred_check
        %p4186 = pneg %p147
      $region42: #{conv_block_forward.4} parent=39 // pred_check_branch
        %4188 = sbr.rel (%p4186) target = $region44
      $region43: #{conv_block_forward.4} parent=39 // pred_region
        _
      $region44: #{conv_block_forward.4} parent=39 // pred_fallthru
        _
      // Predicated region
      $region45: #{conv_block_forward.4} parent=39 // pred_check
        %p4189 = pneg %p173
      $region46: #{conv_block_forward.4} parent=39 // pred_check_branch
        %4191 = sbr.rel (%p4189) target = $region48
      $region47: #{conv_block_forward.4} parent=39 // pred_region
        _
      $region48: #{conv_block_forward.4} parent=39 // pred_fallthru
        _
      // Predicated region
      $region49: #{conv_block_forward.4} parent=39 // pred_check
        %p4192 = pneg %p199
      $region50: #{conv_block_forward.4} parent=39 // pred_check_branch
        %4194 = sbr.rel (%p4192) target = $region52
      $region51: #{conv_block_forward.4} parent=39 // pred_region
        _
      $region52: #{conv_block_forward.4} parent=39 // pred_fallthru
        _
    $region40: #{conv_block_forward.4} parent=5 // pred_fallthru
      _
    %p4195 = scmp.le.s32.totalorder 2, %s14
    // Predicated region
    $region53: #{conv_block_forward.4} parent=5 // pred_check
      %p4196 = pneg %p4195
    $region54: #{conv_block_forward.4} parent=5 // pred_check_branch
      %4198 = sbr.rel (%p4196) target = $region56
    $region55: #{conv_block_forward.4} parent=5 // pred_region
      %s4199 = ssub.s32 %s14, 2
      // Predicated region
      $region57: #{conv_block_forward.4} parent=55 // pred_check
        %p4200 = pneg %p153
      $region58: #{conv_block_forward.4} parent=55 // pred_check_branch
        %4202 = sbr.rel (%p4200) target = $region60
      $region59: #{conv_block_forward.4} parent=55 // pred_region
        %p4203 = scmp.lt.s32.totalorder %s20, 1
        %s4204 = scalar_select %p4203, %s20, 1
        %s4205 = smul.addr %s4204, 32
        %s4206 = smul.addr %s4205, 8
        %s4207 = scalar_lea.vmem %s5, %s4206
      $region60: #{conv_block_forward.4} parent=55 // pred_fallthru
        _
      // Predicated region
      $region61: #{conv_block_forward.4} parent=55 // pred_check
        %p4208 = pneg %p179
      $region62: #{conv_block_forward.4} parent=55 // pred_check_branch
        %4210 = sbr.rel (%p4208) target = $region64
      $region63: #{conv_block_forward.4} parent=55 // pred_region
        %p4211 = scmp.lt.s32.totalorder %s20, 1
        %s4212 = scalar_select %p4211, %s20, 1
        %s4213 = scalar_lea.vmem %s6, %s4212
      $region64: #{conv_block_forward.4} parent=55 // pred_fallthru
        _
      // Predicated region
      $region65: #{conv_block_forward.4} parent=55 // pred_check
        %p4214 = pneg %p205
      $region66: #{conv_block_forward.4} parent=55 // pred_check_branch
        %4216 = sbr.rel (%p4214) target = $region68
      $region67: #{conv_block_forward.4} parent=55 // pred_region
        %p4217 = scmp.lt.s32.totalorder %s20, 1
        %s4218 = scalar_select %p4217, %s20, 1
        %s4219 = scalar_lea.vmem %s7, %s4218
      $region68: #{conv_block_forward.4} parent=55 // pred_fallthru
        _
    $region56: #{conv_block_forward.4} parent=5 // pred_fallthru
      _
  $region6: #{conv_block_forward.4} parent=0 // loop_footer
    %s18 = sadd.s32 1, %s14
  $region7: #{conv_block_forward.4} parent=0 // loop_footer_branch
    %13 = sbr.rel target = $region3
  $region8: #{conv_block_forward.4} parent=0 // loop_exit
    _

// kernel: conv_block_forward.3
$region0: #{conv_block_forward.3}
  #allocation0 [shape = 'u32[]', space=smem, size = 0x4, offset = 0x4, fixed_abs, tag = 'smem constant byte address 0x4 - core index']
  #allocation1 [shape = 'u32[144,128]{1,0:T(1,128)}', space=vmem, size = 0x12000, scoped, tag = 'internal scratch']
  #allocation2 [shape = 'f32[18,18,4]{2,1,0:T(8,128)}', space=vmem, size = 0x36000, scoped, tag = 'scratch operand']
  %s0 = inlined_call_operand.vmem [shape: f32[2,16,16,4], index: 0, kind: input, shape index: {}]
  %s1 = inlined_call_operand.vmem [shape: f32[9,4,128], index: 1, kind: input, shape index: {}]
  %s2 = inlined_call_operand.vmem [shape: f32[1,128], index: 2, kind: input, shape index: {}]
  %s3 = inlined_call_operand.vmem [shape: f32[1,4], index: 3, kind: input, shape index: {}]
  %s4 = inlined_call_operand.vmem [shape: f32[1,4], index: 4, kind: input, shape index: {}]
  %s5 = inlined_call_operand.vmem [shape: f32[2,256,8], index: 5, kind: output, shape index: {0}]
  %s6 = inlined_call_operand.vmem [shape: f32[2,1,8], index: 6, kind: output, shape index: {1}]
  %s7 = inlined_call_operand.vmem [shape: f32[2,1,8], index: 7, kind: output, shape index: {2}]
  %8 = xla_tuple %s5, %s6, %s7
  %s9 = sld [smem:[#allocation0]]
  $region69: #{conv_block_forward.3} parent=0
    _
  %s11 = ssub.s32 1, %s9
  %s12 = scalar_select 0, %s11, %s9
  loop: start=0, step=1, limit=4
  $region2: #{conv_block_forward.3} parent=0 // loop_pre_header
    _
  $region3: #{conv_block_forward.3} parent=0 // loop_header
    %s14 = sphi 0, %s18
    %p15 = scmp.ge.s32.totalorder %s14, 4
    %s24 = sphi 0, %s26
    %s27 = sphi 0, %s24
    %s28 = sphi 0, %s27
    %s44 = sphi 0, %s28
    %s48 = sphi 0, %s48
    %s50 = sphi 0, %s48
    %s51 = sphi 0, %s50
    %s65 = sphi 0, %s51
    %s69 = sphi 0, %s69
    %s71 = sphi 0, %s69
    %s72 = sphi 0, %s71
    %s86 = sphi 0, %s72
    %s90 = sphi 0, %s90
    %s92 = sphi 0, %s90
    %s93 = sphi 0, %s92
    %s107 = sphi 0, %s93
    %s111 = sphi 0, %s111
    %s113 = sphi 0, %s111
    %s114 = sphi 0, %s113
    %s128 = sphi 0, %s114
    %s134 = sphi 0, %s136
    %s137 = sphi 0, %s134
    %s138 = sphi 0, %s137
    %s154 = sphi 0, %s138
    %s160 = sphi 0, %s162
    %s163 = sphi 0, %s160
    %s164 = sphi 0, %s163
    %s180 = sphi 0, %s164
    %s186 = sphi 0, %s188
    %s189 = sphi 0, %s186
    %s190 = sphi 0, %s189
    %s206 = sphi 0, %s190
  $region4: #{conv_block_forward.3} parent=0 // loop_header_branch
    %17 = sbr.rel (%p15) target = $region8
  $region5: #{conv_block_forward.3} parent=0 // loop_body
    %s19 = ssub.s32 %s14, 1
    %s20 = ssub.s32 %s14, 2
    %s21 = sadd.s32 %s14, 1
    %s22 = ssub.s32 %s14, %s21
    %p23 = scmp.eq.s32.totalorder %s22, 0
    %s25 = sadd.s32 %s24, 1
    %s26 = scalar_select %p23, %s24, %s25
    %p29 = pneg %p23
    %p30 = scmp.eq.s32.totalorder %s14, 1
    %p31 = por %p29, %p30
    %p32 = scmp.ne.s32.totalorder %s24, %s27
    %p33 = scmp.eq.s32.totalorder %s14, 0
    %p34 = por %p32, %p33
    %p35 = scmp.ne.s32.totalorder %s24, %s27
    %p36 = scmp.eq.s32.totalorder %s19, 1
    %p37 = por %p35, %p36
    %p38 = scmp.ne.s32.totalorder %s27, %s28
    %p39 = scmp.eq.s32.totalorder %s19, 0
    %p40 = por %p38, %p39
    %p41 = scmp.ne.s32.totalorder %s27, %s28
    %p42 = scmp.eq.s32.totalorder %s20, 1
    %p43 = por %p41, %p42
    %p45 = scmp.ne.s32.totalorder %s28, %s44
    %p46 = scmp.eq.s32.totalorder %s20, 0
    %p47 = por %p45, %p46
    %s49 = sadd.s32 %s48, 1
    %p52 = scmp.eq.s32.totalorder %s14, 1
    %p53 = scmp.ne.s32.totalorder %s48, %s50
    %p54 = scmp.eq.s32.totalorder %s14, 0
    %p55 = por %p53, %p54
    %p56 = scmp.ne.s32.totalorder %s48, %s50
    %p57 = scmp.eq.s32.totalorder %s19, 1
    %p58 = por %p56, %p57
    %p59 = scmp.ne.s32.totalorder %s50, %s51
    %p60 = scmp.eq.s32.totalorder %s19, 0
    %p61 = por %p59, %p60
    %p62 = scmp.ne.s32.totalorder %s50, %s51
    %p63 = scmp.eq.s32.totalorder %s20, 1
    %p64 = por %p62, %p63
    %p66 = scmp.ne.s32.totalorder %s51, %s65
    %p67 = scmp.eq.s32.totalorder %s20, 0
    %p68 = por %p66, %p67
    %s70 = sadd.s32 %s69, 1
    %p73 = scmp.eq.s32.totalorder %s14, 1
    %p74 = scmp.ne.s32.totalorder %s69, %s71
    %p75 = scmp.eq.s32.totalorder %s14, 0
    %p76 = por %p74, %p75
    %p77 = scmp.ne.s32.totalorder %s69, %s71
    %p78 = scmp.eq.s32.totalorder %s19, 1
    %p79 = por %p77, %p78
    %p80 = scmp.ne.s32.totalorder %s71, %s72
    %p81 = scmp.eq.s32.totalorder %s19, 0
    %p82 = por %p80, %p81
    %p83 = scmp.ne.s32.totalorder %s71, %s72
    %p84 = scmp.eq.s32.totalorder %s20, 1
    %p85 = por %p83, %p84
    %p87 = scmp.ne.s32.totalorder %s72, %s86
    %p88 = scmp.eq.s32.totalorder %s20, 0
    %p89 = por %p87, %p88
    %s91 = sadd.s32 %s90, 1
    %p94 = scmp.eq.s32.totalorder %s14, 1
    %p95 = scmp.ne.s32.totalorder %s90, %s92
    %p96 = scmp.eq.s32.totalorder %s14, 0
    %p97 = por %p95, %p96
    %p98 = scmp.ne.s32.totalorder %s90, %s92
    %p99 = scmp.eq.s32.totalorder %s19, 1
    %p100 = por %p98, %p99
    %p101 = scmp.ne.s32.totalorder %s92, %s93
    %p102 = scmp.eq.s32.totalorder %s19, 0
    %p103 = por %p101, %p102
    %p104 = scmp.ne.s32.totalorder %s92, %s93
    %p105 = scmp.eq.s32.totalorder %s20, 1
    %p106 = por %p104, %p105
    %p108 = scmp.ne.s32.totalorder %s93, %s107
    %p109 = scmp.eq.s32.totalorder %s20, 0
    %p110 = por %p108, %p109
    %s112 = sadd.s32 %s111, 1
    %p115 = scmp.eq.s32.totalorder %s14, 1
    %p116 = scmp.ne.s32.totalorder %s111, %s113
    %p117 = scmp.eq.s32.totalorder %s14, 0
    %p118 = por %p116, %p117
    %p119 = scmp.ne.s32.totalorder %s111, %s113
    %p120 = scmp.eq.s32.totalorder %s19, 1
    %p121 = por %p119, %p120
    %p122 = scmp.ne.s32.totalorder %s113, %s114
    %p123 = scmp.eq.s32.totalorder %s19, 0
    %p124 = por %p122, %p123
    %p125 = scmp.ne.s32.totalorder %s113, %s114
    %p126 = scmp.eq.s32.totalorder %s20, 1
    %p127 = por %p125, %p126
    %p129 = scmp.ne.s32.totalorder %s114, %s128
    %p130 = scmp.eq.s32.totalorder %s20, 0
    %p131 = por %p129, %p130
    %s132 = ssub.s32 %s14, %s21
    %p133 = scmp.eq.s32.totalorder %s132, 0
    %s135 = sadd.s32 %s134, 1
    %s136 = scalar_select %p133, %s134, %s135
    %p139 = pneg %p133
    %p140 = scmp.eq.s32.totalorder %s14, 1
    %p141 = por %p139, %p140
    %p142 = scmp.ne.s32.totalorder %s134, %s137
    %p143 = scmp.eq.s32.totalorder %s14, 0
    %p144 = por %p142, %p143
    %p145 = scmp.ne.s32.totalorder %s134, %s137
    %p146 = scmp.eq.s32.totalorder %s19, 1
    %p147 = por %p145, %p146
    %p148 = scmp.ne.s32.totalorder %s137, %s138
    %p149 = scmp.eq.s32.totalorder %s19, 0
    %p150 = por %p148, %p149
    %p151 = scmp.ne.s32.totalorder %s137, %s138
    %p152 = scmp.eq.s32.totalorder %s20, 1
    %p153 = por %p151, %p152
    %p155 = scmp.ne.s32.totalorder %s138, %s154
    %p156 = scmp.eq.s32.totalorder %s20, 0
    %p157 = por %p155, %p156
    %s158 = ssub.s32 %s14, %s21
    %p159 = scmp.eq.s32.totalorder %s158, 0
    %s161 = sadd.s32 %s160, 1
    %s162 = scalar_select %p159, %s160, %s161
    %p165 = pneg %p159
    %p166 = scmp.eq.s32.totalorder %s14, 1
    %p167 = por %p165, %p166
    %p168 = scmp.ne.s32.totalorder %s160, %s163
    %p169 = scmp.eq.s32.totalorder %s14, 0
    %p170 = por %p168, %p169
    %p171 = scmp.ne.s32.totalorder %s160, %s163
    %p172 = scmp.eq.s32.totalorder %s19, 1
    %p173 = por %p171, %p172
    %p174 = scmp.ne.s32.totalorder %s163, %s164
    %p175 = scmp.eq.s32.totalorder %s19, 0
    %p176 = por %p174, %p175
    %p177 = scmp.ne.s32.totalorder %s163, %s164
    %p178 = scmp.eq.s32.totalorder %s20, 1
    %p179 = por %p177, %p178
    %p181 = scmp.ne.s32.totalorder %s164, %s180
    %p182 = scmp.eq.s32.totalorder %s20, 0
    %p183 = por %p181, %p182
    %s184 = ssub.s32 %s14, %s21
    %p185 = scmp.eq.s32.totalorder %s184, 0
    %s187 = sadd.s32 %s186, 1
    %s188 = scalar_select %p185, %s186, %s187
    %p191 = pneg %p185
    %p192 = scmp.eq.s32.totalorder %s14, 1
    %p193 = por %p191, %p192
    %p194 = scmp.ne.s32.totalorder %s186, %s189
    %p195 = scmp.eq.s32.totalorder %s14, 0
    %p196 = por %p194, %p195
    %p197 = scmp.ne.s32.totalorder %s186, %s189
    %p198 = scmp.eq.s32.totalorder %s19, 1
    %p199 = por %p197, %p198
    %p200 = scmp.ne.s32.totalorder %s189, %s190
    %p201 = scmp.eq.s32.totalorder %s19, 0
    %p202 = por %p200, %p201
    %p203 = scmp.ne.s32.totalorder %s189, %s190
    %p204 = scmp.eq.s32.totalorder %s20, 1
    %p205 = por %p203, %p204
    %p207 = scmp.ne.s32.totalorder %s190, %s206
    %p208 = scmp.eq.s32.totalorder %s20, 0
    %p209 = por %p207, %p208
    %p210 = scmp.le.s32.totalorder 1, %s14
    %p211 = scmp.lt.s32.totalorder %s14, 3
    %p212 = pnand %p210, %p211
    %p213 = pneg %p212
    // Predicated region
    $region9: #{conv_block_forward.3} parent=5 // pred_check
      _
    $region10: #{conv_block_forward.3} parent=5 // pred_check_branch
      %215 = sbr.rel (%p212) target = $region12
    $region11: #{conv_block_forward.3} parent=5 // pred_region
      %s216 = ssub.s32 %s14, 1
      // Predicated region
      $region13: #{conv_block_forward.3} parent=11 // pred_check
        %p217 = pneg %p61
      $region14: #{conv_block_forward.3} parent=11 // pred_check_branch
        %219 = sbr.rel (%p217) target = $region16
      $region15: #{conv_block_forward.3} parent=11 // pred_region
        _
      $region16: #{conv_block_forward.3} parent=11 // pred_fallthru
        _
      // Predicated region
      $region17: #{conv_block_forward.3} parent=11 // pred_check
        %p220 = pneg %p82
      $region18: #{conv_block_forward.3} parent=11 // pred_check_branch
        %222 = sbr.rel (%p220) target = $region20
      $region19: #{conv_block_forward.3} parent=11 // pred_region
        _
      $region20: #{conv_block_forward.3} parent=11 // pred_fallthru
        _
      // Predicated region
      $region21: #{conv_block_forward.3} parent=11 // pred_check
        %p223 = pneg %p103
      $region22: #{conv_block_forward.3} parent=11 // pred_check_branch
        %225 = sbr.rel (%p223) target = $region24
      $region23: #{conv_block_forward.3} parent=11 // pred_region
        _
      $region24: #{conv_block_forward.3} parent=11 // pred_fallthru
        _
      // Predicated region
      $region25: #{conv_block_forward.3} parent=11 // pred_check
        %p226 = pneg %p124
      $region26: #{conv_block_forward.3} parent=11 // pred_check_branch
        %228 = sbr.rel (%p226) target = $region28
      $region27: #{conv_block_forward.3} parent=11 // pred_region
        _
      $region28: #{conv_block_forward.3} parent=11 // pred_fallthru
        _
    $region12: #{conv_block_forward.3} parent=5 // pred_fallthru
      _
    %p229 = scmp.lt.s32.totalorder %s14, 2
    // Predicated region
    $region29: #{conv_block_forward.3} parent=5 // pred_check
      %p230 = pneg %p229
    $region30: #{conv_block_forward.3} parent=5 // pred_check_branch
      %232 = sbr.rel (%p230) target = $region32
    $region31: #{conv_block_forward.3} parent=5 // pred_region
      // Predicated region
      $region33: #{conv_block_forward.3} parent=31 // pred_check
        %p233 = pneg %p34
      $region34: #{conv_block_forward.3} parent=31 // pred_check_branch
        %235 = sbr.rel (%p233) target = $region36
      $region35: #{conv_block_forward.3} parent=31 // pred_region
        %p236 = scmp.lt.s32.totalorder %s14, 1
        %s237 = scalar_select %p236, %s14, 1
        %s238 = smul.addr %s237, 32
        %s239 = smul.addr %s238, 8
        %s240 = scalar_lea.vmem %s0, %s239
      $region36: #{conv_block_forward.3} parent=31 // pred_fallthru
        _
    $region32: #{conv_block_forward.3} parent=5 // pred_fallthru
      _
    %p241 = scmp.le.s32.totalorder 1, %s14
    %p242 = scmp.lt.s32.totalorder %s14, 3
    %p243 = pnand %p241, %p242
    %p244 = pneg %p243
    // Predicated region
    $region37: #{conv_block_forward.3} parent=5 // pred_check
      _
    $region38: #{conv_block_forward.3} parent=5 // pred_check_branch
      %246 = sbr.rel (%p243) target = $region40
    $region39: #{conv_block_forward.3} parent=5 // pred_region
      %s247 = ssub.s32 %s14, 1
      %p248 = scmp.lt.s32.totalorder %s19, 1
      %s249 = scalar_select %p248, %s19, 1
      %s250 = smul.addr %s249, 32
      %s251 = smul.addr %s250, 8
      %s252 = scalar_lea.vmem %s0, %s251
      %p253 = pneg %p40
      %p254 = pneg %p37
      %p255 = pneg %p61
      %p256 = pneg %p58
      %p257 = pneg %p82
      %p258 = pneg %p79
      %p259 = pneg %p103
      %p260 = pneg %p100
      %p261 = pneg %p124
      %p262 = pneg %p121
      %p263 = pneg %p150
      %p264 = pneg %p147
      %p265 = scmp.lt.s32.totalorder %s19, 1
      %s266 = scalar_select %p265, %s19, 1
      %s267 = smul.addr %s266, 32
      %s268 = smul.addr %s267, 8
      %s269 = scalar_lea.vmem %s5, %s268
      %p270 = pneg %p176
      %p271 = pneg %p173
      %p272 = scmp.lt.s32.totalorder %s19, 1
      %s273 = scalar_select %p272, %s19, 1
      %s274 = scalar_lea.vmem %s6, %s273
      %p275 = pneg %p202
      %p276 = pneg %p199
      %p277 = scmp.lt.s32.totalorder %s19, 1
      %s278 = scalar_select %p277, %s19, 1
      %s279 = scalar_lea.vmem %s7, %s278
      %p280 = scmp.lt.s32.totalorder %s19, 1
      %s281 = scalar_select %p280, %s19, 1
      %s282 = smul.addr %s281, 32
      %s283 = smul.addr %s282, 8
      %s284 = scalar_lea.vmem %s0, %s283
      %p285 = scmp.lt.s32.totalorder %s19, 1
      %s286 = scalar_select %p285, %s19, 1
      %s287 = smul.addr %s286, 32
      %s288 = smul.addr %s287, 8
      %s289 = scalar_lea.vmem %s5, %s288
      %p290 = scmp.lt.s32.totalorder %s19, 1
      %s291 = scalar_select %p290, %s19, 1
      %s292 = scalar_lea.vmem %s6, %s291
      %p293 = scmp.lt.s32.totalorder %s19, 1
      %s294 = scalar_select %p293, %s19, 1
      %s295 = scalar_lea.vmem %s7, %s294
      %v296 = vld [vmem:[%s284] sm:$0xff]
      %v297 = vld [vmem:[%s284 + $0x8] sm:$0xff]
      %v298 = vld [vmem:[%s284 + $0x10] sm:$0xff]
      %v299 = vld [vmem:[%s284 + $0x18] sm:$0xff]
      %v300 = vld [vmem:[%s284 + $0x20] sm:$0xff]
      %v301 = vld [vmem:[%s284 + $0x28] sm:$0xff]
      %v302 = vld [vmem:[%s284 + $0x30] sm:$0xff]
      %v303 = vld [vmem:[%s284 + $0x38] sm:$0xff]
      %v304 = vld [vmem:[%s284 + $0x40] sm:$0xff]
      %v305 = vld [vmem:[%s284 + $0x48] sm:$0xff]
      %v306 = vld [vmem:[%s284 + $0x50] sm:$0xff]
      %v307 = vld [vmem:[%s284 + $0x58] sm:$0xff]
      %v308 = vld [vmem:[%s284 + $0x60] sm:$0xff]
      %v309 = vld [vmem:[%s284 + $0x68] sm:$0xff]
      %v310 = vld [vmem:[%s284 + $0x70] sm:$0xff]
      %v311 = vld [vmem:[%s284 + $0x78] sm:$0xff]
      %v312 = vld [vmem:[%s284 + $0x80] sm:$0xff]
      %v313 = vld [vmem:[%s284 + $0x88] sm:$0xff]
      %v314 = vld [vmem:[%s284 + $0x90] sm:$0xff]
      %v315 = vld [vmem:[%s284 + $0x98] sm:$0xff]
      %v316 = vld [vmem:[%s284 + $0xa0] sm:$0xff]
      %v317 = vld [vmem:[%s284 + $0xa8] sm:$0xff]
      %v318 = vld [vmem:[%s284 + $0xb0] sm:$0xff]
      %v319 = vld [vmem:[%s284 + $0xb8] sm:$0xff]
      %v320 = vld [vmem:[%s284 + $0xc0] sm:$0xff]
      %v321 = vld [vmem:[%s284 + $0xc8] sm:$0xff]
      %v322 = vld [vmem:[%s284 + $0xd0] sm:$0xff]
      %v323 = vld [vmem:[%s284 + $0xd8] sm:$0xff]
      %v324 = vld [vmem:[%s284 + $0xe0] sm:$0xff]
      %v325 = vld [vmem:[%s284 + $0xe8] sm:$0xff]
      %v326 = vld [vmem:[%s284 + $0xf0] sm:$0xff]
      %v327 = vld [vmem:[%s284 + $0xf8] sm:$0xff]
      %v328 = vld [vmem:[%s3] sm:$0x1]
      %v329 = vld [vmem:[%s4] sm:$0x1]
      %v331 = vlaneseq
      %v332 = vshrl.u32 %v331, 7
      %v333 = vsub.s32 0, %v332
      %v334 = vrot.slane %v328, %v333
      %v336 = vmul.f32 %v296, %v334
      %v337 = vmul.f32 %v297, %v334
      %v338 = vmul.f32 %v298, %v334
      %v339 = vmul.f32 %v299, %v334
      %v340 = vmul.f32 %v300, %v334
      %v341 = vmul.f32 %v301, %v334
      %v342 = vmul.f32 %v302, %v334
      %v343 = vmul.f32 %v303, %v334
      %v344 = vmul.f32 %v304, %v334
      %v345 = vmul.f32 %v305, %v334
      %v346 = vmul.f32 %v306, %v334
      %v347 = vmul.f32 %v307, %v334
      %v348 = vmul.f32 %v308, %v334
      %v349 = vmul.f32 %v309, %v334
      %v350 = vmul.f32 %v310, %v334
      %v351 = vmul.f32 %v311, %v334
      %v352 = vmul.f32 %v312, %v334
      %v353 = vmul.f32 %v313, %v334
      %v354 = vmul.f32 %v314, %v334
      %v355 = vmul.f32 %v315, %v334
      %v356 = vmul.f32 %v316, %v334
      %v357 = vmul.f32 %v317, %v334
      %v358 = vmul.f32 %v318, %v334
      %v359 = vmul.f32 %v319, %v334
      %v360 = vmul.f32 %v320, %v334
      %v361 = vmul.f32 %v321, %v334
      %v362 = vmul.f32 %v322, %v334
      %v363 = vmul.f32 %v323, %v334
      %v364 = vmul.f32 %v324, %v334
      %v365 = vmul.f32 %v325, %v334
      %v366 = vmul.f32 %v326, %v334
      %v367 = vmul.f32 %v327, %v334
      %v369 = vlaneseq
      %v370 = vshrl.u32 %v369, 7
      %v371 = vsub.s32 0, %v370
      %v372 = vrot.slane %v329, %v371
      %v374 = vadd.f32 %v336, %v372
      %v375 = vadd.f32 %v337, %v372
      %v376 = vadd.f32 %v338, %v372
      %v377 = vadd.f32 %v339, %v372
      %v378 = vadd.f32 %v340, %v372
      %v379 = vadd.f32 %v341, %v372
      %v380 = vadd.f32 %v342, %v372
      %v381 = vadd.f32 %v343, %v372
      %v382 = vadd.f32 %v344, %v372
      %v383 = vadd.f32 %v345, %v372
      %v384 = vadd.f32 %v346, %v372
      %v385 = vadd.f32 %v347, %v372
      %v386 = vadd.f32 %v348, %v372
      %v387 = vadd.f32 %v349, %v372
      %v388 = vadd.f32 %v350, %v372
      %v389 = vadd.f32 %v351, %v372
      %v390 = vadd.f32 %v352, %v372
      %v391 = vadd.f32 %v353, %v372
      %v392 = vadd.f32 %v354, %v372
      %v393 = vadd.f32 %v355, %v372
      %v394 = vadd.f32 %v356, %v372
      %v395 = vadd.f32 %v357, %v372
      %v396 = vadd.f32 %v358, %v372
      %v397 = vadd.f32 %v359, %v372
      %v398 = vadd.f32 %v360, %v372
      %v399 = vadd.f32 %v361, %v372
      %v400 = vadd.f32 %v362, %v372
      %v401 = vadd.f32 %v363, %v372
      %v402 = vadd.f32 %v364, %v372
      %v403 = vadd.f32 %v365, %v372
      %v404 = vadd.f32 %v366, %v372
      %v405 = vadd.f32 %v367, %v372
      %vm406 = vcmask 31744
      %407 = vst.msk [vmem:[#allocation2] sm:$0xff] %vm406, 0.0
      %408 = vst.msk [vmem:[#allocation2 + $0x8] sm:$0xff] %vm406, 0.0
      %vm409 = vcmask 25600
      %410 = vst.msk [vmem:[#allocation2 + $0x10] sm:$0x3] %vm409, 0.0
      %s411 = scalar_lea.vmem [#allocation2], 408
      %412 = vst.msk [vmem:[%s411] sm:$0xff] %vm406, 0.0
      %413 = vst.msk [vmem:[%s411 + $0x8] sm:$0xff] %vm406, 0.0
      %414 = vst.msk [vmem:[%s411 + $0x10] sm:$0x3] %vm409, 0.0
      %s415 = scalar_lea.vmem [#allocation2], 24
      %vm416 = vcmask 24576
      %417 = vst.msk [vmem:[%s415] sm:$0x1] %vm416, 0.0
      %418 = vst.msk [vmem:[%s415 + $0x18] sm:$0x1] %vm416, 0.0
      %419 = vst.msk [vmem:[%s415 + $0x30] sm:$0x1] %vm416, 0.0
      %420 = vst.msk [vmem:[%s415 + $0x48] sm:$0x1] %vm416, 0.0
      %421 = vst.msk [vmem:[%s415 + $0x60] sm:$0x1] %vm416, 0.0
      %422 = vst.msk [vmem:[%s415 + $0x78] sm:$0x1] %vm416, 0.0
      %423 = vst.msk [vmem:[%s415 + $0x90] sm:$0x1] %vm416, 0.0
      %424 = vst.msk [vmem:[%s415 + $0xa8] sm:$0x1] %vm416, 0.0
      %425 = vst.msk [vmem:[%s415 + $0xc0] sm:$0x1] %vm416, 0.0
      %426 = vst.msk [vmem:[%s415 + $0xd8] sm:$0x1] %vm416, 0.0
      %427 = vst.msk [vmem:[%s415 + $0xf0] sm:$0x1] %vm416, 0.0
      %428 = vst.msk [vmem:[%s415 + $0x108] sm:$0x1] %vm416, 0.0
      %429 = vst.msk [vmem:[%s415 + $0x120] sm:$0x1] %vm416, 0.0
      %430 = vst.msk [vmem:[%s415 + $0x138] sm:$0x1] %vm416, 0.0
      %431 = vst.msk [vmem:[%s415 + $0x150] sm:$0x1] %vm416, 0.0
      %432 = vst.msk [vmem:[%s415 + $0x168] sm:$0x1] %vm416, 0.0
      %433 = vst.msk [vmem:[%s415 + $0x11] sm:$0x1] %vm416, 0.0
      %434 = vst.msk [vmem:[%s415 + $0x29] sm:$0x1] %vm416, 0.0
      %435 = vst.msk [vmem:[%s415 + $0x41] sm:$0x1] %vm416, 0.0
      %436 = vst.msk [vmem:[%s415 + $0x59] sm:$0x1] %vm416, 0.0
      %437 = vst.msk [vmem:[%s415 + $0x71] sm:$0x1] %vm416, 0.0
      %438 = vst.msk [vmem:[%s415 + $0x89] sm:$0x1] %vm416, 0.0
      %439 = vst.msk [vmem:[%s415 + $0xa1] sm:$0x1] %vm416, 0.0
      %440 = vst.msk [vmem:[%s415 + $0xb9] sm:$0x1] %vm416, 0.0
      %441 = vst.msk [vmem:[%s415 + $0xd1] sm:$0x1] %vm416, 0.0
      %442 = vst.msk [vmem:[%s415 + $0xe9] sm:$0x1] %vm416, 0.0
      %443 = vst.msk [vmem:[%s415 + $0x101] sm:$0x1] %vm416, 0.0
      %444 = vst.msk [vmem:[%s415 + $0x119] sm:$0x1] %vm416, 0.0
      %445 = vst.msk [vmem:[%s415 + $0x131] sm:$0x1] %vm416, 0.0
      %446 = vst.msk [vmem:[%s415 + $0x149] sm:$0x1] %vm416, 0.0
      %447 = vst.msk [vmem:[%s415 + $0x161] sm:$0x1] %vm416, 0.0
      %448 = vst.msk [vmem:[%s415 + $0x179] sm:$0x1] %vm416, 0.0
      %449 = vst.msk [vmem:[%s415 + $0x1] sm:$0xff] %vm406, %v374
      %450 = vst.msk [vmem:[%s415 + $0x9] sm:$0xff] %vm406, %v375
      %451 = vst.msk [vmem:[%s415 + $0x19] sm:$0xff] %vm406, %v376
      %452 = vst.msk [vmem:[%s415 + $0x21] sm:$0xff] %vm406, %v377
      %453 = vst.msk [vmem:[%s415 + $0x31] sm:$0xff] %vm406, %v378
      %454 = vst.msk [vmem:[%s415 + $0x39] sm:$0xff] %vm406, %v379
      %455 = vst.msk [vmem:[%s415 + $0x49] sm:$0xff] %vm406, %v380
      %456 = vst.msk [vmem:[%s415 + $0x51] sm:$0xff] %vm406, %v381
      %457 = vst.msk [vmem:[%s415 + $0x61] sm:$0xff] %vm406, %v382
      %458 = vst.msk [vmem:[%s415 + $0x69] sm:$0xff] %vm406, %v383
      %459 = vst.msk [vmem:[%s415 + $0x79] sm:$0xff] %vm406, %v384
      %460 = vst.msk [vmem:[%s415 + $0x81] sm:$0xff] %vm406, %v385
      %461 = vst.msk [vmem:[%s415 + $0x91] sm:$0xff] %vm406, %v386
      %462 = vst.msk [vmem:[%s415 + $0x99] sm:$0xff] %vm406, %v387
      %463 = vst.msk [vmem:[%s415 + $0xa9] sm:$0xff] %vm406, %v388
      %464 = vst.msk [vmem:[%s415 + $0xb1] sm:$0xff] %vm406, %v389
      %465 = vst.msk [vmem:[%s415 + $0xc1] sm:$0xff] %vm406, %v390
      %466 = vst.msk [vmem:[%s415 + $0xc9] sm:$0xff] %vm406, %v391
      %467 = vst.msk [vmem:[%s415 + $0xd9] sm:$0xff] %vm406, %v392
      %468 = vst.msk [vmem:[%s415 + $0xe1] sm:$0xff] %vm406, %v393
      %469 = vst.msk [vmem:[%s415 + $0xf1] sm:$0xff] %vm406, %v394
      %470 = vst.msk [vmem:[%s415 + $0xf9] sm:$0xff] %vm406, %v395
      %471 = vst.msk [vmem:[%s415 + $0x109] sm:$0xff] %vm406, %v396
      %472 = vst.msk [vmem:[%s415 + $0x111] sm:$0xff] %vm406, %v397
      %473 = vst.msk [vmem:[%s415 + $0x121] sm:$0xff] %vm406, %v398
      %474 = vst.msk [vmem:[%s415 + $0x129] sm:$0xff] %vm406, %v399
      %475 = vst.msk [vmem:[%s415 + $0x139] sm:$0xff] %vm406, %v400
      %476 = vst.msk [vmem:[%s415 + $0x141] sm:$0xff] %vm406, %v401
      %477 = vst.msk [vmem:[%s415 + $0x151] sm:$0xff] %vm406, %v402
      %478 = vst.msk [vmem:[%s415 + $0x159] sm:$0xff] %vm406, %v403
      %479 = vst.msk [vmem:[%s415 + $0x169] sm:$0xff] %vm406, %v404
      %480 = vst.msk [vmem:[%s415 + $0x171] sm:$0xff] %vm406, %v405
      %v481 = vld [vmem:[#allocation2] sm:$0xff]
      %v482 = vld [vmem:[#allocation2 + $0x8] sm:$0xff]
      %v483 = vld [vmem:[#allocation2 + $0x18] sm:$0xff]
      %v484 = vld [vmem:[#allocation2 + $0x20] sm:$0xff]
      %v485 = vld [vmem:[#allocation2 + $0x30] sm:$0xff]
      %v486 = vld [vmem:[#allocation2 + $0x38] sm:$0xff]
      %v487 = vld [vmem:[#allocation2 + $0x48] sm:$0xff]
      %v488 = vld [vmem:[#allocation2 + $0x50] sm:$0xff]
      %v489 = vld [vmem:[#allocation2 + $0x60] sm:$0xff]
      %v490 = vld [vmem:[#allocation2 + $0x68] sm:$0xff]
      %v491 = vld [vmem:[#allocation2 + $0x78] sm:$0xff]
      %v492 = vld [vmem:[#allocation2 + $0x80] sm:$0xff]
      %v493 = vld [vmem:[#allocation2 + $0x90] sm:$0xff]
      %v494 = vld [vmem:[#allocation2 + $0x98] sm:$0xff]
      %v495 = vld [vmem:[#allocation2 + $0xa8] sm:$0xff]
      %v496 = vld [vmem:[#allocation2 + $0xb0] sm:$0xff]
      %v497 = vld [vmem:[#allocation2 + $0xc0] sm:$0xff]
      %v498 = vld [vmem:[#allocation2 + $0xc8] sm:$0xff]
      %v499 = vld [vmem:[#allocation2 + $0xd8] sm:$0xff]
      %v500 = vld [vmem:[#allocation2 + $0xe0] sm:$0xff]
      %v501 = vld [vmem:[#allocation2 + $0xf0] sm:$0xff]
      %v502 = vld [vmem:[#allocation2 + $0xf8] sm:$0xff]
      %v503 = vld [vmem:[#allocation2 + $0x108] sm:$0xff]
      %v504 = vld [vmem:[#allocation2 + $0x110] sm:$0xff]
      %v505 = vld [vmem:[#allocation2 + $0x120] sm:$0xff]
      %v506 = vld [vmem:[#allocation2 + $0x128] sm:$0xff]
      %v507 = vld [vmem:[#allocation2 + $0x138] sm:$0xff]
      %v508 = vld [vmem:[#allocation2 + $0x140] sm:$0xff]
      %v509 = vld [vmem:[#allocation2 + $0x150] sm:$0xff]
      %v510 = vld [vmem:[#allocation2 + $0x158] sm:$0xff]
      %v511 = vld [vmem:[#allocation2 + $0x168] sm:$0xff]
      %v512 = vld [vmem:[#allocation2 + $0x170] sm:$0xff]
      %v513 = vld [vmem:[%s1] sm:$0xf]
      %v514 = vld [vmem:[#allocation2 + $0x1] sm:$0xff]
      %v515 = vld [vmem:[#allocation2 + $0x9] sm:$0xff]
      %v516 = vld [vmem:[#allocation2 + $0x19] sm:$0xff]
      %v517 = vld [vmem:[#allocation2 + $0x21] sm:$0xff]
      %v518 = vld [vmem:[#allocation2 + $0x31] sm:$0xff]
      %v519 = vld [vmem:[#allocation2 + $0x39] sm:$0xff]
      %v520 = vld [vmem:[#allocation2 + $0x49] sm:$0xff]
      %v521 = vld [vmem:[#allocation2 + $0x51] sm:$0xff]
      %v522 = vld [vmem:[#allocation2 + $0x61] sm:$0xff]
      %v523 = vld [vmem:[#allocation2 + $0x69] sm:$0xff]
      %v524 = vld [vmem:[#allocation2 + $0x79] sm:$0xff]
      %v525 = vld [vmem:[#allocation2 + $0x81] sm:$0xff]
      %v526 = vld [vmem:[#allocation2 + $0x91] sm:$0xff]
      %v527 = vld [vmem:[#allocation2 + $0x99] sm:$0xff]
      %v528 = vld [vmem:[#allocation2 + $0xa9] sm:$0xff]
      %v529 = vld [vmem:[#allocation2 + $0xb1] sm:$0xff]
      %v530 = vld [vmem:[#allocation2 + $0xc1] sm:$0xff]
      %v531 = vld [vmem:[#allocation2 + $0xc9] sm:$0xff]
      %v532 = vld [vmem:[#allocation2 + $0xd9] sm:$0xff]
      %v533 = vld [vmem:[#allocation2 + $0xe1] sm:$0xff]
      %v534 = vld [vmem:[#allocation2 + $0xf1] sm:$0xff]
      %v535 = vld [vmem:[#allocation2 + $0xf9] sm:$0xff]
      %v536 = vld [vmem:[#allocation2 + $0x109] sm:$0xff]
      %v537 = vld [vmem:[#allocation2 + $0x111] sm:$0xff]
      %v538 = vld [vmem:[#allocation2 + $0x121] sm:$0xff]
      %v539 = vld [vmem:[#allocation2 + $0x129] sm:$0xff]
      %v540 = vld [vmem:[#allocation2 + $0x139] sm:$0xff]
      %v541 = vld [vmem:[#allocation2 + $0x141] sm:$0xff]
      %v542 = vld [vmem:[#allocation2 + $0x151] sm:$0xff]
      %v543 = vld [vmem:[#allocation2 + $0x159] sm:$0xff]
      %v544 = vld [vmem:[#allocation2 + $0x169] sm:$0xff]
      %v545 = vld [vmem:[#allocation2 + $0x171] sm:$0xff]
      %s546 = scalar_lea.vmem %s1, 4
      %v547 = vld [vmem:[%s546] sm:$0xf]
      %v549 = vsel %vm406, %v514, 0
      %v552 = vsel %vm406, %v515, 0
      %v555 = vsel %vm406, %v516, 0
      %v558 = vsel %vm406, %v517, 0
      %v561 = vsel %vm406, %v518, 0
      %v564 = vsel %vm406, %v519, 0
      %v567 = vsel %vm406, %v520, 0
      %v570 = vsel %vm406, %v521, 0
      %v573 = vsel %vm406, %v522, 0
      %v576 = vsel %vm406, %v523, 0
      %v579 = vsel %vm406, %v524, 0
      %v582 = vsel %vm406, %v525, 0
      %v585 = vsel %vm406, %v526, 0
      %v588 = vsel %vm406, %v527, 0
      %v591 = vsel %vm406, %v528, 0
      %v594 = vsel %vm406, %v529, 0
      %v597 = vsel %vm406, %v530, 0
      %v600 = vsel %vm406, %v531, 0
      %v603 = vsel %vm406, %v532, 0
      %v606 = vsel %vm406, %v533, 0
      %v609 = vsel %vm406, %v534, 0
      %v612 = vsel %vm406, %v535, 0
      %v615 = vsel %vm406, %v536, 0
      %v618 = vsel %vm406, %v537, 0
      %v621 = vsel %vm406, %v538, 0
      %v624 = vsel %vm406, %v539, 0
      %v627 = vsel %vm406, %v540, 0
      %v630 = vsel %vm406, %v541, 0
      %v633 = vsel %vm406, %v542, 0
      %v636 = vsel %vm406, %v543, 0
      %v639 = vsel %vm406, %v544, 0
      %v642 = vsel %vm406, %v545, 0
      %vm644 = vcmask 1043456
      %v646 = vsel %vm644, %v547, 0
      %648 = vmatprep.subr.mxu0 0.0
      %649 = vmatpush1.msra.mxu0 %v646
      %650 = vmatprep.subr.mxu0 0.0
      %651 = vmatpush1.msra.mxu0 0.0
      %652 = vmatprep.subr.mxu0 0.0
      %653 = vmatpush1.msra.mxu0 0.0
      %654 = vmatprep.subr.mxu0 0.0
      %655 = vmatpush1.msra.mxu0 0.0
      %656 = vmatprep.subr.mxu0 0.0
      %657 = vmatpush1.msra.mxu0 0.0
      %658 = vmatprep.subr.mxu0 0.0
      %659 = vmatpush1.msra.mxu0 0.0
      %660 = vmatprep.subr.mxu0 0.0
      %661 = vmatpush1.msra.mxu0 0.0
      %662 = vmatprep.subr.mxu0 0.0
      %663 = vmatpush1.msra.mxu0 0.0
      %664 = vmatprep.subr.mxu0 0.0
      %665 = vmatpush1.msra.mxu0 0.0
      %666 = vmatprep.subr.mxu0 0.0
      %667 = vmatpush1.msra.mxu0 0.0
      %668 = vmatprep.subr.mxu0 0.0
      %669 = vmatpush1.msra.mxu0 0.0
      %670 = vmatprep.subr.mxu0 0.0
      %671 = vmatpush1.msra.mxu0 0.0
      %672 = vmatprep.subr.mxu0 0.0
      %673 = vmatpush1.msra.mxu0 0.0
      %674 = vmatprep.subr.mxu0 0.0
      %675 = vmatpush1.msra.mxu0 0.0
      %676 = vmatprep.subr.mxu0 0.0
      %677 = vmatpush1.msra.mxu0 0.0
      %678 = vmatprep.subr.mxu0 0.0
      %679 = vmatpush1.msra.mxu0 0.0
      %680 = vmatprep.subr.mxu0 0.0
      %681 = vmatpush1.msra.mxu0 0.0
      %682 = vmatprep.subr.mxu0 0.0
      %683 = vmatpush1.msra.mxu0 0.0
      %684 = vmatprep.subr.mxu0 0.0
      %685 = vmatpush1.msra.mxu0 0.0
      %686 = vmatprep.subr.mxu0 0.0
      %687 = vmatpush1.msra.mxu0 0.0
      %688 = vmatprep.subr.mxu0 0.0
      %689 = vmatpush1.msra.mxu0 0.0
      %690 = vmatprep.subr.mxu0 0.0
      %691 = vmatpush1.msra.mxu0 0.0
      %692 = vmatprep.subr.mxu0 0.0
      %693 = vmatpush1.msra.mxu0 0.0
      %694 = vmatprep.subr.mxu0 0.0
      %695 = vmatpush1.msra.mxu0 0.0
      %696 = vmatprep.subr.mxu0 0.0
      %697 = vmatpush1.msra.mxu0 0.0
      %698 = vmatprep.subr.mxu0 0.0
      %699 = vmatpush1.msra.mxu0 0.0
      %700 = vmatprep.subr.mxu0 0.0
      %701 = vmatpush1.msra.mxu0 0.0
      %702 = vmatprep.subr.mxu0 0.0
      %703 = vmatpush1.msra.mxu0 0.0
      %704 = vmatprep.subr.mxu0 0.0
      %705 = vmatpush1.msra.mxu0 0.0
      %706 = vmatprep.subr.mxu0 0.0
      %707 = vmatpush1.msra.mxu0 0.0
      %708 = vmatprep.subr.mxu0 0.0
      %709 = vmatpush1.msra.mxu0 0.0
      %710 = vmatprep.subr.mxu0 0.0
      %711 = vmatpush1.msra.mxu0 0.0
      %712 = vmatprep.mubr.f32.mxu0 0.0
      %713 = vmatmul.mubr.f32.gmra.mrb[0].mxu0 %v549
      %v714 = vpop.f32.mrb[0].mxu0
      %v715 = vadd.f32 0.0, %v714
      %v716 = vpop.f32.mrb[0].mxu0
      %717 = vmatprep.mubr.f32.mxu0 0.0
      %718 = vmatmul.mubr.f32.gmra.mrb[0].mxu0 %v552
      %v719 = vpop.f32.mrb[0].mxu0
      %v720 = vadd.f32 0.0, %v719
      %v721 = vpop.f32.mrb[0].mxu0
      %722 = vmatprep.mubr.f32.mxu0 0.0
      %723 = vmatmul.mubr.f32.gmra.mrb[0].mxu0 %v555
      %v724 = vpop.f32.mrb[0].mxu0
      %v725 = vadd.f32 0.0, %v724
      %v726 = vpop.f32.mrb[0].mxu0
      %727 = vmatprep.mubr.f32.mxu0 0.0
      %728 = vmatmul.mubr.f32.gmra.mrb[0].mxu0 %v558
      %v729 = vpop.f32.mrb[0].mxu0
      %v730 = vadd.f32 0.0, %v729
      %v731 = vpop.f32.mrb[0].mxu0
      %732 = vmatprep.mubr.f32.mxu0 0.0
      %733 = vmatmul.mubr.f32.gmra.mrb[0].mxu0 %v561
      %v734 = vpop.f32.mrb[0].mxu0
      %v735 = vadd.f32 0.0, %v734
      %v736 = vpop.f32.mrb[0].mxu0
      %737 = vmatprep.mubr.f32.mxu0 0.0
      %738 = vmatmul.mubr.f32.gmra.mrb[0].mxu0 %v564
      %v739 = vpop.f32.mrb[0].mxu0
      %v740 = vadd.f32 0.0, %v739
      %v741 = vpop.f32.mrb[0].mxu0
      %742 = vmatprep.mubr.f32.mxu0 0.0
      %743 = vmatmul.mubr.f32.gmra.mrb[0].mxu0 %v567
      %v744 = vpop.f32.mrb[0].mxu0
      %v745 = vadd.f32 0.0, %v744
      %v746 = vpop.f32.mrb[0].mxu0
      %747 = vmatprep.mubr.f32.mxu0 0.0
      %748 = vmatmul.mubr.f32.gmra.mrb[0].mxu0 %v570
      %v749 = vpop.f32.mrb[0].mxu0
      %v750 = vadd.f32 0.0, %v749
      %v751 = vpop.f32.mrb[0].mxu0
      %752 = vmatprep.mubr.f32.mxu0 0.0
      %753 = vmatmul.mubr.f32.gmra.mrb[0].mxu0 %v573
      %v754 = vpop.f32.mrb[0].mxu0
      %v755 = vadd.f32 0.0, %v754
      %v756 = vpop.f32.mrb[0].mxu0
      %757 = vmatprep.mubr.f32.mxu0 0.0
      %758 = vmatmul.mubr.f32.gmra.mrb[0].mxu0 %v576
      %v759 = vpop.f32.mrb[0].mxu0
      %v760 = vadd.f32 0.0, %v759
      %v761 = vpop.f32.mrb[0].mxu0
      %762 = vmatprep.mubr.f32.mxu0 0.0
      %763 = vmatmul.mubr.f32.gmra.mrb[0].mxu0 %v579
      %v764 = vpop.f32.mrb[0].mxu0
      %v765 = vadd.f32 0.0, %v764
      %v766 = vpop.f32.mrb[0].mxu0
      %767 = vmatprep.mubr.f32.mxu0 0.0
      %768 = vmatmul.mubr.f32.gmra.mrb[0].mxu0 %v582
      %v769 = vpop.f32.mrb[0].mxu0
      %v770 = vadd.f32 0.0, %v769
      %v771 = vpop.f32.mrb[0].mxu0
      %772 = vmatprep.mubr.f32.mxu0 0.0
      %773 = vmatmul.mubr.f32.gmra.mrb[0].mxu0 %v585
      %v774 = vpop.f32.mrb[0].mxu0
      %v775 = vadd.f32 0.0, %v774
      %v776 = vpop.f32.mrb[0].mxu0
      %777 = vmatprep.mubr.f32.mxu0 0.0
      %778 = vmatmul.mubr.f32.gmra.mrb[0].mxu0 %v588
      %v779 = vpop.f32.mrb[0].mxu0
      %v780 = vadd.f32 0.0, %v779
      %v781 = vpop.f32.mrb[0].mxu0
      %782 = vmatprep.mubr.f32.mxu0 0.0
      %783 = vmatmul.mubr.f32.gmra.mrb[0].mxu0 %v591
      %v784 = vpop.f32.mrb[0].mxu0
      %v785 = vadd.f32 0.0, %v784
      %v786 = vpop.f32.mrb[0].mxu0
      %787 = vmatprep.mubr.f32.mxu0 0.0
      %788 = vmatmul.mubr.f32.gmra.mrb[0].mxu0 %v594
      %v789 = vpop.f32.mrb[0].mxu0
      %v790 = vadd.f32 0.0, %v789
      %v791 = vpop.f32.mrb[0].mxu0
      %792 = vmatprep.mubr.f32.mxu0 0.0
      %793 = vmatmul.mubr.f32.gmra.mrb[0].mxu0 %v597
      %v794 = vpop.f32.mrb[0].mxu0
      %v795 = vadd.f32 0.0, %v794
      %v796 = vpop.f32.mrb[0].mxu0
      %797 = vmatprep.mubr.f32.mxu0 0.0
      %798 = vmatmul.mubr.f32.gmra.mrb[0].mxu0 %v600
      %v799 = vpop.f32.mrb[0].mxu0
      %v800 = vadd.f32 0.0, %v799
      %v801 = vpop.f32.mrb[0].mxu0
      %802 = vmatprep.mubr.f32.mxu0 0.0
      %803 = vmatmul.mubr.f32.gmra.mrb[0].mxu0 %v603
      %v804 = vpop.f32.mrb[0].mxu0
      %v805 = vadd.f32 0.0, %v804
      %v806 = vpop.f32.mrb[0].mxu0
      %807 = vmatprep.mubr.f32.mxu0 0.0
      %808 = vmatmul.mubr.f32.gmra.mrb[0].mxu0 %v606
      %v809 = vpop.f32.mrb[0].mxu0
      %v810 = vadd.f32 0.0, %v809
      %v811 = vpop.f32.mrb[0].mxu0
      %812 = vmatprep.mubr.f32.mxu0 0.0
      %813 = vmatmul.mubr.f32.gmra.mrb[0].mxu0 %v609
      %v814 = vpop.f32.mrb[0].mxu0
      %v815 = vadd.f32 0.0, %v814
      %v816 = vpop.f32.mrb[0].mxu0
      %817 = vmatprep.mubr.f32.mxu0 0.0
      %818 = vmatmul.mubr.f32.gmra.mrb[0].mxu0 %v612
      %v819 = vpop.f32.mrb[0].mxu0
      %v820 = vadd.f32 0.0, %v819
      %v821 = vpop.f32.mrb[0].mxu0
      %822 = vmatprep.mubr.f32.mxu0 0.0
      %823 = vmatmul.mubr.f32.gmra.mrb[0].mxu0 %v615
      %v824 = vpop.f32.mrb[0].mxu0
      %v825 = vadd.f32 0.0, %v824
      %v826 = vpop.f32.mrb[0].mxu0
      %827 = vmatprep.mubr.f32.mxu0 0.0
      %828 = vmatmul.mubr.f32.gmra.mrb[0].mxu0 %v618
      %v829 = vpop.f32.mrb[0].mxu0
      %v830 = vadd.f32 0.0, %v829
      %v831 = vpop.f32.mrb[0].mxu0
      %832 = vmatprep.mubr.f32.mxu0 0.0
      %833 = vmatmul.mubr.f32.gmra.mrb[0].mxu0 %v621
      %v834 = vpop.f32.mrb[0].mxu0
      %v835 = vadd.f32 0.0, %v834
      %v836 = vpop.f32.mrb[0].mxu0
      %837 = vmatprep.mubr.f32.mxu0 0.0
      %838 = vmatmul.mubr.f32.gmra.mrb[0].mxu0 %v624
      %v839 = vpop.f32.mrb[0].mxu0
      %v840 = vadd.f32 0.0, %v839
      %v841 = vpop.f32.mrb[0].mxu0
      %842 = vmatprep.mubr.f32.mxu0 0.0
      %843 = vmatmul.mubr.f32.gmra.mrb[0].mxu0 %v627
      %v844 = vpop.f32.mrb[0].mxu0
      %v845 = vadd.f32 0.0, %v844
      %v846 = vpop.f32.mrb[0].mxu0
      %847 = vmatprep.mubr.f32.mxu0 0.0
      %848 = vmatmul.mubr.f32.gmra.mrb[0].mxu0 %v630
      %v849 = vpop.f32.mrb[0].mxu0
      %v850 = vadd.f32 0.0, %v849
      %v851 = vpop.f32.mrb[0].mxu0
      %852 = vmatprep.mubr.f32.mxu0 0.0
      %853 = vmatmul.mubr.f32.gmra.mrb[0].mxu0 %v633
      %v854 = vpop.f32.mrb[0].mxu0
      %v855 = vadd.f32 0.0, %v854
      %v856 = vpop.f32.mrb[0].mxu0
      %857 = vmatprep.mubr.f32.mxu0 0.0
      %858 = vmatmul.mubr.f32.gmra.mrb[0].mxu0 %v636
      %v859 = vpop.f32.mrb[0].mxu0
      %v860 = vadd.f32 0.0, %v859
      %v861 = vpop.f32.mrb[0].mxu0
      %862 = vmatprep.mubr.f32.mxu0 0.0
      %863 = vmatmul.mubr.f32.gmra.mrb[0].mxu0 %v639
      %v864 = vpop.f32.mrb[0].mxu0
      %v865 = vadd.f32 0.0, %v864
      %v866 = vpop.f32.mrb[0].mxu0
      %867 = vmatprep.mubr.f32.mxu0 0.0
      %868 = vmatmul.mubr.f32.gmra.mrb[0].mxu0 %v642
      %v869 = vpop.f32.mrb[0].mxu0
      %v870 = vadd.f32 0.0, %v869
      %v871 = vpop.f32.mrb[0].mxu0
      %872 = vdwg.mxu0
      %v874 = vsel %vm406, %v481, 0
      %v877 = vsel %vm406, %v482, 0
      %v880 = vsel %vm406, %v483, 0
      %v883 = vsel %vm406, %v484, 0
      %v886 = vsel %vm406, %v485, 0
      %v889 = vsel %vm406, %v486, 0
      %v892 = vsel %vm406, %v487, 0
      %v895 = vsel %vm406, %v488, 0
      %v898 = vsel %vm406, %v489, 0
      %v901 = vsel %vm406, %v490, 0
      %v904 = vsel %vm406, %v491, 0
      %v907 = vsel %vm406, %v492, 0
      %v910 = vsel %vm406, %v493, 0
      %v913 = vsel %vm406, %v494, 0
      %v916 = vsel %vm406, %v495, 0
      %v919 = vsel %vm406, %v496, 0
      %v922 = vsel %vm406, %v497, 0
      %v925 = vsel %vm406, %v498, 0
      %v928 = vsel %vm406, %v499, 0
      %v931 = vsel %vm406, %v500, 0
      %v934 = vsel %vm406, %v501, 0
      %v937 = vsel %vm406, %v502, 0
      %v940 = vsel %vm406, %v503, 0
      %v943 = vsel %vm406, %v504, 0
      %v946 = vsel %vm406, %v505, 0
      %v949 = vsel %vm406, %v506, 0
      %v952 = vsel %vm406, %v507, 0
      %v955 = vsel %vm406, %v508, 0
      %v958 = vsel %vm406, %v509, 0
      %v961 = vsel %vm406, %v510, 0
      %v964 = vsel %vm406, %v511, 0
      %v967 = vsel %vm406, %v512, 0
      %v970 = vsel %vm644, %v513, 0
      %972 = vmatprep.subr.mxu0 0.0
      %973 = vmatpush1.msra.mxu0 %v970
      %974 = vmatprep.subr.mxu0 0.0
      %975 = vmatpush1.msra.mxu0 0.0
      %976 = vmatprep.subr.mxu0 0.0
      %977 = vmatpush1.msra.mxu0 0.0
      %978 = vmatprep.subr.mxu0 0.0
      %979 = vmatpush1.msra.mxu0 0.0
      %980 = vmatprep.subr.mxu0 0.0
      %981 = vmatpush1.msra.mxu0 0.0
      %982 = vmatprep.subr.mxu0 0.0
      %983 = vmatpush1.msra.mxu0 0.0
      %984 = vmatprep.subr.mxu0 0.0
      %985 = vmatpush1.msra.mxu0 0.0
      %986 = vmatprep.subr.mxu0 0.0
      %987 = vmatpush1.msra.mxu0 0.0
      %988 = vmatprep.subr.mxu0 0.0
      %989 = vmatpush1.msra.mxu0 0.0
      %990 = vmatprep.subr.mxu0 0.0
      %991 = vmatpush1.msra.mxu0 0.0
      %992 = vmatprep.subr.mxu0 0.0
      %993 = vmatpush1.msra.mxu0 0.0
      %994 = vmatprep.subr.mxu0 0.0
      %995 = vmatpush1.msra.mxu0 0.0
      %996 = vmatprep.subr.mxu0 0.0
      %997 = vmatpush1.msra.mxu0 0.0
      %998 = vmatprep.subr.mxu0 0.0
      %999 = vmatpush1.msra.mxu0 0.0
      %1000 = vmatprep.subr.mxu0 0.0
      %1001 = vmatpush1.msra.mxu0 0.0
      %1002 = vmatprep.subr.mxu0 0.0
      %1003 = vmatpush1.msra.mxu0 0.0
      %1004 = vmatprep.subr.mxu0 0.0
      %1005 = vmatpush1.msra.mxu0 0.0
      %1006 = vmatprep.subr.mxu0 0.0
      %1007 = vmatpush1.msra.mxu0 0.0
      %1008 = vmatprep.subr.mxu0 0.0
      %1009 = vmatpush1.msra.mxu0 0.0
      %1010 = vmatprep.subr.mxu0 0.0
      %1011 = vmatpush1.msra.mxu0 0.0
      %1012 = vmatprep.subr.mxu0 0.0
      %1013 = vmatpush1.msra.mxu0 0.0
      %1014 = vmatprep.subr.mxu0 0.0
      %1015 = vmatpush1.msra.mxu0 0.0
      %1016 = vmatprep.subr.mxu0 0.0
      %1017 = vmatpush1.msra.mxu0 0.0
      %1018 = vmatprep.subr.mxu0 0.0
      %1019 = vmatpush1.msra.mxu0 0.0
      %1020 = vmatprep.subr.mxu0 0.0
      %1021 = vmatpush1.msra.mxu0 0.0
      %1022 = vmatprep.subr.mxu0 0.0
      %1023 = vmatpush1.msra.mxu0 0.0
      %1024 = vmatprep.subr.mxu0 0.0
      %1025 = vmatpush1.msra.mxu0 0.0
      %1026 = vmatprep.subr.mxu0 0.0
      %1027 = vmatpush1.msra.mxu0 0.0
      %1028 = vmatprep.subr.mxu0 0.0
      %1029 = vmatpush1.msra.mxu0 0.0
      %1030 = vmatprep.subr.mxu0 0.0
      %1031 = vmatpush1.msra.mxu0 0.0
      %1032 = vmatprep.subr.mxu0 0.0
      %1033 = vmatpush1.msra.mxu0 0.0
      %1034 = vmatprep.subr.mxu0 0.0
      %1035 = vmatpush1.msra.mxu0 0.0
      %1036 = vmatprep.mubr.f32.mxu0 0.0
      %1037 = vmatmul.mubr.f32.gmra.mrb[0].mxu0 %v874
      %v1038 = vpop.f32.mrb[0].mxu0
      %v1039 = vadd.f32 %v715, %v1038
      %v1040 = vpop.f32.mrb[0].mxu0
      %1041 = vmatprep.mubr.f32.mxu0 0.0
      %1042 = vmatmul.mubr.f32.gmra.mrb[0].mxu0 %v877
      %v1043 = vpop.f32.mrb[0].mxu0
      %v1044 = vadd.f32 %v720, %v1043
      %v1045 = vpop.f32.mrb[0].mxu0
      %1046 = vmatprep.mubr.f32.mxu0 0.0
      %1047 = vmatmul.mubr.f32.gmra.mrb[0].mxu0 %v880
      %v1048 = vpop.f32.mrb[0].mxu0
      %v1049 = vadd.f32 %v725, %v1048
      %v1050 = vpop.f32.mrb[0].mxu0
      %1051 = vmatprep.mubr.f32.mxu0 0.0
      %1052 = vmatmul.mubr.f32.gmra.mrb[0].mxu0 %v883
      %v1053 = vpop.f32.mrb[0].mxu0
      %v1054 = vadd.f32 %v730, %v1053
      %v1055 = vpop.f32.mrb[0].mxu0
      %1056 = vmatprep.mubr.f32.mxu0 0.0
      %1057 = vmatmul.mubr.f32.gmra.mrb[0].mxu0 %v886
      %v1058 = vpop.f32.mrb[0].mxu0
      %v1059 = vadd.f32 %v735, %v1058
      %v1060 = vpop.f32.mrb[0].mxu0
      %1061 = vmatprep.mubr.f32.mxu0 0.0
      %1062 = vmatmul.mubr.f32.gmra.mrb[0].mxu0 %v889
      %v1063 = vpop.f32.mrb[0].mxu0
      %v1064 = vadd.f32 %v740, %v1063
      %v1065 = vpop.f32.mrb[0].mxu0
      %1066 = vmatprep.mubr.f32.mxu0 0.0
      %1067 = vmatmul.mubr.f32.gmra.mrb[0].mxu0 %v892
      %v1068 = vpop.f32.mrb[0].mxu0
      %v1069 = vadd.f32 %v745, %v1068
      %v1070 = vpop.f32.mrb[0].mxu0
      %1071 = vmatprep.mubr.f32.mxu0 0.0
      %1072 = vmatmul.mubr.f32.gmra.mrb[0].mxu0 %v895
      %v1073 = vpop.f32.mrb[0].mxu0
      %v1074 = vadd.f32 %v750, %v1073
      %v1075 = vpop.f32.mrb[0].mxu0
      %1076 = vmatprep.mubr.f32.mxu0 0.0
      %1077 = vmatmul.mubr.f32.gmra.mrb[0].mxu0 %v898
      %v1078 = vpop.f32.mrb[0].mxu0
      %v1079 = vadd.f32 %v755, %v1078
      %v1080 = vpop.f32.mrb[0].mxu0
      %1081 = vmatprep.mubr.f32.mxu0 0.0
      %1082 = vmatmul.mubr.f32.gmra.mrb[0].mxu0 %v901
      %v1083 = vpop.f32.mrb[0].mxu0
      %v1084 = vadd.f32 %v760, %v1083
      %v1085 = vpop.f32.mrb[0].mxu0
      %1086 = vmatprep.mubr.f32.mxu0 0.0
      %1087 = vmatmul.mubr.f32.gmra.mrb[0].mxu0 %v904
      %v1088 = vpop.f32.mrb[0].mxu0
      %v1089 = vadd.f32 %v765, %v1088
      %v1090 = vpop.f32.mrb[0].mxu0
      %1091 = vmatprep.mubr.f32.mxu0 0.0
      %1092 = vmatmul.mubr.f32.gmra.mrb[0].mxu0 %v907
      %v1093 = vpop.f32.mrb[0].mxu0
      %v1094 = vadd.f32 %v770, %v1093
      %v1095 = vpop.f32.mrb[0].mxu0
      %1096 = vmatprep.mubr.f32.mxu0 0.0
      %1097 = vmatmul.mubr.f32.gmra.mrb[0].mxu0 %v910
      %v1098 = vpop.f32.mrb[0].mxu0
      %v1099 = vadd.f32 %v775, %v1098
      %v1100 = vpop.f32.mrb[0].mxu0
      %1101 = vmatprep.mubr.f32.mxu0 0.0
      %1102 = vmatmul.mubr.f32.gmra.mrb[0].mxu0 %v913
      %v1103 = vpop.f32.mrb[0].mxu0
      %v1104 = vadd.f32 %v780, %v1103
      %v1105 = vpop.f32.mrb[0].mxu0
      %1106 = vmatprep.mubr.f32.mxu0 0.0
      %1107 = vmatmul.mubr.f32.gmra.mrb[0].mxu0 %v916
      %v1108 = vpop.f32.mrb[0].mxu0
      %v1109 = vadd.f32 %v785, %v1108
      %v1110 = vpop.f32.mrb[0].mxu0
      %1111 = vmatprep.mubr.f32.mxu0 0.0
      %1112 = vmatmul.mubr.f32.gmra.mrb[0].mxu0 %v919
      %v1113 = vpop.f32.mrb[0].mxu0
      %v1114 = vadd.f32 %v790, %v1113
      %v1115 = vpop.f32.mrb[0].mxu0
      %1116 = vmatprep.mubr.f32.mxu0 0.0
      %1117 = vmatmul.mubr.f32.gmra.mrb[0].mxu0 %v922
      %v1118 = vpop.f32.mrb[0].mxu0
      %v1119 = vadd.f32 %v795, %v1118
      %v1120 = vpop.f32.mrb[0].mxu0
      %1121 = vmatprep.mubr.f32.mxu0 0.0
      %1122 = vmatmul.mubr.f32.gmra.mrb[0].mxu0 %v925
      %v1123 = vpop.f32.mrb[0].mxu0
      %v1124 = vadd.f32 %v800, %v1123
      %v1125 = vpop.f32.mrb[0].mxu0
      %1126 = vmatprep.mubr.f32.mxu0 0.0
      %1127 = vmatmul.mubr.f32.gmra.mrb[0].mxu0 %v928
      %v1128 = vpop.f32.mrb[0].mxu0
      %v1129 = vadd.f32 %v805, %v1128
      %v1130 = vpop.f32.mrb[0].mxu0
      %1131 = vmatprep.mubr.f32.mxu0 0.0
      %1132 = vmatmul.mubr.f32.gmra.mrb[0].mxu0 %v931
      %v1133 = vpop.f32.mrb[0].mxu0
      %v1134 = vadd.f32 %v810, %v1133
      %v1135 = vpop.f32.mrb[0].mxu0
      %1136 = vmatprep.mubr.f32.mxu0 0.0
      %1137 = vmatmul.mubr.f32.gmra.mrb[0].mxu0 %v934
      %v1138 = vpop.f32.mrb[0].mxu0
      %v1139 = vadd.f32 %v815, %v1138
      %v1140 = vpop.f32.mrb[0].mxu0
      %1141 = vmatprep.mubr.f32.mxu0 0.0
      %1142 = vmatmul.mubr.f32.gmra.mrb[0].mxu0 %v937
      %v1143 = vpop.f32.mrb[0].mxu0
      %v1144 = vadd.f32 %v820, %v1143
      %v1145 = vpop.f32.mrb[0].mxu0
      %1146 = vmatprep.mubr.f32.mxu0 0.0
      %1147 = vmatmul.mubr.f32.gmra.mrb[0].mxu0 %v940
      %v1148 = vpop.f32.mrb[0].mxu0
      %v1149 = vadd.f32 %v825, %v1148
      %v1150 = vpop.f32.mrb[0].mxu0
      %1151 = vmatprep.mubr.f32.mxu0 0.0
      %1152 = vmatmul.mubr.f32.gmra.mrb[0].mxu0 %v943
      %v1153 = vpop.f32.mrb[0].mxu0
      %v1154 = vadd.f32 %v830, %v1153
      %v1155 = vpop.f32.mrb[0].mxu0
      %1156 = vmatprep.mubr.f32.mxu0 0.0
      %1157 = vmatmul.mubr.f32.gmra.mrb[0].mxu0 %v946
      %v1158 = vpop.f32.mrb[0].mxu0
      %v1159 = vadd.f32 %v835, %v1158
      %v1160 = vpop.f32.mrb[0].mxu0
      %1161 = vmatprep.mubr.f32.mxu0 0.0
      %1162 = vmatmul.mubr.f32.gmra.mrb[0].mxu0 %v949
      %v1163 = vpop.f32.mrb[0].mxu0
      %v1164 = vadd.f32 %v840, %v1163
      %v1165 = vpop.f32.mrb[0].mxu0
      %1166 = vmatprep.mubr.f32.mxu0 0.0
      %1167 = vmatmul.mubr.f32.gmra.mrb[0].mxu0 %v952
      %v1168 = vpop.f32.mrb[0].mxu0
      %v1169 = vadd.f32 %v845, %v1168
      %v1170 = vpop.f32.mrb[0].mxu0
      %1171 = vmatprep.mubr.f32.mxu0 0.0
      %1172 = vmatmul.mubr.f32.gmra.mrb[0].mxu0 %v955
      %v1173 = vpop.f32.mrb[0].mxu0
      %v1174 = vadd.f32 %v850, %v1173
      %v1175 = vpop.f32.mrb[0].mxu0
      %1176 = vmatprep.mubr.f32.mxu0 0.0
      %1177 = vmatmul.mubr.f32.gmra.mrb[0].mxu0 %v958
      %v1178 = vpop.f32.mrb[0].mxu0
      %v1179 = vadd.f32 %v855, %v1178
      %v1180 = vpop.f32.mrb[0].mxu0
      %1181 = vmatprep.mubr.f32.mxu0 0.0
      %1182 = vmatmul.mubr.f32.gmra.mrb[0].mxu0 %v961
      %v1183 = vpop.f32.mrb[0].mxu0
      %v1184 = vadd.f32 %v860, %v1183
      %v1185 = vpop.f32.mrb[0].mxu0
      %1186 = vmatprep.mubr.f32.mxu0 0.0
      %1187 = vmatmul.mubr.f32.gmra.mrb[0].mxu0 %v964
      %v1188 = vpop.f32.mrb[0].mxu0
      %v1189 = vadd.f32 %v865, %v1188
      %v1190 = vpop.f32.mrb[0].mxu0
      %1191 = vmatprep.mubr.f32.mxu0 0.0
      %1192 = vmatmul.mubr.f32.gmra.mrb[0].mxu0 %v967
      %v1193 = vpop.f32.mrb[0].mxu0
      %v1194 = vadd.f32 %v870, %v1193
      %v1195 = vpop.f32.mrb[0].mxu0
      %1196 = vdwg.mxu0
      %v1197 = vld [vmem:[#allocation2 + $0x2] sm:$0xff]
      %v1198 = vld [vmem:[#allocation2 + $0xa] sm:$0xff]
      %v1199 = vld [vmem:[#allocation2 + $0x1a] sm:$0xff]
      %v1200 = vld [vmem:[#allocation2 + $0x22] sm:$0xff]
      %v1201 = vld [vmem:[#allocation2 + $0x32] sm:$0xff]
      %v1202 = vld [vmem:[#allocation2 + $0x3a] sm:$0xff]
      %v1203 = vld [vmem:[#allocation2 + $0x4a] sm:$0xff]
      %v1204 = vld [vmem:[#allocation2 + $0x52] sm:$0xff]
      %v1205 = vld [vmem:[#allocation2 + $0x62] sm:$0xff]
      %v1206 = vld [vmem:[#allocation2 + $0x6a] sm:$0xff]
      %v1207 = vld [vmem:[#allocation2 + $0x7a] sm:$0xff]
      %v1208 = vld [vmem:[#allocation2 + $0x82] sm:$0xff]
      %v1209 = vld [vmem:[#allocation2 + $0x92] sm:$0xff]
      %v1210 = vld [vmem:[#allocation2 + $0x9a] sm:$0xff]
      %v1211 = vld [vmem:[#allocation2 + $0xaa] sm:$0xff]
      %v1212 = vld [vmem:[#allocation2 + $0xb2] sm:$0xff]
      %v1213 = vld [vmem:[#allocation2 + $0xc2] sm:$0xff]
      %v1214 = vld [vmem:[#allocation2 + $0xca] sm:$0xff]
      %v1215 = vld [vmem:[#allocation2 + $0xda] sm:$0xff]
      %v1216 = vld [vmem:[#allocation2 + $0xe2] sm:$0xff]
      %v1217 = vld [vmem:[#allocation2 + $0xf2] sm:$0xff]
      %v1218 = vld [vmem:[#allocation2 + $0xfa] sm:$0xff]
      %v1219 = vld [vmem:[#allocation2 + $0x10a] sm:$0xff]
      %v1220 = vld [vmem:[#allocation2 + $0x112] sm:$0xff]
      %v1221 = vld [vmem:[#allocation2 + $0x122] sm:$0xff]
      %v1222 = vld [vmem:[#allocation2 + $0x12a] sm:$0xff]
      %v1223 = vld [vmem:[#allocation2 + $0x13a] sm:$0xff]
      %v1224 = vld [vmem:[#allocation2 + $0x142] sm:$0xff]
      %v1225 = vld [vmem:[#allocation2 + $0x152] sm:$0xff]
      %v1226 = vld [vmem:[#allocation2 + $0x15a] sm:$0xff]
      %v1227 = vld [vmem:[#allocation2 + $0x16a] sm:$0xff]
      %v1228 = vld [vmem:[#allocation2 + $0x172] sm:$0xff]
      %s1229 = scalar_lea.vmem %s1, 8
      %v1230 = vld [vmem:[%s1229] sm:$0xf]
      %v1232 = vsel %vm406, %v1197, 0
      %v1235 = vsel %vm406, %v1198, 0
      %v1238 = vsel %vm406, %v1199, 0
      %v1241 = vsel %vm406, %v1200, 0
      %v1244 = vsel %vm406, %v1201, 0
      %v1247 = vsel %vm406, %v1202, 0
      %v1250 = vsel %vm406, %v1203, 0
      %v1253 = vsel %vm406, %v1204, 0
      %v1256 = vsel %vm406, %v1205, 0
      %v1259 = vsel %vm406, %v1206, 0
      %v1262 = vsel %vm406, %v1207, 0
      %v1265 = vsel %vm406, %v1208, 0
      %v1268 = vsel %vm406, %v1209, 0
      %v1271 = vsel %vm406, %v1210, 0
      %v1274 = vsel %vm406, %v1211, 0
      %v1277 = vsel %vm406, %v1212, 0
      %v1280 = vsel %vm406, %v1213, 0
      %v1283 = vsel %vm406, %v1214, 0
      %v1286 = vsel %vm406, %v1215, 0
      %v1289 = vsel %vm406, %v1216, 0
      %v1292 = vsel %vm406, %v1217, 0
      %v1295 = vsel %vm406, %v1218, 0
      %v1298 = vsel %vm406, %v1219, 0
      %v1301 = vsel %vm406, %v1220, 0
      %v1304 = vsel %vm406, %v1221, 0
      %v1307 = vsel %vm406, %v1222, 0
      %v1310 = vsel %vm406, %v1223, 0
      %v1313 = vsel %vm406, %v1224, 0
      %v1316 = vsel %vm406, %v1225, 0
      %v1319 = vsel %vm406, %v1226, 0
      %v1322 = vsel %vm406, %v1227, 0
      %v1325 = vsel %vm406, %v1228, 0
      %v1328 = vsel %vm644, %v1230, 0
      %1330 = vmatprep.subr.mxu0 0.0
      %1331 = vmatpush1.msra.mxu0 %v1328
      %1332 = vmatprep.subr.mxu0 0.0
      %1333 = vmatpush1.msra.mxu0 0.0
      %1334 = vmatprep.subr.mxu0 0.0
      %1335 = vmatpush1.msra.mxu0 0.0
      %1336 = vmatprep.subr.mxu0 0.0
      %1337 = vmatpush1.msra.mxu0 0.0
      %1338 = vmatprep.subr.mxu0 0.0
      %1339 = vmatpush1.msra.mxu0 0.0
      %1340 = vmatprep.subr.mxu0 0.0
      %1341 = vmatpush1.msra.mxu0 0.0
      %1342 = vmatprep.subr.mxu0 0.0
      %1343 = vmatpush1.msra.mxu0 0.0
      %1344 = vmatprep.subr.mxu0 0.0
      %1345 = vmatpush1.msra.mxu0 0.0
      %1346 = vmatprep.subr.mxu0 0.0
      %1347 = vmatpush1.msra.mxu0 0.0
      %1348 = vmatprep.subr.mxu0 0.0
      %1349 = vmatpush1.msra.mxu0 0.0
      %1350 = vmatprep.subr.mxu0 0.0
      %1351 = vmatpush1.msra.mxu0 0.0
      %1352 = vmatprep.subr.mxu0 0.0
      %1353 = vmatpush1.msra.mxu0 0.0
      %1354 = vmatprep.subr.mxu0 0.0
      %1355 = vmatpush1.msra.mxu0 0.0
      %1356 = vmatprep.subr.mxu0 0.0
      %1357 = vmatpush1.msra.mxu0 0.0
      %1358 = vmatprep.subr.mxu0 0.0
      %1359 = vmatpush1.msra.mxu0 0.0
      %1360 = vmatprep.subr.mxu0 0.0
      %1361 = vmatpush1.msra.mxu0 0.0
      %1362 = vmatprep.subr.mxu0 0.0
      %1363 = vmatpush1.msra.mxu0 0.0
      %1364 = vmatprep.subr.mxu0 0.0
      %1365 = vmatpush1.msra.mxu0 0.0
      %1366 = vmatprep.subr.mxu0 0.0
      %1367 = vmatpush1.msra.mxu0 0.0
      %1368 = vmatprep.subr.mxu0 0.0
      %1369 = vmatpush1.msra.mxu0 0.0
      %1370 = vmatprep.subr.mxu0 0.0
      %1371 = vmatpush1.msra.mxu0 0.0
      %1372 = vmatprep.subr.mxu0 0.0
      %1373 = vmatpush1.msra.mxu0 0.0
      %1374 = vmatprep.subr.mxu0 0.0
      %1375 = vmatpush1.msra.mxu0 0.0
      %1376 = vmatprep.subr.mxu0 0.0
      %1377 = vmatpush1.msra.mxu0 0.0
      %1378 = vmatprep.subr.mxu0 0.0
      %1379 = vmatpush1.msra.mxu0 0.0
      %1380 = vmatprep.subr.mxu0 0.0
      %1381 = vmatpush1.msra.mxu0 0.0
      %1382 = vmatprep.subr.mxu0 0.0
      %1383 = vmatpush1.msra.mxu0 0.0
      %1384 = vmatprep.subr.mxu0 0.0
      %1385 = vmatpush1.msra.mxu0 0.0
      %1386 = vmatprep.subr.mxu0 0.0
      %1387 = vmatpush1.msra.mxu0 0.0
      %1388 = vmatprep.subr.mxu0 0.0
      %1389 = vmatpush1.msra.mxu0 0.0
      %1390 = vmatprep.subr.mxu0 0.0
      %1391 = vmatpush1.msra.mxu0 0.0
      %1392 = vmatprep.subr.mxu0 0.0
      %1393 = vmatpush1.msra.mxu0 0.0
      %1394 = vmatprep.mubr.f32.mxu0 0.0
      %1395 = vmatmul.mubr.f32.gmra.mrb[0].mxu0 %v1232
      %v1396 = vpop.f32.mrb[0].mxu0
      %v1397 = vadd.f32 0.0, %v1396
      %v1398 = vpop.f32.mrb[0].mxu0
      %1399 = vmatprep.mubr.f32.mxu0 0.0
      %1400 = vmatmul.mubr.f32.gmra.mrb[0].mxu0 %v1235
      %v1401 = vpop.f32.mrb[0].mxu0
      %v1402 = vadd.f32 0.0, %v1401
      %v1403 = vpop.f32.mrb[0].mxu0
      %1404 = vmatprep.mubr.f32.mxu0 0.0
      %1405 = vmatmul.mubr.f32.gmra.mrb[0].mxu0 %v1238
      %v1406 = vpop.f32.mrb[0].mxu0
      %v1407 = vadd.f32 0.0, %v1406
      %v1408 = vpop.f32.mrb[0].mxu0
      %1409 = vmatprep.mubr.f32.mxu0 0.0
      %1410 = vmatmul.mubr.f32.gmra.mrb[0].mxu0 %v1241
      %v1411 = vpop.f32.mrb[0].mxu0
      %v1412 = vadd.f32 0.0, %v1411
      %v1413 = vpop.f32.mrb[0].mxu0
      %1414 = vmatprep.mubr.f32.mxu0 0.0
      %1415 = vmatmul.mubr.f32.gmra.mrb[0].mxu0 %v1244
      %v1416 = vpop.f32.mrb[0].mxu0
      %v1417 = vadd.f32 0.0, %v1416
      %v1418 = vpop.f32.mrb[0].mxu0
      %1419 = vmatprep.mubr.f32.mxu0 0.0
      %1420 = vmatmul.mubr.f32.gmra.mrb[0].mxu0 %v1247
      %v1421 = vpop.f32.mrb[0].mxu0
      %v1422 = vadd.f32 0.0, %v1421
      %v1423 = vpop.f32.mrb[0].mxu0
      %1424 = vmatprep.mubr.f32.mxu0 0.0
      %1425 = vmatmul.mubr.f32.gmra.mrb[0].mxu0 %v1250
      %v1426 = vpop.f32.mrb[0].mxu0
      %v1427 = vadd.f32 0.0, %v1426
      %v1428 = vpop.f32.mrb[0].mxu0
      %1429 = vmatprep.mubr.f32.mxu0 0.0
      %1430 = vmatmul.mubr.f32.gmra.mrb[0].mxu0 %v1253
      %v1431 = vpop.f32.mrb[0].mxu0
      %v1432 = vadd.f32 0.0, %v1431
      %v1433 = vpop.f32.mrb[0].mxu0
      %1434 = vmatprep.mubr.f32.mxu0 0.0
      %1435 = vmatmul.mubr.f32.gmra.mrb[0].mxu0 %v1256
      %v1436 = vpop.f32.mrb[0].mxu0
      %v1437 = vadd.f32 0.0, %v1436
      %v1438 = vpop.f32.mrb[0].mxu0
      %1439 = vmatprep.mubr.f32.mxu0 0.0
      %1440 = vmatmul.mubr.f32.gmra.mrb[0].mxu0 %v1259
      %v1441 = vpop.f32.mrb[0].mxu0
      %v1442 = vadd.f32 0.0, %v1441
      %v1443 = vpop.f32.mrb[0].mxu0
      %1444 = vmatprep.mubr.f32.mxu0 0.0
      %1445 = vmatmul.mubr.f32.gmra.mrb[0].mxu0 %v1262
      %v1446 = vpop.f32.mrb[0].mxu0
      %v1447 = vadd.f32 0.0, %v1446
      %v1448 = vpop.f32.mrb[0].mxu0
      %1449 = vmatprep.mubr.f32.mxu0 0.0
      %1450 = vmatmul.mubr.f32.gmra.mrb[0].mxu0 %v1265
      %v1451 = vpop.f32.mrb[0].mxu0
      %v1452 = vadd.f32 0.0, %v1451
      %v1453 = vpop.f32.mrb[0].mxu0
      %1454 = vmatprep.mubr.f32.mxu0 0.0
      %1455 = vmatmul.mubr.f32.gmra.mrb[0].mxu0 %v1268
      %v1456 = vpop.f32.mrb[0].mxu0
      %v1457 = vadd.f32 0.0, %v1456
      %v1458 = vpop.f32.mrb[0].mxu0
      %1459 = vmatprep.mubr.f32.mxu0 0.0
      %1460 = vmatmul.mubr.f32.gmra.mrb[0].mxu0 %v1271
      %v1461 = vpop.f32.mrb[0].mxu0
      %v1462 = vadd.f32 0.0, %v1461
      %v1463 = vpop.f32.mrb[0].mxu0
      %1464 = vmatprep.mubr.f32.mxu0 0.0
      %1465 = vmatmul.mubr.f32.gmra.mrb[0].mxu0 %v1274
      %v1466 = vpop.f32.mrb[0].mxu0
      %v1467 = vadd.f32 0.0, %v1466
      %v1468 = vpop.f32.mrb[0].mxu0
      %1469 = vmatprep.mubr.f32.mxu0 0.0
      %1470 = vmatmul.mubr.f32.gmra.mrb[0].mxu0 %v1277
      %v1471 = vpop.f32.mrb[0].mxu0
      %v1472 = vadd.f32 0.0, %v1471
      %v1473 = vpop.f32.mrb[0].mxu0
      %1474 = vmatprep.mubr.f32.mxu0 0.0
      %1475 = vmatmul.mubr.f32.gmra.mrb[0].mxu0 %v1280
      %v1476 = vpop.f32.mrb[0].mxu0
      %v1477 = vadd.f32 0.0, %v1476
      %v1478 = vpop.f32.mrb[0].mxu0
      %1479 = vmatprep.mubr.f32.mxu0 0.0
      %1480 = vmatmul.mubr.f32.gmra.mrb[0].mxu0 %v1283
      %v1481 = vpop.f32.mrb[0].mxu0
      %v1482 = vadd.f32 0.0, %v1481
      %v1483 = vpop.f32.mrb[0].mxu0
      %1484 = vmatprep.mubr.f32.mxu0 0.0
      %1485 = vmatmul.mubr.f32.gmra.mrb[0].mxu0 %v1286
      %v1486 = vpop.f32.mrb[0].mxu0
      %v1487 = vadd.f32 0.0, %v1486
      %v1488 = vpop.f32.mrb[0].mxu0
      %1489 = vmatprep.mubr.f32.mxu0 0.0
      %1490 = vmatmul.mubr.f32.gmra.mrb[0].mxu0 %v1289
      %v1491 = vpop.f32.mrb[0].mxu0
      %v1492 = vadd.f32 0.0, %v1491
      %v1493 = vpop.f32.mrb[0].mxu0
      %1494 = vmatprep.mubr.f32.mxu0 0.0
      %1495 = vmatmul.mubr.f32.gmra.mrb[0].mxu0 %v1292
      %v1496 = vpop.f32.mrb[0].mxu0
      %v1497 = vadd.f32 0.0, %v1496
      %v1498 = vpop.f32.mrb[0].mxu0
      %1499 = vmatprep.mubr.f32.mxu0 0.0
      %1500 = vmatmul.mubr.f32.gmra.mrb[0].mxu0 %v1295
      %v1501 = vpop.f32.mrb[0].mxu0
      %v1502 = vadd.f32 0.0, %v1501
      %v1503 = vpop.f32.mrb[0].mxu0
      %1504 = vmatprep.mubr.f32.mxu0 0.0
      %1505 = vmatmul.mubr.f32.gmra.mrb[0].mxu0 %v1298
      %v1506 = vpop.f32.mrb[0].mxu0
      %v1507 = vadd.f32 0.0, %v1506
      %v1508 = vpop.f32.mrb[0].mxu0
      %1509 = vmatprep.mubr.f32.mxu0 0.0
      %1510 = vmatmul.mubr.f32.gmra.mrb[0].mxu0 %v1301
      %v1511 = vpop.f32.mrb[0].mxu0
      %v1512 = vadd.f32 0.0, %v1511
      %v1513 = vpop.f32.mrb[0].mxu0
      %1514 = vmatprep.mubr.f32.mxu0 0.0
      %1515 = vmatmul.mubr.f32.gmra.mrb[0].mxu0 %v1304
      %v1516 = vpop.f32.mrb[0].mxu0
      %v1517 = vadd.f32 0.0, %v1516
      %v1518 = vpop.f32.mrb[0].mxu0
      %1519 = vmatprep.mubr.f32.mxu0 0.0
      %1520 = vmatmul.mubr.f32.gmra.mrb[0].mxu0 %v1307
      %v1521 = vpop.f32.mrb[0].mxu0
      %v1522 = vadd.f32 0.0, %v1521
      %v1523 = vpop.f32.mrb[0].mxu0
      %1524 = vmatprep.mubr.f32.mxu0 0.0
      %1525 = vmatmul.mubr.f32.gmra.mrb[0].mxu0 %v1310
      %v1526 = vpop.f32.mrb[0].mxu0
      %v1527 = vadd.f32 0.0, %v1526
      %v1528 = vpop.f32.mrb[0].mxu0
      %1529 = vmatprep.mubr.f32.mxu0 0.0
      %1530 = vmatmul.mubr.f32.gmra.mrb[0].mxu0 %v1313
      %v1531 = vpop.f32.mrb[0].mxu0
      %v1532 = vadd.f32 0.0, %v1531
      %v1533 = vpop.f32.mrb[0].mxu0
      %1534 = vmatprep.mubr.f32.mxu0 0.0
      %1535 = vmatmul.mubr.f32.gmra.mrb[0].mxu0 %v1316
      %v1536 = vpop.f32.mrb[0].mxu0
      %v1537 = vadd.f32 0.0, %v1536
      %v1538 = vpop.f32.mrb[0].mxu0
      %1539 = vmatprep.mubr.f32.mxu0 0.0
      %1540 = vmatmul.mubr.f32.gmra.mrb[0].mxu0 %v1319
      %v1541 = vpop.f32.mrb[0].mxu0
      %v1542 = vadd.f32 0.0, %v1541
      %v1543 = vpop.f32.mrb[0].mxu0
      %1544 = vmatprep.mubr.f32.mxu0 0.0
      %1545 = vmatmul.mubr.f32.gmra.mrb[0].mxu0 %v1322
      %v1546 = vpop.f32.mrb[0].mxu0
      %v1547 = vadd.f32 0.0, %v1546
      %v1548 = vpop.f32.mrb[0].mxu0
      %1549 = vmatprep.mubr.f32.mxu0 0.0
      %1550 = vmatmul.mubr.f32.gmra.mrb[0].mxu0 %v1325
      %v1551 = vpop.f32.mrb[0].mxu0
      %v1552 = vadd.f32 0.0, %v1551
      %v1553 = vpop.f32.mrb[0].mxu0
      %1554 = vdwg.mxu0
      %v1555 = vadd.f32 %v1039, %v1397
      %v1556 = vadd.f32 %v1044, %v1402
      %v1557 = vadd.f32 %v1049, %v1407
      %v1558 = vadd.f32 %v1054, %v1412
      %v1559 = vadd.f32 %v1059, %v1417
      %v1560 = vadd.f32 %v1064, %v1422
      %v1561 = vadd.f32 %v1069, %v1427
      %v1562 = vadd.f32 %v1074, %v1432
      %v1563 = vadd.f32 %v1079, %v1437
      %v1564 = vadd.f32 %v1084, %v1442
      %v1565 = vadd.f32 %v1089, %v1447
      %v1566 = vadd.f32 %v1094, %v1452
      %v1567 = vadd.f32 %v1099, %v1457
      %v1568 = vadd.f32 %v1104, %v1462
      %v1569 = vadd.f32 %v1109, %v1467
      %v1570 = vadd.f32 %v1114, %v1472
      %v1571 = vadd.f32 %v1119, %v1477
      %v1572 = vadd.f32 %v1124, %v1482
      %v1573 = vadd.f32 %v1129, %v1487
      %v1574 = vadd.f32 %v1134, %v1492
      %v1575 = vadd.f32 %v1139, %v1497
      %v1576 = vadd.f32 %v1144, %v1502
      %v1577 = vadd.f32 %v1149, %v1507
      %v1578 = vadd.f32 %v1154, %v1512
      %v1579 = vadd.f32 %v1159, %v1517
      %v1580 = vadd.f32 %v1164, %v1522
      %v1581 = vadd.f32 %v1169, %v1527
      %v1582 = vadd.f32 %v1174, %v1532
      %v1583 = vadd.f32 %v1179, %v1537
      %v1584 = vadd.f32 %v1184, %v1542
      %v1585 = vadd.f32 %v1189, %v1547
      %v1586 = vadd.f32 %v1194, %v1552
      %v1587 = vld [vmem:[%s415] sm:$0xff]
      %v1588 = vld [vmem:[%s415 + $0x8] sm:$0xff]
      %v1589 = vld [vmem:[%s415 + $0x18] sm:$0xff]
      %v1590 = vld [vmem:[%s415 + $0x20] sm:$0xff]
      %v1591 = vld [vmem:[%s415 + $0x30] sm:$0xff]
      %v1592 = vld [vmem:[%s415 + $0x38] sm:$0xff]
      %v1593 = vld [vmem:[%s415 + $0x48] sm:$0xff]
      %v1594 = vld [vmem:[%s415 + $0x50] sm:$0xff]
      %v1595 = vld [vmem:[%s415 + $0x60] sm:$0xff]
      %v1596 = vld [vmem:[%s415 + $0x68] sm:$0xff]
      %v1597 = vld [vmem:[%s415 + $0x78] sm:$0xff]
      %v1598 = vld [vmem:[%s415 + $0x80] sm:$0xff]
      %v1599 = vld [vmem:[%s415 + $0x90] sm:$0xff]
      %v1600 = vld [vmem:[%s415 + $0x98] sm:$0xff]
      %v1601 = vld [vmem:[%s415 + $0xa8] sm:$0xff]
      %v1602 = vld [vmem:[%s415 + $0xb0] sm:$0xff]
      %v1603 = vld [vmem:[%s415 + $0xc0] sm:$0xff]
      %v1604 = vld [vmem:[%s415 + $0xc8] sm:$0xff]
      %v1605 = vld [vmem:[%s415 + $0xd8] sm:$0xff]
      %v1606 = vld [vmem:[%s415 + $0xe0] sm:$0xff]
      %v1607 = vld [vmem:[%s415 + $0xf0] sm:$0xff]
      %v1608 = vld [vmem:[%s415 + $0xf8] sm:$0xff]
      %v1609 = vld [vmem:[%s415 + $0x108] sm:$0xff]
      %v1610 = vld [vmem:[%s415 + $0x110] sm:$0xff]
      %v1611 = vld [vmem:[%s415 + $0x120] sm:$0xff]
      %v1612 = vld [vmem:[%s415 + $0x128] sm:$0xff]
      %v1613 = vld [vmem:[%s415 + $0x138] sm:$0xff]
      %v1614 = vld [vmem:[%s415 + $0x140] sm:$0xff]
      %v1615 = vld [vmem:[%s415 + $0x150] sm:$0xff]
      %v1616 = vld [vmem:[%s415 + $0x158] sm:$0xff]
      %v1617 = vld [vmem:[%s415 + $0x168] sm:$0xff]
      %v1618 = vld [vmem:[%s415 + $0x170] sm:$0xff]
      %s1619 = scalar_lea.vmem %s1, 12
      %v1620 = vld [vmem:[%s1619] sm:$0xf]
      %v1622 = vsel %vm406, %v1587, 0
      %v1625 = vsel %vm406, %v1588, 0
      %v1628 = vsel %vm406, %v1589, 0
      %v1631 = vsel %vm406, %v1590, 0
      %v1634 = vsel %vm406, %v1591, 0
      %v1637 = vsel %vm406, %v1592, 0
      %v1640 = vsel %vm406, %v1593, 0
      %v1643 = vsel %vm406, %v1594, 0
      %v1646 = vsel %vm406, %v1595, 0
      %v1649 = vsel %vm406, %v1596, 0
      %v1652 = vsel %vm406, %v1597, 0
      %v1655 = vsel %vm406, %v1598, 0
      %v1658 = vsel %vm406, %v1599, 0
      %v1661 = vsel %vm406, %v1600, 0
      %v1664 = vsel %vm406, %v1601, 0
      %v1667 = vsel %vm406, %v1602, 0
      %v1670 = vsel %vm406, %v1603, 0
      %v1673 = vsel %vm406, %v1604, 0
      %v1676 = vsel %vm406, %v1605, 0
      %v1679 = vsel %vm406, %v1606, 0
      %v1682 = vsel %vm406, %v1607, 0
      %v1685 = vsel %vm406, %v1608, 0
      %v1688 = vsel %vm406, %v1609, 0
      %v1691 = vsel %vm406, %v1610, 0
      %v1694 = vsel %vm406, %v1611, 0
      %v1697 = vsel %vm406, %v1612, 0
      %v1700 = vsel %vm406, %v1613, 0
      %v1703 = vsel %vm406, %v1614, 0
      %v1706 = vsel %vm406, %v1615, 0
      %v1709 = vsel %vm406, %v1616, 0
      %v1712 = vsel %vm406, %v1617, 0
      %v1715 = vsel %vm406, %v1618, 0
      %v1718 = vsel %vm644, %v1620, 0
      %1720 = vmatprep.subr.mxu0 0.0
      %1721 = vmatpush1.msra.mxu0 %v1718
      %1722 = vmatprep.subr.mxu0 0.0
      %1723 = vmatpush1.msra.mxu0 0.0
      %1724 = vmatprep.subr.mxu0 0.0
      %1725 = vmatpush1.msra.mxu0 0.0
      %1726 = vmatprep.subr.mxu0 0.0
      %1727 = vmatpush1.msra.mxu0 0.0
      %1728 = vmatprep.subr.mxu0 0.0
      %1729 = vmatpush1.msra.mxu0 0.0
      %1730 = vmatprep.subr.mxu0 0.0
      %1731 = vmatpush1.msra.mxu0 0.0
      %1732 = vmatprep.subr.mxu0 0.0
      %1733 = vmatpush1.msra.mxu0 0.0
      %1734 = vmatprep.subr.mxu0 0.0
      %1735 = vmatpush1.msra.mxu0 0.0
      %1736 = vmatprep.subr.mxu0 0.0
      %1737 = vmatpush1.msra.mxu0 0.0
      %1738 = vmatprep.subr.mxu0 0.0
      %1739 = vmatpush1.msra.mxu0 0.0
      %1740 = vmatprep.subr.mxu0 0.0
      %1741 = vmatpush1.msra.mxu0 0.0
      %1742 = vmatprep.subr.mxu0 0.0
      %1743 = vmatpush1.msra.mxu0 0.0
      %1744 = vmatprep.subr.mxu0 0.0
      %1745 = vmatpush1.msra.mxu0 0.0
      %1746 = vmatprep.subr.mxu0 0.0
      %1747 = vmatpush1.msra.mxu0 0.0
      %1748 = vmatprep.subr.mxu0 0.0
      %1749 = vmatpush1.msra.mxu0 0.0
      %1750 = vmatprep.subr.mxu0 0.0
      %1751 = vmatpush1.msra.mxu0 0.0
      %1752 = vmatprep.subr.mxu0 0.0
      %1753 = vmatpush1.msra.mxu0 0.0
      %1754 = vmatprep.subr.mxu0 0.0
      %1755 = vmatpush1.msra.mxu0 0.0
      %1756 = vmatprep.subr.mxu0 0.0
      %1757 = vmatpush1.msra.mxu0 0.0
      %1758 = vmatprep.subr.mxu0 0.0
      %1759 = vmatpush1.msra.mxu0 0.0
      %1760 = vmatprep.subr.mxu0 0.0
      %1761 = vmatpush1.msra.mxu0 0.0
      %1762 = vmatprep.subr.mxu0 0.0
      %1763 = vmatpush1.msra.mxu0 0.0
      %1764 = vmatprep.subr.mxu0 0.0
      %1765 = vmatpush1.msra.mxu0 0.0
      %1766 = vmatprep.subr.mxu0 0.0
      %1767 = vmatpush1.msra.mxu0 0.0
      %1768 = vmatprep.subr.mxu0 0.0
      %1769 = vmatpush1.msra.mxu0 0.0
      %1770 = vmatprep.subr.mxu0 0.0
      %1771 = vmatpush1.msra.mxu0 0.0
      %1772 = vmatprep.subr.mxu0 0.0
      %1773 = vmatpush1.msra.mxu0 0.0
      %1774 = vmatprep.subr.mxu0 0.0
      %1775 = vmatpush1.msra.mxu0 0.0
      %1776 = vmatprep.subr.mxu0 0.0
      %1777 = vmatpush1.msra.mxu0 0.0
      %1778 = vmatprep.subr.mxu0 0.0
      %1779 = vmatpush1.msra.mxu0 0.0
      %1780 = vmatprep.subr.mxu0 0.0
      %1781 = vmatpush1.msra.mxu0 0.0
      %1782 = vmatprep.subr.mxu0 0.0
      %1783 = vmatpush1.msra.mxu0 0.0
      %1784 = vmatprep.mubr.f32.mxu0 0.0
      %1785 = vmatmul.mubr.f32.gmra.mrb[0].mxu0 %v1622
      %v1786 = vpop.f32.mrb[0].mxu0
      %v1787 = vadd.f32 0.0, %v1786
      %v1788 = vpop.f32.mrb[0].mxu0
      %1789 = vmatprep.mubr.f32.mxu0 0.0
      %1790 = vmatmul.mubr.f32.gmra.mrb[0].mxu0 %v1625
      %v1791 = vpop.f32.mrb[0].mxu0
      %v1792 = vadd.f32 0.0, %v1791
      %v1793 = vpop.f32.mrb[0].mxu0
      %1794 = vmatprep.mubr.f32.mxu0 0.0
      %1795 = vmatmul.mubr.f32.gmra.mrb[0].mxu0 %v1628
      %v1796 = vpop.f32.mrb[0].mxu0
      %v1797 = vadd.f32 0.0, %v1796
      %v1798 = vpop.f32.mrb[0].mxu0
      %1799 = vmatprep.mubr.f32.mxu0 0.0
      %1800 = vmatmul.mubr.f32.gmra.mrb[0].mxu0 %v1631
      %v1801 = vpop.f32.mrb[0].mxu0
      %v1802 = vadd.f32 0.0, %v1801
      %v1803 = vpop.f32.mrb[0].mxu0
      %1804 = vmatprep.mubr.f32.mxu0 0.0
      %1805 = vmatmul.mubr.f32.gmra.mrb[0].mxu0 %v1634
      %v1806 = vpop.f32.mrb[0].mxu0
      %v1807 = vadd.f32 0.0, %v1806
      %v1808 = vpop.f32.mrb[0].mxu0
      %1809 = vmatprep.mubr.f32.mxu0 0.0
      %1810 = vmatmul.mubr.f32.gmra.mrb[0].mxu0 %v1637
      %v1811 = vpop.f32.mrb[0].mxu0
      %v1812 = vadd.f32 0.0, %v1811
      %v1813 = vpop.f32.mrb[0].mxu0
      %1814 = vmatprep.mubr.f32.mxu0 0.0
      %1815 = vmatmul.mubr.f32.gmra.mrb[0].mxu0 %v1640
      %v1816 = vpop.f32.mrb[0].mxu0
      %v1817 = vadd.f32 0.0, %v1816
      %v1818 = vpop.f32.mrb[0].mxu0
      %1819 = vmatprep.mubr.f32.mxu0 0.0
      %1820 = vmatmul.mubr.f32.gmra.mrb[0].mxu0 %v1643
      %v1821 = vpop.f32.mrb[0].mxu0
      %v1822 = vadd.f32 0.0, %v1821
      %v1823 = vpop.f32.mrb[0].mxu0
      %1824 = vmatprep.mubr.f32.mxu0 0.0
      %1825 = vmatmul.mubr.f32.gmra.mrb[0].mxu0 %v1646
      %v1826 = vpop.f32.mrb[0].mxu0
      %v1827 = vadd.f32 0.0, %v1826
      %v1828 = vpop.f32.mrb[0].mxu0
      %1829 = vmatprep.mubr.f32.mxu0 0.0
      %1830 = vmatmul.mubr.f32.gmra.mrb[0].mxu0 %v1649
      %v1831 = vpop.f32.mrb[0].mxu0
      %v1832 = vadd.f32 0.0, %v1831
      %v1833 = vpop.f32.mrb[0].mxu0
      %1834 = vmatprep.mubr.f32.mxu0 0.0
      %1835 = vmatmul.mubr.f32.gmra.mrb[0].mxu0 %v1652
      %v1836 = vpop.f32.mrb[0].mxu0
      %v1837 = vadd.f32 0.0, %v1836
      %v1838 = vpop.f32.mrb[0].mxu0
      %1839 = vmatprep.mubr.f32.mxu0 0.0
      %1840 = vmatmul.mubr.f32.gmra.mrb[0].mxu0 %v1655
      %v1841 = vpop.f32.mrb[0].mxu0
      %v1842 = vadd.f32 0.0, %v1841
      %v1843 = vpop.f32.mrb[0].mxu0
      %1844 = vmatprep.mubr.f32.mxu0 0.0
      %1845 = vmatmul.mubr.f32.gmra.mrb[0].mxu0 %v1658
      %v1846 = vpop.f32.mrb[0].mxu0
      %v1847 = vadd.f32 0.0, %v1846
      %v1848 = vpop.f32.mrb[0].mxu0
      %1849 = vmatprep.mubr.f32.mxu0 0.0
      %1850 = vmatmul.mubr.f32.gmra.mrb[0].mxu0 %v1661
      %v1851 = vpop.f32.mrb[0].mxu0
      %v1852 = vadd.f32 0.0, %v1851
      %v1853 = vpop.f32.mrb[0].mxu0
      %1854 = vmatprep.mubr.f32.mxu0 0.0
      %1855 = vmatmul.mubr.f32.gmra.mrb[0].mxu0 %v1664
      %v1856 = vpop.f32.mrb[0].mxu0
      %v1857 = vadd.f32 0.0, %v1856
      %v1858 = vpop.f32.mrb[0].mxu0
      %1859 = vmatprep.mubr.f32.mxu0 0.0
      %1860 = vmatmul.mubr.f32.gmra.mrb[0].mxu0 %v1667
      %v1861 = vpop.f32.mrb[0].mxu0
      %v1862 = vadd.f32 0.0, %v1861
      %v1863 = vpop.f32.mrb[0].mxu0
      %1864 = vmatprep.mubr.f32.mxu0 0.0
      %1865 = vmatmul.mubr.f32.gmra.mrb[0].mxu0 %v1670
      %v1866 = vpop.f32.mrb[0].mxu0
      %v1867 = vadd.f32 0.0, %v1866
      %v1868 = vpop.f32.mrb[0].mxu0
      %1869 = vmatprep.mubr.f32.mxu0 0.0
      %1870 = vmatmul.mubr.f32.gmra.mrb[0].mxu0 %v1673
      %v1871 = vpop.f32.mrb[0].mxu0
      %v1872 = vadd.f32 0.0, %v1871
      %v1873 = vpop.f32.mrb[0].mxu0
      %1874 = vmatprep.mubr.f32.mxu0 0.0
      %1875 = vmatmul.mubr.f32.gmra.mrb[0].mxu0 %v1676
      %v1876 = vpop.f32.mrb[0].mxu0
      %v1877 = vadd.f32 0.0, %v1876
      %v1878 = vpop.f32.mrb[0].mxu0
      %1879 = vmatprep.mubr.f32.mxu0 0.0
      %1880 = vmatmul.mubr.f32.gmra.mrb[0].mxu0 %v1679
      %v1881 = vpop.f32.mrb[0].mxu0
      %v1882 = vadd.f32 0.0, %v1881
      %v1883 = vpop.f32.mrb[0].mxu0
      %1884 = vmatprep.mubr.f32.mxu0 0.0
      %1885 = vmatmul.mubr.f32.gmra.mrb[0].mxu0 %v1682
      %v1886 = vpop.f32.mrb[0].mxu0
      %v1887 = vadd.f32 0.0, %v1886
      %v1888 = vpop.f32.mrb[0].mxu0
      %1889 = vmatprep.mubr.f32.mxu0 0.0
      %1890 = vmatmul.mubr.f32.gmra.mrb[0].mxu0 %v1685
      %v1891 = vpop.f32.mrb[0].mxu0
      %v1892 = vadd.f32 0.0, %v1891
      %v1893 = vpop.f32.mrb[0].mxu0
      %1894 = vmatprep.mubr.f32.mxu0 0.0
      %1895 = vmatmul.mubr.f32.gmra.mrb[0].mxu0 %v1688
      %v1896 = vpop.f32.mrb[0].mxu0
      %v1897 = vadd.f32 0.0, %v1896
      %v1898 = vpop.f32.mrb[0].mxu0
      %1899 = vmatprep.mubr.f32.mxu0 0.0
      %1900 = vmatmul.mubr.f32.gmra.mrb[0].mxu0 %v1691
      %v1901 = vpop.f32.mrb[0].mxu0
      %v1902 = vadd.f32 0.0, %v1901
      %v1903 = vpop.f32.mrb[0].mxu0
      %1904 = vmatprep.mubr.f32.mxu0 0.0
      %1905 = vmatmul.mubr.f32.gmra.mrb[0].mxu0 %v1694
      %v1906 = vpop.f32.mrb[0].mxu0
      %v1907 = vadd.f32 0.0, %v1906
      %v1908 = vpop.f32.mrb[0].mxu0
      %1909 = vmatprep.mubr.f32.mxu0 0.0
      %1910 = vmatmul.mubr.f32.gmra.mrb[0].mxu0 %v1697
      %v1911 = vpop.f32.mrb[0].mxu0
      %v1912 = vadd.f32 0.0, %v1911
      %v1913 = vpop.f32.mrb[0].mxu0
      %1914 = vmatprep.mubr.f32.mxu0 0.0
      %1915 = vmatmul.mubr.f32.gmra.mrb[0].mxu0 %v1700
      %v1916 = vpop.f32.mrb[0].mxu0
      %v1917 = vadd.f32 0.0, %v1916
      %v1918 = vpop.f32.mrb[0].mxu0
      %1919 = vmatprep.mubr.f32.mxu0 0.0
      %1920 = vmatmul.mubr.f32.gmra.mrb[0].mxu0 %v1703
      %v1921 = vpop.f32.mrb[0].mxu0
      %v1922 = vadd.f32 0.0, %v1921
      %v1923 = vpop.f32.mrb[0].mxu0
      %1924 = vmatprep.mubr.f32.mxu0 0.0
      %1925 = vmatmul.mubr.f32.gmra.mrb[0].mxu0 %v1706
      %v1926 = vpop.f32.mrb[0].mxu0
      %v1927 = vadd.f32 0.0, %v1926
      %v1928 = vpop.f32.mrb[0].mxu0
      %1929 = vmatprep.mubr.f32.mxu0 0.0
      %1930 = vmatmul.mubr.f32.gmra.mrb[0].mxu0 %v1709
      %v1931 = vpop.f32.mrb[0].mxu0
      %v1932 = vadd.f32 0.0, %v1931
      %v1933 = vpop.f32.mrb[0].mxu0
      %1934 = vmatprep.mubr.f32.mxu0 0.0
      %1935 = vmatmul.mubr.f32.gmra.mrb[0].mxu0 %v1712
      %v1936 = vpop.f32.mrb[0].mxu0
      %v1937 = vadd.f32 0.0, %v1936
      %v1938 = vpop.f32.mrb[0].mxu0
      %1939 = vmatprep.mubr.f32.mxu0 0.0
      %1940 = vmatmul.mubr.f32.gmra.mrb[0].mxu0 %v1715
      %v1941 = vpop.f32.mrb[0].mxu0
      %v1942 = vadd.f32 0.0, %v1941
      %v1943 = vpop.f32.mrb[0].mxu0
      %1944 = vdwg.mxu0
      %v1945 = vadd.f32 %v1555, %v1787
      %v1946 = vadd.f32 %v1556, %v1792
      %v1947 = vadd.f32 %v1557, %v1797
      %v1948 = vadd.f32 %v1558, %v1802
      %v1949 = vadd.f32 %v1559, %v1807
      %v1950 = vadd.f32 %v1560, %v1812
      %v1951 = vadd.f32 %v1561, %v1817
      %v1952 = vadd.f32 %v1562, %v1822
      %v1953 = vadd.f32 %v1563, %v1827
      %v1954 = vadd.f32 %v1564, %v1832
      %v1955 = vadd.f32 %v1565, %v1837
      %v1956 = vadd.f32 %v1566, %v1842
      %v1957 = vadd.f32 %v1567, %v1847
      %v1958 = vadd.f32 %v1568, %v1852
      %v1959 = vadd.f32 %v1569, %v1857
      %v1960 = vadd.f32 %v1570, %v1862
      %v1961 = vadd.f32 %v1571, %v1867
      %v1962 = vadd.f32 %v1572, %v1872
      %v1963 = vadd.f32 %v1573, %v1877
      %v1964 = vadd.f32 %v1574, %v1882
      %v1965 = vadd.f32 %v1575, %v1887
      %v1966 = vadd.f32 %v1576, %v1892
      %v1967 = vadd.f32 %v1577, %v1897
      %v1968 = vadd.f32 %v1578, %v1902
      %v1969 = vadd.f32 %v1579, %v1907
      %v1970 = vadd.f32 %v1580, %v1912
      %v1971 = vadd.f32 %v1581, %v1917
      %v1972 = vadd.f32 %v1582, %v1922
      %v1973 = vadd.f32 %v1583, %v1927
      %v1974 = vadd.f32 %v1584, %v1932
      %v1975 = vadd.f32 %v1585, %v1937
      %v1976 = vadd.f32 %v1586, %v1942
      %v1977 = vld [vmem:[%s415 + $0x1] sm:$0xff]
      %v1978 = vld [vmem:[%s415 + $0x9] sm:$0xff]
      %v1979 = vld [vmem:[%s415 + $0x19] sm:$0xff]
      %v1980 = vld [vmem:[%s415 + $0x21] sm:$0xff]
      %v1981 = vld [vmem:[%s415 + $0x31] sm:$0xff]
      %v1982 = vld [vmem:[%s415 + $0x39] sm:$0xff]
      %v1983 = vld [vmem:[%s415 + $0x49] sm:$0xff]
      %v1984 = vld [vmem:[%s415 + $0x51] sm:$0xff]
      %v1985 = vld [vmem:[%s415 + $0x61] sm:$0xff]
      %v1986 = vld [vmem:[%s415 + $0x69] sm:$0xff]
      %v1987 = vld [vmem:[%s415 + $0x79] sm:$0xff]
      %v1988 = vld [vmem:[%s415 + $0x81] sm:$0xff]
      %v1989 = vld [vmem:[%s415 + $0x91] sm:$0xff]
      %v1990 = vld [vmem:[%s415 + $0x99] sm:$0xff]
      %v1991 = vld [vmem:[%s415 + $0xa9] sm:$0xff]
      %v1992 = vld [vmem:[%s415 + $0xb1] sm:$0xff]
      %v1993 = vld [vmem:[%s415 + $0xc1] sm:$0xff]
      %v1994 = vld [vmem:[%s415 + $0xc9] sm:$0xff]
      %v1995 = vld [vmem:[%s415 + $0xd9] sm:$0xff]
      %v1996 = vld [vmem:[%s415 + $0xe1] sm:$0xff]
      %v1997 = vld [vmem:[%s415 + $0xf1] sm:$0xff]
      %v1998 = vld [vmem:[%s415 + $0xf9] sm:$0xff]
      %v1999 = vld [vmem:[%s415 + $0x109] sm:$0xff]
      %v2000 = vld [vmem:[%s415 + $0x111] sm:$0xff]
      %v2001 = vld [vmem:[%s415 + $0x121] sm:$0xff]
      %v2002 = vld [vmem:[%s415 + $0x129] sm:$0xff]
      %v2003 = vld [vmem:[%s415 + $0x139] sm:$0xff]
      %v2004 = vld [vmem:[%s415 + $0x141] sm:$0xff]
      %v2005 = vld [vmem:[%s415 + $0x151] sm:$0xff]
      %v2006 = vld [vmem:[%s415 + $0x159] sm:$0xff]
      %v2007 = vld [vmem:[%s415 + $0x169] sm:$0xff]
      %v2008 = vld [vmem:[%s415 + $0x171] sm:$0xff]
      %s2009 = scalar_lea.vmem %s1, 16
      %v2010 = vld [vmem:[%s2009] sm:$0xf]
      %v2012 = vsel %vm406, %v1977, 0
      %v2015 = vsel %vm406, %v1978, 0
      %v2018 = vsel %vm406, %v1979, 0
      %v2021 = vsel %vm406, %v1980, 0
      %v2024 = vsel %vm406, %v1981, 0
      %v2027 = vsel %vm406, %v1982, 0
      %v2030 = vsel %vm406, %v1983, 0
      %v2033 = vsel %vm406, %v1984, 0
      %v2036 = vsel %vm406, %v1985, 0
      %v2039 = vsel %vm406, %v1986, 0
      %v2042 = vsel %vm406, %v1987, 0
      %v2045 = vsel %vm406, %v1988, 0
      %v2048 = vsel %vm406, %v1989, 0
      %v2051 = vsel %vm406, %v1990, 0
      %v2054 = vsel %vm406, %v1991, 0
      %v2057 = vsel %vm406, %v1992, 0
      %v2060 = vsel %vm406, %v1993, 0
      %v2063 = vsel %vm406, %v1994, 0
      %v2066 = vsel %vm406, %v1995, 0
      %v2069 = vsel %vm406, %v1996, 0
      %v2072 = vsel %vm406, %v1997, 0
      %v2075 = vsel %vm406, %v1998, 0
      %v2078 = vsel %vm406, %v1999, 0
      %v2081 = vsel %vm406, %v2000, 0
      %v2084 = vsel %vm406, %v2001, 0
      %v2087 = vsel %vm406, %v2002, 0
      %v2090 = vsel %vm406, %v2003, 0
      %v2093 = vsel %vm406, %v2004, 0
      %v2096 = vsel %vm406, %v2005, 0
      %v2099 = vsel %vm406, %v2006, 0
      %v2102 = vsel %vm406, %v2007, 0
      %v2105 = vsel %vm406, %v2008, 0
      %v2108 = vsel %vm644, %v2010, 0
      %2110 = vmatprep.subr.mxu0 0.0
      %2111 = vmatpush1.msra.mxu0 %v2108
      %2112 = vmatprep.subr.mxu0 0.0
      %2113 = vmatpush1.msra.mxu0 0.0
      %2114 = vmatprep.subr.mxu0 0.0
      %2115 = vmatpush1.msra.mxu0 0.0
      %2116 = vmatprep.subr.mxu0 0.0
      %2117 = vmatpush1.msra.mxu0 0.0
      %2118 = vmatprep.subr.mxu0 0.0
      %2119 = vmatpush1.msra.mxu0 0.0
      %2120 = vmatprep.subr.mxu0 0.0
      %2121 = vmatpush1.msra.mxu0 0.0
      %2122 = vmatprep.subr.mxu0 0.0
      %2123 = vmatpush1.msra.mxu0 0.0
      %2124 = vmatprep.subr.mxu0 0.0
      %2125 = vmatpush1.msra.mxu0 0.0
      %2126 = vmatprep.subr.mxu0 0.0
      %2127 = vmatpush1.msra.mxu0 0.0
      %2128 = vmatprep.subr.mxu0 0.0
      %2129 = vmatpush1.msra.mxu0 0.0
      %2130 = vmatprep.subr.mxu0 0.0
      %2131 = vmatpush1.msra.mxu0 0.0
      %2132 = vmatprep.subr.mxu0 0.0
      %2133 = vmatpush1.msra.mxu0 0.0
      %2134 = vmatprep.subr.mxu0 0.0
      %2135 = vmatpush1.msra.mxu0 0.0
      %2136 = vmatprep.subr.mxu0 0.0
      %2137 = vmatpush1.msra.mxu0 0.0
      %2138 = vmatprep.subr.mxu0 0.0
      %2139 = vmatpush1.msra.mxu0 0.0
      %2140 = vmatprep.subr.mxu0 0.0
      %2141 = vmatpush1.msra.mxu0 0.0
      %2142 = vmatprep.subr.mxu0 0.0
      %2143 = vmatpush1.msra.mxu0 0.0
      %2144 = vmatprep.subr.mxu0 0.0
      %2145 = vmatpush1.msra.mxu0 0.0
      %2146 = vmatprep.subr.mxu0 0.0
      %2147 = vmatpush1.msra.mxu0 0.0
      %2148 = vmatprep.subr.mxu0 0.0
      %2149 = vmatpush1.msra.mxu0 0.0
      %2150 = vmatprep.subr.mxu0 0.0
      %2151 = vmatpush1.msra.mxu0 0.0
      %2152 = vmatprep.subr.mxu0 0.0
      %2153 = vmatpush1.msra.mxu0 0.0
      %2154 = vmatprep.subr.mxu0 0.0
      %2155 = vmatpush1.msra.mxu0 0.0
      %2156 = vmatprep.subr.mxu0 0.0
      %2157 = vmatpush1.msra.mxu0 0.0
      %2158 = vmatprep.subr.mxu0 0.0
      %2159 = vmatpush1.msra.mxu0 0.0
      %2160 = vmatprep.subr.mxu0 0.0
      %2161 = vmatpush1.msra.mxu0 0.0
      %2162 = vmatprep.subr.mxu0 0.0
      %2163 = vmatpush1.msra.mxu0 0.0
      %2164 = vmatprep.subr.mxu0 0.0
      %2165 = vmatpush1.msra.mxu0 0.0
      %2166 = vmatprep.subr.mxu0 0.0
      %2167 = vmatpush1.msra.mxu0 0.0
      %2168 = vmatprep.subr.mxu0 0.0
      %2169 = vmatpush1.msra.mxu0 0.0
      %2170 = vmatprep.subr.mxu0 0.0
      %2171 = vmatpush1.msra.mxu0 0.0
      %2172 = vmatprep.subr.mxu0 0.0
      %2173 = vmatpush1.msra.mxu0 0.0
      %2174 = vmatprep.mubr.f32.mxu0 0.0
      %2175 = vmatmul.mubr.f32.gmra.mrb[0].mxu0 %v2012
      %v2176 = vpop.f32.mrb[0].mxu0
      %v2177 = vadd.f32 0.0, %v2176
      %v2178 = vpop.f32.mrb[0].mxu0
      %2179 = vmatprep.mubr.f32.mxu0 0.0
      %2180 = vmatmul.mubr.f32.gmra.mrb[0].mxu0 %v2015
      %v2181 = vpop.f32.mrb[0].mxu0
      %v2182 = vadd.f32 0.0, %v2181
      %v2183 = vpop.f32.mrb[0].mxu0
      %2184 = vmatprep.mubr.f32.mxu0 0.0
      %2185 = vmatmul.mubr.f32.gmra.mrb[0].mxu0 %v2018
      %v2186 = vpop.f32.mrb[0].mxu0
      %v2187 = vadd.f32 0.0, %v2186
      %v2188 = vpop.f32.mrb[0].mxu0
      %2189 = vmatprep.mubr.f32.mxu0 0.0
      %2190 = vmatmul.mubr.f32.gmra.mrb[0].mxu0 %v2021
      %v2191 = vpop.f32.mrb[0].mxu0
      %v2192 = vadd.f32 0.0, %v2191
      %v2193 = vpop.f32.mrb[0].mxu0
      %2194 = vmatprep.mubr.f32.mxu0 0.0
      %2195 = vmatmul.mubr.f32.gmra.mrb[0].mxu0 %v2024
      %v2196 = vpop.f32.mrb[0].mxu0
      %v2197 = vadd.f32 0.0, %v2196
      %v2198 = vpop.f32.mrb[0].mxu0
      %2199 = vmatprep.mubr.f32.mxu0 0.0
      %2200 = vmatmul.mubr.f32.gmra.mrb[0].mxu0 %v2027
      %v2201 = vpop.f32.mrb[0].mxu0
      %v2202 = vadd.f32 0.0, %v2201
      %v2203 = vpop.f32.mrb[0].mxu0
      %2204 = vmatprep.mubr.f32.mxu0 0.0
      %2205 = vmatmul.mubr.f32.gmra.mrb[0].mxu0 %v2030
      %v2206 = vpop.f32.mrb[0].mxu0
      %v2207 = vadd.f32 0.0, %v2206
      %v2208 = vpop.f32.mrb[0].mxu0
      %2209 = vmatprep.mubr.f32.mxu0 0.0
      %2210 = vmatmul.mubr.f32.gmra.mrb[0].mxu0 %v2033
      %v2211 = vpop.f32.mrb[0].mxu0
      %v2212 = vadd.f32 0.0, %v2211
      %v2213 = vpop.f32.mrb[0].mxu0
      %2214 = vmatprep.mubr.f32.mxu0 0.0
      %2215 = vmatmul.mubr.f32.gmra.mrb[0].mxu0 %v2036
      %v2216 = vpop.f32.mrb[0].mxu0
      %v2217 = vadd.f32 0.0, %v2216
      %v2218 = vpop.f32.mrb[0].mxu0
      %2219 = vmatprep.mubr.f32.mxu0 0.0
      %2220 = vmatmul.mubr.f32.gmra.mrb[0].mxu0 %v2039
      %v2221 = vpop.f32.mrb[0].mxu0
      %v2222 = vadd.f32 0.0, %v2221
      %v2223 = vpop.f32.mrb[0].mxu0
      %2224 = vmatprep.mubr.f32.mxu0 0.0
      %2225 = vmatmul.mubr.f32.gmra.mrb[0].mxu0 %v2042
      %v2226 = vpop.f32.mrb[0].mxu0
      %v2227 = vadd.f32 0.0, %v2226
      %v2228 = vpop.f32.mrb[0].mxu0
      %2229 = vmatprep.mubr.f32.mxu0 0.0
      %2230 = vmatmul.mubr.f32.gmra.mrb[0].mxu0 %v2045
      %v2231 = vpop.f32.mrb[0].mxu0
      %v2232 = vadd.f32 0.0, %v2231
      %v2233 = vpop.f32.mrb[0].mxu0
      %2234 = vmatprep.mubr.f32.mxu0 0.0
      %2235 = vmatmul.mubr.f32.gmra.mrb[0].mxu0 %v2048
      %v2236 = vpop.f32.mrb[0].mxu0
      %v2237 = vadd.f32 0.0, %v2236
      %v2238 = vpop.f32.mrb[0].mxu0
      %2239 = vmatprep.mubr.f32.mxu0 0.0
      %2240 = vmatmul.mubr.f32.gmra.mrb[0].mxu0 %v2051
      %v2241 = vpop.f32.mrb[0].mxu0
      %v2242 = vadd.f32 0.0, %v2241
      %v2243 = vpop.f32.mrb[0].mxu0
      %2244 = vmatprep.mubr.f32.mxu0 0.0
      %2245 = vmatmul.mubr.f32.gmra.mrb[0].mxu0 %v2054
      %v2246 = vpop.f32.mrb[0].mxu0
      %v2247 = vadd.f32 0.0, %v2246
      %v2248 = vpop.f32.mrb[0].mxu0
      %2249 = vmatprep.mubr.f32.mxu0 0.0
      %2250 = vmatmul.mubr.f32.gmra.mrb[0].mxu0 %v2057
      %v2251 = vpop.f32.mrb[0].mxu0
      %v2252 = vadd.f32 0.0, %v2251
      %v2253 = vpop.f32.mrb[0].mxu0
      %2254 = vmatprep.mubr.f32.mxu0 0.0
      %2255 = vmatmul.mubr.f32.gmra.mrb[0].mxu0 %v2060
      %v2256 = vpop.f32.mrb[0].mxu0
      %v2257 = vadd.f32 0.0, %v2256
      %v2258 = vpop.f32.mrb[0].mxu0
      %2259 = vmatprep.mubr.f32.mxu0 0.0
      %2260 = vmatmul.mubr.f32.gmra.mrb[0].mxu0 %v2063
      %v2261 = vpop.f32.mrb[0].mxu0
      %v2262 = vadd.f32 0.0, %v2261
      %v2263 = vpop.f32.mrb[0].mxu0
      %2264 = vmatprep.mubr.f32.mxu0 0.0
      %2265 = vmatmul.mubr.f32.gmra.mrb[0].mxu0 %v2066
      %v2266 = vpop.f32.mrb[0].mxu0
      %v2267 = vadd.f32 0.0, %v2266
      %v2268 = vpop.f32.mrb[0].mxu0
      %2269 = vmatprep.mubr.f32.mxu0 0.0
      %2270 = vmatmul.mubr.f32.gmra.mrb[0].mxu0 %v2069
      %v2271 = vpop.f32.mrb[0].mxu0
      %v2272 = vadd.f32 0.0, %v2271
      %v2273 = vpop.f32.mrb[0].mxu0
      %2274 = vmatprep.mubr.f32.mxu0 0.0
      %2275 = vmatmul.mubr.f32.gmra.mrb[0].mxu0 %v2072
      %v2276 = vpop.f32.mrb[0].mxu0
      %v2277 = vadd.f32 0.0, %v2276
      %v2278 = vpop.f32.mrb[0].mxu0
      %2279 = vmatprep.mubr.f32.mxu0 0.0
      %2280 = vmatmul.mubr.f32.gmra.mrb[0].mxu0 %v2075
      %v2281 = vpop.f32.mrb[0].mxu0
      %v2282 = vadd.f32 0.0, %v2281
      %v2283 = vpop.f32.mrb[0].mxu0
      %2284 = vmatprep.mubr.f32.mxu0 0.0
      %2285 = vmatmul.mubr.f32.gmra.mrb[0].mxu0 %v2078
      %v2286 = vpop.f32.mrb[0].mxu0
      %v2287 = vadd.f32 0.0, %v2286
      %v2288 = vpop.f32.mrb[0].mxu0
      %2289 = vmatprep.mubr.f32.mxu0 0.0
      %2290 = vmatmul.mubr.f32.gmra.mrb[0].mxu0 %v2081
      %v2291 = vpop.f32.mrb[0].mxu0
      %v2292 = vadd.f32 0.0, %v2291
      %v2293 = vpop.f32.mrb[0].mxu0
      %2294 = vmatprep.mubr.f32.mxu0 0.0
      %2295 = vmatmul.mubr.f32.gmra.mrb[0].mxu0 %v2084
      %v2296 = vpop.f32.mrb[0].mxu0
      %v2297 = vadd.f32 0.0, %v2296
      %v2298 = vpop.f32.mrb[0].mxu0
      %2299 = vmatprep.mubr.f32.mxu0 0.0
      %2300 = vmatmul.mubr.f32.gmra.mrb[0].mxu0 %v2087
      %v2301 = vpop.f32.mrb[0].mxu0
      %v2302 = vadd.f32 0.0, %v2301
      %v2303 = vpop.f32.mrb[0].mxu0
      %2304 = vmatprep.mubr.f32.mxu0 0.0
      %2305 = vmatmul.mubr.f32.gmra.mrb[0].mxu0 %v2090
      %v2306 = vpop.f32.mrb[0].mxu0
      %v2307 = vadd.f32 0.0, %v2306
      %v2308 = vpop.f32.mrb[0].mxu0
      %2309 = vmatprep.mubr.f32.mxu0 0.0
      %2310 = vmatmul.mubr.f32.gmra.mrb[0].mxu0 %v2093
      %v2311 = vpop.f32.mrb[0].mxu0
      %v2312 = vadd.f32 0.0, %v2311
      %v2313 = vpop.f32.mrb[0].mxu0
      %2314 = vmatprep.mubr.f32.mxu0 0.0
      %2315 = vmatmul.mubr.f32.gmra.mrb[0].mxu0 %v2096
      %v2316 = vpop.f32.mrb[0].mxu0
      %v2317 = vadd.f32 0.0, %v2316
      %v2318 = vpop.f32.mrb[0].mxu0
      %2319 = vmatprep.mubr.f32.mxu0 0.0
      %2320 = vmatmul.mubr.f32.gmra.mrb[0].mxu0 %v2099
      %v2321 = vpop.f32.mrb[0].mxu0
      %v2322 = vadd.f32 0.0, %v2321
      %v2323 = vpop.f32.mrb[0].mxu0
      %2324 = vmatprep.mubr.f32.mxu0 0.0
      %2325 = vmatmul.mubr.f32.gmra.mrb[0].mxu0 %v2102
      %v2326 = vpop.f32.mrb[0].mxu0
      %v2327 = vadd.f32 0.0, %v2326
      %v2328 = vpop.f32.mrb[0].mxu0
      %2329 = vmatprep.mubr.f32.mxu0 0.0
      %2330 = vmatmul.mubr.f32.gmra.mrb[0].mxu0 %v2105
      %v2331 = vpop.f32.mrb[0].mxu0
      %v2332 = vadd.f32 0.0, %v2331
      %v2333 = vpop.f32.mrb[0].mxu0
      %2334 = vdwg.mxu0
      %v2335 = vadd.f32 %v1945, %v2177
      %v2336 = vadd.f32 %v1946, %v2182
      %v2337 = vadd.f32 %v1947, %v2187
      %v2338 = vadd.f32 %v1948, %v2192
      %v2339 = vadd.f32 %v1949, %v2197
      %v2340 = vadd.f32 %v1950, %v2202
      %v2341 = vadd.f32 %v1951, %v2207
      %v2342 = vadd.f32 %v1952, %v2212
      %v2343 = vadd.f32 %v1953, %v2217
      %v2344 = vadd.f32 %v1954, %v2222
      %v2345 = vadd.f32 %v1955, %v2227
      %v2346 = vadd.f32 %v1956, %v2232
      %v2347 = vadd.f32 %v1957, %v2237
      %v2348 = vadd.f32 %v1958, %v2242
      %v2349 = vadd.f32 %v1959, %v2247
      %v2350 = vadd.f32 %v1960, %v2252
      %v2351 = vadd.f32 %v1961, %v2257
      %v2352 = vadd.f32 %v1962, %v2262
      %v2353 = vadd.f32 %v1963, %v2267
      %v2354 = vadd.f32 %v1964, %v2272
      %v2355 = vadd.f32 %v1965, %v2277
      %v2356 = vadd.f32 %v1966, %v2282
      %v2357 = vadd.f32 %v1967, %v2287
      %v2358 = vadd.f32 %v1968, %v2292
      %v2359 = vadd.f32 %v1969, %v2297
      %v2360 = vadd.f32 %v1970, %v2302
      %v2361 = vadd.f32 %v1971, %v2307
      %v2362 = vadd.f32 %v1972, %v2312
      %v2363 = vadd.f32 %v1973, %v2317
      %v2364 = vadd.f32 %v1974, %v2322
      %v2365 = vadd.f32 %v1975, %v2327
      %v2366 = vadd.f32 %v1976, %v2332
      %v2367 = vld [vmem:[%s415 + $0x2] sm:$0xff]
      %v2368 = vld [vmem:[%s415 + $0xa] sm:$0xff]
      %v2369 = vld [vmem:[%s415 + $0x1a] sm:$0xff]
      %v2370 = vld [vmem:[%s415 + $0x22] sm:$0xff]
      %v2371 = vld [vmem:[%s415 + $0x32] sm:$0xff]
      %v2372 = vld [vmem:[%s415 + $0x3a] sm:$0xff]
      %v2373 = vld [vmem:[%s415 + $0x4a] sm:$0xff]
      %v2374 = vld [vmem:[%s415 + $0x52] sm:$0xff]
      %v2375 = vld [vmem:[%s415 + $0x62] sm:$0xff]
      %v2376 = vld [vmem:[%s415 + $0x6a] sm:$0xff]
      %v2377 = vld [vmem:[%s415 + $0x7a] sm:$0xff]
      %v2378 = vld [vmem:[%s415 + $0x82] sm:$0xff]
      %v2379 = vld [vmem:[%s415 + $0x92] sm:$0xff]
      %v2380 = vld [vmem:[%s415 + $0x9a] sm:$0xff]
      %v2381 = vld [vmem:[%s415 + $0xaa] sm:$0xff]
      %v2382 = vld [vmem:[%s415 + $0xb2] sm:$0xff]
      %v2383 = vld [vmem:[%s415 + $0xc2] sm:$0xff]
      %v2384 = vld [vmem:[%s415 + $0xca] sm:$0xff]
      %v2385 = vld [vmem:[%s415 + $0xda] sm:$0xff]
      %v2386 = vld [vmem:[%s415 + $0xe2] sm:$0xff]
      %v2387 = vld [vmem:[%s415 + $0xf2] sm:$0xff]
      %v2388 = vld [vmem:[%s415 + $0xfa] sm:$0xff]
      %v2389 = vld [vmem:[%s415 + $0x10a] sm:$0xff]
      %v2390 = vld [vmem:[%s415 + $0x112] sm:$0xff]
      %v2391 = vld [vmem:[%s415 + $0x122] sm:$0xff]
      %v2392 = vld [vmem:[%s415 + $0x12a] sm:$0xff]
      %v2393 = vld [vmem:[%s415 + $0x13a] sm:$0xff]
      %v2394 = vld [vmem:[%s415 + $0x142] sm:$0xff]
      %v2395 = vld [vmem:[%s415 + $0x152] sm:$0xff]
      %v2396 = vld [vmem:[%s415 + $0x15a] sm:$0xff]
      %v2397 = vld [vmem:[%s415 + $0x16a] sm:$0xff]
      %v2398 = vld [vmem:[%s415 + $0x172] sm:$0xff]
      %s2399 = scalar_lea.vmem %s1, 20
      %v2400 = vld [vmem:[%s2399] sm:$0xf]
      %v2402 = vsel %vm406, %v2367, 0
      %v2405 = vsel %vm406, %v2368, 0
      %v2408 = vsel %vm406, %v2369, 0
      %v2411 = vsel %vm406, %v2370, 0
      %v2414 = vsel %vm406, %v2371, 0
      %v2417 = vsel %vm406, %v2372, 0
      %v2420 = vsel %vm406, %v2373, 0
      %v2423 = vsel %vm406, %v2374, 0
      %v2426 = vsel %vm406, %v2375, 0
      %v2429 = vsel %vm406, %v2376, 0
      %v2432 = vsel %vm406, %v2377, 0
      %v2435 = vsel %vm406, %v2378, 0
      %v2438 = vsel %vm406, %v2379, 0
      %v2441 = vsel %vm406, %v2380, 0
      %v2444 = vsel %vm406, %v2381, 0
      %v2447 = vsel %vm406, %v2382, 0
      %v2450 = vsel %vm406, %v2383, 0
      %v2453 = vsel %vm406, %v2384, 0
      %v2456 = vsel %vm406, %v2385, 0
      %v2459 = vsel %vm406, %v2386, 0
      %v2462 = vsel %vm406, %v2387, 0
      %v2465 = vsel %vm406, %v2388, 0
      %v2468 = vsel %vm406, %v2389, 0
      %v2471 = vsel %vm406, %v2390, 0
      %v2474 = vsel %vm406, %v2391, 0
      %v2477 = vsel %vm406, %v2392, 0
      %v2480 = vsel %vm406, %v2393, 0
      %v2483 = vsel %vm406, %v2394, 0
      %v2486 = vsel %vm406, %v2395, 0
      %v2489 = vsel %vm406, %v2396, 0
      %v2492 = vsel %vm406, %v2397, 0
      %v2495 = vsel %vm406, %v2398, 0
      %v2498 = vsel %vm644, %v2400, 0
      %2500 = vmatprep.subr.mxu0 0.0
      %2501 = vmatpush1.msra.mxu0 %v2498
      %2502 = vmatprep.subr.mxu0 0.0
      %2503 = vmatpush1.msra.mxu0 0.0
      %2504 = vmatprep.subr.mxu0 0.0
      %2505 = vmatpush1.msra.mxu0 0.0
      %2506 = vmatprep.subr.mxu0 0.0
      %2507 = vmatpush1.msra.mxu0 0.0
      %2508 = vmatprep.subr.mxu0 0.0
      %2509 = vmatpush1.msra.mxu0 0.0
      %2510 = vmatprep.subr.mxu0 0.0
      %2511 = vmatpush1.msra.mxu0 0.0
      %2512 = vmatprep.subr.mxu0 0.0
      %2513 = vmatpush1.msra.mxu0 0.0
      %2514 = vmatprep.subr.mxu0 0.0
      %2515 = vmatpush1.msra.mxu0 0.0
      %2516 = vmatprep.subr.mxu0 0.0
      %2517 = vmatpush1.msra.mxu0 0.0
      %2518 = vmatprep.subr.mxu0 0.0
      %2519 = vmatpush1.msra.mxu0 0.0
      %2520 = vmatprep.subr.mxu0 0.0
      %2521 = vmatpush1.msra.mxu0 0.0
      %2522 = vmatprep.subr.mxu0 0.0
      %2523 = vmatpush1.msra.mxu0 0.0
      %2524 = vmatprep.subr.mxu0 0.0
      %2525 = vmatpush1.msra.mxu0 0.0
      %2526 = vmatprep.subr.mxu0 0.0
      %2527 = vmatpush1.msra.mxu0 0.0
      %2528 = vmatprep.subr.mxu0 0.0
      %2529 = vmatpush1.msra.mxu0 0.0
      %2530 = vmatprep.subr.mxu0 0.0
      %2531 = vmatpush1.msra.mxu0 0.0
      %2532 = vmatprep.subr.mxu0 0.0
      %2533 = vmatpush1.msra.mxu0 0.0
      %2534 = vmatprep.subr.mxu0 0.0
      %2535 = vmatpush1.msra.mxu0 0.0
      %2536 = vmatprep.subr.mxu0 0.0
      %2537 = vmatpush1.msra.mxu0 0.0
      %2538 = vmatprep.subr.mxu0 0.0
      %2539 = vmatpush1.msra.mxu0 0.0
      %2540 = vmatprep.subr.mxu0 0.0
      %2541 = vmatpush1.msra.mxu0 0.0
      %2542 = vmatprep.subr.mxu0 0.0
      %2543 = vmatpush1.msra.mxu0 0.0
      %2544 = vmatprep.subr.mxu0 0.0
      %2545 = vmatpush1.msra.mxu0 0.0
      %2546 = vmatprep.subr.mxu0 0.0
      %2547 = vmatpush1.msra.mxu0 0.0
      %2548 = vmatprep.subr.mxu0 0.0
      %2549 = vmatpush1.msra.mxu0 0.0
      %2550 = vmatprep.subr.mxu0 0.0
      %2551 = vmatpush1.msra.mxu0 0.0
      %2552 = vmatprep.subr.mxu0 0.0
      %2553 = vmatpush1.msra.mxu0 0.0
      %2554 = vmatprep.subr.mxu0 0.0
      %2555 = vmatpush1.msra.mxu0 0.0
      %2556 = vmatprep.subr.mxu0 0.0
      %2557 = vmatpush1.msra.mxu0 0.0
      %2558 = vmatprep.subr.mxu0 0.0
      %2559 = vmatpush1.msra.mxu0 0.0
      %2560 = vmatprep.subr.mxu0 0.0
      %2561 = vmatpush1.msra.mxu0 0.0
      %2562 = vmatprep.subr.mxu0 0.0
      %2563 = vmatpush1.msra.mxu0 0.0
      %2564 = vmatprep.mubr.f32.mxu0 0.0
      %2565 = vmatmul.mubr.f32.gmra.mrb[0].mxu0 %v2402
      %v2566 = vpop.f32.mrb[0].mxu0
      %v2567 = vadd.f32 0.0, %v2566
      %v2568 = vpop.f32.mrb[0].mxu0
      %2569 = vmatprep.mubr.f32.mxu0 0.0
      %2570 = vmatmul.mubr.f32.gmra.mrb[0].mxu0 %v2405
      %v2571 = vpop.f32.mrb[0].mxu0
      %v2572 = vadd.f32 0.0, %v2571
      %v2573 = vpop.f32.mrb[0].mxu0
      %2574 = vmatprep.mubr.f32.mxu0 0.0
      %2575 = vmatmul.mubr.f32.gmra.mrb[0].mxu0 %v2408
      %v2576 = vpop.f32.mrb[0].mxu0
      %v2577 = vadd.f32 0.0, %v2576
      %v2578 = vpop.f32.mrb[0].mxu0
      %2579 = vmatprep.mubr.f32.mxu0 0.0
      %2580 = vmatmul.mubr.f32.gmra.mrb[0].mxu0 %v2411
      %v2581 = vpop.f32.mrb[0].mxu0
      %v2582 = vadd.f32 0.0, %v2581
      %v2583 = vpop.f32.mrb[0].mxu0
      %2584 = vmatprep.mubr.f32.mxu0 0.0
      %2585 = vmatmul.mubr.f32.gmra.mrb[0].mxu0 %v2414
      %v2586 = vpop.f32.mrb[0].mxu0
      %v2587 = vadd.f32 0.0, %v2586
      %v2588 = vpop.f32.mrb[0].mxu0
      %2589 = vmatprep.mubr.f32.mxu0 0.0
      %2590 = vmatmul.mubr.f32.gmra.mrb[0].mxu0 %v2417
      %v2591 = vpop.f32.mrb[0].mxu0
      %v2592 = vadd.f32 0.0, %v2591
      %v2593 = vpop.f32.mrb[0].mxu0
      %2594 = vmatprep.mubr.f32.mxu0 0.0
      %2595 = vmatmul.mubr.f32.gmra.mrb[0].mxu0 %v2420
      %v2596 = vpop.f32.mrb[0].mxu0
      %v2597 = vadd.f32 0.0, %v2596
      %v2598 = vpop.f32.mrb[0].mxu0
      %2599 = vmatprep.mubr.f32.mxu0 0.0
      %2600 = vmatmul.mubr.f32.gmra.mrb[0].mxu0 %v2423
      %v2601 = vpop.f32.mrb[0].mxu0
      %v2602 = vadd.f32 0.0, %v2601
      %v2603 = vpop.f32.mrb[0].mxu0
      %2604 = vmatprep.mubr.f32.mxu0 0.0
      %2605 = vmatmul.mubr.f32.gmra.mrb[0].mxu0 %v2426
      %v2606 = vpop.f32.mrb[0].mxu0
      %v2607 = vadd.f32 0.0, %v2606
      %v2608 = vpop.f32.mrb[0].mxu0
      %2609 = vmatprep.mubr.f32.mxu0 0.0
      %2610 = vmatmul.mubr.f32.gmra.mrb[0].mxu0 %v2429
      %v2611 = vpop.f32.mrb[0].mxu0
      %v2612 = vadd.f32 0.0, %v2611
      %v2613 = vpop.f32.mrb[0].mxu0
      %2614 = vmatprep.mubr.f32.mxu0 0.0
      %2615 = vmatmul.mubr.f32.gmra.mrb[0].mxu0 %v2432
      %v2616 = vpop.f32.mrb[0].mxu0
      %v2617 = vadd.f32 0.0, %v2616
      %v2618 = vpop.f32.mrb[0].mxu0
      %2619 = vmatprep.mubr.f32.mxu0 0.0
      %2620 = vmatmul.mubr.f32.gmra.mrb[0].mxu0 %v2435
      %v2621 = vpop.f32.mrb[0].mxu0
      %v2622 = vadd.f32 0.0, %v2621
      %v2623 = vpop.f32.mrb[0].mxu0
      %2624 = vmatprep.mubr.f32.mxu0 0.0
      %2625 = vmatmul.mubr.f32.gmra.mrb[0].mxu0 %v2438
      %v2626 = vpop.f32.mrb[0].mxu0
      %v2627 = vadd.f32 0.0, %v2626
      %v2628 = vpop.f32.mrb[0].mxu0
      %2629 = vmatprep.mubr.f32.mxu0 0.0
      %2630 = vmatmul.mubr.f32.gmra.mrb[0].mxu0 %v2441
      %v2631 = vpop.f32.mrb[0].mxu0
      %v2632 = vadd.f32 0.0, %v2631
      %v2633 = vpop.f32.mrb[0].mxu0
      %2634 = vmatprep.mubr.f32.mxu0 0.0
      %2635 = vmatmul.mubr.f32.gmra.mrb[0].mxu0 %v2444
      %v2636 = vpop.f32.mrb[0].mxu0
      %v2637 = vadd.f32 0.0, %v2636
      %v2638 = vpop.f32.mrb[0].mxu0
      %2639 = vmatprep.mubr.f32.mxu0 0.0
      %2640 = vmatmul.mubr.f32.gmra.mrb[0].mxu0 %v2447
      %v2641 = vpop.f32.mrb[0].mxu0
      %v2642 = vadd.f32 0.0, %v2641
      %v2643 = vpop.f32.mrb[0].mxu0
      %2644 = vmatprep.mubr.f32.mxu0 0.0
      %2645 = vmatmul.mubr.f32.gmra.mrb[0].mxu0 %v2450
      %v2646 = vpop.f32.mrb[0].mxu0
      %v2647 = vadd.f32 0.0, %v2646
      %v2648 = vpop.f32.mrb[0].mxu0
      %2649 = vmatprep.mubr.f32.mxu0 0.0
      %2650 = vmatmul.mubr.f32.gmra.mrb[0].mxu0 %v2453
      %v2651 = vpop.f32.mrb[0].mxu0
      %v2652 = vadd.f32 0.0, %v2651
      %v2653 = vpop.f32.mrb[0].mxu0
      %2654 = vmatprep.mubr.f32.mxu0 0.0
      %2655 = vmatmul.mubr.f32.gmra.mrb[0].mxu0 %v2456
      %v2656 = vpop.f32.mrb[0].mxu0
      %v2657 = vadd.f32 0.0, %v2656
      %v2658 = vpop.f32.mrb[0].mxu0
      %2659 = vmatprep.mubr.f32.mxu0 0.0
      %2660 = vmatmul.mubr.f32.gmra.mrb[0].mxu0 %v2459
      %v2661 = vpop.f32.mrb[0].mxu0
      %v2662 = vadd.f32 0.0, %v2661
      %v2663 = vpop.f32.mrb[0].mxu0
      %2664 = vmatprep.mubr.f32.mxu0 0.0
      %2665 = vmatmul.mubr.f32.gmra.mrb[0].mxu0 %v2462
      %v2666 = vpop.f32.mrb[0].mxu0
      %v2667 = vadd.f32 0.0, %v2666
      %v2668 = vpop.f32.mrb[0].mxu0
      %2669 = vmatprep.mubr.f32.mxu0 0.0
      %2670 = vmatmul.mubr.f32.gmra.mrb[0].mxu0 %v2465
      %v2671 = vpop.f32.mrb[0].mxu0
      %v2672 = vadd.f32 0.0, %v2671
      %v2673 = vpop.f32.mrb[0].mxu0
      %2674 = vmatprep.mubr.f32.mxu0 0.0
      %2675 = vmatmul.mubr.f32.gmra.mrb[0].mxu0 %v2468
      %v2676 = vpop.f32.mrb[0].mxu0
      %v2677 = vadd.f32 0.0, %v2676
      %v2678 = vpop.f32.mrb[0].mxu0
      %2679 = vmatprep.mubr.f32.mxu0 0.0
      %2680 = vmatmul.mubr.f32.gmra.mrb[0].mxu0 %v2471
      %v2681 = vpop.f32.mrb[0].mxu0
      %v2682 = vadd.f32 0.0, %v2681
      %v2683 = vpop.f32.mrb[0].mxu0
      %2684 = vmatprep.mubr.f32.mxu0 0.0
      %2685 = vmatmul.mubr.f32.gmra.mrb[0].mxu0 %v2474
      %v2686 = vpop.f32.mrb[0].mxu0
      %v2687 = vadd.f32 0.0, %v2686
      %v2688 = vpop.f32.mrb[0].mxu0
      %2689 = vmatprep.mubr.f32.mxu0 0.0
      %2690 = vmatmul.mubr.f32.gmra.mrb[0].mxu0 %v2477
      %v2691 = vpop.f32.mrb[0].mxu0
      %v2692 = vadd.f32 0.0, %v2691
      %v2693 = vpop.f32.mrb[0].mxu0
      %2694 = vmatprep.mubr.f32.mxu0 0.0
      %2695 = vmatmul.mubr.f32.gmra.mrb[0].mxu0 %v2480
      %v2696 = vpop.f32.mrb[0].mxu0
      %v2697 = vadd.f32 0.0, %v2696
      %v2698 = vpop.f32.mrb[0].mxu0
      %2699 = vmatprep.mubr.f32.mxu0 0.0
      %2700 = vmatmul.mubr.f32.gmra.mrb[0].mxu0 %v2483
      %v2701 = vpop.f32.mrb[0].mxu0
      %v2702 = vadd.f32 0.0, %v2701
      %v2703 = vpop.f32.mrb[0].mxu0
      %2704 = vmatprep.mubr.f32.mxu0 0.0
      %2705 = vmatmul.mubr.f32.gmra.mrb[0].mxu0 %v2486
      %v2706 = vpop.f32.mrb[0].mxu0
      %v2707 = vadd.f32 0.0, %v2706
      %v2708 = vpop.f32.mrb[0].mxu0
      %2709 = vmatprep.mubr.f32.mxu0 0.0
      %2710 = vmatmul.mubr.f32.gmra.mrb[0].mxu0 %v2489
      %v2711 = vpop.f32.mrb[0].mxu0
      %v2712 = vadd.f32 0.0, %v2711
      %v2713 = vpop.f32.mrb[0].mxu0
      %2714 = vmatprep.mubr.f32.mxu0 0.0
      %2715 = vmatmul.mubr.f32.gmra.mrb[0].mxu0 %v2492
      %v2716 = vpop.f32.mrb[0].mxu0
      %v2717 = vadd.f32 0.0, %v2716
      %v2718 = vpop.f32.mrb[0].mxu0
      %2719 = vmatprep.mubr.f32.mxu0 0.0
      %2720 = vmatmul.mubr.f32.gmra.mrb[0].mxu0 %v2495
      %v2721 = vpop.f32.mrb[0].mxu0
      %v2722 = vadd.f32 0.0, %v2721
      %v2723 = vpop.f32.mrb[0].mxu0
      %2724 = vdwg.mxu0
      %v2725 = vadd.f32 %v2335, %v2567
      %v2726 = vadd.f32 %v2336, %v2572
      %v2727 = vadd.f32 %v2337, %v2577
      %v2728 = vadd.f32 %v2338, %v2582
      %v2729 = vadd.f32 %v2339, %v2587
      %v2730 = vadd.f32 %v2340, %v2592
      %v2731 = vadd.f32 %v2341, %v2597
      %v2732 = vadd.f32 %v2342, %v2602
      %v2733 = vadd.f32 %v2343, %v2607
      %v2734 = vadd.f32 %v2344, %v2612
      %v2735 = vadd.f32 %v2345, %v2617
      %v2736 = vadd.f32 %v2346, %v2622
      %v2737 = vadd.f32 %v2347, %v2627
      %v2738 = vadd.f32 %v2348, %v2632
      %v2739 = vadd.f32 %v2349, %v2637
      %v2740 = vadd.f32 %v2350, %v2642
      %v2741 = vadd.f32 %v2351, %v2647
      %v2742 = vadd.f32 %v2352, %v2652
      %v2743 = vadd.f32 %v2353, %v2657
      %v2744 = vadd.f32 %v2354, %v2662
      %v2745 = vadd.f32 %v2355, %v2667
      %v2746 = vadd.f32 %v2356, %v2672
      %v2747 = vadd.f32 %v2357, %v2677
      %v2748 = vadd.f32 %v2358, %v2682
      %v2749 = vadd.f32 %v2359, %v2687
      %v2750 = vadd.f32 %v2360, %v2692
      %v2751 = vadd.f32 %v2361, %v2697
      %v2752 = vadd.f32 %v2362, %v2702
      %v2753 = vadd.f32 %v2363, %v2707
      %v2754 = vadd.f32 %v2364, %v2712
      %v2755 = vadd.f32 %v2365, %v2717
      %v2756 = vadd.f32 %v2366, %v2722
      %s2757 = scalar_lea.vmem [#allocation2], 48
      %v2758 = vld [vmem:[%s2757] sm:$0xff]
      %v2759 = vld [vmem:[%s2757 + $0x8] sm:$0xff]
      %v2760 = vld [vmem:[%s2757 + $0x18] sm:$0xff]
      %v2761 = vld [vmem:[%s2757 + $0x20] sm:$0xff]
      %v2762 = vld [vmem:[%s2757 + $0x30] sm:$0xff]
      %v2763 = vld [vmem:[%s2757 + $0x38] sm:$0xff]
      %v2764 = vld [vmem:[%s2757 + $0x48] sm:$0xff]
      %v2765 = vld [vmem:[%s2757 + $0x50] sm:$0xff]
      %v2766 = vld [vmem:[%s2757 + $0x60] sm:$0xff]
      %v2767 = vld [vmem:[%s2757 + $0x68] sm:$0xff]
      %v2768 = vld [vmem:[%s2757 + $0x78] sm:$0xff]
      %v2769 = vld [vmem:[%s2757 + $0x80] sm:$0xff]
      %v2770 = vld [vmem:[%s2757 + $0x90] sm:$0xff]
      %v2771 = vld [vmem:[%s2757 + $0x98] sm:$0xff]
      %v2772 = vld [vmem:[%s2757 + $0xa8] sm:$0xff]
      %v2773 = vld [vmem:[%s2757 + $0xb0] sm:$0xff]
      %v2774 = vld [vmem:[%s2757 + $0xc0] sm:$0xff]
      %v2775 = vld [vmem:[%s2757 + $0xc8] sm:$0xff]
      %v2776 = vld [vmem:[%s2757 + $0xd8] sm:$0xff]
      %v2777 = vld [vmem:[%s2757 + $0xe0] sm:$0xff]
      %v2778 = vld [vmem:[%s2757 + $0xf0] sm:$0xff]
      %v2779 = vld [vmem:[%s2757 + $0xf8] sm:$0xff]
      %v2780 = vld [vmem:[%s2757 + $0x108] sm:$0xff]
      %v2781 = vld [vmem:[%s2757 + $0x110] sm:$0xff]
      %v2782 = vld [vmem:[%s2757 + $0x120] sm:$0xff]
      %v2783 = vld [vmem:[%s2757 + $0x128] sm:$0xff]
      %v2784 = vld [vmem:[%s2757 + $0x138] sm:$0xff]
      %v2785 = vld [vmem:[%s2757 + $0x140] sm:$0xff]
      %v2786 = vld [vmem:[%s2757 + $0x150] sm:$0xff]
      %v2787 = vld [vmem:[%s2757 + $0x158] sm:$0xff]
      %v2788 = vld [vmem:[%s2757 + $0x168] sm:$0xff]
      %v2789 = vld [vmem:[%s2757 + $0x170] sm:$0xff]
      %s2790 = scalar_lea.vmem %s1, 24
      %v2791 = vld [vmem:[%s2790] sm:$0xf]
      %v2793 = vsel %vm406, %v2758, 0
      %v2796 = vsel %vm406, %v2759, 0
      %v2799 = vsel %vm406, %v2760, 0
      %v2802 = vsel %vm406, %v2761, 0
      %v2805 = vsel %vm406, %v2762, 0
      %v2808 = vsel %vm406, %v2763, 0
      %v2811 = vsel %vm406, %v2764, 0
      %v2814 = vsel %vm406, %v2765, 0
      %v2817 = vsel %vm406, %v2766, 0
      %v2820 = vsel %vm406, %v2767, 0
      %v2823 = vsel %vm406, %v2768, 0
      %v2826 = vsel %vm406, %v2769, 0
      %v2829 = vsel %vm406, %v2770, 0
      %v2832 = vsel %vm406, %v2771, 0
      %v2835 = vsel %vm406, %v2772, 0
      %v2838 = vsel %vm406, %v2773, 0
      %v2841 = vsel %vm406, %v2774, 0
      %v2844 = vsel %vm406, %v2775, 0
      %v2847 = vsel %vm406, %v2776, 0
      %v2850 = vsel %vm406, %v2777, 0
      %v2853 = vsel %vm406, %v2778, 0
      %v2856 = vsel %vm406, %v2779, 0
      %v2859 = vsel %vm406, %v2780, 0
      %v2862 = vsel %vm406, %v2781, 0
      %v2865 = vsel %vm406, %v2782, 0
      %v2868 = vsel %vm406, %v2783, 0
      %v2871 = vsel %vm406, %v2784, 0
      %v2874 = vsel %vm406, %v2785, 0
      %v2877 = vsel %vm406, %v2786, 0
      %v2880 = vsel %vm406, %v2787, 0
      %v2883 = vsel %vm406, %v2788, 0
      %v2886 = vsel %vm406, %v2789, 0
      %v2889 = vsel %vm644, %v2791, 0
      %2891 = vmatprep.subr.mxu0 0.0
      %2892 = vmatpush1.msra.mxu0 %v2889
      %2893 = vmatprep.subr.mxu0 0.0
      %2894 = vmatpush1.msra.mxu0 0.0
      %2895 = vmatprep.subr.mxu0 0.0
      %2896 = vmatpush1.msra.mxu0 0.0
      %2897 = vmatprep.subr.mxu0 0.0
      %2898 = vmatpush1.msra.mxu0 0.0
      %2899 = vmatprep.subr.mxu0 0.0
      %2900 = vmatpush1.msra.mxu0 0.0
      %2901 = vmatprep.subr.mxu0 0.0
      %2902 = vmatpush1.msra.mxu0 0.0
      %2903 = vmatprep.subr.mxu0 0.0
      %2904 = vmatpush1.msra.mxu0 0.0
      %2905 = vmatprep.subr.mxu0 0.0
      %2906 = vmatpush1.msra.mxu0 0.0
      %2907 = vmatprep.subr.mxu0 0.0
      %2908 = vmatpush1.msra.mxu0 0.0
      %2909 = vmatprep.subr.mxu0 0.0
      %2910 = vmatpush1.msra.mxu0 0.0
      %2911 = vmatprep.subr.mxu0 0.0
      %2912 = vmatpush1.msra.mxu0 0.0
      %2913 = vmatprep.subr.mxu0 0.0
      %2914 = vmatpush1.msra.mxu0 0.0
      %2915 = vmatprep.subr.mxu0 0.0
      %2916 = vmatpush1.msra.mxu0 0.0
      %2917 = vmatprep.subr.mxu0 0.0
      %2918 = vmatpush1.msra.mxu0 0.0
      %2919 = vmatprep.subr.mxu0 0.0
      %2920 = vmatpush1.msra.mxu0 0.0
      %2921 = vmatprep.subr.mxu0 0.0
      %2922 = vmatpush1.msra.mxu0 0.0
      %2923 = vmatprep.subr.mxu0 0.0
      %2924 = vmatpush1.msra.mxu0 0.0
      %2925 = vmatprep.subr.mxu0 0.0
      %2926 = vmatpush1.msra.mxu0 0.0
      %2927 = vmatprep.subr.mxu0 0.0
      %2928 = vmatpush1.msra.mxu0 0.0
      %2929 = vmatprep.subr.mxu0 0.0
      %2930 = vmatpush1.msra.mxu0 0.0
      %2931 = vmatprep.subr.mxu0 0.0
      %2932 = vmatpush1.msra.mxu0 0.0
      %2933 = vmatprep.subr.mxu0 0.0
      %2934 = vmatpush1.msra.mxu0 0.0
      %2935 = vmatprep.subr.mxu0 0.0
      %2936 = vmatpush1.msra.mxu0 0.0
      %2937 = vmatprep.subr.mxu0 0.0
      %2938 = vmatpush1.msra.mxu0 0.0
      %2939 = vmatprep.subr.mxu0 0.0
      %2940 = vmatpush1.msra.mxu0 0.0
      %2941 = vmatprep.subr.mxu0 0.0
      %2942 = vmatpush1.msra.mxu0 0.0
      %2943 = vmatprep.subr.mxu0 0.0
      %2944 = vmatpush1.msra.mxu0 0.0
      %2945 = vmatprep.subr.mxu0 0.0
      %2946 = vmatpush1.msra.mxu0 0.0
      %2947 = vmatprep.subr.mxu0 0.0
      %2948 = vmatpush1.msra.mxu0 0.0
      %2949 = vmatprep.subr.mxu0 0.0
      %2950 = vmatpush1.msra.mxu0 0.0
      %2951 = vmatprep.subr.mxu0 0.0
      %2952 = vmatpush1.msra.mxu0 0.0
      %2953 = vmatprep.subr.mxu0 0.0
      %2954 = vmatpush1.msra.mxu0 0.0
      %2955 = vmatprep.mubr.f32.mxu0 0.0
      %2956 = vmatmul.mubr.f32.gmra.mrb[0].mxu0 %v2793
      %v2957 = vpop.f32.mrb[0].mxu0
      %v2958 = vadd.f32 0.0, %v2957
      %v2959 = vpop.f32.mrb[0].mxu0
      %2960 = vmatprep.mubr.f32.mxu0 0.0
      %2961 = vmatmul.mubr.f32.gmra.mrb[0].mxu0 %v2796
      %v2962 = vpop.f32.mrb[0].mxu0
      %v2963 = vadd.f32 0.0, %v2962
      %v2964 = vpop.f32.mrb[0].mxu0
      %2965 = vmatprep.mubr.f32.mxu0 0.0
      %2966 = vmatmul.mubr.f32.gmra.mrb[0].mxu0 %v2799
      %v2967 = vpop.f32.mrb[0].mxu0
      %v2968 = vadd.f32 0.0, %v2967
      %v2969 = vpop.f32.mrb[0].mxu0
      %2970 = vmatprep.mubr.f32.mxu0 0.0
      %2971 = vmatmul.mubr.f32.gmra.mrb[0].mxu0 %v2802
      %v2972 = vpop.f32.mrb[0].mxu0
      %v2973 = vadd.f32 0.0, %v2972
      %v2974 = vpop.f32.mrb[0].mxu0
      %2975 = vmatprep.mubr.f32.mxu0 0.0
      %2976 = vmatmul.mubr.f32.gmra.mrb[0].mxu0 %v2805
      %v2977 = vpop.f32.mrb[0].mxu0
      %v2978 = vadd.f32 0.0, %v2977
      %v2979 = vpop.f32.mrb[0].mxu0
      %2980 = vmatprep.mubr.f32.mxu0 0.0
      %2981 = vmatmul.mubr.f32.gmra.mrb[0].mxu0 %v2808
      %v2982 = vpop.f32.mrb[0].mxu0
      %v2983 = vadd.f32 0.0, %v2982
      %v2984 = vpop.f32.mrb[0].mxu0
      %2985 = vmatprep.mubr.f32.mxu0 0.0
      %2986 = vmatmul.mubr.f32.gmra.mrb[0].mxu0 %v2811
      %v2987 = vpop.f32.mrb[0].mxu0
      %v2988 = vadd.f32 0.0, %v2987
      %v2989 = vpop.f32.mrb[0].mxu0
      %2990 = vmatprep.mubr.f32.mxu0 0.0
      %2991 = vmatmul.mubr.f32.gmra.mrb[0].mxu0 %v2814
      %v2992 = vpop.f32.mrb[0].mxu0
      %v2993 = vadd.f32 0.0, %v2992
      %v2994 = vpop.f32.mrb[0].mxu0
      %2995 = vmatprep.mubr.f32.mxu0 0.0
      %2996 = vmatmul.mubr.f32.gmra.mrb[0].mxu0 %v2817
      %v2997 = vpop.f32.mrb[0].mxu0
      %v2998 = vadd.f32 0.0, %v2997
      %v2999 = vpop.f32.mrb[0].mxu0
      %3000 = vmatprep.mubr.f32.mxu0 0.0
      %3001 = vmatmul.mubr.f32.gmra.mrb[0].mxu0 %v2820
      %v3002 = vpop.f32.mrb[0].mxu0
      %v3003 = vadd.f32 0.0, %v3002
      %v3004 = vpop.f32.mrb[0].mxu0
      %3005 = vmatprep.mubr.f32.mxu0 0.0
      %3006 = vmatmul.mubr.f32.gmra.mrb[0].mxu0 %v2823
      %v3007 = vpop.f32.mrb[0].mxu0
      %v3008 = vadd.f32 0.0, %v3007
      %v3009 = vpop.f32.mrb[0].mxu0
      %3010 = vmatprep.mubr.f32.mxu0 0.0
      %3011 = vmatmul.mubr.f32.gmra.mrb[0].mxu0 %v2826
      %v3012 = vpop.f32.mrb[0].mxu0
      %v3013 = vadd.f32 0.0, %v3012
      %v3014 = vpop.f32.mrb[0].mxu0
      %3015 = vmatprep.mubr.f32.mxu0 0.0
      %3016 = vmatmul.mubr.f32.gmra.mrb[0].mxu0 %v2829
      %v3017 = vpop.f32.mrb[0].mxu0
      %v3018 = vadd.f32 0.0, %v3017
      %v3019 = vpop.f32.mrb[0].mxu0
      %3020 = vmatprep.mubr.f32.mxu0 0.0
      %3021 = vmatmul.mubr.f32.gmra.mrb[0].mxu0 %v2832
      %v3022 = vpop.f32.mrb[0].mxu0
      %v3023 = vadd.f32 0.0, %v3022
      %v3024 = vpop.f32.mrb[0].mxu0
      %3025 = vmatprep.mubr.f32.mxu0 0.0
      %3026 = vmatmul.mubr.f32.gmra.mrb[0].mxu0 %v2835
      %v3027 = vpop.f32.mrb[0].mxu0
      %v3028 = vadd.f32 0.0, %v3027
      %v3029 = vpop.f32.mrb[0].mxu0
      %3030 = vmatprep.mubr.f32.mxu0 0.0
      %3031 = vmatmul.mubr.f32.gmra.mrb[0].mxu0 %v2838
      %v3032 = vpop.f32.mrb[0].mxu0
      %v3033 = vadd.f32 0.0, %v3032
      %v3034 = vpop.f32.mrb[0].mxu0
      %3035 = vmatprep.mubr.f32.mxu0 0.0
      %3036 = vmatmul.mubr.f32.gmra.mrb[0].mxu0 %v2841
      %v3037 = vpop.f32.mrb[0].mxu0
      %v3038 = vadd.f32 0.0, %v3037
      %v3039 = vpop.f32.mrb[0].mxu0
      %3040 = vmatprep.mubr.f32.mxu0 0.0
      %3041 = vmatmul.mubr.f32.gmra.mrb[0].mxu0 %v2844
      %v3042 = vpop.f32.mrb[0].mxu0
      %v3043 = vadd.f32 0.0, %v3042
      %v3044 = vpop.f32.mrb[0].mxu0
      %3045 = vmatprep.mubr.f32.mxu0 0.0
      %3046 = vmatmul.mubr.f32.gmra.mrb[0].mxu0 %v2847
      %v3047 = vpop.f32.mrb[0].mxu0
      %v3048 = vadd.f32 0.0, %v3047
      %v3049 = vpop.f32.mrb[0].mxu0
      %3050 = vmatprep.mubr.f32.mxu0 0.0
      %3051 = vmatmul.mubr.f32.gmra.mrb[0].mxu0 %v2850
      %v3052 = vpop.f32.mrb[0].mxu0
      %v3053 = vadd.f32 0.0, %v3052
      %v3054 = vpop.f32.mrb[0].mxu0
      %3055 = vmatprep.mubr.f32.mxu0 0.0
      %3056 = vmatmul.mubr.f32.gmra.mrb[0].mxu0 %v2853
      %v3057 = vpop.f32.mrb[0].mxu0
      %v3058 = vadd.f32 0.0, %v3057
      %v3059 = vpop.f32.mrb[0].mxu0
      %3060 = vmatprep.mubr.f32.mxu0 0.0
      %3061 = vmatmul.mubr.f32.gmra.mrb[0].mxu0 %v2856
      %v3062 = vpop.f32.mrb[0].mxu0
      %v3063 = vadd.f32 0.0, %v3062
      %v3064 = vpop.f32.mrb[0].mxu0
      %3065 = vmatprep.mubr.f32.mxu0 0.0
      %3066 = vmatmul.mubr.f32.gmra.mrb[0].mxu0 %v2859
      %v3067 = vpop.f32.mrb[0].mxu0
      %v3068 = vadd.f32 0.0, %v3067
      %v3069 = vpop.f32.mrb[0].mxu0
      %3070 = vmatprep.mubr.f32.mxu0 0.0
      %3071 = vmatmul.mubr.f32.gmra.mrb[0].mxu0 %v2862
      %v3072 = vpop.f32.mrb[0].mxu0
      %v3073 = vadd.f32 0.0, %v3072
      %v3074 = vpop.f32.mrb[0].mxu0
      %3075 = vmatprep.mubr.f32.mxu0 0.0
      %3076 = vmatmul.mubr.f32.gmra.mrb[0].mxu0 %v2865
      %v3077 = vpop.f32.mrb[0].mxu0
      %v3078 = vadd.f32 0.0, %v3077
      %v3079 = vpop.f32.mrb[0].mxu0
      %3080 = vmatprep.mubr.f32.mxu0 0.0
      %3081 = vmatmul.mubr.f32.gmra.mrb[0].mxu0 %v2868
      %v3082 = vpop.f32.mrb[0].mxu0
      %v3083 = vadd.f32 0.0, %v3082
      %v3084 = vpop.f32.mrb[0].mxu0
      %3085 = vmatprep.mubr.f32.mxu0 0.0
      %3086 = vmatmul.mubr.f32.gmra.mrb[0].mxu0 %v2871
      %v3087 = vpop.f32.mrb[0].mxu0
      %v3088 = vadd.f32 0.0, %v3087
      %v3089 = vpop.f32.mrb[0].mxu0
      %3090 = vmatprep.mubr.f32.mxu0 0.0
      %3091 = vmatmul.mubr.f32.gmra.mrb[0].mxu0 %v2874
      %v3092 = vpop.f32.mrb[0].mxu0
      %v3093 = vadd.f32 0.0, %v3092
      %v3094 = vpop.f32.mrb[0].mxu0
      %3095 = vmatprep.mubr.f32.mxu0 0.0
      %3096 = vmatmul.mubr.f32.gmra.mrb[0].mxu0 %v2877
      %v3097 = vpop.f32.mrb[0].mxu0
      %v3098 = vadd.f32 0.0, %v3097
      %v3099 = vpop.f32.mrb[0].mxu0
      %3100 = vmatprep.mubr.f32.mxu0 0.0
      %3101 = vmatmul.mubr.f32.gmra.mrb[0].mxu0 %v2880
      %v3102 = vpop.f32.mrb[0].mxu0
      %v3103 = vadd.f32 0.0, %v3102
      %v3104 = vpop.f32.mrb[0].mxu0
      %3105 = vmatprep.mubr.f32.mxu0 0.0
      %3106 = vmatmul.mubr.f32.gmra.mrb[0].mxu0 %v2883
      %v3107 = vpop.f32.mrb[0].mxu0
      %v3108 = vadd.f32 0.0, %v3107
      %v3109 = vpop.f32.mrb[0].mxu0
      %3110 = vmatprep.mubr.f32.mxu0 0.0
      %3111 = vmatmul.mubr.f32.gmra.mrb[0].mxu0 %v2886
      %v3112 = vpop.f32.mrb[0].mxu0
      %v3113 = vadd.f32 0.0, %v3112
      %v3114 = vpop.f32.mrb[0].mxu0
      %3115 = vdwg.mxu0
      %v3116 = vadd.f32 %v2725, %v2958
      %v3117 = vadd.f32 %v2726, %v2963
      %v3118 = vadd.f32 %v2727, %v2968
      %v3119 = vadd.f32 %v2728, %v2973
      %v3120 = vadd.f32 %v2729, %v2978
      %v3121 = vadd.f32 %v2730, %v2983
      %v3122 = vadd.f32 %v2731, %v2988
      %v3123 = vadd.f32 %v2732, %v2993
      %v3124 = vadd.f32 %v2733, %v2998
      %v3125 = vadd.f32 %v2734, %v3003
      %v3126 = vadd.f32 %v2735, %v3008
      %v3127 = vadd.f32 %v2736, %v3013
      %v3128 = vadd.f32 %v2737, %v3018
      %v3129 = vadd.f32 %v2738, %v3023
      %v3130 = vadd.f32 %v2739, %v3028
      %v3131 = vadd.f32 %v2740, %v3033
      %v3132 = vadd.f32 %v2741, %v3038
      %v3133 = vadd.f32 %v2742, %v3043
      %v3134 = vadd.f32 %v2743, %v3048
      %v3135 = vadd.f32 %v2744, %v3053
      %v3136 = vadd.f32 %v2745, %v3058
      %v3137 = vadd.f32 %v2746, %v3063
      %v3138 = vadd.f32 %v2747, %v3068
      %v3139 = vadd.f32 %v2748, %v3073
      %v3140 = vadd.f32 %v2749, %v3078
      %v3141 = vadd.f32 %v2750, %v3083
      %v3142 = vadd.f32 %v2751, %v3088
      %v3143 = vadd.f32 %v2752, %v3093
      %v3144 = vadd.f32 %v2753, %v3098
      %v3145 = vadd.f32 %v2754, %v3103
      %v3146 = vadd.f32 %v2755, %v3108
      %v3147 = vadd.f32 %v2756, %v3113
      %v3148 = vld [vmem:[%s2757 + $0x1] sm:$0xff]
      %v3149 = vld [vmem:[%s2757 + $0x9] sm:$0xff]
      %v3150 = vld [vmem:[%s2757 + $0x19] sm:$0xff]
      %v3151 = vld [vmem:[%s2757 + $0x21] sm:$0xff]
      %v3152 = vld [vmem:[%s2757 + $0x31] sm:$0xff]
      %v3153 = vld [vmem:[%s2757 + $0x39] sm:$0xff]
      %v3154 = vld [vmem:[%s2757 + $0x49] sm:$0xff]
      %v3155 = vld [vmem:[%s2757 + $0x51] sm:$0xff]
      %v3156 = vld [vmem:[%s2757 + $0x61] sm:$0xff]
      %v3157 = vld [vmem:[%s2757 + $0x69] sm:$0xff]
      %v3158 = vld [vmem:[%s2757 + $0x79] sm:$0xff]
      %v3159 = vld [vmem:[%s2757 + $0x81] sm:$0xff]
      %v3160 = vld [vmem:[%s2757 + $0x91] sm:$0xff]
      %v3161 = vld [vmem:[%s2757 + $0x99] sm:$0xff]
      %v3162 = vld [vmem:[%s2757 + $0xa9] sm:$0xff]
      %v3163 = vld [vmem:[%s2757 + $0xb1] sm:$0xff]
      %v3164 = vld [vmem:[%s2757 + $0xc1] sm:$0xff]
      %v3165 = vld [vmem:[%s2757 + $0xc9] sm:$0xff]
      %v3166 = vld [vmem:[%s2757 + $0xd9] sm:$0xff]
      %v3167 = vld [vmem:[%s2757 + $0xe1] sm:$0xff]
      %v3168 = vld [vmem:[%s2757 + $0xf1] sm:$0xff]
      %v3169 = vld [vmem:[%s2757 + $0xf9] sm:$0xff]
      %v3170 = vld [vmem:[%s2757 + $0x109] sm:$0xff]
      %v3171 = vld [vmem:[%s2757 + $0x111] sm:$0xff]
      %v3172 = vld [vmem:[%s2757 + $0x121] sm:$0xff]
      %v3173 = vld [vmem:[%s2757 + $0x129] sm:$0xff]
      %v3174 = vld [vmem:[%s2757 + $0x139] sm:$0xff]
      %v3175 = vld [vmem:[%s2757 + $0x141] sm:$0xff]
      %v3176 = vld [vmem:[%s2757 + $0x151] sm:$0xff]
      %v3177 = vld [vmem:[%s2757 + $0x159] sm:$0xff]
      %v3178 = vld [vmem:[%s2757 + $0x169] sm:$0xff]
      %v3179 = vld [vmem:[%s2757 + $0x171] sm:$0xff]
      %s3180 = scalar_lea.vmem %s1, 28
      %v3181 = vld [vmem:[%s3180] sm:$0xf]
      %v3183 = vsel %vm406, %v3148, 0
      %v3186 = vsel %vm406, %v3149, 0
      %v3189 = vsel %vm406, %v3150, 0
      %v3192 = vsel %vm406, %v3151, 0
      %v3195 = vsel %vm406, %v3152, 0
      %v3198 = vsel %vm406, %v3153, 0
      %v3201 = vsel %vm406, %v3154, 0
      %v3204 = vsel %vm406, %v3155, 0
      %v3207 = vsel %vm406, %v3156, 0
      %v3210 = vsel %vm406, %v3157, 0
      %v3213 = vsel %vm406, %v3158, 0
      %v3216 = vsel %vm406, %v3159, 0
      %v3219 = vsel %vm406, %v3160, 0
      %v3222 = vsel %vm406, %v3161, 0
      %v3225 = vsel %vm406, %v3162, 0
      %v3228 = vsel %vm406, %v3163, 0
      %v3231 = vsel %vm406, %v3164, 0
      %v3234 = vsel %vm406, %v3165, 0
      %v3237 = vsel %vm406, %v3166, 0
      %v3240 = vsel %vm406, %v3167, 0
      %v3243 = vsel %vm406, %v3168, 0
      %v3246 = vsel %vm406, %v3169, 0
      %v3249 = vsel %vm406, %v3170, 0
      %v3252 = vsel %vm406, %v3171, 0
      %v3255 = vsel %vm406, %v3172, 0
      %v3258 = vsel %vm406, %v3173, 0
      %v3261 = vsel %vm406, %v3174, 0
      %v3264 = vsel %vm406, %v3175, 0
      %v3267 = vsel %vm406, %v3176, 0
      %v3270 = vsel %vm406, %v3177, 0
      %v3273 = vsel %vm406, %v3178, 0
      %v3276 = vsel %vm406, %v3179, 0
      %v3279 = vsel %vm644, %v3181, 0
      %3281 = vmatprep.subr.mxu0 0.0
      %3282 = vmatpush1.msra.mxu0 %v3279
      %3283 = vmatprep.subr.mxu0 0.0
      %3284 = vmatpush1.msra.mxu0 0.0
      %3285 = vmatprep.subr.mxu0 0.0
      %3286 = vmatpush1.msra.mxu0 0.0
      %3287 = vmatprep.subr.mxu0 0.0
      %3288 = vmatpush1.msra.mxu0 0.0
      %3289 = vmatprep.subr.mxu0 0.0
      %3290 = vmatpush1.msra.mxu0 0.0
      %3291 = vmatprep.subr.mxu0 0.0
      %3292 = vmatpush1.msra.mxu0 0.0
      %3293 = vmatprep.subr.mxu0 0.0
      %3294 = vmatpush1.msra.mxu0 0.0
      %3295 = vmatprep.subr.mxu0 0.0
      %3296 = vmatpush1.msra.mxu0 0.0
      %3297 = vmatprep.subr.mxu0 0.0
      %3298 = vmatpush1.msra.mxu0 0.0
      %3299 = vmatprep.subr.mxu0 0.0
      %3300 = vmatpush1.msra.mxu0 0.0
      %3301 = vmatprep.subr.mxu0 0.0
      %3302 = vmatpush1.msra.mxu0 0.0
      %3303 = vmatprep.subr.mxu0 0.0
      %3304 = vmatpush1.msra.mxu0 0.0
      %3305 = vmatprep.subr.mxu0 0.0
      %3306 = vmatpush1.msra.mxu0 0.0
      %3307 = vmatprep.subr.mxu0 0.0
      %3308 = vmatpush1.msra.mxu0 0.0
      %3309 = vmatprep.subr.mxu0 0.0
      %3310 = vmatpush1.msra.mxu0 0.0
      %3311 = vmatprep.subr.mxu0 0.0
      %3312 = vmatpush1.msra.mxu0 0.0
      %3313 = vmatprep.subr.mxu0 0.0
      %3314 = vmatpush1.msra.mxu0 0.0
      %3315 = vmatprep.subr.mxu0 0.0
      %3316 = vmatpush1.msra.mxu0 0.0
      %3317 = vmatprep.subr.mxu0 0.0
      %3318 = vmatpush1.msra.mxu0 0.0
      %3319 = vmatprep.subr.mxu0 0.0
      %3320 = vmatpush1.msra.mxu0 0.0
      %3321 = vmatprep.subr.mxu0 0.0
      %3322 = vmatpush1.msra.mxu0 0.0
      %3323 = vmatprep.subr.mxu0 0.0
      %3324 = vmatpush1.msra.mxu0 0.0
      %3325 = vmatprep.subr.mxu0 0.0
      %3326 = vmatpush1.msra.mxu0 0.0
      %3327 = vmatprep.subr.mxu0 0.0
      %3328 = vmatpush1.msra.mxu0 0.0
      %3329 = vmatprep.subr.mxu0 0.0
      %3330 = vmatpush1.msra.mxu0 0.0
      %3331 = vmatprep.subr.mxu0 0.0
      %3332 = vmatpush1.msra.mxu0 0.0
      %3333 = vmatprep.subr.mxu0 0.0
      %3334 = vmatpush1.msra.mxu0 0.0
      %3335 = vmatprep.subr.mxu0 0.0
      %3336 = vmatpush1.msra.mxu0 0.0
      %3337 = vmatprep.subr.mxu0 0.0
      %3338 = vmatpush1.msra.mxu0 0.0
      %3339 = vmatprep.subr.mxu0 0.0
      %3340 = vmatpush1.msra.mxu0 0.0
      %3341 = vmatprep.subr.mxu0 0.0
      %3342 = vmatpush1.msra.mxu0 0.0
      %3343 = vmatprep.subr.mxu0 0.0
      %3344 = vmatpush1.msra.mxu0 0.0
      %3345 = vmatprep.mubr.f32.mxu0 0.0
      %3346 = vmatmul.mubr.f32.gmra.mrb[0].mxu0 %v3183
      %v3347 = vpop.f32.mrb[0].mxu0
      %v3348 = vadd.f32 0.0, %v3347
      %v3349 = vpop.f32.mrb[0].mxu0
      %3350 = vmatprep.mubr.f32.mxu0 0.0
      %3351 = vmatmul.mubr.f32.gmra.mrb[0].mxu0 %v3186
      %v3352 = vpop.f32.mrb[0].mxu0
      %v3353 = vadd.f32 0.0, %v3352
      %v3354 = vpop.f32.mrb[0].mxu0
      %3355 = vmatprep.mubr.f32.mxu0 0.0
      %3356 = vmatmul.mubr.f32.gmra.mrb[0].mxu0 %v3189
      %v3357 = vpop.f32.mrb[0].mxu0
      %v3358 = vadd.f32 0.0, %v3357
      %v3359 = vpop.f32.mrb[0].mxu0
      %3360 = vmatprep.mubr.f32.mxu0 0.0
      %3361 = vmatmul.mubr.f32.gmra.mrb[0].mxu0 %v3192
      %v3362 = vpop.f32.mrb[0].mxu0
      %v3363 = vadd.f32 0.0, %v3362
      %v3364 = vpop.f32.mrb[0].mxu0
      %3365 = vmatprep.mubr.f32.mxu0 0.0
      %3366 = vmatmul.mubr.f32.gmra.mrb[0].mxu0 %v3195
      %v3367 = vpop.f32.mrb[0].mxu0
      %v3368 = vadd.f32 0.0, %v3367
      %v3369 = vpop.f32.mrb[0].mxu0
      %3370 = vmatprep.mubr.f32.mxu0 0.0
      %3371 = vmatmul.mubr.f32.gmra.mrb[0].mxu0 %v3198
      %v3372 = vpop.f32.mrb[0].mxu0
      %v3373 = vadd.f32 0.0, %v3372
      %v3374 = vpop.f32.mrb[0].mxu0
      %3375 = vmatprep.mubr.f32.mxu0 0.0
      %3376 = vmatmul.mubr.f32.gmra.mrb[0].mxu0 %v3201
      %v3377 = vpop.f32.mrb[0].mxu0
      %v3378 = vadd.f32 0.0, %v3377
      %v3379 = vpop.f32.mrb[0].mxu0
      %3380 = vmatprep.mubr.f32.mxu0 0.0
      %3381 = vmatmul.mubr.f32.gmra.mrb[0].mxu0 %v3204
      %v3382 = vpop.f32.mrb[0].mxu0
      %v3383 = vadd.f32 0.0, %v3382
      %v3384 = vpop.f32.mrb[0].mxu0
      %3385 = vmatprep.mubr.f32.mxu0 0.0
      %3386 = vmatmul.mubr.f32.gmra.mrb[0].mxu0 %v3207
      %v3387 = vpop.f32.mrb[0].mxu0
      %v3388 = vadd.f32 0.0, %v3387
      %v3389 = vpop.f32.mrb[0].mxu0
      %3390 = vmatprep.mubr.f32.mxu0 0.0
      %3391 = vmatmul.mubr.f32.gmra.mrb[0].mxu0 %v3210
      %v3392 = vpop.f32.mrb[0].mxu0
      %v3393 = vadd.f32 0.0, %v3392
      %v3394 = vpop.f32.mrb[0].mxu0
      %3395 = vmatprep.mubr.f32.mxu0 0.0
      %3396 = vmatmul.mubr.f32.gmra.mrb[0].mxu0 %v3213
      %v3397 = vpop.f32.mrb[0].mxu0
      %v3398 = vadd.f32 0.0, %v3397
      %v3399 = vpop.f32.mrb[0].mxu0
      %3400 = vmatprep.mubr.f32.mxu0 0.0
      %3401 = vmatmul.mubr.f32.gmra.mrb[0].mxu0 %v3216
      %v3402 = vpop.f32.mrb[0].mxu0
      %v3403 = vadd.f32 0.0, %v3402
      %v3404 = vpop.f32.mrb[0].mxu0
      %3405 = vmatprep.mubr.f32.mxu0 0.0
      %3406 = vmatmul.mubr.f32.gmra.mrb[0].mxu0 %v3219
      %v3407 = vpop.f32.mrb[0].mxu0
      %v3408 = vadd.f32 0.0, %v3407
      %v3409 = vpop.f32.mrb[0].mxu0
      %3410 = vmatprep.mubr.f32.mxu0 0.0
      %3411 = vmatmul.mubr.f32.gmra.mrb[0].mxu0 %v3222
      %v3412 = vpop.f32.mrb[0].mxu0
      %v3413 = vadd.f32 0.0, %v3412
      %v3414 = vpop.f32.mrb[0].mxu0
      %3415 = vmatprep.mubr.f32.mxu0 0.0
      %3416 = vmatmul.mubr.f32.gmra.mrb[0].mxu0 %v3225
      %v3417 = vpop.f32.mrb[0].mxu0
      %v3418 = vadd.f32 0.0, %v3417
      %v3419 = vpop.f32.mrb[0].mxu0
      %3420 = vmatprep.mubr.f32.mxu0 0.0
      %3421 = vmatmul.mubr.f32.gmra.mrb[0].mxu0 %v3228
      %v3422 = vpop.f32.mrb[0].mxu0
      %v3423 = vadd.f32 0.0, %v3422
      %v3424 = vpop.f32.mrb[0].mxu0
      %3425 = vmatprep.mubr.f32.mxu0 0.0
      %3426 = vmatmul.mubr.f32.gmra.mrb[0].mxu0 %v3231
      %v3427 = vpop.f32.mrb[0].mxu0
      %v3428 = vadd.f32 0.0, %v3427
      %v3429 = vpop.f32.mrb[0].mxu0
      %3430 = vmatprep.mubr.f32.mxu0 0.0
      %3431 = vmatmul.mubr.f32.gmra.mrb[0].mxu0 %v3234
      %v3432 = vpop.f32.mrb[0].mxu0
      %v3433 = vadd.f32 0.0, %v3432
      %v3434 = vpop.f32.mrb[0].mxu0
      %3435 = vmatprep.mubr.f32.mxu0 0.0
      %3436 = vmatmul.mubr.f32.gmra.mrb[0].mxu0 %v3237
      %v3437 = vpop.f32.mrb[0].mxu0
      %v3438 = vadd.f32 0.0, %v3437
      %v3439 = vpop.f32.mrb[0].mxu0
      %3440 = vmatprep.mubr.f32.mxu0 0.0
      %3441 = vmatmul.mubr.f32.gmra.mrb[0].mxu0 %v3240
      %v3442 = vpop.f32.mrb[0].mxu0
      %v3443 = vadd.f32 0.0, %v3442
      %v3444 = vpop.f32.mrb[0].mxu0
      %3445 = vmatprep.mubr.f32.mxu0 0.0
      %3446 = vmatmul.mubr.f32.gmra.mrb[0].mxu0 %v3243
      %v3447 = vpop.f32.mrb[0].mxu0
      %v3448 = vadd.f32 0.0, %v3447
      %v3449 = vpop.f32.mrb[0].mxu0
      %3450 = vmatprep.mubr.f32.mxu0 0.0
      %3451 = vmatmul.mubr.f32.gmra.mrb[0].mxu0 %v3246
      %v3452 = vpop.f32.mrb[0].mxu0
      %v3453 = vadd.f32 0.0, %v3452
      %v3454 = vpop.f32.mrb[0].mxu0
      %3455 = vmatprep.mubr.f32.mxu0 0.0
      %3456 = vmatmul.mubr.f32.gmra.mrb[0].mxu0 %v3249
      %v3457 = vpop.f32.mrb[0].mxu0
      %v3458 = vadd.f32 0.0, %v3457
      %v3459 = vpop.f32.mrb[0].mxu0
      %3460 = vmatprep.mubr.f32.mxu0 0.0
      %3461 = vmatmul.mubr.f32.gmra.mrb[0].mxu0 %v3252
      %v3462 = vpop.f32.mrb[0].mxu0
      %v3463 = vadd.f32 0.0, %v3462
      %v3464 = vpop.f32.mrb[0].mxu0
      %3465 = vmatprep.mubr.f32.mxu0 0.0
      %3466 = vmatmul.mubr.f32.gmra.mrb[0].mxu0 %v3255
      %v3467 = vpop.f32.mrb[0].mxu0
      %v3468 = vadd.f32 0.0, %v3467
      %v3469 = vpop.f32.mrb[0].mxu0
      %3470 = vmatprep.mubr.f32.mxu0 0.0
      %3471 = vmatmul.mubr.f32.gmra.mrb[0].mxu0 %v3258
      %v3472 = vpop.f32.mrb[0].mxu0
      %v3473 = vadd.f32 0.0, %v3472
      %v3474 = vpop.f32.mrb[0].mxu0
      %3475 = vmatprep.mubr.f32.mxu0 0.0
      %3476 = vmatmul.mubr.f32.gmra.mrb[0].mxu0 %v3261
      %v3477 = vpop.f32.mrb[0].mxu0
      %v3478 = vadd.f32 0.0, %v3477
      %v3479 = vpop.f32.mrb[0].mxu0
      %3480 = vmatprep.mubr.f32.mxu0 0.0
      %3481 = vmatmul.mubr.f32.gmra.mrb[0].mxu0 %v3264
      %v3482 = vpop.f32.mrb[0].mxu0
      %v3483 = vadd.f32 0.0, %v3482
      %v3484 = vpop.f32.mrb[0].mxu0
      %3485 = vmatprep.mubr.f32.mxu0 0.0
      %3486 = vmatmul.mubr.f32.gmra.mrb[0].mxu0 %v3267
      %v3487 = vpop.f32.mrb[0].mxu0
      %v3488 = vadd.f32 0.0, %v3487
      %v3489 = vpop.f32.mrb[0].mxu0
      %3490 = vmatprep.mubr.f32.mxu0 0.0
      %3491 = vmatmul.mubr.f32.gmra.mrb[0].mxu0 %v3270
      %v3492 = vpop.f32.mrb[0].mxu0
      %v3493 = vadd.f32 0.0, %v3492
      %v3494 = vpop.f32.mrb[0].mxu0
      %3495 = vmatprep.mubr.f32.mxu0 0.0
      %3496 = vmatmul.mubr.f32.gmra.mrb[0].mxu0 %v3273
      %v3497 = vpop.f32.mrb[0].mxu0
      %v3498 = vadd.f32 0.0, %v3497
      %v3499 = vpop.f32.mrb[0].mxu0
      %3500 = vmatprep.mubr.f32.mxu0 0.0
      %3501 = vmatmul.mubr.f32.gmra.mrb[0].mxu0 %v3276
      %v3502 = vpop.f32.mrb[0].mxu0
      %v3503 = vadd.f32 0.0, %v3502
      %v3504 = vpop.f32.mrb[0].mxu0
      %3505 = vdwg.mxu0
      %v3506 = vadd.f32 %v3116, %v3348
      %v3507 = vadd.f32 %v3117, %v3353
      %v3508 = vadd.f32 %v3118, %v3358
      %v3509 = vadd.f32 %v3119, %v3363
      %v3510 = vadd.f32 %v3120, %v3368
      %v3511 = vadd.f32 %v3121, %v3373
      %v3512 = vadd.f32 %v3122, %v3378
      %v3513 = vadd.f32 %v3123, %v3383
      %v3514 = vadd.f32 %v3124, %v3388
      %v3515 = vadd.f32 %v3125, %v3393
      %v3516 = vadd.f32 %v3126, %v3398
      %v3517 = vadd.f32 %v3127, %v3403
      %v3518 = vadd.f32 %v3128, %v3408
      %v3519 = vadd.f32 %v3129, %v3413
      %v3520 = vadd.f32 %v3130, %v3418
      %v3521 = vadd.f32 %v3131, %v3423
      %v3522 = vadd.f32 %v3132, %v3428
      %v3523 = vadd.f32 %v3133, %v3433
      %v3524 = vadd.f32 %v3134, %v3438
      %v3525 = vadd.f32 %v3135, %v3443
      %v3526 = vadd.f32 %v3136, %v3448
      %v3527 = vadd.f32 %v3137, %v3453
      %v3528 = vadd.f32 %v3138, %v3458
      %v3529 = vadd.f32 %v3139, %v3463
      %v3530 = vadd.f32 %v3140, %v3468
      %v3531 = vadd.f32 %v3141, %v3473
      %v3532 = vadd.f32 %v3142, %v3478
      %v3533 = vadd.f32 %v3143, %v3483
      %v3534 = vadd.f32 %v3144, %v3488
      %v3535 = vadd.f32 %v3145, %v3493
      %v3536 = vadd.f32 %v3146, %v3498
      %v3537 = vadd.f32 %v3147, %v3503
      %v3538 = vld [vmem:[%s2757 + $0x2] sm:$0xff]
      %v3539 = vld [vmem:[%s2757 + $0xa] sm:$0xff]
      %v3540 = vld [vmem:[%s2757 + $0x1a] sm:$0xff]
      %v3541 = vld [vmem:[%s2757 + $0x22] sm:$0xff]
      %v3542 = vld [vmem:[%s2757 + $0x32] sm:$0xff]
      %v3543 = vld [vmem:[%s2757 + $0x3a] sm:$0xff]
      %v3544 = vld [vmem:[%s2757 + $0x4a] sm:$0xff]
      %v3545 = vld [vmem:[%s2757 + $0x52] sm:$0xff]
      %v3546 = vld [vmem:[%s2757 + $0x62] sm:$0xff]
      %v3547 = vld [vmem:[%s2757 + $0x6a] sm:$0xff]
      %v3548 = vld [vmem:[%s2757 + $0x7a] sm:$0xff]
      %v3549 = vld [vmem:[%s2757 + $0x82] sm:$0xff]
      %v3550 = vld [vmem:[%s2757 + $0x92] sm:$0xff]
      %v3551 = vld [vmem:[%s2757 + $0x9a] sm:$0xff]
      %v3552 = vld [vmem:[%s2757 + $0xaa] sm:$0xff]
      %v3553 = vld [vmem:[%s2757 + $0xb2] sm:$0xff]
      %v3554 = vld [vmem:[%s2757 + $0xc2] sm:$0xff]
      %v3555 = vld [vmem:[%s2757 + $0xca] sm:$0xff]
      %v3556 = vld [vmem:[%s2757 + $0xda] sm:$0xff]
      %v3557 = vld [vmem:[%s2757 + $0xe2] sm:$0xff]
      %v3558 = vld [vmem:[%s2757 + $0xf2] sm:$0xff]
      %v3559 = vld [vmem:[%s2757 + $0xfa] sm:$0xff]
      %v3560 = vld [vmem:[%s2757 + $0x10a] sm:$0xff]
      %v3561 = vld [vmem:[%s2757 + $0x112] sm:$0xff]
      %v3562 = vld [vmem:[%s2757 + $0x122] sm:$0xff]
      %v3563 = vld [vmem:[%s2757 + $0x12a] sm:$0xff]
      %v3564 = vld [vmem:[%s2757 + $0x13a] sm:$0xff]
      %v3565 = vld [vmem:[%s2757 + $0x142] sm:$0xff]
      %v3566 = vld [vmem:[%s2757 + $0x152] sm:$0xff]
      %v3567 = vld [vmem:[%s2757 + $0x15a] sm:$0xff]
      %v3568 = vld [vmem:[%s2757 + $0x16a] sm:$0xff]
      %v3569 = vld [vmem:[%s2757 + $0x172] sm:$0xff]
      %s3570 = scalar_lea.vmem %s1, 32
      %v3571 = vld [vmem:[%s3570] sm:$0xf]
      %v3573 = vsel %vm406, %v3538, 0
      %v3576 = vsel %vm406, %v3539, 0
      %v3579 = vsel %vm406, %v3540, 0
      %v3582 = vsel %vm406, %v3541, 0
      %v3585 = vsel %vm406, %v3542, 0
      %v3588 = vsel %vm406, %v3543, 0
      %v3591 = vsel %vm406, %v3544, 0
      %v3594 = vsel %vm406, %v3545, 0
      %v3597 = vsel %vm406, %v3546, 0
      %v3600 = vsel %vm406, %v3547, 0
      %v3603 = vsel %vm406, %v3548, 0
      %v3606 = vsel %vm406, %v3549, 0
      %v3609 = vsel %vm406, %v3550, 0
      %v3612 = vsel %vm406, %v3551, 0
      %v3615 = vsel %vm406, %v3552, 0
      %v3618 = vsel %vm406, %v3553, 0
      %v3621 = vsel %vm406, %v3554, 0
      %v3624 = vsel %vm406, %v3555, 0
      %v3627 = vsel %vm406, %v3556, 0
      %v3630 = vsel %vm406, %v3557, 0
      %v3633 = vsel %vm406, %v3558, 0
      %v3636 = vsel %vm406, %v3559, 0
      %v3639 = vsel %vm406, %v3560, 0
      %v3642 = vsel %vm406, %v3561, 0
      %v3645 = vsel %vm406, %v3562, 0
      %v3648 = vsel %vm406, %v3563, 0
      %v3651 = vsel %vm406, %v3564, 0
      %v3654 = vsel %vm406, %v3565, 0
      %v3657 = vsel %vm406, %v3566, 0
      %v3660 = vsel %vm406, %v3567, 0
      %v3663 = vsel %vm406, %v3568, 0
      %v3666 = vsel %vm406, %v3569, 0
      %v3669 = vsel %vm644, %v3571, 0
      %3671 = vmatprep.subr.mxu0 0.0
      %3672 = vmatpush1.msra.mxu0 %v3669
      %3673 = vmatprep.subr.mxu0 0.0
      %3674 = vmatpush1.msra.mxu0 0.0
      %3675 = vmatprep.subr.mxu0 0.0
      %3676 = vmatpush1.msra.mxu0 0.0
      %3677 = vmatprep.subr.mxu0 0.0
      %3678 = vmatpush1.msra.mxu0 0.0
      %3679 = vmatprep.subr.mxu0 0.0
      %3680 = vmatpush1.msra.mxu0 0.0
      %3681 = vmatprep.subr.mxu0 0.0
      %3682 = vmatpush1.msra.mxu0 0.0
      %3683 = vmatprep.subr.mxu0 0.0
      %3684 = vmatpush1.msra.mxu0 0.0
      %3685 = vmatprep.subr.mxu0 0.0
      %3686 = vmatpush1.msra.mxu0 0.0
      %3687 = vmatprep.subr.mxu0 0.0
      %3688 = vmatpush1.msra.mxu0 0.0
      %3689 = vmatprep.subr.mxu0 0.0
      %3690 = vmatpush1.msra.mxu0 0.0
      %3691 = vmatprep.subr.mxu0 0.0
      %3692 = vmatpush1.msra.mxu0 0.0
      %3693 = vmatprep.subr.mxu0 0.0
      %3694 = vmatpush1.msra.mxu0 0.0
      %3695 = vmatprep.subr.mxu0 0.0
      %3696 = vmatpush1.msra.mxu0 0.0
      %3697 = vmatprep.subr.mxu0 0.0
      %3698 = vmatpush1.msra.mxu0 0.0
      %3699 = vmatprep.subr.mxu0 0.0
      %3700 = vmatpush1.msra.mxu0 0.0
      %3701 = vmatprep.subr.mxu0 0.0
      %3702 = vmatpush1.msra.mxu0 0.0
      %3703 = vmatprep.subr.mxu0 0.0
      %3704 = vmatpush1.msra.mxu0 0.0
      %3705 = vmatprep.subr.mxu0 0.0
      %3706 = vmatpush1.msra.mxu0 0.0
      %3707 = vmatprep.subr.mxu0 0.0
      %3708 = vmatpush1.msra.mxu0 0.0
      %3709 = vmatprep.subr.mxu0 0.0
      %3710 = vmatpush1.msra.mxu0 0.0
      %3711 = vmatprep.subr.mxu0 0.0
      %3712 = vmatpush1.msra.mxu0 0.0
      %3713 = vmatprep.subr.mxu0 0.0
      %3714 = vmatpush1.msra.mxu0 0.0
      %3715 = vmatprep.subr.mxu0 0.0
      %3716 = vmatpush1.msra.mxu0 0.0
      %3717 = vmatprep.subr.mxu0 0.0
      %3718 = vmatpush1.msra.mxu0 0.0
      %3719 = vmatprep.subr.mxu0 0.0
      %3720 = vmatpush1.msra.mxu0 0.0
      %3721 = vmatprep.subr.mxu0 0.0
      %3722 = vmatpush1.msra.mxu0 0.0
      %3723 = vmatprep.subr.mxu0 0.0
      %3724 = vmatpush1.msra.mxu0 0.0
      %3725 = vmatprep.subr.mxu0 0.0
      %3726 = vmatpush1.msra.mxu0 0.0
      %3727 = vmatprep.subr.mxu0 0.0
      %3728 = vmatpush1.msra.mxu0 0.0
      %3729 = vmatprep.subr.mxu0 0.0
      %3730 = vmatpush1.msra.mxu0 0.0
      %3731 = vmatprep.subr.mxu0 0.0
      %3732 = vmatpush1.msra.mxu0 0.0
      %3733 = vmatprep.subr.mxu0 0.0
      %3734 = vmatpush1.msra.mxu0 0.0
      %3735 = vmatprep.mubr.f32.mxu0 0.0
      %3736 = vmatmul.mubr.f32.gmra.mrb[0].mxu0 %v3573
      %v3737 = vpop.f32.mrb[0].mxu0
      %v3738 = vadd.f32 0.0, %v3737
      %v3739 = vpop.f32.mrb[0].mxu0
      %3740 = vmatprep.mubr.f32.mxu0 0.0
      %3741 = vmatmul.mubr.f32.gmra.mrb[0].mxu0 %v3576
      %v3742 = vpop.f32.mrb[0].mxu0
      %v3743 = vadd.f32 0.0, %v3742
      %v3744 = vpop.f32.mrb[0].mxu0
      %3745 = vmatprep.mubr.f32.mxu0 0.0
      %3746 = vmatmul.mubr.f32.gmra.mrb[0].mxu0 %v3579
      %v3747 = vpop.f32.mrb[0].mxu0
      %v3748 = vadd.f32 0.0, %v3747
      %v3749 = vpop.f32.mrb[0].mxu0
      %3750 = vmatprep.mubr.f32.mxu0 0.0
      %3751 = vmatmul.mubr.f32.gmra.mrb[0].mxu0 %v3582
      %v3752 = vpop.f32.mrb[0].mxu0
      %v3753 = vadd.f32 0.0, %v3752
      %v3754 = vpop.f32.mrb[0].mxu0
      %3755 = vmatprep.mubr.f32.mxu0 0.0
      %3756 = vmatmul.mubr.f32.gmra.mrb[0].mxu0 %v3585
      %v3757 = vpop.f32.mrb[0].mxu0
      %v3758 = vadd.f32 0.0, %v3757
      %v3759 = vpop.f32.mrb[0].mxu0
      %3760 = vmatprep.mubr.f32.mxu0 0.0
      %3761 = vmatmul.mubr.f32.gmra.mrb[0].mxu0 %v3588
      %v3762 = vpop.f32.mrb[0].mxu0
      %v3763 = vadd.f32 0.0, %v3762
      %v3764 = vpop.f32.mrb[0].mxu0
      %3765 = vmatprep.mubr.f32.mxu0 0.0
      %3766 = vmatmul.mubr.f32.gmra.mrb[0].mxu0 %v3591
      %v3767 = vpop.f32.mrb[0].mxu0
      %v3768 = vadd.f32 0.0, %v3767
      %v3769 = vpop.f32.mrb[0].mxu0
      %3770 = vmatprep.mubr.f32.mxu0 0.0
      %3771 = vmatmul.mubr.f32.gmra.mrb[0].mxu0 %v3594
      %v3772 = vpop.f32.mrb[0].mxu0
      %v3773 = vadd.f32 0.0, %v3772
      %v3774 = vpop.f32.mrb[0].mxu0
      %3775 = vmatprep.mubr.f32.mxu0 0.0
      %3776 = vmatmul.mubr.f32.gmra.mrb[0].mxu0 %v3597
      %v3777 = vpop.f32.mrb[0].mxu0
      %v3778 = vadd.f32 0.0, %v3777
      %v3779 = vpop.f32.mrb[0].mxu0
      %3780 = vmatprep.mubr.f32.mxu0 0.0
      %3781 = vmatmul.mubr.f32.gmra.mrb[0].mxu0 %v3600
      %v3782 = vpop.f32.mrb[0].mxu0
      %v3783 = vadd.f32 0.0, %v3782
      %v3784 = vpop.f32.mrb[0].mxu0
      %3785 = vmatprep.mubr.f32.mxu0 0.0
      %3786 = vmatmul.mubr.f32.gmra.mrb[0].mxu0 %v3603
      %v3787 = vpop.f32.mrb[0].mxu0
      %v3788 = vadd.f32 0.0, %v3787
      %v3789 = vpop.f32.mrb[0].mxu0
      %3790 = vmatprep.mubr.f32.mxu0 0.0
      %3791 = vmatmul.mubr.f32.gmra.mrb[0].mxu0 %v3606
      %v3792 = vpop.f32.mrb[0].mxu0
      %v3793 = vadd.f32 0.0, %v3792
      %v3794 = vpop.f32.mrb[0].mxu0
      %3795 = vmatprep.mubr.f32.mxu0 0.0
      %3796 = vmatmul.mubr.f32.gmra.mrb[0].mxu0 %v3609
      %v3797 = vpop.f32.mrb[0].mxu0
      %v3798 = vadd.f32 0.0, %v3797
      %v3799 = vpop.f32.mrb[0].mxu0
      %3800 = vmatprep.mubr.f32.mxu0 0.0
      %3801 = vmatmul.mubr.f32.gmra.mrb[0].mxu0 %v3612
      %v3802 = vpop.f32.mrb[0].mxu0
      %v3803 = vadd.f32 0.0, %v3802
      %v3804 = vpop.f32.mrb[0].mxu0
      %3805 = vmatprep.mubr.f32.mxu0 0.0
      %3806 = vmatmul.mubr.f32.gmra.mrb[0].mxu0 %v3615
      %v3807 = vpop.f32.mrb[0].mxu0
      %v3808 = vadd.f32 0.0, %v3807
      %v3809 = vpop.f32.mrb[0].mxu0
      %3810 = vmatprep.mubr.f32.mxu0 0.0
      %3811 = vmatmul.mubr.f32.gmra.mrb[0].mxu0 %v3618
      %v3812 = vpop.f32.mrb[0].mxu0
      %v3813 = vadd.f32 0.0, %v3812
      %v3814 = vpop.f32.mrb[0].mxu0
      %3815 = vmatprep.mubr.f32.mxu0 0.0
      %3816 = vmatmul.mubr.f32.gmra.mrb[0].mxu0 %v3621
      %v3817 = vpop.f32.mrb[0].mxu0
      %v3818 = vadd.f32 0.0, %v3817
      %v3819 = vpop.f32.mrb[0].mxu0
      %3820 = vmatprep.mubr.f32.mxu0 0.0
      %3821 = vmatmul.mubr.f32.gmra.mrb[0].mxu0 %v3624
      %v3822 = vpop.f32.mrb[0].mxu0
      %v3823 = vadd.f32 0.0, %v3822
      %v3824 = vpop.f32.mrb[0].mxu0
      %3825 = vmatprep.mubr.f32.mxu0 0.0
      %3826 = vmatmul.mubr.f32.gmra.mrb[0].mxu0 %v3627
      %v3827 = vpop.f32.mrb[0].mxu0
      %v3828 = vadd.f32 0.0, %v3827
      %v3829 = vpop.f32.mrb[0].mxu0
      %3830 = vmatprep.mubr.f32.mxu0 0.0
      %3831 = vmatmul.mubr.f32.gmra.mrb[0].mxu0 %v3630
      %v3832 = vpop.f32.mrb[0].mxu0
      %v3833 = vadd.f32 0.0, %v3832
      %v3834 = vpop.f32.mrb[0].mxu0
      %3835 = vmatprep.mubr.f32.mxu0 0.0
      %3836 = vmatmul.mubr.f32.gmra.mrb[0].mxu0 %v3633
      %v3837 = vpop.f32.mrb[0].mxu0
      %v3838 = vadd.f32 0.0, %v3837
      %v3839 = vpop.f32.mrb[0].mxu0
      %3840 = vmatprep.mubr.f32.mxu0 0.0
      %3841 = vmatmul.mubr.f32.gmra.mrb[0].mxu0 %v3636
      %v3842 = vpop.f32.mrb[0].mxu0
      %v3843 = vadd.f32 0.0, %v3842
      %v3844 = vpop.f32.mrb[0].mxu0
      %3845 = vmatprep.mubr.f32.mxu0 0.0
      %3846 = vmatmul.mubr.f32.gmra.mrb[0].mxu0 %v3639
      %v3847 = vpop.f32.mrb[0].mxu0
      %v3848 = vadd.f32 0.0, %v3847
      %v3849 = vpop.f32.mrb[0].mxu0
      %3850 = vmatprep.mubr.f32.mxu0 0.0
      %3851 = vmatmul.mubr.f32.gmra.mrb[0].mxu0 %v3642
      %v3852 = vpop.f32.mrb[0].mxu0
      %v3853 = vadd.f32 0.0, %v3852
      %v3854 = vpop.f32.mrb[0].mxu0
      %3855 = vmatprep.mubr.f32.mxu0 0.0
      %3856 = vmatmul.mubr.f32.gmra.mrb[0].mxu0 %v3645
      %v3857 = vpop.f32.mrb[0].mxu0
      %v3858 = vadd.f32 0.0, %v3857
      %v3859 = vpop.f32.mrb[0].mxu0
      %3860 = vmatprep.mubr.f32.mxu0 0.0
      %3861 = vmatmul.mubr.f32.gmra.mrb[0].mxu0 %v3648
      %v3862 = vpop.f32.mrb[0].mxu0
      %v3863 = vadd.f32 0.0, %v3862
      %v3864 = vpop.f32.mrb[0].mxu0
      %3865 = vmatprep.mubr.f32.mxu0 0.0
      %3866 = vmatmul.mubr.f32.gmra.mrb[0].mxu0 %v3651
      %v3867 = vpop.f32.mrb[0].mxu0
      %v3868 = vadd.f32 0.0, %v3867
      %v3869 = vpop.f32.mrb[0].mxu0
      %3870 = vmatprep.mubr.f32.mxu0 0.0
      %3871 = vmatmul.mubr.f32.gmra.mrb[0].mxu0 %v3654
      %v3872 = vpop.f32.mrb[0].mxu0
      %v3873 = vadd.f32 0.0, %v3872
      %v3874 = vpop.f32.mrb[0].mxu0
      %3875 = vmatprep.mubr.f32.mxu0 0.0
      %3876 = vmatmul.mubr.f32.gmra.mrb[0].mxu0 %v3657
      %v3877 = vpop.f32.mrb[0].mxu0
      %v3878 = vadd.f32 0.0, %v3877
      %v3879 = vpop.f32.mrb[0].mxu0
      %3880 = vmatprep.mubr.f32.mxu0 0.0
      %3881 = vmatmul.mubr.f32.gmra.mrb[0].mxu0 %v3660
      %v3882 = vpop.f32.mrb[0].mxu0
      %v3883 = vadd.f32 0.0, %v3882
      %v3884 = vpop.f32.mrb[0].mxu0
      %3885 = vmatprep.mubr.f32.mxu0 0.0
      %3886 = vmatmul.mubr.f32.gmra.mrb[0].mxu0 %v3663
      %v3887 = vpop.f32.mrb[0].mxu0
      %v3888 = vadd.f32 0.0, %v3887
      %v3889 = vpop.f32.mrb[0].mxu0
      %3890 = vmatprep.mubr.f32.mxu0 0.0
      %3891 = vmatmul.mubr.f32.gmra.mrb[0].mxu0 %v3666
      %v3892 = vpop.f32.mrb[0].mxu0
      %v3893 = vadd.f32 0.0, %v3892
      %v3894 = vpop.f32.mrb[0].mxu0
      %3895 = vdwg.mxu0
      %v3896 = vadd.f32 %v3506, %v3738
      %v3897 = vadd.f32 %v3507, %v3743
      %v3898 = vadd.f32 %v3508, %v3748
      %v3899 = vadd.f32 %v3509, %v3753
      %v3900 = vadd.f32 %v3510, %v3758
      %v3901 = vadd.f32 %v3511, %v3763
      %v3902 = vadd.f32 %v3512, %v3768
      %v3903 = vadd.f32 %v3513, %v3773
      %v3904 = vadd.f32 %v3514, %v3778
      %v3905 = vadd.f32 %v3515, %v3783
      %v3906 = vadd.f32 %v3516, %v3788
      %v3907 = vadd.f32 %v3517, %v3793
      %v3908 = vadd.f32 %v3518, %v3798
      %v3909 = vadd.f32 %v3519, %v3803
      %v3910 = vadd.f32 %v3520, %v3808
      %v3911 = vadd.f32 %v3521, %v3813
      %v3912 = vadd.f32 %v3522, %v3818
      %v3913 = vadd.f32 %v3523, %v3823
      %v3914 = vadd.f32 %v3524, %v3828
      %v3915 = vadd.f32 %v3525, %v3833
      %v3916 = vadd.f32 %v3526, %v3838
      %v3917 = vadd.f32 %v3527, %v3843
      %v3918 = vadd.f32 %v3528, %v3848
      %v3919 = vadd.f32 %v3529, %v3853
      %v3920 = vadd.f32 %v3530, %v3858
      %v3921 = vadd.f32 %v3531, %v3863
      %v3922 = vadd.f32 %v3532, %v3868
      %v3923 = vadd.f32 %v3533, %v3873
      %v3924 = vadd.f32 %v3534, %v3878
      %v3925 = vadd.f32 %v3535, %v3883
      %v3926 = vadd.f32 %v3536, %v3888
      %v3927 = vadd.f32 %v3537, %v3893
      %v3928 = vld [vmem:[%s2] sm:$0x1]
      %v3930 = vlaneseq
      %v3931 = vshrl.u32 %v3930, 7
      %v3932 = vsub.s32 0, %v3931
      %v3933 = vrot.slane %v3928, %v3932
      %v3935 = vadd.f32 %v3896, %v3933
      %v3936 = vadd.f32 %v3897, %v3933
      %v3937 = vadd.f32 %v3898, %v3933
      %v3938 = vadd.f32 %v3899, %v3933
      %v3939 = vadd.f32 %v3900, %v3933
      %v3940 = vadd.f32 %v3901, %v3933
      %v3941 = vadd.f32 %v3902, %v3933
      %v3942 = vadd.f32 %v3903, %v3933
      %v3943 = vadd.f32 %v3904, %v3933
      %v3944 = vadd.f32 %v3905, %v3933
      %v3945 = vadd.f32 %v3906, %v3933
      %v3946 = vadd.f32 %v3907, %v3933
      %v3947 = vadd.f32 %v3908, %v3933
      %v3948 = vadd.f32 %v3909, %v3933
      %v3949 = vadd.f32 %v3910, %v3933
      %v3950 = vadd.f32 %v3911, %v3933
      %v3951 = vadd.f32 %v3912, %v3933
      %v3952 = vadd.f32 %v3913, %v3933
      %v3953 = vadd.f32 %v3914, %v3933
      %v3954 = vadd.f32 %v3915, %v3933
      %v3955 = vadd.f32 %v3916, %v3933
      %v3956 = vadd.f32 %v3917, %v3933
      %v3957 = vadd.f32 %v3918, %v3933
      %v3958 = vadd.f32 %v3919, %v3933
      %v3959 = vadd.f32 %v3920, %v3933
      %v3960 = vadd.f32 %v3921, %v3933
      %v3961 = vadd.f32 %v3922, %v3933
      %v3962 = vadd.f32 %v3923, %v3933
      %v3963 = vadd.f32 %v3924, %v3933
      %v3964 = vadd.f32 %v3925, %v3933
      %v3965 = vadd.f32 %v3926, %v3933
      %v3966 = vadd.f32 %v3927, %v3933
      %v3967 = vmax.f32 %v3935, 0.0
      %v3968 = vmax.f32 %v3936, 0.0
      %v3969 = vmax.f32 %v3937, 0.0
      %v3970 = vmax.f32 %v3938, 0.0
      %v3971 = vmax.f32 %v3939, 0.0
      %v3972 = vmax.f32 %v3940, 0.0
      %v3973 = vmax.f32 %v3941, 0.0
      %v3974 = vmax.f32 %v3942, 0.0
      %v3975 = vmax.f32 %v3943, 0.0
      %v3976 = vmax.f32 %v3944, 0.0
      %v3977 = vmax.f32 %v3945, 0.0
      %v3978 = vmax.f32 %v3946, 0.0
      %v3979 = vmax.f32 %v3947, 0.0
      %v3980 = vmax.f32 %v3948, 0.0
      %v3981 = vmax.f32 %v3949, 0.0
      %v3982 = vmax.f32 %v3950, 0.0
      %v3983 = vmax.f32 %v3951, 0.0
      %v3984 = vmax.f32 %v3952, 0.0
      %v3985 = vmax.f32 %v3953, 0.0
      %v3986 = vmax.f32 %v3954, 0.0
      %v3987 = vmax.f32 %v3955, 0.0
      %v3988 = vmax.f32 %v3956, 0.0
      %v3989 = vmax.f32 %v3957, 0.0
      %v3990 = vmax.f32 %v3958, 0.0
      %v3991 = vmax.f32 %v3959, 0.0
      %v3992 = vmax.f32 %v3960, 0.0
      %v3993 = vmax.f32 %v3961, 0.0
      %v3994 = vmax.f32 %v3962, 0.0
      %v3995 = vmax.f32 %v3963, 0.0
      %v3996 = vmax.f32 %v3964, 0.0
      %v3997 = vmax.f32 %v3965, 0.0
      %v3998 = vmax.f32 %v3966, 0.0
      %vm3999 = vcmask 64512
      %v4000 = vsel %vm3999, %v3967, 0.0
      %v4001 = vsel %vm3999, %v3968, 0.0
      %v4002 = vadd.f32 %v4000, %v4001
      %v4003 = vsel %vm3999, %v3969, 0.0
      %v4004 = vadd.f32 %v4002, %v4003
      %v4005 = vsel %vm3999, %v3970, 0.0
      %v4006 = vadd.f32 %v4004, %v4005
      %v4007 = vsel %vm3999, %v3971, 0.0
      %v4008 = vadd.f32 %v4006, %v4007
      %v4009 = vsel %vm3999, %v3972, 0.0
      %v4010 = vadd.f32 %v4008, %v4009
      %v4011 = vsel %vm3999, %v3973, 0.0
      %v4012 = vadd.f32 %v4010, %v4011
      %v4013 = vsel %vm3999, %v3974, 0.0
      %v4014 = vadd.f32 %v4012, %v4013
      %v4015 = vsel %vm3999, %v3975, 0.0
      %v4016 = vadd.f32 %v4014, %v4015
      %v4017 = vsel %vm3999, %v3976, 0.0
      %v4018 = vadd.f32 %v4016, %v4017
      %v4019 = vsel %vm3999, %v3977, 0.0
      %v4020 = vadd.f32 %v4018, %v4019
      %v4021 = vsel %vm3999, %v3978, 0.0
      %v4022 = vadd.f32 %v4020, %v4021
      %v4023 = vsel %vm3999, %v3979, 0.0
      %v4024 = vadd.f32 %v4022, %v4023
      %v4025 = vsel %vm3999, %v3980, 0.0
      %v4026 = vadd.f32 %v4024, %v4025
      %v4027 = vsel %vm3999, %v3981, 0.0
      %v4028 = vadd.f32 %v4026, %v4027
      %v4029 = vsel %vm3999, %v3982, 0.0
      %v4030 = vadd.f32 %v4028, %v4029
      %v4031 = vsel %vm3999, %v3983, 0.0
      %v4032 = vadd.f32 %v4030, %v4031
      %v4033 = vsel %vm3999, %v3984, 0.0
      %v4034 = vadd.f32 %v4032, %v4033
      %v4035 = vsel %vm3999, %v3985, 0.0
      %v4036 = vadd.f32 %v4034, %v4035
      %v4037 = vsel %vm3999, %v3986, 0.0
      %v4038 = vadd.f32 %v4036, %v4037
      %v4039 = vsel %vm3999, %v3987, 0.0
      %v4040 = vadd.f32 %v4038, %v4039
      %v4041 = vsel %vm3999, %v3988, 0.0
      %v4042 = vadd.f32 %v4040, %v4041
      %v4043 = vsel %vm3999, %v3989, 0.0
      %v4044 = vadd.f32 %v4042, %v4043
      %v4045 = vsel %vm3999, %v3990, 0.0
      %v4046 = vadd.f32 %v4044, %v4045
      %v4047 = vsel %vm3999, %v3991, 0.0
      %v4048 = vadd.f32 %v4046, %v4047
      %v4049 = vsel %vm3999, %v3992, 0.0
      %v4050 = vadd.f32 %v4048, %v4049
      %v4051 = vsel %vm3999, %v3993, 0.0
      %v4052 = vadd.f32 %v4050, %v4051
      %v4053 = vsel %vm3999, %v3994, 0.0
      %v4054 = vadd.f32 %v4052, %v4053
      %v4055 = vsel %vm3999, %v3995, 0.0
      %v4056 = vadd.f32 %v4054, %v4055
      %v4057 = vsel %vm3999, %v3996, 0.0
      %v4058 = vadd.f32 %v4056, %v4057
      %v4059 = vsel %vm3999, %v3997, 0.0
      %v4060 = vadd.f32 %v4058, %v4059
      %v4061 = vsel %vm3999, %v3998, 0.0
      %v4062 = vadd.f32 %v4060, %v4061
      %v4063 = vrot.slane %v4062, 4
      %v4064 = vadd.f32 %v4062, %v4063
      %v4065 = vrot.slane %v4064, 2
      %v4066 = vadd.f32 %v4064, %v4065
      %v4067 = vrot.slane %v4066, 1
      %v4068 = vadd.f32 %v4066, %v4067
      %vm4069 = vcmask 57344
      %4070 = vst.msk [vmem:[%s292] sm:$0x1] %vm4069, %v4068
      %v4071 = vmul.f32 %v3967, %v3967
      %v4072 = vmul.f32 %v3968, %v3968
      %v4073 = vmul.f32 %v3969, %v3969
      %v4074 = vmul.f32 %v3970, %v3970
      %v4075 = vmul.f32 %v3971, %v3971
      %v4076 = vmul.f32 %v3972, %v3972
      %v4077 = vmul.f32 %v3973, %v3973
      %v4078 = vmul.f32 %v3974, %v3974
      %v4079 = vmul.f32 %v3975, %v3975
      %v4080 = vmul.f32 %v3976, %v3976
      %v4081 = vmul.f32 %v3977, %v3977
      %v4082 = vmul.f32 %v3978, %v3978
      %v4083 = vmul.f32 %v3979, %v3979
      %v4084 = vmul.f32 %v3980, %v3980
      %v4085 = vmul.f32 %v3981, %v3981
      %v4086 = vmul.f32 %v3982, %v3982
      %v4087 = vmul.f32 %v3983, %v3983
      %v4088 = vmul.f32 %v3984, %v3984
      %v4089 = vmul.f32 %v3985, %v3985
      %v4090 = vmul.f32 %v3986, %v3986
      %v4091 = vmul.f32 %v3987, %v3987
      %v4092 = vmul.f32 %v3988, %v3988
      %v4093 = vmul.f32 %v3989, %v3989
      %v4094 = vmul.f32 %v3990, %v3990
      %v4095 = vmul.f32 %v3991, %v3991
      %v4096 = vmul.f32 %v3992, %v3992
      %v4097 = vmul.f32 %v3993, %v3993
      %v4098 = vmul.f32 %v3994, %v3994
      %v4099 = vmul.f32 %v3995, %v3995
      %v4100 = vmul.f32 %v3996, %v3996
      %v4101 = vmul.f32 %v3997, %v3997
      %v4102 = vmul.f32 %v3998, %v3998
      %v4103 = vsel %vm3999, %v4071, 0.0
      %v4104 = vsel %vm3999, %v4072, 0.0
      %v4105 = vadd.f32 %v4103, %v4104
      %v4106 = vsel %vm3999, %v4073, 0.0
      %v4107 = vadd.f32 %v4105, %v4106
      %v4108 = vsel %vm3999, %v4074, 0.0
      %v4109 = vadd.f32 %v4107, %v4108
      %v4110 = vsel %vm3999, %v4075, 0.0
      %v4111 = vadd.f32 %v4109, %v4110
      %v4112 = vsel %vm3999, %v4076, 0.0
      %v4113 = vadd.f32 %v4111, %v4112
      %v4114 = vsel %vm3999, %v4077, 0.0
      %v4115 = vadd.f32 %v4113, %v4114
      %v4116 = vsel %vm3999, %v4078, 0.0
      %v4117 = vadd.f32 %v4115, %v4116
      %v4118 = vsel %vm3999, %v4079, 0.0
      %v4119 = vadd.f32 %v4117, %v4118
      %v4120 = vsel %vm3999, %v4080, 0.0
      %v4121 = vadd.f32 %v4119, %v4120
      %v4122 = vsel %vm3999, %v4081, 0.0
      %v4123 = vadd.f32 %v4121, %v4122
      %v4124 = vsel %vm3999, %v4082, 0.0
      %v4125 = vadd.f32 %v4123, %v4124
      %v4126 = vsel %vm3999, %v4083, 0.0
      %v4127 = vadd.f32 %v4125, %v4126
      %v4128 = vsel %vm3999, %v4084, 0.0
      %v4129 = vadd.f32 %v4127, %v4128
      %v4130 = vsel %vm3999, %v4085, 0.0
      %v4131 = vadd.f32 %v4129, %v4130
      %v4132 = vsel %vm3999, %v4086, 0.0
      %v4133 = vadd.f32 %v4131, %v4132
      %v4134 = vsel %vm3999, %v4087, 0.0
      %v4135 = vadd.f32 %v4133, %v4134
      %v4136 = vsel %vm3999, %v4088, 0.0
      %v4137 = vadd.f32 %v4135, %v4136
      %v4138 = vsel %vm3999, %v4089, 0.0
      %v4139 = vadd.f32 %v4137, %v4138
      %v4140 = vsel %vm3999, %v4090, 0.0
      %v4141 = vadd.f32 %v4139, %v4140
      %v4142 = vsel %vm3999, %v4091, 0.0
      %v4143 = vadd.f32 %v4141, %v4142
      %v4144 = vsel %vm3999, %v4092, 0.0
      %v4145 = vadd.f32 %v4143, %v4144
      %v4146 = vsel %vm3999, %v4093, 0.0
      %v4147 = vadd.f32 %v4145, %v4146
      %v4148 = vsel %vm3999, %v4094, 0.0
      %v4149 = vadd.f32 %v4147, %v4148
      %v4150 = vsel %vm3999, %v4095, 0.0
      %v4151 = vadd.f32 %v4149, %v4150
      %v4152 = vsel %vm3999, %v4096, 0.0
      %v4153 = vadd.f32 %v4151, %v4152
      %v4154 = vsel %vm3999, %v4097, 0.0
      %v4155 = vadd.f32 %v4153, %v4154
      %v4156 = vsel %vm3999, %v4098, 0.0
      %v4157 = vadd.f32 %v4155, %v4156
      %v4158 = vsel %vm3999, %v4099, 0.0
      %v4159 = vadd.f32 %v4157, %v4158
      %v4160 = vsel %vm3999, %v4100, 0.0
      %v4161 = vadd.f32 %v4159, %v4160
      %v4162 = vsel %vm3999, %v4101, 0.0
      %v4163 = vadd.f32 %v4161, %v4162
      %v4164 = vsel %vm3999, %v4102, 0.0
      %v4165 = vadd.f32 %v4163, %v4164
      %v4166 = vrot.slane %v4165, 4
      %v4167 = vadd.f32 %v4165, %v4166
      %v4168 = vrot.slane %v4167, 2
      %v4169 = vadd.f32 %v4167, %v4168
      %v4170 = vrot.slane %v4169, 1
      %v4171 = vadd.f32 %v4169, %v4170
      %4172 = vst.msk [vmem:[%s295] sm:$0x1] %vm4069, %v4171
      %4173 = vst.msk [vmem:[%s289] sm:$0xff] %vm3999, %v3967
      %4174 = vst.msk [vmem:[%s289 + $0x8] sm:$0xff] %vm3999, %v3968
      %4175 = vst.msk [vmem:[%s289 + $0x10] sm:$0xff] %vm3999, %v3969
      %4176 = vst.msk [vmem:[%s289 + $0x18] sm:$0xff] %vm3999, %v3970
      %4177 = vst.msk [vmem:[%s289 + $0x20] sm:$0xff] %vm3999, %v3971
      %4178 = vst.msk [vmem:[%s289 + $0x28] sm:$0xff] %vm3999, %v3972
      %4179 = vst.msk [vmem:[%s289 + $0x30] sm:$0xff] %vm3999, %v3973
      %4180 = vst.msk [vmem:[%s289 + $0x38] sm:$0xff] %vm3999, %v3974
      %4181 = vst.msk [vmem:[%s289 + $0x40] sm:$0xff] %vm3999, %v3975
      %4182 = vst.msk [vmem:[%s289 + $0x48] sm:$0xff] %vm3999, %v3976
      %4183 = vst.msk [vmem:[%s289 + $0x50] sm:$0xff] %vm3999, %v3977
      %4184 = vst.msk [vmem:[%s289 + $0x58] sm:$0xff] %vm3999, %v3978
      %4185 = vst.msk [vmem:[%s289 + $0x60] sm:$0xff] %vm3999, %v3979
      %4186 = vst.msk [vmem:[%s289 + $0x68] sm:$0xff] %vm3999, %v3980
      %4187 = vst.msk [vmem:[%s289 + $0x70] sm:$0xff] %vm3999, %v3981
      %4188 = vst.msk [vmem:[%s289 + $0x78] sm:$0xff] %vm3999, %v3982
      %4189 = vst.msk [vmem:[%s289 + $0x80] sm:$0xff] %vm3999, %v3983
      %4190 = vst.msk [vmem:[%s289 + $0x88] sm:$0xff] %vm3999, %v3984
      %4191 = vst.msk [vmem:[%s289 + $0x90] sm:$0xff] %vm3999, %v3985
      %4192 = vst.msk [vmem:[%s289 + $0x98] sm:$0xff] %vm3999, %v3986
      %4193 = vst.msk [vmem:[%s289 + $0xa0] sm:$0xff] %vm3999, %v3987
      %4194 = vst.msk [vmem:[%s289 + $0xa8] sm:$0xff] %vm3999, %v3988
      %4195 = vst.msk [vmem:[%s289 + $0xb0] sm:$0xff] %vm3999, %v3989
      %4196 = vst.msk [vmem:[%s289 + $0xb8] sm:$0xff] %vm3999, %v3990
      %4197 = vst.msk [vmem:[%s289 + $0xc0] sm:$0xff] %vm3999, %v3991
      %4198 = vst.msk [vmem:[%s289 + $0xc8] sm:$0xff] %vm3999, %v3992
      %4199 = vst.msk [vmem:[%s289 + $0xd0] sm:$0xff] %vm3999, %v3993
      %4200 = vst.msk [vmem:[%s289 + $0xd8] sm:$0xff] %vm3999, %v3994
      %4201 = vst.msk [vmem:[%s289 + $0xe0] sm:$0xff] %vm3999, %v3995
      %4202 = vst.msk [vmem:[%s289 + $0xe8] sm:$0xff] %vm3999, %v3996
      %4203 = vst.msk [vmem:[%s289 + $0xf0] sm:$0xff] %vm3999, %v3997
      %4204 = vst.msk [vmem:[%s289 + $0xf8] sm:$0xff] %vm3999, %v3998
      %p4205 = scmp.lt.s32.totalorder %s19, 1
      %s4206 = scalar_select %p4205, %s19, 1
      %s4207 = smul.addr %s4206, 32
      %s4208 = smul.addr %s4207, 8
      %s4209 = scalar_lea.vmem %s5, %s4208
      %p4210 = scmp.lt.s32.totalorder %s19, 1
      %s4211 = scalar_select %p4210, %s19, 1
      %s4212 = scalar_lea.vmem %s6, %s4211
      %p4213 = scmp.lt.s32.totalorder %s19, 1
      %s4214 = scalar_select %p4213, %s19, 1
      %s4215 = scalar_lea.vmem %s7, %s4214
      // Predicated region
      $region41: #{conv_block_forward.3} parent=39 // pred_check
        %p4216 = pneg %p147
      $region42: #{conv_block_forward.3} parent=39 // pred_check_branch
        %4218 = sbr.rel (%p4216) target = $region44
      $region43: #{conv_block_forward.3} parent=39 // pred_region
        _
      $region44: #{conv_block_forward.3} parent=39 // pred_fallthru
        _
      // Predicated region
      $region45: #{conv_block_forward.3} parent=39 // pred_check
        %p4219 = pneg %p173
      $region46: #{conv_block_forward.3} parent=39 // pred_check_branch
        %4221 = sbr.rel (%p4219) target = $region48
      $region47: #{conv_block_forward.3} parent=39 // pred_region
        _
      $region48: #{conv_block_forward.3} parent=39 // pred_fallthru
        _
      // Predicated region
      $region49: #{conv_block_forward.3} parent=39 // pred_check
        %p4222 = pneg %p199
      $region50: #{conv_block_forward.3} parent=39 // pred_check_branch
        %4224 = sbr.rel (%p4222) target = $region52
      $region51: #{conv_block_forward.3} parent=39 // pred_region
        _
      $region52: #{conv_block_forward.3} parent=39 // pred_fallthru
        _
    $region40: #{conv_block_forward.3} parent=5 // pred_fallthru
      _
    %p4225 = scmp.le.s32.totalorder 2, %s14
    // Predicated region
    $region53: #{conv_block_forward.3} parent=5 // pred_check
      %p4226 = pneg %p4225
    $region54: #{conv_block_forward.3} parent=5 // pred_check_branch
      %4228 = sbr.rel (%p4226) target = $region56
    $region55: #{conv_block_forward.3} parent=5 // pred_region
      %s4229 = ssub.s32 %s14, 2
      // Predicated region
      $region57: #{conv_block_forward.3} parent=55 // pred_check
        %p4230 = pneg %p153
      $region58: #{conv_block_forward.3} parent=55 // pred_check_branch
        %4232 = sbr.rel (%p4230) target = $region60
      $region59: #{conv_block_forward.3} parent=55 // pred_region
        %p4233 = scmp.lt.s32.totalorder %s20, 1
        %s4234 = scalar_select %p4233, %s20, 1
        %s4235 = smul.addr %s4234, 32
        %s4236 = smul.addr %s4235, 8
        %s4237 = scalar_lea.vmem %s5, %s4236
      $region60: #{conv_block_forward.3} parent=55 // pred_fallthru
        _
      // Predicated region
      $region61: #{conv_block_forward.3} parent=55 // pred_check
        %p4238 = pneg %p179
      $region62: #{conv_block_forward.3} parent=55 // pred_check_branch
        %4240 = sbr.rel (%p4238) target = $region64
      $region63: #{conv_block_forward.3} parent=55 // pred_region
        %p4241 = scmp.lt.s32.totalorder %s20, 1
        %s4242 = scalar_select %p4241, %s20, 1
        %s4243 = scalar_lea.vmem %s6, %s4242
      $region64: #{conv_block_forward.3} parent=55 // pred_fallthru
        _
      // Predicated region
      $region65: #{conv_block_forward.3} parent=55 // pred_check
        %p4244 = pneg %p205
      $region66: #{conv_block_forward.3} parent=55 // pred_check_branch
        %4246 = sbr.rel (%p4244) target = $region68
      $region67: #{conv_block_forward.3} parent=55 // pred_region
        %p4247 = scmp.lt.s32.totalorder %s20, 1
        %s4248 = scalar_select %p4247, %s20, 1
        %s4249 = scalar_lea.vmem %s7, %s4248
      $region68: #{conv_block_forward.3} parent=55 // pred_fallthru
        _
    $region56: #{conv_block_forward.3} parent=5 // pred_fallthru
      _
  $region6: #{conv_block_forward.3} parent=0 // loop_footer
    %s18 = sadd.s32 1, %s14
  $region7: #{conv_block_forward.3} parent=0 // loop_footer_branch
    %13 = sbr.rel target = $region3
  $region8: #{conv_block_forward.3} parent=0 // loop_exit
    _

</llo_original>
